<compile_context>
chip_gen: v5e
topology: v5e:2x2
jax: 0.10.0
libtpu: 0.0.40
codegen_flags: <defaults>
</compile_context>

<pallas_src>
import functools

import jax
import jax.numpy as jnp
from jax.experimental import pallas as pl
from jax.experimental.pallas import tpu as pltpu


def _round_up(x, m):
    return ((x + m - 1) // m) * m


def _basic_block_kernel(x_ref, w1_ref, w2_ref, bn1s_ref, bn1b_ref, bn2b_ref,
                        out_ref, *scratch,
                        stride, equal_in_out, use_col1_slab):
    if use_col1_slab:
        pad1_ref, pad2_ref, col1_ref = scratch
    else:
        pad1_ref, pad2_ref = scratch
        col1_ref = None

    s = stride
    f32, bf16 = jnp.float32, jnp.bfloat16

    _, Ho, Wo, Cout = out_ref.shape
    PHp1, Wp1, Cin = pad1_ref.shape
    P = s * s
    Hp1 = PHp1 // P
    Hd = x_ref.shape[1] // P           # = H // s   (rows per parity plane)
    Wd = x_ref.shape[2]                # = W // s
    H, W = Hd * s, Wd * s

    # ---- bn1 + relu -> padded (parity-decomposed) conv1 input in bf16 ------
    bn1s = bn1s_ref[...].reshape(1, 1, Cin)
    bn1b = bn1b_ref[...].reshape(1, 1, Cin)
    for rp in range(s):
        for cp in range(s):
            p = rp * s + cp
            base = p * Hp1
            ro = 1 if rp == 0 else 0
            co = 1 if cp == 0 else 0
            # Re-zero only the 1-element border strips of this parity plane.
            # The interior is fully overwritten every grid step; doing this
            # unconditionally keeps the kernel megacore-safe ("parallel" axis).
            if rp == 0:
                pad1_ref[pl.ds(base, 1), :, :] = jnp.zeros((1, Wp1, Cin), bf16)
            if (H + 1 - rp) % s == 0:
                pad1_ref[pl.ds(base + Hp1 - 1, 1), :, :] = (
                    jnp.zeros((1, Wp1, Cin), bf16))
            if cp == 0:
                pad1_ref[pl.ds(base, Hp1), pl.ds(0, 1), :] = (
                    jnp.zeros((Hp1, 1, Cin), bf16))
            if (W + 1 - cp) % s == 0:
                pad1_ref[pl.ds(base, Hp1), pl.ds(Wp1 - 1, 1), :] = (
                    jnp.zeros((Hp1, 1, Cin), bf16))
            o_p = jnp.maximum(
                x_ref[0, pl.ds(p * Hd, Hd), :, :].astype(f32) * bn1s + bn1b,
                0.0)
            pad1_ref[pl.ds(base + ro, Hd), pl.ds(co, Wd), :] = o_p.astype(bf16)

    # ---- conv1 (3x3, stride s, pad 1) + fused 1x1 shortcut ------------------
    # Tap (ky, kx) of the padded input is a contiguous window of one parity
    # plane (stride handled by the space-to-depth split, no strided reads).
    def tap1(ky, kx):
        p = (ky % s) * s + (kx % s)
        return pad1_ref[pl.ds(p * Hp1 + ky // s, Ho), pl.ds(kx // s, Wo), :]

    if use_col1_slab:
        # One big-K im2col matmul (per-tap K = Cin_p < 256).
        for ky in range(3):
            for kx in range(3):
                t = ky * 3 + kx
                col1_ref[:, pl.ds(t * Cin, Cin)] = (
                    tap1(ky, kx).reshape(Ho * Wo, Cin))
        y_cat = jnp.dot(col1_ref[...], w1_ref[...],
                        preferred_element_type=f32)          # (Ho*Wo, NC)
    else:
        # Per-tap K is already MXU-efficient: 9 accumulating dots, no slab.
        y_cat = None
        for ky in range(3):
            for kx in range(3):
                t = ky * 3 + kx
                part = jnp.dot(tap1(ky, kx).reshape(Ho * Wo, Cin),
                               w1_ref[pl.ds(t * Cin, Cin), :],
                               preferred_element_type=f32)
                y_cat = part if y_cat is None else y_cat + part

    # bn2 scale is folded into w1's output columns in the wrapper; only the
    # bias add + ReLU run on the VPU here.
    y = jnp.maximum(y_cat[:, :Cout] + bn2b_ref[...], 0.0)    # f32 (Ho*Wo,Cout)

    # TODO(synk): F.dropout (droprate>0, training mode) not implemented.

    # ---- conv2 (3x3, stride 1, pad 1): 9 accumulating taps from bf16 pad2 ---
    Hp2, Wp2 = Ho + 2, Wo + 2
    pad2_ref[pl.ds(0, 1), :, :] = jnp.zeros((1, Wp2, Cout), bf16)
    pad2_ref[pl.ds(Hp2 - 1, 1), :, :] = jnp.zeros((1, Wp2, Cout), bf16)
    pad2_ref[:, pl.ds(0, 1), :] = jnp.zeros((Hp2, 1, Cout), bf16)
    pad2_ref[:, pl.ds(Wp2 - 1, 1), :] = jnp.zeros((Hp2, 1, Cout), bf16)
    pad2_ref[pl.ds(1, Ho), pl.ds(1, Wo), :] = (
        y.reshape(Ho, Wo, Cout).astype(bf16))

    # Shortcut initialises the accumulator: identity re-read from x_ref
    # (bounded live range) or the fused-1x1 half of the conv1 matmul.
    if equal_in_out:
        acc = x_ref[0].astype(f32).reshape(Ho * Wo, Cin)      # s == 1, Cin == Cout
    else:
        acc = y_cat[:, Cout:2 * Cout]

    for ky in range(3):
        for kx in range(3):
            t = ky * 3 + kx
            acc = acc + jnp.dot(
                pad2_ref[pl.ds(ky, Ho), pl.ds(kx, Wo), :].reshape(Ho * Wo, Cout),
                w2_ref[pl.ds(t * Cout, Cout), :],
                preferred_element_type=f32)

    out_ref[0] = acc.reshape(Ho, Wo, Cout).astype(out_ref.dtype)


def basic_block_forward(x_nhwc, w1_hwio, w2_hwio, ws_io,
                        bn1_scale, bn1_bias, bn2_scale, bn2_bias, *,
                        stride, out_dtype=jnp.bfloat16):
    """x: (N,H,W,Cin); w1: (3,3,Cin,Cout); w2: (3,3,Cout,Cout);
       ws_io: (Cin,Cout) or None (identity shortcut); bn*: folded scale/bias.
       Returns (N, Ho, Wo, Cout_p) in out_dtype (lane-dense, channel-padded);
       slice [..., :Cout] to recover the torch layout."""
    N, H, W, Cin = x_nhwc.shape
    Cout = w1_hwio.shape[-1]
    s = int(stride)
    equal_in_out = (Cin == Cout)
    assert s in (1, 2), "only stride 1 / 2 are used by WRN"
    assert (ws_io is None) == equal_in_out
    if equal_in_out:
        assert s == 1, "identity shortcut requires stride == 1"
    assert H % s == 0 and W % s == 0
    Ho = (H - 1) // s + 1
    Wo = (W - 1) // s + 1

    LANES = 128
    Cin_p = _round_up(Cin, LANES)
    Cout_p = _round_up(Cout, LANES)
    f32, bf16 = jnp.float32, jnp.bfloat16

    def padc(a, axis, new):
        pad = [(0, 0)] * a.ndim
        pad[axis] = (0, new - a.shape[axis])
        return jnp.pad(a.astype(f32), pad)

    # ---- input: channel pad -> bf16; space-to-depth parity split for s>1 ----
    xp = padc(x_nhwc, 3, Cin_p).astype(bf16)                  # (N,H,W,Cin_p)
    if s > 1:
        planes = []
        for rp in range(s):
            for cp in range(s):
                planes.append(xp[:, (rp - 1) % s::s, (cp - 1) % s::s, :])
        x_in = jnp.concatenate(planes, axis=1)                # (N, P*Hd, Wd, Cin_p)
    else:
        x_in = xp
    P = s * s
    Hd, Wd = H // s, W // s
    Hp1 = (H + 1) // s + 1
    Wp1 = (W + 1) // s + 1

    # ---- conv1 weights: im2col layout, bn2 scale folded into output columns,
    #      1x1 shortcut fused into extra output columns (centre-tap rows) -----
    s2 = jnp.pad(bn2_scale.reshape(-1).astype(f32), (0, Cout_p - Cout))
    w1p = padc(padc(w1_hwio, 2, Cin_p), 3, Cout_p) * s2.reshape(1, 1, 1, Cout_p)
    w1p = w1p.reshape(9 * Cin_p, Cout_p)
    if not equal_in_out:
        wsp = padc(padc(ws_io, 0, Cin_p), 1, Cout_p)          # (Cin_p, Cout_p)
        sc_cols = jnp.zeros((9, Cin_p, Cout_p), f32).at[4].set(wsp)
        w1p = jnp.concatenate([w1p, sc_cols.reshape(9 * Cin_p, Cout_p)], axis=1)
    w1p = w1p.astype(bf16)                                    # (9*Cin_p, NC)
    NC = w1p.shape[1]

    w2p = padc(padc(w2_hwio, 2, Cout_p), 3, Cout_p)
    w2p = w2p.reshape(9 * Cout_p, Cout_p).astype(bf16)

    bn1s = jnp.pad(bn1_scale.reshape(-1).astype(f32), (0, Cin_p - Cin)).reshape(1, Cin_p)
    bn1b = jnp.pad(bn1_bias.reshape(-1).astype(f32), (0, Cin_p - Cin)).reshape(1, Cin_p)
    bn2b = jnp.pad(bn2_bias.reshape(-1).astype(f32), (0, Cout_p - Cout)).reshape(1, Cout_p)

    # Big-K im2col slab for conv1 only while the per-tap K is MXU-inefficient.
    use_col1_slab = Cin_p < 256

    scratch_shapes = [
        pltpu.VMEM((P * Hp1, Wp1, Cin_p), bf16),      # padded conv1 parity planes
        pltpu.VMEM((Ho + 2, Wo + 2, Cout_p), bf16),   # padded conv2 input
    ]
    if use_col1_slab:
        scratch_shapes.append(pltpu.VMEM((Ho * Wo, 9 * Cin_p), bf16))

    # VMEM footprint estimate -> scoped limit (weights are still double
    # buffered by the pipeline even though their index_map is constant).
    # TODO(synk): single-buffer the grid-invariant operands (pl.Buffered(1)).
    vmem_bytes = (
        2 * 2 * P * Hd * Wd * Cin_p                           # x block, bf16, 2 bufs
        + 2 * 2 * (9 * Cin_p * NC + 9 * Cout_p * Cout_p)      # weights, bf16, 2 bufs
        + 2 * 4 * (2 * Cin_p + Cout_p)                        # bn vectors
        + 2 * jnp.dtype(out_dtype).itemsize * Ho * Wo * Cout_p
        + 2 * (P * Hp1 * Wp1 * Cin_p + (Ho + 2) * (Wo + 2) * Cout_p)
        + (2 * Ho * Wo * 9 * Cin_p if use_col1_slab else 0))
    vmem_limit = int(min(96 * 1024 * 1024, max(2 * vmem_bytes, 16 * 1024 * 1024)))

    kernel = functools.partial(_basic_block_kernel, stride=s,
                               equal_in_out=equal_in_out,
                               use_col1_slab=use_col1_slab)

    # TODO(synk): add a second "parallel" grid axis over output-row tiles so
    #             both v7x TensorCores stay busy at batch size 1.
    out = pl.pallas_call(
        kernel,
        out_shape=jax.ShapeDtypeStruct((N, Ho, Wo, Cout_p), out_dtype),
        grid_spec=pltpu.PrefetchScalarGridSpec(
            num_scalar_prefetch=0,
            grid=(N,),                                        # one image per step
            in_specs=[
                pl.BlockSpec((1, P * Hd, Wd, Cin_p), lambda n: (n, 0, 0, 0)),
                pl.BlockSpec((9 * Cin_p, NC), lambda n: (0, 0)),
                pl.BlockSpec((9 * Cout_p, Cout_p), lambda n: (0, 0)),
                pl.BlockSpec((1, Cin_p), lambda n: (0, 0)),
                pl.BlockSpec((1, Cin_p), lambda n: (0, 0)),
                pl.BlockSpec((1, Cout_p), lambda n: (0, 0)),
            ],
            out_specs=pl.BlockSpec((1, Ho, Wo, Cout_p), lambda n: (n, 0, 0, 0)),
            scratch_shapes=scratch_shapes),
        compiler_params=pltpu.CompilerParams(
            dimension_semantics=("parallel",),
            vmem_limit_bytes=vmem_limit),
    )(x_in, w1p, w2p, bn1s, bn1b, bn2b)

    return out


def _reference_forward(x, w1, w2, ws, bn1_s, bn1_b, bn2_s, bn2_b,
                       stride, equal_in_out):
    """Pure-XLA reference mirroring the kernel's bf16 quantization points."""
    dn = ('NHWC', 'HWIO', 'NHWC')
    hp = jax.lax.Precision.HIGHEST

    def q(a):
        return a.astype(jnp.bfloat16).astype(jnp.float32)

    xq = q(x)
    o = q(jnp.maximum(xq * bn1_s.reshape(1, 1, 1, -1)
                      + bn1_b.reshape(1, 1, 1, -1), 0.0))
    w1f = q(w1 * bn2_s.reshape(1, 1, 1, -1))          # bn2 scale folded like the kernel
    y = jax.lax.conv_general_dilated(o, w1f, (stride, stride), ((1, 1), (1, 1)),
                                     dimension_numbers=dn, precision=hp)
    y = q(jnp.maximum(y + bn2_b.reshape(1, 1, 1, -1), 0.0))
    y = jax.lax.conv_general_dilated(y, q(w2), (1, 1), ((1, 1), (1, 1)),
                                     dimension_numbers=dn, precision=hp)
    if equal_in_out:
        sc = xq
    else:
        ws4 = q(ws).reshape(1, 1, ws.shape[0], ws.shape[1])
        sc = jax.lax.conv_general_dilated(o, ws4, (stride, stride),
                                          ((0, 0), (0, 0)),
                                          dimension_numbers=dn, precision=hp)
    return sc + y


def _make_case(key, N, Cin, H, W, Cout):
    ks = jax.random.split(key, 12)
    f32 = jnp.float32
    x = jax.random.normal(ks[0], (N, H, W, Cin), f32)
    w1 = 0.1 * jax.random.normal(ks[1], (3, 3, Cin, Cout), f32)
    w2 = 0.1 * jax.random.normal(ks[2], (3, 3, Cout, Cout), f32)
    ws = None if Cin == Cout else 0.1 * jax.random.normal(ks[3], (Cin, Cout), f32)
    eps = 1e-5
    g1 = 1.0 + 0.1 * jax.random.normal(ks[4], (Cin,), f32)
    b1 = 0.1 * jax.random.normal(ks[5], (Cin,), f32)
    m1 = 0.1 * jax.random.normal(ks[6], (Cin,), f32)
    v1 = 0.5 + 0.5 * jnp.abs(jax.random.normal(ks[7], (Cin,), f32))
    g2 = 1.0 + 0.1 * jax.random.normal(ks[8], (Cout,), f32)
    b2 = 0.1 * jax.random.normal(ks[9], (Cout,), f32)
    m2 = 0.1 * jax.random.normal(ks[10], (Cout,), f32)
    v2 = 0.5 + 0.5 * jnp.abs(jax.random.normal(ks[11], (Cout,), f32))
    s1 = g1 / jnp.sqrt(v1 + eps)
    bb1 = b1 - m1 * s1
    s2 = g2 / jnp.sqrt(v2 + eps)
    bb2 = b2 - m2 * s2
    return x, w1, w2, ws, s1, bb1, s2, bb2


def _check_case(name, key, N, Cin, H, W, Cout, stride):
    x, w1, w2, ws, s1, b1, s2, b2 = _make_case(key, N, Cin, H, W, Cout)
    out = basic_block_forward(x, w1, w2, ws, s1, b1, s2, b2, stride=stride)
    out = jax.block_until_ready(out)

    Ho = (H - 1) // stride + 1
    Wo = (W - 1) // stride + 1
    Cout_p = _round_up(Cout, 128)
    assert out.shape == (N, Ho, Wo, Cout_p), (name, out.shape)

    ref = _reference_forward(x, w1, w2, ws, s1, b1, s2, b2,
                             stride, Cin == Cout)
    ref = jax.block_until_ready(ref)
    got = out[..., :Cout].astype(jnp.float32)
    max_diff = float(jnp.max(jnp.abs(got - ref)))
    assert jnp.allclose(got, ref, rtol=3e-2, atol=3e-2), \
        f"{name}: max abs diff = {max_diff}"


if __name__ == "__main__":
    root = jax.random.PRNGKey(0)
    k1, k2, k3, k4 = jax.random.split(root, 4)

    # (name, key, N, Cin, H, W, Cout, stride)
    cases = [
        ("conv-shortcut s=1", k1, 2, 4, 16, 16, 8, 1),    # equalInOut=False, fused 1x1
        ("identity     s=1", k2, 2, 8, 16, 16, 8, 1),     # equalInOut=True
        ("downsample   s=2", k3, 2, 8, 32, 32, 16, 2),    # WRN stage transition
        ("wide         s=1", k4, 1, 160, 16, 16, 160, 1), # per-tap conv1 path
    ]
    for case in cases:
        _check_case(*case)
    print("KERNEL_OK")
</pallas_src>

<mosaic_0001>
module attributes {stable_mosaic.version = 11 : i64} {
  func.func @_basic_block_kernel(%arg0: i32, %arg1: memref<1x16x16x128xbf16, #tpu.memory_space<vmem>>, %arg2: memref<1152x256xbf16, #tpu.memory_space<vmem>>, %arg3: memref<1152x128xbf16, #tpu.memory_space<vmem>>, %arg4: memref<1x128xf32, #tpu.memory_space<vmem>>, %arg5: memref<1x128xf32, #tpu.memory_space<vmem>>, %arg6: memref<1x128xf32, #tpu.memory_space<vmem>>, %arg7: memref<1x16x16x128xbf16, #tpu.memory_space<vmem>>, %arg8: memref<18x18x128xbf16, #tpu.memory_space<vmem>>, %arg9: memref<18x18x128xbf16, #tpu.memory_space<vmem>>, %arg10: memref<256x1152xbf16, #tpu.memory_space<vmem>>) attributes {dimension_semantics = [#tpu.dimension_semantics<parallel>], iteration_bounds = array<i64: 2>, scalar_prefetch = 0 : i64, scratch_operands = 3 : i64, tpu.core_type = #tpu.core_type<tc>, window_params = [{transform_indices = @transform_0, window_bounds = array<i64: 1, 16, 16, 128>}, {pipeline_mode = #tpu.pipeline_mode<synchronous>, transform_indices = @transform_1, window_bounds = array<i64: 1152, 256>}, {pipeline_mode = #tpu.pipeline_mode<synchronous>, transform_indices = @transform_2, window_bounds = array<i64: 1152, 128>}, {pipeline_mode = #tpu.pipeline_mode<synchronous>, transform_indices = @transform_3, window_bounds = array<i64: 1, 128>}, {pipeline_mode = #tpu.pipeline_mode<synchronous>, transform_indices = @transform_4, window_bounds = array<i64: 1, 128>}, {pipeline_mode = #tpu.pipeline_mode<synchronous>, transform_indices = @transform_5, window_bounds = array<i64: 1, 128>}, {transform_indices = @transform_6, window_bounds = array<i64: 1, 16, 16, 128>}]} {
    %c0 = arith.constant 0 : index
    %c0_0 = arith.constant 0 : index
    %0 = vector.load %arg4[%c0, %c0_0] : memref<1x128xf32, #tpu.memory_space<vmem>>, vector<1x128xf32>
    %1 = vector.shape_cast %0 : vector<1x128xf32> to vector<1x1x128xf32>
    %c0_1 = arith.constant 0 : index
    %c0_2 = arith.constant 0 : index
    %2 = vector.load %arg5[%c0_1, %c0_2] : memref<1x128xf32, #tpu.memory_space<vmem>>, vector<1x128xf32>
    %3 = vector.shape_cast %2 : vector<1x128xf32> to vector<1x1x128xf32>
    %cst = arith.constant 0.000000e+00 : bf16
    %4 = vector.broadcast %cst : bf16 to vector<1x18x128xbf16>
    %c0_3 = arith.constant 0 : index
    %c0_4 = arith.constant 0 : index
    %c0_5 = arith.constant 0 : index
    %5 = vector.load %arg8[%c0_3, %c0_4, %c0_5] : memref<18x18x128xbf16, #tpu.memory_space<vmem>>, vector<1x18x128xbf16>
    tpu.vector_store %arg8[%c0_3, %c0_4, %c0_5], %4 {strides = array<i32>} : memref<18x18x128xbf16, #tpu.memory_space<vmem>>, vector<1x18x128xbf16>,
    %cst_6 = arith.constant 0.000000e+00 : bf16
    %6 = vector.broadcast %cst_6 : bf16 to vector<1x18x128xbf16>
    %c17 = arith.constant 17 : index
    %c0_7 = arith.constant 0 : index
    %c0_8 = arith.constant 0 : index
    %7 = vector.load %arg8[%c17, %c0_7, %c0_8] : memref<18x18x128xbf16, #tpu.memory_space<vmem>>, vector<1x18x128xbf16>
    tpu.vector_store %arg8[%c17, %c0_7, %c0_8], %6 {strides = array<i32>} : memref<18x18x128xbf16, #tpu.memory_space<vmem>>, vector<1x18x128xbf16>,
    %cst_9 = arith.constant 0.000000e+00 : bf16
    %8 = vector.broadcast %cst_9 : bf16 to vector<18x1x128xbf16>
    %c0_10 = arith.constant 0 : index
    %c0_11 = arith.constant 0 : index
    %c0_12 = arith.constant 0 : index
    %9 = vector.load %arg8[%c0_10, %c0_11, %c0_12] : memref<18x18x128xbf16, #tpu.memory_space<vmem>>, vector<18x1x128xbf16>
    tpu.vector_store %arg8[%c0_10, %c0_11, %c0_12], %8 {strides = array<i32>} : memref<18x18x128xbf16, #tpu.memory_space<vmem>>, vector<18x1x128xbf16>,
    %cst_13 = arith.constant 0.000000e+00 : bf16
    %10 = vector.broadcast %cst_13 : bf16 to vector<18x1x128xbf16>
    %c0_14 = arith.constant 0 : index
    %c17_15 = arith.constant 17 : index
    %c0_16 = arith.constant 0 : index
    %11 = vector.load %arg8[%c0_14, %c17_15, %c0_16] : memref<18x18x128xbf16, #tpu.memory_space<vmem>>, vector<18x1x128xbf16>
    tpu.vector_store %arg8[%c0_14, %c17_15, %c0_16], %10 {strides = array<i32>} : memref<18x18x128xbf16, #tpu.memory_space<vmem>>, vector<18x1x128xbf16>,
    %c0_17 = arith.constant 0 : index
    %c0_18 = arith.constant 0 : index
    %c0_19 = arith.constant 0 : index
    %c0_20 = arith.constant 0 : index
    %12 = vector.load %arg1[%c0_17, %c0_18, %c0_19, %c0_20] : memref<1x16x16x128xbf16, #tpu.memory_space<vmem>>, vector<1x16x16x128xbf16>
    %13 = vector.shape_cast %12 : vector<1x16x16x128xbf16> to vector<16x16x128xbf16>
    %14 = arith.extf %13 : vector<16x16x128xbf16> to vector<16x16x128xf32>
    %15 = vector.broadcast %1 : vector<1x1x128xf32> to vector<16x16x128xf32>
    %16 = arith.mulf %14, %15 : vector<16x16x128xf32>
    %17 = vector.broadcast %3 : vector<1x1x128xf32> to vector<16x16x128xf32>
    %18 = arith.addf %16, %17 : vector<16x16x128xf32>
    %cst_21 = arith.constant 0.000000e+00 : f32
    %19 = vector.broadcast %cst_21 : f32 to vector<16x16x128xf32>
    %20 = arith.maximumf %18, %19 : vector<16x16x128xf32>
    %21 = arith.truncf %20 : vector<16x16x128xf32> to vector<16x16x128xbf16>
    %c1 = arith.constant 1 : index
    %c1_22 = arith.constant 1 : index
    %c0_23 = arith.constant 0 : index
    %22 = vector.load %arg8[%c1, %c1_22, %c0_23] : memref<18x18x128xbf16, #tpu.memory_space<vmem>>, vector<16x16x128xbf16>
    tpu.vector_store %arg8[%c1, %c1_22, %c0_23], %21 {strides = array<i32>} : memref<18x18x128xbf16, #tpu.memory_space<vmem>>, vector<16x16x128xbf16>,
    %c0_24 = arith.constant 0 : index
    %c0_25 = arith.constant 0 : index
    %c0_26 = arith.constant 0 : index
    %23 = vector.load %arg8[%c0_24, %c0_25, %c0_26] : memref<18x18x128xbf16, #tpu.memory_space<vmem>>, vector<16x16x128xbf16>
    %24 = vector.shape_cast %23 : vector<16x16x128xbf16> to vector<256x128xbf16>
    %c0_27 = arith.constant 0 : index
    %c0_28 = arith.constant 0 : index
    %25 = vector.load %arg10[%c0_27, %c0_28] : memref<256x1152xbf16, #tpu.memory_space<vmem>>, vector<256x128xbf16>
    tpu.vector_store %arg10[%c0_27, %c0_28], %24 {strides = array<i32>} : memref<256x1152xbf16, #tpu.memory_space<vmem>>, vector<256x128xbf16>,
    %c0_29 = arith.constant 0 : index
    %c1_30 = arith.constant 1 : index
    %c0_31 = arith.constant 0 : index
    %26 = vector.load %arg8[%c0_29, %c1_30, %c0_31] : memref<18x18x128xbf16, #tpu.memory_space<vmem>>, vector<16x16x128xbf16>
    %27 = vector.shape_cast %26 : vector<16x16x128xbf16> to vector<256x128xbf16>
    %c0_32 = arith.constant 0 : index
    %c128 = arith.constant 128 : index
    %28 = vector.load %arg10[%c0_32, %c128] : memref<256x1152xbf16, #tpu.memory_space<vmem>>, vector<256x128xbf16>
    tpu.vector_store %arg10[%c0_32, %c128], %27 {strides = array<i32>} : memref<256x1152xbf16, #tpu.memory_space<vmem>>, vector<256x128xbf16>,
    %c0_33 = arith.constant 0 : index
    %c2 = arith.constant 2 : index
    %c0_34 = arith.constant 0 : index
    %29 = vector.load %arg8[%c0_33, %c2, %c0_34] : memref<18x18x128xbf16, #tpu.memory_space<vmem>>, vector<16x16x128xbf16>
    %30 = vector.shape_cast %29 : vector<16x16x128xbf16> to vector<256x128xbf16>
    %c0_35 = arith.constant 0 : index
    %c256 = arith.constant 256 : index
    %31 = vector.load %arg10[%c0_35, %c256] : memref<256x1152xbf16, #tpu.memory_space<vmem>>, vector<256x128xbf16>
    tpu.vector_store %arg10[%c0_35, %c256], %30 {strides = array<i32>} : memref<256x1152xbf16, #tpu.memory_space<vmem>>, vector<256x128xbf16>,
    %c1_36 = arith.constant 1 : index
    %c0_37 = arith.constant 0 : index
    %c0_38 = arith.constant 0 : index
    %32 = vector.load %arg8[%c1_36, %c0_37, %c0_38] : memref<18x18x128xbf16, #tpu.memory_space<vmem>>, vector<16x16x128xbf16>
    %33 = vector.shape_cast %32 : vector<16x16x128xbf16> to vector<256x128xbf16>
    %c0_39 = arith.constant 0 : index
    %c384 = arith.constant 384 : index
    %34 = vector.load %arg10[%c0_39, %c384] : memref<256x1152xbf16, #tpu.memory_space<vmem>>, vector<256x128xbf16>
    tpu.vector_store %arg10[%c0_39, %c384], %33 {strides = array<i32>} : memref<256x1152xbf16, #tpu.memory_space<vmem>>, vector<256x128xbf16>,
    %c1_40 = arith.constant 1 : index
    %c1_41 = arith.constant 1 : index
    %c0_42 = arith.constant 0 : index
    %35 = vector.load %arg8[%c1_40, %c1_41, %c0_42] : memref<18x18x128xbf16, #tpu.memory_space<vmem>>, vector<16x16x128xbf16>
    %36 = vector.shape_cast %35 : vector<16x16x128xbf16> to vector<256x128xbf16>
    %c0_43 = arith.constant 0 : index
    %c512 = arith.constant 512 : index
    %37 = vector.load %arg10[%c0_43, %c512] : memref<256x1152xbf16, #tpu.memory_space<vmem>>, vector<256x128xbf16>
    tpu.vector_store %arg10[%c0_43, %c512], %36 {strides = array<i32>} : memref<256x1152xbf16, #tpu.memory_space<vmem>>, vector<256x128xbf16>,
    %c1_44 = arith.constant 1 : index
    %c2_45 = arith.constant 2 : index
    %c0_46 = arith.constant 0 : index
    %38 = vector.load %arg8[%c1_44, %c2_45, %c0_46] : memref<18x18x128xbf16, #tpu.memory_space<vmem>>, vector<16x16x128xbf16>
    %39 = vector.shape_cast %38 : vector<16x16x128xbf16> to vector<256x128xbf16>
    %c0_47 = arith.constant 0 : index
    %c640 = arith.constant 640 : index
    %40 = vector.load %arg10[%c0_47, %c640] : memref<256x1152xbf16, #tpu.memory_space<vmem>>, vector<256x128xbf16>
    tpu.vector_store %arg10[%c0_47, %c640], %39 {strides = array<i32>} : memref<256x1152xbf16, #tpu.memory_space<vmem>>, vector<256x128xbf16>,
    %c2_48 = arith.constant 2 : index
    %c0_49 = arith.constant 0 : index
    %c0_50 = arith.constant 0 : index
    %41 = vector.load %arg8[%c2_48, %c0_49, %c0_50] : memref<18x18x128xbf16, #tpu.memory_space<vmem>>, vector<16x16x128xbf16>
    %42 = vector.shape_cast %41 : vector<16x16x128xbf16> to vector<256x128xbf16>
    %c0_51 = arith.constant 0 : index
    %c768 = arith.constant 768 : index
    %43 = vector.load %arg10[%c0_51, %c768] : memref<256x1152xbf16, #tpu.memory_space<vmem>>, vector<256x128xbf16>
    tpu.vector_store %arg10[%c0_51, %c768], %42 {strides = array<i32>} : memref<256x1152xbf16, #tpu.memory_space<vmem>>, vector<256x128xbf16>,
    %c2_52 = arith.constant 2 : index
    %c1_53 = arith.constant 1 : index
    %c0_54 = arith.constant 0 : index
    %44 = vector.load %arg8[%c2_52, %c1_53, %c0_54] : memref<18x18x128xbf16, #tpu.memory_space<vmem>>, vector<16x16x128xbf16>
    %45 = vector.shape_cast %44 : vector<16x16x128xbf16> to vector<256x128xbf16>
    %c0_55 = arith.constant 0 : index
    %c896 = arith.constant 896 : index
    %46 = vector.load %arg10[%c0_55, %c896] : memref<256x1152xbf16, #tpu.memory_space<vmem>>, vector<256x128xbf16>
    tpu.vector_store %arg10[%c0_55, %c896], %45 {strides = array<i32>} : memref<256x1152xbf16, #tpu.memory_space<vmem>>, vector<256x128xbf16>,
    %c2_56 = arith.constant 2 : index
    %c2_57 = arith.constant 2 : index
    %c0_58 = arith.constant 0 : index
    %47 = vector.load %arg8[%c2_56, %c2_57, %c0_58] : memref<18x18x128xbf16, #tpu.memory_space<vmem>>, vector<16x16x128xbf16>
    %48 = vector.shape_cast %47 : vector<16x16x128xbf16> to vector<256x128xbf16>
    %c0_59 = arith.constant 0 : index
    %c1024 = arith.constant 1024 : index
    %49 = vector.load %arg10[%c0_59, %c1024] : memref<256x1152xbf16, #tpu.memory_space<vmem>>, vector<256x128xbf16>
    tpu.vector_store %arg10[%c0_59, %c1024], %48 {strides = array<i32>} : memref<256x1152xbf16, #tpu.memory_space<vmem>>, vector<256x128xbf16>,
    %c0_60 = arith.constant 0 : index
    %c0_61 = arith.constant 0 : index
    %50 = vector.load %arg10[%c0_60, %c0_61] : memref<256x1152xbf16, #tpu.memory_space<vmem>>, vector<256x1152xbf16>
    %c0_62 = arith.constant 0 : index
    %c0_63 = arith.constant 0 : index
    %51 = vector.load %arg2[%c0_62, %c0_63] : memref<1152x256xbf16, #tpu.memory_space<vmem>>, vector<1152x256xbf16>
    %cst_64 = arith.constant dense<0.000000e+00> : vector<256x256xf32>
    %52 = tpu.matmul %50, %51, %cst_64 {dimension_numbers = #tpu.dot_dimension_numbers<[1], [0], [0], [1], [0, 0, 1, 1], [], []>} : vector<256x1152xbf16>, vector<1152x256xbf16>, vector<256x256xf32> -> vector<256x256xf32>
    %53 = vector.extract_strided_slice %52 {offsets = [0, 0], sizes = [256, 128], strides = [1, 1]} : vector<256x256xf32> to vector<256x128xf32>
    %c0_65 = arith.constant 0 : index
    %c0_66 = arith.constant 0 : index
    %54 = vector.load %arg6[%c0_65, %c0_66] : memref<1x128xf32, #tpu.memory_space<vmem>>, vector<1x128xf32>
    %55 = vector.broadcast %54 : vector<1x128xf32> to vector<256x128xf32>
    %56 = arith.addf %53, %55 : vector<256x128xf32>
    %cst_67 = arith.constant 0.000000e+00 : f32
    %57 = vector.broadcast %cst_67 : f32 to vector<256x128xf32>
    %58 = arith.maximumf %56, %57 : vector<256x128xf32>
    %cst_68 = arith.constant 0.000000e+00 : bf16
    %59 = vector.broadcast %cst_68 : bf16 to vector<1x18x128xbf16>
    %c0_69 = arith.constant 0 : index
    %c0_70 = arith.constant 0 : index
    %c0_71 = arith.constant 0 : index
    %60 = vector.load %arg9[%c0_69, %c0_70, %c0_71] : memref<18x18x128xbf16, #tpu.memory_space<vmem>>, vector<1x18x128xbf16>
    tpu.vector_store %arg9[%c0_69, %c0_70, %c0_71], %59 {strides = array<i32>} : memref<18x18x128xbf16, #tpu.memory_space<vmem>>, vector<1x18x128xbf16>,
    %cst_72 = arith.constant 0.000000e+00 : bf16
    %61 = vector.broadcast %cst_72 : bf16 to vector<1x18x128xbf16>
    %c17_73 = arith.constant 17 : index
    %c0_74 = arith.constant 0 : index
    %c0_75 = arith.constant 0 : index
    %62 = vector.load %arg9[%c17_73, %c0_74, %c0_75] : memref<18x18x128xbf16, #tpu.memory_space<vmem>>, vector<1x18x128xbf16>
    tpu.vector_store %arg9[%c17_73, %c0_74, %c0_75], %61 {strides = array<i32>} : memref<18x18x128xbf16, #tpu.memory_space<vmem>>, vector<1x18x128xbf16>,
    %cst_76 = arith.constant 0.000000e+00 : bf16
    %63 = vector.broadcast %cst_76 : bf16 to vector<18x1x128xbf16>
    %c0_77 = arith.constant 0 : index
    %c0_78 = arith.constant 0 : index
    %c0_79 = arith.constant 0 : index
    %64 = vector.load %arg9[%c0_77, %c0_78, %c0_79] : memref<18x18x128xbf16, #tpu.memory_space<vmem>>, vector<18x1x128xbf16>
    tpu.vector_store %arg9[%c0_77, %c0_78, %c0_79], %63 {strides = array<i32>} : memref<18x18x128xbf16, #tpu.memory_space<vmem>>, vector<18x1x128xbf16>,
    %cst_80 = arith.constant 0.000000e+00 : bf16
    %65 = vector.broadcast %cst_80 : bf16 to vector<18x1x128xbf16>
    %c0_81 = arith.constant 0 : index
    %c17_82 = arith.constant 17 : index
    %c0_83 = arith.constant 0 : index
    %66 = vector.load %arg9[%c0_81, %c17_82, %c0_83] : memref<18x18x128xbf16, #tpu.memory_space<vmem>>, vector<18x1x128xbf16>
    tpu.vector_store %arg9[%c0_81, %c17_82, %c0_83], %65 {strides = array<i32>} : memref<18x18x128xbf16, #tpu.memory_space<vmem>>, vector<18x1x128xbf16>,
    %67 = vector.shape_cast %58 : vector<256x128xf32> to vector<16x16x128xf32>
    %68 = arith.truncf %67 : vector<16x16x128xf32> to vector<16x16x128xbf16>
    %c1_84 = arith.constant 1 : index
    %c1_85 = arith.constant 1 : index
    %c0_86 = arith.constant 0 : index
    %69 = vector.load %arg9[%c1_84, %c1_85, %c0_86] : memref<18x18x128xbf16, #tpu.memory_space<vmem>>, vector<16x16x128xbf16>
    tpu.vector_store %arg9[%c1_84, %c1_85, %c0_86], %68 {strides = array<i32>} : memref<18x18x128xbf16, #tpu.memory_space<vmem>>, vector<16x16x128xbf16>,
    %70 = vector.extract_strided_slice %52 {offsets = [0, 128], sizes = [256, 128], strides = [1, 1]} : vector<256x256xf32> to vector<256x128xf32>
    %c0_87 = arith.constant 0 : index
    %c0_88 = arith.constant 0 : index
    %c0_89 = arith.constant 0 : index
    %71 = vector.load %arg9[%c0_87, %c0_88, %c0_89] : memref<18x18x128xbf16, #tpu.memory_space<vmem>>, vector<16x16x128xbf16>
    %72 = vector.shape_cast %71 : vector<16x16x128xbf16> to vector<256x128xbf16>
    %c0_90 = arith.constant 0 : index
    %c0_91 = arith.constant 0 : index
    %73 = vector.load %arg3[%c0_90, %c0_91] : memref<1152x128xbf16, #tpu.memory_space<vmem>>, vector<128x128xbf16>
    %cst_92 = arith.constant dense<0.000000e+00> : vector<256x128xf32>
    %74 = tpu.matmul %72, %73, %cst_92 {dimension_numbers = #tpu.dot_dimension_numbers<[1], [0], [0], [1], [0, 0, 1, 1], [], []>} : vector<256x128xbf16>, vector<128x128xbf16>, vector<256x128xf32> -> vector<256x128xf32>
    %75 = arith.addf %70, %74 : vector<256x128xf32>
    %c0_93 = arith.constant 0 : index
    %c1_94 = arith.constant 1 : index
    %c0_95 = arith.constant 0 : index
    %76 = vector.load %arg9[%c0_93, %c1_94, %c0_95] : memref<18x18x128xbf16, #tpu.memory_space<vmem>>, vector<16x16x128xbf16>
    %77 = vector.shape_cast %76 : vector<16x16x128xbf16> to vector<256x128xbf16>
    %c128_96 = arith.constant 128 : index
    %c0_97 = arith.constant 0 : index
    %78 = vector.load %arg3[%c128_96, %c0_97] : memref<1152x128xbf16, #tpu.memory_space<vmem>>, vector<128x128xbf16>
    %cst_98 = arith.constant dense<0.000000e+00> : vector<256x128xf32>
    %79 = tpu.matmul %77, %78, %cst_98 {dimension_numbers = #tpu.dot_dimension_numbers<[1], [0], [0], [1], [0, 0, 1, 1], [], []>} : vector<256x128xbf16>, vector<128x128xbf16>, vector<256x128xf32> -> vector<256x128xf32>
    %80 = arith.addf %75, %79 : vector<256x128xf32>
    %c0_99 = arith.constant 0 : index
    %c2_100 = arith.constant 2 : index
    %c0_101 = arith.constant 0 : index
    %81 = vector.load %arg9[%c0_99, %c2_100, %c0_101] : memref<18x18x128xbf16, #tpu.memory_space<vmem>>, vector<16x16x128xbf16>
    %82 = vector.shape_cast %81 : vector<16x16x128xbf16> to vector<256x128xbf16>
    %c256_102 = arith.constant 256 : index
    %c0_103 = arith.constant 0 : index
    %83 = vector.load %arg3[%c256_102, %c0_103] : memref<1152x128xbf16, #tpu.memory_space<vmem>>, vector<128x128xbf16>
    %cst_104 = arith.constant dense<0.000000e+00> : vector<256x128xf32>
    %84 = tpu.matmul %82, %83, %cst_104 {dimension_numbers = #tpu.dot_dimension_numbers<[1], [0], [0], [1], [0, 0, 1, 1], [], []>} : vector<256x128xbf16>, vector<128x128xbf16>, vector<256x128xf32> -> vector<256x128xf32>
    %85 = arith.addf %80, %84 : vector<256x128xf32>
    %c1_105 = arith.constant 1 : index
    %c0_106 = arith.constant 0 : index
    %c0_107 = arith.constant 0 : index
    %86 = vector.load %arg9[%c1_105, %c0_106, %c0_107] : memref<18x18x128xbf16, #tpu.memory_space<vmem>>, vector<16x16x128xbf16>
    %87 = vector.shape_cast %86 : vector<16x16x128xbf16> to vector<256x128xbf16>
    %c384_108 = arith.constant 384 : index
    %c0_109 = arith.constant 0 : index
    %88 = vector.load %arg3[%c384_108, %c0_109] : memref<1152x128xbf16, #tpu.memory_space<vmem>>, vector<128x128xbf16>
    %cst_110 = arith.constant dense<0.000000e+00> : vector<256x128xf32>
    %89 = tpu.matmul %87, %88, %cst_110 {dimension_numbers = #tpu.dot_dimension_numbers<[1], [0], [0], [1], [0, 0, 1, 1], [], []>} : vector<256x128xbf16>, vector<128x128xbf16>, vector<256x128xf32> -> vector<256x128xf32>
    %90 = arith.addf %85, %89 : vector<256x128xf32>
    %c1_111 = arith.constant 1 : index
    %c1_112 = arith.constant 1 : index
    %c0_113 = arith.constant 0 : index
    %91 = vector.load %arg9[%c1_111, %c1_112, %c0_113] : memref<18x18x128xbf16, #tpu.memory_space<vmem>>, vector<16x16x128xbf16>
    %92 = vector.shape_cast %91 : vector<16x16x128xbf16> to vector<256x128xbf16>
    %c512_114 = arith.constant 512 : index
    %c0_115 = arith.constant 0 : index
    %93 = vector.load %arg3[%c512_114, %c0_115] : memref<1152x128xbf16, #tpu.memory_space<vmem>>, vector<128x128xbf16>
    %cst_116 = arith.constant dense<0.000000e+00> : vector<256x128xf32>
    %94 = tpu.matmul %92, %93, %cst_116 {dimension_numbers = #tpu.dot_dimension_numbers<[1], [0], [0], [1], [0, 0, 1, 1], [], []>} : vector<256x128xbf16>, vector<128x128xbf16>, vector<256x128xf32> -> vector<256x128xf32>
    %95 = arith.addf %90, %94 : vector<256x128xf32>
    %c1_117 = arith.constant 1 : index
    %c2_118 = arith.constant 2 : index
    %c0_119 = arith.constant 0 : index
    %96 = vector.load %arg9[%c1_117, %c2_118, %c0_119] : memref<18x18x128xbf16, #tpu.memory_space<vmem>>, vector<16x16x128xbf16>
    %97 = vector.shape_cast %96 : vector<16x16x128xbf16> to vector<256x128xbf16>
    %c640_120 = arith.constant 640 : index
    %c0_121 = arith.constant 0 : index
    %98 = vector.load %arg3[%c640_120, %c0_121] : memref<1152x128xbf16, #tpu.memory_space<vmem>>, vector<128x128xbf16>
    %cst_122 = arith.constant dense<0.000000e+00> : vector<256x128xf32>
    %99 = tpu.matmul %97, %98, %cst_122 {dimension_numbers = #tpu.dot_dimension_numbers<[1], [0], [0], [1], [0, 0, 1, 1], [], []>} : vector<256x128xbf16>, vector<128x128xbf16>, vector<256x128xf32> -> vector<256x128xf32>
    %100 = arith.addf %95, %99 : vector<256x128xf32>
    %c2_123 = arith.constant 2 : index
    %c0_124 = arith.constant 0 : index
    %c0_125 = arith.constant 0 : index
    %101 = vector.load %arg9[%c2_123, %c0_124, %c0_125] : memref<18x18x128xbf16, #tpu.memory_space<vmem>>, vector<16x16x128xbf16>
    %102 = vector.shape_cast %101 : vector<16x16x128xbf16> to vector<256x128xbf16>
    %c768_126 = arith.constant 768 : index
    %c0_127 = arith.constant 0 : index
    %103 = vector.load %arg3[%c768_126, %c0_127] : memref<1152x128xbf16, #tpu.memory_space<vmem>>, vector<128x128xbf16>
    %cst_128 = arith.constant dense<0.000000e+00> : vector<256x128xf32>
    %104 = tpu.matmul %102, %103, %cst_128 {dimension_numbers = #tpu.dot_dimension_numbers<[1], [0], [0], [1], [0, 0, 1, 1], [], []>} : vector<256x128xbf16>, vector<128x128xbf16>, vector<256x128xf32> -> vector<256x128xf32>
    %105 = arith.addf %100, %104 : vector<256x128xf32>
    %c2_129 = arith.constant 2 : index
    %c1_130 = arith.constant 1 : index
    %c0_131 = arith.constant 0 : index
    %106 = vector.load %arg9[%c2_129, %c1_130, %c0_131] : memref<18x18x128xbf16, #tpu.memory_space<vmem>>, vector<16x16x128xbf16>
    %107 = vector.shape_cast %106 : vector<16x16x128xbf16> to vector<256x128xbf16>
    %c896_132 = arith.constant 896 : index
    %c0_133 = arith.constant 0 : index
    %108 = vector.load %arg3[%c896_132, %c0_133] : memref<1152x128xbf16, #tpu.memory_space<vmem>>, vector<128x128xbf16>
    %cst_134 = arith.constant dense<0.000000e+00> : vector<256x128xf32>
    %109 = tpu.matmul %107, %108, %cst_134 {dimension_numbers = #tpu.dot_dimension_numbers<[1], [0], [0], [1], [0, 0, 1, 1], [], []>} : vector<256x128xbf16>, vector<128x128xbf16>, vector<256x128xf32> -> vector<256x128xf32>
    %110 = arith.addf %105, %109 : vector<256x128xf32>
    %c2_135 = arith.constant 2 : index
    %c2_136 = arith.constant 2 : index
    %c0_137 = arith.constant 0 : index
    %111 = vector.load %arg9[%c2_135, %c2_136, %c0_137] : memref<18x18x128xbf16, #tpu.memory_space<vmem>>, vector<16x16x128xbf16>
    %112 = vector.shape_cast %111 : vector<16x16x128xbf16> to vector<256x128xbf16>
    %c1024_138 = arith.constant 1024 : index
    %c0_139 = arith.constant 0 : index
    %113 = vector.load %arg3[%c1024_138, %c0_139] : memref<1152x128xbf16, #tpu.memory_space<vmem>>, vector<128x128xbf16>
    %cst_140 = arith.constant dense<0.000000e+00> : vector<256x128xf32>
    %114 = tpu.matmul %112, %113, %cst_140 {dimension_numbers = #tpu.dot_dimension_numbers<[1], [0], [0], [1], [0, 0, 1, 1], [], []>} : vector<256x128xbf16>, vector<128x128xbf16>, vector<256x128xf32> -> vector<256x128xf32>
    %115 = arith.addf %110, %114 : vector<256x128xf32>
    %116 = vector.shape_cast %115 : vector<256x128xf32> to vector<16x16x128xf32>
    %117 = arith.truncf %116 : vector<16x16x128xf32> to vector<16x16x128xbf16>
    %c0_141 = arith.constant 0 : index
    %c0_142 = arith.constant 0 : index
    %c0_143 = arith.constant 0 : index
    %c0_144 = arith.constant 0 : index
    %118 = vector.load %arg7[%c0_141, %c0_142, %c0_143, %c0_144] : memref<1x16x16x128xbf16, #tpu.memory_space<vmem>>, vector<1x16x16x128xbf16>
    %119 = vector.shape_cast %118 : vector<1x16x16x128xbf16> to vector<16x16x128xbf16>
    %120 = vector.shape_cast %117 : vector<16x16x128xbf16> to vector<1x16x16x128xbf16>
    tpu.vector_store %arg7[%c0_141, %c0_142, %c0_143, %c0_144], %120 {strides = array<i32>} : memref<1x16x16x128xbf16, #tpu.memory_space<vmem>>, vector<1x16x16x128xbf16>,
    return
  }
  func.func @transform_0(%arg0: i32) -> (i32, i32, i32, i32) {
    %c0_i32 = arith.constant 0 : i32
    %c0_i32_0 = arith.constant 0 : i32
    %c0_i32_1 = arith.constant 0 : i32
    %c0_i32_2 = arith.constant 0 : i32
    return %arg0, %c0_i32, %c0_i32_0, %c0_i32_1 : i32, i32, i32, i32
  }
  func.func @transform_1(%arg0: i32) -> (i32, i32) {
    %c0_i32 = arith.constant 0 : i32
    %c0_i32_0 = arith.constant 0 : i32
    %c0_i32_1 = arith.constant 0 : i32
    return %c0_i32, %c0_i32_0 : i32, i32
  }
  func.func @transform_2(%arg0: i32) -> (i32, i32) {
    %c0_i32 = arith.constant 0 : i32
    %c0_i32_0 = arith.constant 0 : i32
    %c0_i32_1 = arith.constant 0 : i32
    return %c0_i32, %c0_i32_0 : i32, i32
  }
  func.func @transform_3(%arg0: i32) -> (i32, i32) {
    %c0_i32 = arith.constant 0 : i32
    %c0_i32_0 = arith.constant 0 : i32
    %c0_i32_1 = arith.constant 0 : i32
    return %c0_i32, %c0_i32_0 : i32, i32
  }
  func.func @transform_4(%arg0: i32) -> (i32, i32) {
    %c0_i32 = arith.constant 0 : i32
    %c0_i32_0 = arith.constant 0 : i32
    %c0_i32_1 = arith.constant 0 : i32
    return %c0_i32, %c0_i32_0 : i32, i32
  }
  func.func @transform_5(%arg0: i32) -> (i32, i32) {
    %c0_i32 = arith.constant 0 : i32
    %c0_i32_0 = arith.constant 0 : i32
    %c0_i32_1 = arith.constant 0 : i32
    return %c0_i32, %c0_i32_0 : i32, i32
  }
  func.func @transform_6(%arg0: i32) -> (i32, i32, i32, i32) {
    %c0_i32 = arith.constant 0 : i32
    %c0_i32_0 = arith.constant 0 : i32
    %c0_i32_1 = arith.constant 0 : i32
    %c0_i32_2 = arith.constant 0 : i32
    return %arg0, %c0_i32, %c0_i32_0, %c0_i32_1 : i32, i32, i32, i32
  }
}

</mosaic_0001>

<llo_original>
// kernel: tpu_custom_call.1
$region0: #{tpu_custom_call.1}
  #allocation0 [shape = 'u32[]', space=smem, size = 0x4, offset = 0x4, fixed_abs, tag = 'smem constant byte address 0x4 - core index']
  #allocation1 [shape = 'u32[72,128]{1,0:T(1,128)}', space=vmem, size = 0x9000, scoped, tag = 'internal scratch']
  #allocation2 [shape = 'bf16[18,18,128]{2,1,0:T(8,128)(2,1)}', space=vmem, size = 0x1b000, scoped, tag = 'scratch operand']
  #allocation3 [shape = 'bf16[18,18,128]{2,1,0:T(8,128)(2,1)}', space=vmem, size = 0x1b000, scoped, tag = 'scratch operand']
  #allocation4 [shape = 'bf16[256,1152]{1,0:T(8,128)(2,1)}', space=vmem, size = 0x90000, scoped, tag = 'scratch operand']
  %s0 = inlined_call_operand.hbm [shape: bf16[2,16,16,128], index: 0, kind: input, shape index: {}]
  %s1 = inlined_call_operand.hbm [shape: bf16[1152,256], index: 1, kind: input, shape index: {}]
  %s2 = inlined_call_operand.hbm [shape: bf16[1152,128], index: 2, kind: input, shape index: {}]
  %s3 = inlined_call_operand.vmem [shape: f32[1,128], index: 3, kind: input, shape index: {}]
  %s4 = inlined_call_operand.vmem [shape: f32[1,128], index: 4, kind: input, shape index: {}]
  %s5 = inlined_call_operand.vmem [shape: f32[1,128], index: 5, kind: input, shape index: {}]
  %s6 = inlined_call_operand.hbm [shape: bf16[2,16,16,128], index: 6, kind: output, shape index: {}]
  %s7 = sld [smem:[#allocation0]]
  $region69: #{tpu_custom_call.1} parent=0
    _
  %s9 = ssub.s32 1, %s7
  %s10 = scalar_select 0, %s9, %s7
  $region1: #{tpu_custom_call.1} parent=0
    #allocation5 [shape = 'u8[131072]{0}', space=vmem, size = 0x20000, scoped, tag = 'input window, operand 0']
    #allocation6 [shape = 's32[2]{0}', space=sflag, size = 0x8, scoped, tag = 'scoped memory for tpu_custom_call.1']
    #allocation7 [shape = 's32[2]{0}', space=sflag, size = 0x8, scoped, tag = 'scoped memory for tpu_custom_call.1']
    #allocation8 [shape = 'u8[589824]{0}', space=vmem, size = 0x90000, scoped, tag = 'input window, operand 1, single buffered']
    #allocation9 [shape = 's32[1]{0}', space=sflag, size = 0x4, scoped, tag = 'scoped memory for tpu_custom_call.1']
    #allocation10 [shape = 'u8[294912]{0}', space=vmem, size = 0x48000, scoped, tag = 'input window, operand 2, single buffered']
    #allocation11 [shape = 'u8[131072]{0}', space=vmem, size = 0x20000, scoped, tag = 'output window, operand 0']
    %11 = vsyncpa [#allocation6], 0
    %s12 = scalar_lea.sflag [#allocation6], 1
    %13 = vsyncpa %s12, 0
    %14 = vsyncpa [#allocation9], 0
    %15 = vsyncpa [#allocation7], 0
    %s16 = scalar_lea.sflag [#allocation7], 1
    %17 = vsyncpa %s16, 0
    loop: start=0, step=1, limit=4
    $region2: #{tpu_custom_call.1} parent=1 // loop_pre_header
      _
    $region3: #{tpu_custom_call.1} parent=1 // loop_header
      %s19 = sphi 0, %s23
      %p20 = scmp.ge.s32.totalorder %s19, 4
      %s29 = sphi 0, %s31
      %s32 = sphi 0, %s29
      %s33 = sphi 0, %s32
      %s49 = sphi 0, %s33
      %s53 = sphi 0, %s53
      %s55 = sphi 0, %s53
      %s56 = sphi 0, %s55
      %s70 = sphi 0, %s56
      %s74 = sphi 0, %s74
      %s76 = sphi 0, %s74
      %s77 = sphi 0, %s76
      %s91 = sphi 0, %s77
      %s95 = sphi 0, %s95
      %s97 = sphi 0, %s95
      %s98 = sphi 0, %s97
      %s112 = sphi 0, %s98
      %s116 = sphi 0, %s116
      %s118 = sphi 0, %s116
      %s119 = sphi 0, %s118
      %s133 = sphi 0, %s119
      %s137 = sphi 0, %s137
      %s139 = sphi 0, %s137
      %s140 = sphi 0, %s139
      %s154 = sphi 0, %s140
      %s160 = sphi 0, %s162
      %s163 = sphi 0, %s160
      %s164 = sphi 0, %s163
      %s180 = sphi 0, %s164
    $region4: #{tpu_custom_call.1} parent=1 // loop_header_branch
      %22 = sbr.rel (%p20) target = $region8
    $region5: #{tpu_custom_call.1} parent=1 // loop_body
      %s24 = ssub.s32 %s19, 1
      %s25 = ssub.s32 %s19, 2
      %s26 = sadd.s32 %s19, 1
      %s27 = ssub.s32 %s19, %s26
      %p28 = scmp.eq.s32.totalorder %s27, 0
      %s30 = sadd.s32 %s29, 1
      %s31 = scalar_select %p28, %s29, %s30
      %p34 = pneg %p28
      %p35 = scmp.eq.s32.totalorder %s19, 1
      %p36 = por %p34, %p35
      %p37 = scmp.ne.s32.totalorder %s29, %s32
      %p38 = scmp.eq.s32.totalorder %s19, 0
      %p39 = por %p37, %p38
      %p40 = scmp.ne.s32.totalorder %s29, %s32
      %p41 = scmp.eq.s32.totalorder %s24, 1
      %p42 = por %p40, %p41
      %p43 = scmp.ne.s32.totalorder %s32, %s33
      %p44 = scmp.eq.s32.totalorder %s24, 0
      %p45 = por %p43, %p44
      %p46 = scmp.ne.s32.totalorder %s32, %s33
      %p47 = scmp.eq.s32.totalorder %s25, 1
      %p48 = por %p46, %p47
      %p50 = scmp.ne.s32.totalorder %s33, %s49
      %p51 = scmp.eq.s32.totalorder %s25, 0
      %p52 = por %p50, %p51
      %s54 = sadd.s32 %s53, 1
      %p57 = scmp.eq.s32.totalorder %s19, 1
      %p58 = scmp.ne.s32.totalorder %s53, %s55
      %p59 = scmp.eq.s32.totalorder %s19, 0
      %p60 = por %p58, %p59
      %p61 = scmp.ne.s32.totalorder %s53, %s55
      %p62 = scmp.eq.s32.totalorder %s24, 1
      %p63 = por %p61, %p62
      %p64 = scmp.ne.s32.totalorder %s55, %s56
      %p65 = scmp.eq.s32.totalorder %s24, 0
      %p66 = por %p64, %p65
      %p67 = scmp.ne.s32.totalorder %s55, %s56
      %p68 = scmp.eq.s32.totalorder %s25, 1
      %p69 = por %p67, %p68
      %p71 = scmp.ne.s32.totalorder %s56, %s70
      %p72 = scmp.eq.s32.totalorder %s25, 0
      %p73 = por %p71, %p72
      %s75 = sadd.s32 %s74, 1
      %p78 = scmp.eq.s32.totalorder %s19, 1
      %p79 = scmp.ne.s32.totalorder %s74, %s76
      %p80 = scmp.eq.s32.totalorder %s19, 0
      %p81 = por %p79, %p80
      %p82 = scmp.ne.s32.totalorder %s74, %s76
      %p83 = scmp.eq.s32.totalorder %s24, 1
      %p84 = por %p82, %p83
      %p85 = scmp.ne.s32.totalorder %s76, %s77
      %p86 = scmp.eq.s32.totalorder %s24, 0
      %p87 = por %p85, %p86
      %p88 = scmp.ne.s32.totalorder %s76, %s77
      %p89 = scmp.eq.s32.totalorder %s25, 1
      %p90 = por %p88, %p89
      %p92 = scmp.ne.s32.totalorder %s77, %s91
      %p93 = scmp.eq.s32.totalorder %s25, 0
      %p94 = por %p92, %p93
      %s96 = sadd.s32 %s95, 1
      %p99 = scmp.eq.s32.totalorder %s19, 1
      %p100 = scmp.ne.s32.totalorder %s95, %s97
      %p101 = scmp.eq.s32.totalorder %s19, 0
      %p102 = por %p100, %p101
      %p103 = scmp.ne.s32.totalorder %s95, %s97
      %p104 = scmp.eq.s32.totalorder %s24, 1
      %p105 = por %p103, %p104
      %p106 = scmp.ne.s32.totalorder %s97, %s98
      %p107 = scmp.eq.s32.totalorder %s24, 0
      %p108 = por %p106, %p107
      %p109 = scmp.ne.s32.totalorder %s97, %s98
      %p110 = scmp.eq.s32.totalorder %s25, 1
      %p111 = por %p109, %p110
      %p113 = scmp.ne.s32.totalorder %s98, %s112
      %p114 = scmp.eq.s32.totalorder %s25, 0
      %p115 = por %p113, %p114
      %s117 = sadd.s32 %s116, 1
      %p120 = scmp.eq.s32.totalorder %s19, 1
      %p121 = scmp.ne.s32.totalorder %s116, %s118
      %p122 = scmp.eq.s32.totalorder %s19, 0
      %p123 = por %p121, %p122
      %p124 = scmp.ne.s32.totalorder %s116, %s118
      %p125 = scmp.eq.s32.totalorder %s24, 1
      %p126 = por %p124, %p125
      %p127 = scmp.ne.s32.totalorder %s118, %s119
      %p128 = scmp.eq.s32.totalorder %s24, 0
      %p129 = por %p127, %p128
      %p130 = scmp.ne.s32.totalorder %s118, %s119
      %p131 = scmp.eq.s32.totalorder %s25, 1
      %p132 = por %p130, %p131
      %p134 = scmp.ne.s32.totalorder %s119, %s133
      %p135 = scmp.eq.s32.totalorder %s25, 0
      %p136 = por %p134, %p135
      %s138 = sadd.s32 %s137, 1
      %p141 = scmp.eq.s32.totalorder %s19, 1
      %p142 = scmp.ne.s32.totalorder %s137, %s139
      %p143 = scmp.eq.s32.totalorder %s19, 0
      %p144 = por %p142, %p143
      %p145 = scmp.ne.s32.totalorder %s137, %s139
      %p146 = scmp.eq.s32.totalorder %s24, 1
      %p147 = por %p145, %p146
      %p148 = scmp.ne.s32.totalorder %s139, %s140
      %p149 = scmp.eq.s32.totalorder %s24, 0
      %p150 = por %p148, %p149
      %p151 = scmp.ne.s32.totalorder %s139, %s140
      %p152 = scmp.eq.s32.totalorder %s25, 1
      %p153 = por %p151, %p152
      %p155 = scmp.ne.s32.totalorder %s140, %s154
      %p156 = scmp.eq.s32.totalorder %s25, 0
      %p157 = por %p155, %p156
      %s158 = ssub.s32 %s19, %s26
      %p159 = scmp.eq.s32.totalorder %s158, 0
      %s161 = sadd.s32 %s160, 1
      %s162 = scalar_select %p159, %s160, %s161
      %p165 = pneg %p159
      %p166 = scmp.eq.s32.totalorder %s19, 1
      %p167 = por %p165, %p166
      %p168 = scmp.ne.s32.totalorder %s160, %s163
      %p169 = scmp.eq.s32.totalorder %s19, 0
      %p170 = por %p168, %p169
      %p171 = scmp.ne.s32.totalorder %s160, %s163
      %p172 = scmp.eq.s32.totalorder %s24, 1
      %p173 = por %p171, %p172
      %p174 = scmp.ne.s32.totalorder %s163, %s164
      %p175 = scmp.eq.s32.totalorder %s24, 0
      %p176 = por %p174, %p175
      %p177 = scmp.ne.s32.totalorder %s163, %s164
      %p178 = scmp.eq.s32.totalorder %s25, 1
      %p179 = por %p177, %p178
      %p181 = scmp.ne.s32.totalorder %s164, %s180
      %p182 = scmp.eq.s32.totalorder %s25, 0
      %p183 = por %p181, %p182
      %p184 = scmp.le.s32.totalorder 1, %s19
      %p185 = scmp.lt.s32.totalorder %s19, 3
      %p186 = pnand %p184, %p185
      %p187 = pneg %p186
      // Predicated region
      $region9: #{tpu_custom_call.1} parent=5 // pred_check
        _
      $region10: #{tpu_custom_call.1} parent=5 // pred_check_branch
        %189 = sbr.rel (%p186) target = $region12
      $region11: #{tpu_custom_call.1} parent=5 // pred_region
        %s190 = ssub.s32 %s19, 1
        // Predicated region
        $region13: #{tpu_custom_call.1} parent=11 // pred_check
          %p191 = pneg %p66
        $region14: #{tpu_custom_call.1} parent=11 // pred_check_branch
          %193 = sbr.rel (%p191) target = $region16
        $region15: #{tpu_custom_call.1} parent=11 // pred_region
          %195 = vsyncadd [#allocation9], 0
          %s196 = sshll.u32 %s1, 4
          %s197 = int_to_ptr.hbm [resolvable:$true] %s196
          %s198 = sshll.u32 [#allocation8], 4
          %s199 = int_to_ptr.vmem [resolvable:$true] %s198
          %204 = dma.hbm_to_vmem [thread:$0]  %s197, 18432, %s199, [#allocation9], 128, 128, 8
        $region16: #{tpu_custom_call.1} parent=11 // pred_fallthru
          _
        // Predicated region
        $region17: #{tpu_custom_call.1} parent=11 // pred_check
          %p205 = pneg %p87
        $region18: #{tpu_custom_call.1} parent=11 // pred_check_branch
          %207 = sbr.rel (%p205) target = $region20
        $region19: #{tpu_custom_call.1} parent=11 // pred_region
          %209 = vsyncadd [#allocation9], 0
          %s210 = sshll.u32 %s2, 4
          %s211 = int_to_ptr.hbm [resolvable:$true] %s210
          %s212 = sshll.u32 [#allocation10], 4
          %s213 = int_to_ptr.vmem [resolvable:$true] %s212
          %218 = dma.hbm_to_vmem [thread:$0]  %s211, 9216, %s213, [#allocation9], 64, 64, 4
        $region20: #{tpu_custom_call.1} parent=11 // pred_fallthru
          _
        // Predicated region
        $region21: #{tpu_custom_call.1} parent=11 // pred_check
          %p219 = pneg %p108
        $region22: #{tpu_custom_call.1} parent=11 // pred_check_branch
          %221 = sbr.rel (%p219) target = $region24
        $region23: #{tpu_custom_call.1} parent=11 // pred_region
          _
        $region24: #{tpu_custom_call.1} parent=11 // pred_fallthru
          _
        // Predicated region
        $region25: #{tpu_custom_call.1} parent=11 // pred_check
          %p222 = pneg %p129
        $region26: #{tpu_custom_call.1} parent=11 // pred_check_branch
          %224 = sbr.rel (%p222) target = $region28
        $region27: #{tpu_custom_call.1} parent=11 // pred_region
          _
        $region28: #{tpu_custom_call.1} parent=11 // pred_fallthru
          _
        // Predicated region
        $region29: #{tpu_custom_call.1} parent=11 // pred_check
          %p225 = pneg %p150
        $region30: #{tpu_custom_call.1} parent=11 // pred_check_branch
          %227 = sbr.rel (%p225) target = $region32
        $region31: #{tpu_custom_call.1} parent=11 // pred_region
          _
        $region32: #{tpu_custom_call.1} parent=11 // pred_fallthru
          _
      $region12: #{tpu_custom_call.1} parent=5 // pred_fallthru
        _
      %p228 = scmp.lt.s32.totalorder %s19, 2
      // Predicated region
      $region33: #{tpu_custom_call.1} parent=5 // pred_check
        %p229 = pneg %p228
      $region34: #{tpu_custom_call.1} parent=5 // pred_check_branch
        %231 = sbr.rel (%p229) target = $region36
      $region35: #{tpu_custom_call.1} parent=5 // pred_region
        // Predicated region
        $region37: #{tpu_custom_call.1} parent=35 // pred_check
          %p232 = pneg %p39
        $region38: #{tpu_custom_call.1} parent=35 // pred_check_branch
          %234 = sbr.rel (%p232) target = $region40
        $region39: #{tpu_custom_call.1} parent=35 // pred_region
          %s235 = sand.u32 %s29, 1
          %s236 = scalar_lea.sflag [#allocation6], %s235
          %s237 = sand.u32 %s29, 1
          %s238 = smul.addr %s237, 128
          %s239 = scalar_lea.vmem [#allocation5], %s238
          %241 = vsyncadd %s236, 0
          %s242 = smul.addr %s19, 32
          %s243 = smul.addr %s242, 4
          %s244 = scalar_lea.hbm %s0, %s243
          %s245 = sshll.u32 %s244, 4
          %s246 = int_to_ptr.hbm [resolvable:$true] %s245
          %s247 = sshll.u32 %s239, 4
          %s248 = int_to_ptr.vmem [resolvable:$true] %s247
          %253 = dma.hbm_to_vmem [thread:$0]  %s246, 2048, %s248, %s236, 64, 64, 4
        $region40: #{tpu_custom_call.1} parent=35 // pred_fallthru
          _
      $region36: #{tpu_custom_call.1} parent=5 // pred_fallthru
        _
      %p254 = scmp.le.s32.totalorder 1, %s19
      %p255 = scmp.lt.s32.totalorder %s19, 3
      %p256 = pnand %p254, %p255
      %p257 = pneg %p256
      // Predicated region
      $region41: #{tpu_custom_call.1} parent=5 // pred_check
        _
      $region42: #{tpu_custom_call.1} parent=5 // pred_check_branch
        %259 = sbr.rel (%p256) target = $region44
      $region43: #{tpu_custom_call.1} parent=5 // pred_region
        %s260 = ssub.s32 %s19, 1
        %s261 = sand.u32 %s32, 1
        %s262 = scalar_lea.sflag [#allocation6], %s261
        %s263 = sand.u32 %s32, 1
        %s264 = smul.addr %s263, 128
        %s265 = scalar_lea.vmem [#allocation5], %s264
        // Predicated region
        $region45: #{tpu_custom_call.1} parent=43 // pred_check
          %p266 = pneg %p45
        $region46: #{tpu_custom_call.1} parent=43 // pred_check_branch
          %268 = sbr.rel (%p266) target = $region48
        $region47: #{tpu_custom_call.1} parent=43 // pred_region
          %270 = dma.done %s262, 2048
        $region48: #{tpu_custom_call.1} parent=43 // pred_fallthru
          _
        // Predicated region
        $region49: #{tpu_custom_call.1} parent=43 // pred_check
          %p271 = pneg %p66
        $region50: #{tpu_custom_call.1} parent=43 // pred_check_branch
          %273 = sbr.rel (%p271) target = $region52
        $region51: #{tpu_custom_call.1} parent=43 // pred_region
          %275 = dma.done [#allocation9], 18432
        $region52: #{tpu_custom_call.1} parent=43 // pred_fallthru
          _
        // Predicated region
        $region53: #{tpu_custom_call.1} parent=43 // pred_check
          %p276 = pneg %p87
        $region54: #{tpu_custom_call.1} parent=43 // pred_check_branch
          %278 = sbr.rel (%p276) target = $region56
        $region55: #{tpu_custom_call.1} parent=43 // pred_region
          %280 = dma.done [#allocation9], 9216
        $region56: #{tpu_custom_call.1} parent=43 // pred_fallthru
          _
        %s281 = sand.u32 %s32, 1
        %s282 = scalar_lea.sflag [#allocation6], %s281
        %s283 = sand.u32 %s32, 1
        %s284 = smul.addr %s283, 128
        %s285 = scalar_lea.vmem [#allocation5], %s284
        %p286 = pneg %p45
        %p287 = pneg %p42
        %p288 = pneg %p66
        %p289 = pneg %p63
        %p290 = pneg %p87
        %p291 = pneg %p84
        %p292 = pneg %p108
        %p293 = pneg %p105
        %p294 = pneg %p129
        %p295 = pneg %p126
        %p296 = pneg %p150
        %p297 = pneg %p147
        %p298 = pneg %p176
        %p299 = pneg %p173
        %s300 = sand.u32 %s163, 1
        %s301 = scalar_lea.sflag [#allocation7], %s300
        %s302 = sand.u32 %s163, 1
        %s303 = smul.addr %s302, 128
        %s304 = scalar_lea.vmem [#allocation11], %s303
        %v306 = vld [vmem:[%s3] sm:$0x1]
        %v307 = vld [vmem:[%s4] sm:$0x1]
        %308 = vst [vmem:[#allocation2] sm:$0xf] 0
        %309 = vst [vmem:[#allocation2 + $0x4] sm:$0xf] 0
        %310 = vst [vmem:[#allocation2 + $0x8] sm:$0x1] 0
        %s311 = scalar_lea.vmem [#allocation2], 204
        %312 = vst [vmem:[%s311] sm:$0xf] 0
        %313 = vst [vmem:[%s311 + $0x4] sm:$0xf] 0
        %314 = vst [vmem:[%s311 + $0x8] sm:$0x1] 0
        %vm315 = vcmask 1040384
        %vm316 = vsmask.f32 256
        %vm317 = vmand %vm315, %vm316
        %v318 = vld [vmem:[#allocation2] sm:$0x1]
        %v319 = vsel %vm317, 0, %v318
        %320 = vst [vmem:[#allocation2] sm:$0x1] %v319
        %v321 = vld [vmem:[#allocation2 + $0xc] sm:$0x1]
        %v322 = vsel %vm317, 0, %v321
        %323 = vst [vmem:[#allocation2 + $0xc] sm:$0x1] %v322
        %v324 = vld [vmem:[#allocation2 + $0x18] sm:$0x1]
        %v325 = vsel %vm317, 0, %v324
        %326 = vst [vmem:[#allocation2 + $0x18] sm:$0x1] %v325
        %v327 = vld [vmem:[#allocation2 + $0x24] sm:$0x1]
        %v328 = vsel %vm317, 0, %v327
        %329 = vst [vmem:[#allocation2 + $0x24] sm:$0x1] %v328
        %v330 = vld [vmem:[#allocation2 + $0x30] sm:$0x1]
        %v331 = vsel %vm317, 0, %v330
        %332 = vst [vmem:[#allocation2 + $0x30] sm:$0x1] %v331
        %v333 = vld [vmem:[#allocation2 + $0x3c] sm:$0x1]
        %v334 = vsel %vm317, 0, %v333
        %335 = vst [vmem:[#allocation2 + $0x3c] sm:$0x1] %v334
        %v336 = vld [vmem:[#allocation2 + $0x48] sm:$0x1]
        %v337 = vsel %vm317, 0, %v336
        %338 = vst [vmem:[#allocation2 + $0x48] sm:$0x1] %v337
        %v339 = vld [vmem:[#allocation2 + $0x54] sm:$0x1]
        %v340 = vsel %vm317, 0, %v339
        %341 = vst [vmem:[#allocation2 + $0x54] sm:$0x1] %v340
        %v342 = vld [vmem:[#allocation2 + $0x60] sm:$0x1]
        %v343 = vsel %vm317, 0, %v342
        %344 = vst [vmem:[#allocation2 + $0x60] sm:$0x1] %v343
        %v345 = vld [vmem:[#allocation2 + $0x6c] sm:$0x1]
        %v346 = vsel %vm317, 0, %v345
        %347 = vst [vmem:[#allocation2 + $0x6c] sm:$0x1] %v346
        %v348 = vld [vmem:[#allocation2 + $0x78] sm:$0x1]
        %v349 = vsel %vm317, 0, %v348
        %350 = vst [vmem:[#allocation2 + $0x78] sm:$0x1] %v349
        %v351 = vld [vmem:[#allocation2 + $0x84] sm:$0x1]
        %v352 = vsel %vm317, 0, %v351
        %353 = vst [vmem:[#allocation2 + $0x84] sm:$0x1] %v352
        %v354 = vld [vmem:[#allocation2 + $0x90] sm:$0x1]
        %v355 = vsel %vm317, 0, %v354
        %356 = vst [vmem:[#allocation2 + $0x90] sm:$0x1] %v355
        %v357 = vld [vmem:[#allocation2 + $0x9c] sm:$0x1]
        %v358 = vsel %vm317, 0, %v357
        %359 = vst [vmem:[#allocation2 + $0x9c] sm:$0x1] %v358
        %v360 = vld [vmem:[#allocation2 + $0xa8] sm:$0x1]
        %v361 = vsel %vm317, 0, %v360
        %362 = vst [vmem:[#allocation2 + $0xa8] sm:$0x1] %v361
        %v363 = vld [vmem:[#allocation2 + $0xb4] sm:$0x1]
        %v364 = vsel %vm317, 0, %v363
        %365 = vst [vmem:[#allocation2 + $0xb4] sm:$0x1] %v364
        %v366 = vld [vmem:[#allocation2 + $0xc0] sm:$0x1]
        %v367 = vsel %vm317, 0, %v366
        %368 = vst [vmem:[#allocation2 + $0xc0] sm:$0x1] %v367
        %v369 = vld [vmem:[#allocation2 + $0xcc] sm:$0x1]
        %v370 = vsel %vm317, 0, %v369
        %371 = vst [vmem:[#allocation2 + $0xcc] sm:$0x1] %v370
        %vm372 = vsmask.f32 7938
        %vm373 = vmand %vm315, %vm372
        %v374 = vld [vmem:[#allocation2 + $0x8] sm:$0x1]
        %v375 = vsel %vm373, 0, %v374
        %376 = vst [vmem:[#allocation2 + $0x8] sm:$0x1] %v375
        %v377 = vld [vmem:[#allocation2 + $0x14] sm:$0x1]
        %v378 = vsel %vm373, 0, %v377
        %379 = vst [vmem:[#allocation2 + $0x14] sm:$0x1] %v378
        %v380 = vld [vmem:[#allocation2 + $0x20] sm:$0x1]
        %v381 = vsel %vm373, 0, %v380
        %382 = vst [vmem:[#allocation2 + $0x20] sm:$0x1] %v381
        %v383 = vld [vmem:[#allocation2 + $0x2c] sm:$0x1]
        %v384 = vsel %vm373, 0, %v383
        %385 = vst [vmem:[#allocation2 + $0x2c] sm:$0x1] %v384
        %v386 = vld [vmem:[#allocation2 + $0x38] sm:$0x1]
        %v387 = vsel %vm373, 0, %v386
        %388 = vst [vmem:[#allocation2 + $0x38] sm:$0x1] %v387
        %v389 = vld [vmem:[#allocation2 + $0x44] sm:$0x1]
        %v390 = vsel %vm373, 0, %v389
        %391 = vst [vmem:[#allocation2 + $0x44] sm:$0x1] %v390
        %v392 = vld [vmem:[#allocation2 + $0x50] sm:$0x1]
        %v393 = vsel %vm373, 0, %v392
        %394 = vst [vmem:[#allocation2 + $0x50] sm:$0x1] %v393
        %v395 = vld [vmem:[#allocation2 + $0x5c] sm:$0x1]
        %v396 = vsel %vm373, 0, %v395
        %397 = vst [vmem:[#allocation2 + $0x5c] sm:$0x1] %v396
        %v398 = vld [vmem:[#allocation2 + $0x68] sm:$0x1]
        %v399 = vsel %vm373, 0, %v398
        %400 = vst [vmem:[#allocation2 + $0x68] sm:$0x1] %v399
        %v401 = vld [vmem:[#allocation2 + $0x74] sm:$0x1]
        %v402 = vsel %vm373, 0, %v401
        %403 = vst [vmem:[#allocation2 + $0x74] sm:$0x1] %v402
        %v404 = vld [vmem:[#allocation2 + $0x80] sm:$0x1]
        %v405 = vsel %vm373, 0, %v404
        %406 = vst [vmem:[#allocation2 + $0x80] sm:$0x1] %v405
        %v407 = vld [vmem:[#allocation2 + $0x8c] sm:$0x1]
        %v408 = vsel %vm373, 0, %v407
        %409 = vst [vmem:[#allocation2 + $0x8c] sm:$0x1] %v408
        %v410 = vld [vmem:[#allocation2 + $0x98] sm:$0x1]
        %v411 = vsel %vm373, 0, %v410
        %412 = vst [vmem:[#allocation2 + $0x98] sm:$0x1] %v411
        %v413 = vld [vmem:[#allocation2 + $0xa4] sm:$0x1]
        %v414 = vsel %vm373, 0, %v413
        %415 = vst [vmem:[#allocation2 + $0xa4] sm:$0x1] %v414
        %v416 = vld [vmem:[#allocation2 + $0xb0] sm:$0x1]
        %v417 = vsel %vm373, 0, %v416
        %418 = vst [vmem:[#allocation2 + $0xb0] sm:$0x1] %v417
        %v419 = vld [vmem:[#allocation2 + $0xbc] sm:$0x1]
        %v420 = vsel %vm373, 0, %v419
        %421 = vst [vmem:[#allocation2 + $0xbc] sm:$0x1] %v420
        %v422 = vld [vmem:[#allocation2 + $0xc8] sm:$0x1]
        %v423 = vsel %vm373, 0, %v422
        %424 = vst [vmem:[#allocation2 + $0xc8] sm:$0x1] %v423
        %v425 = vld [vmem:[#allocation2 + $0xd4] sm:$0x1]
        %v426 = vsel %vm373, 0, %v425
        %427 = vst [vmem:[#allocation2 + $0xd4] sm:$0x1] %v426
        %v428 = vld [vmem:[%s265] sm:$0xf]
        %v429 = vld [vmem:[%s265 + $0x4] sm:$0xf]
        %v430 = vld [vmem:[%s265 + $0x8] sm:$0xf]
        %v431 = vld [vmem:[%s265 + $0xc] sm:$0xf]
        %v432 = vld [vmem:[%s265 + $0x10] sm:$0xf]
        %v433 = vld [vmem:[%s265 + $0x14] sm:$0xf]
        %v434 = vld [vmem:[%s265 + $0x18] sm:$0xf]
        %v435 = vld [vmem:[%s265 + $0x1c] sm:$0xf]
        %v436 = vld [vmem:[%s265 + $0x20] sm:$0xf]
        %v437 = vld [vmem:[%s265 + $0x24] sm:$0xf]
        %v438 = vld [vmem:[%s265 + $0x28] sm:$0xf]
        %v439 = vld [vmem:[%s265 + $0x2c] sm:$0xf]
        %v440 = vld [vmem:[%s265 + $0x30] sm:$0xf]
        %v441 = vld [vmem:[%s265 + $0x34] sm:$0xf]
        %v442 = vld [vmem:[%s265 + $0x38] sm:$0xf]
        %v443 = vld [vmem:[%s265 + $0x3c] sm:$0xf]
        %v444 = vld [vmem:[%s265 + $0x40] sm:$0xf]
        %v445 = vld [vmem:[%s265 + $0x44] sm:$0xf]
        %v446 = vld [vmem:[%s265 + $0x48] sm:$0xf]
        %v447 = vld [vmem:[%s265 + $0x4c] sm:$0xf]
        %v448 = vld [vmem:[%s265 + $0x50] sm:$0xf]
        %v449 = vld [vmem:[%s265 + $0x54] sm:$0xf]
        %v450 = vld [vmem:[%s265 + $0x58] sm:$0xf]
        %v451 = vld [vmem:[%s265 + $0x5c] sm:$0xf]
        %v452 = vld [vmem:[%s265 + $0x60] sm:$0xf]
        %v453 = vld [vmem:[%s265 + $0x64] sm:$0xf]
        %v454 = vld [vmem:[%s265 + $0x68] sm:$0xf]
        %v455 = vld [vmem:[%s265 + $0x6c] sm:$0xf]
        %v456 = vld [vmem:[%s265 + $0x70] sm:$0xf]
        %v457 = vld [vmem:[%s265 + $0x74] sm:$0xf]
        %v458 = vld [vmem:[%s265 + $0x78] sm:$0xf]
        %v459 = vld [vmem:[%s265 + $0x7c] sm:$0xf]
        %v460 = vunpack.c.l.bf16 %v428
        %v461 = vunpack.c.l.bf16 %v429
        %v462 = vunpack.c.l.bf16 %v430
        %v463 = vunpack.c.l.bf16 %v431
        %v464 = vunpack.c.l.bf16 %v432
        %v465 = vunpack.c.l.bf16 %v433
        %v466 = vunpack.c.l.bf16 %v434
        %v467 = vunpack.c.l.bf16 %v435
        %v468 = vunpack.c.l.bf16 %v436
        %v469 = vunpack.c.l.bf16 %v437
        %v470 = vunpack.c.l.bf16 %v438
        %v471 = vunpack.c.l.bf16 %v439
        %v472 = vunpack.c.l.bf16 %v440
        %v473 = vunpack.c.l.bf16 %v441
        %v474 = vunpack.c.l.bf16 %v442
        %v475 = vunpack.c.l.bf16 %v443
        %v476 = vunpack.c.l.bf16 %v444
        %v477 = vunpack.c.l.bf16 %v445
        %v478 = vunpack.c.l.bf16 %v446
        %v479 = vunpack.c.l.bf16 %v447
        %v480 = vunpack.c.l.bf16 %v448
        %v481 = vunpack.c.l.bf16 %v449
        %v482 = vunpack.c.l.bf16 %v450
        %v483 = vunpack.c.l.bf16 %v451
        %v484 = vunpack.c.l.bf16 %v452
        %v485 = vunpack.c.l.bf16 %v453
        %v486 = vunpack.c.l.bf16 %v454
        %v487 = vunpack.c.l.bf16 %v455
        %v488 = vunpack.c.l.bf16 %v456
        %v489 = vunpack.c.l.bf16 %v457
        %v490 = vunpack.c.l.bf16 %v458
        %v491 = vunpack.c.l.bf16 %v459
        %v493 = vperm.slane %v306, 0
        %v495 = vmul.f32 %v460, %v493
        %v496 = vmul.f32 %v461, %v493
        %v497 = vmul.f32 %v462, %v493
        %v498 = vmul.f32 %v463, %v493
        %v499 = vmul.f32 %v464, %v493
        %v500 = vmul.f32 %v465, %v493
        %v501 = vmul.f32 %v466, %v493
        %v502 = vmul.f32 %v467, %v493
        %v503 = vmul.f32 %v468, %v493
        %v504 = vmul.f32 %v469, %v493
        %v505 = vmul.f32 %v470, %v493
        %v506 = vmul.f32 %v471, %v493
        %v507 = vmul.f32 %v472, %v493
        %v508 = vmul.f32 %v473, %v493
        %v509 = vmul.f32 %v474, %v493
        %v510 = vmul.f32 %v475, %v493
        %v511 = vmul.f32 %v476, %v493
        %v512 = vmul.f32 %v477, %v493
        %v513 = vmul.f32 %v478, %v493
        %v514 = vmul.f32 %v479, %v493
        %v515 = vmul.f32 %v480, %v493
        %v516 = vmul.f32 %v481, %v493
        %v517 = vmul.f32 %v482, %v493
        %v518 = vmul.f32 %v483, %v493
        %v519 = vmul.f32 %v484, %v493
        %v520 = vmul.f32 %v485, %v493
        %v521 = vmul.f32 %v486, %v493
        %v522 = vmul.f32 %v487, %v493
        %v523 = vmul.f32 %v488, %v493
        %v524 = vmul.f32 %v489, %v493
        %v525 = vmul.f32 %v490, %v493
        %v526 = vmul.f32 %v491, %v493
        %v528 = vperm.slane %v307, 0
        %v530 = vadd.f32 %v495, %v528
        %v531 = vadd.f32 %v496, %v528
        %v532 = vadd.f32 %v497, %v528
        %v533 = vadd.f32 %v498, %v528
        %v534 = vadd.f32 %v499, %v528
        %v535 = vadd.f32 %v500, %v528
        %v536 = vadd.f32 %v501, %v528
        %v537 = vadd.f32 %v502, %v528
        %v538 = vadd.f32 %v503, %v528
        %v539 = vadd.f32 %v504, %v528
        %v540 = vadd.f32 %v505, %v528
        %v541 = vadd.f32 %v506, %v528
        %v542 = vadd.f32 %v507, %v528
        %v543 = vadd.f32 %v508, %v528
        %v544 = vadd.f32 %v509, %v528
        %v545 = vadd.f32 %v510, %v528
        %v546 = vadd.f32 %v511, %v528
        %v547 = vadd.f32 %v512, %v528
        %v548 = vadd.f32 %v513, %v528
        %v549 = vadd.f32 %v514, %v528
        %v550 = vadd.f32 %v515, %v528
        %v551 = vadd.f32 %v516, %v528
        %v552 = vadd.f32 %v517, %v528
        %v553 = vadd.f32 %v518, %v528
        %v554 = vadd.f32 %v519, %v528
        %v555 = vadd.f32 %v520, %v528
        %v556 = vadd.f32 %v521, %v528
        %v557 = vadd.f32 %v522, %v528
        %v558 = vadd.f32 %v523, %v528
        %v559 = vadd.f32 %v524, %v528
        %v560 = vadd.f32 %v525, %v528
        %v561 = vadd.f32 %v526, %v528
        %v562 = vmax.f32 %v530, 0.0
        %v563 = vmax.f32 %v531, 0.0
        %v564 = vmax.f32 %v532, 0.0
        %v565 = vmax.f32 %v533, 0.0
        %v566 = vmax.f32 %v534, 0.0
        %v567 = vmax.f32 %v535, 0.0
        %v568 = vmax.f32 %v536, 0.0
        %v569 = vmax.f32 %v537, 0.0
        %v570 = vmax.f32 %v538, 0.0
        %v571 = vmax.f32 %v539, 0.0
        %v572 = vmax.f32 %v540, 0.0
        %v573 = vmax.f32 %v541, 0.0
        %v574 = vmax.f32 %v542, 0.0
        %v575 = vmax.f32 %v543, 0.0
        %v576 = vmax.f32 %v544, 0.0
        %v577 = vmax.f32 %v545, 0.0
        %v578 = vmax.f32 %v546, 0.0
        %v579 = vmax.f32 %v547, 0.0
        %v580 = vmax.f32 %v548, 0.0
        %v581 = vmax.f32 %v549, 0.0
        %v582 = vmax.f32 %v550, 0.0
        %v583 = vmax.f32 %v551, 0.0
        %v584 = vmax.f32 %v552, 0.0
        %v585 = vmax.f32 %v553, 0.0
        %v586 = vmax.f32 %v554, 0.0
        %v587 = vmax.f32 %v555, 0.0
        %v588 = vmax.f32 %v556, 0.0
        %v589 = vmax.f32 %v557, 0.0
        %v590 = vmax.f32 %v558, 0.0
        %v591 = vmax.f32 %v559, 0.0
        %v592 = vmax.f32 %v560, 0.0
        %v593 = vmax.f32 %v561, 0.0
        %v594 = vpack.c.bf16 %v562, %v562
        %v595 = vpack.c.bf16 %v563, %v563
        %v596 = vpack.c.bf16 %v564, %v564
        %v597 = vpack.c.bf16 %v565, %v565
        %v598 = vpack.c.bf16 %v566, %v566
        %v599 = vpack.c.bf16 %v567, %v567
        %v600 = vpack.c.bf16 %v568, %v568
        %v601 = vpack.c.bf16 %v569, %v569
        %v602 = vpack.c.bf16 %v570, %v570
        %v603 = vpack.c.bf16 %v571, %v571
        %v604 = vpack.c.bf16 %v572, %v572
        %v605 = vpack.c.bf16 %v573, %v573
        %v606 = vpack.c.bf16 %v574, %v574
        %v607 = vpack.c.bf16 %v575, %v575
        %v608 = vpack.c.bf16 %v576, %v576
        %v609 = vpack.c.bf16 %v577, %v577
        %v610 = vpack.c.bf16 %v578, %v578
        %v611 = vpack.c.bf16 %v579, %v579
        %v612 = vpack.c.bf16 %v580, %v580
        %v613 = vpack.c.bf16 %v581, %v581
        %v614 = vpack.c.bf16 %v582, %v582
        %v615 = vpack.c.bf16 %v583, %v583
        %v616 = vpack.c.bf16 %v584, %v584
        %v617 = vpack.c.bf16 %v585, %v585
        %v618 = vpack.c.bf16 %v586, %v586
        %v619 = vpack.c.bf16 %v587, %v587
        %v620 = vpack.c.bf16 %v588, %v588
        %v621 = vpack.c.bf16 %v589, %v589
        %v622 = vpack.c.bf16 %v590, %v590
        %v623 = vpack.c.bf16 %v591, %v591
        %v624 = vpack.c.bf16 %v592, %v592
        %v625 = vpack.c.bf16 %v593, %v593
        %vm626 = vsmask.f32 4368
        %vm627 = vmor %vm316, %vm626
        %v629 = vshrl.u32 %v594, 16
        %v631 = vrot.slane %v629, 7
        %v632 = vshll.u32 %v594, 16
        %v634 = vor.u32 %v631, %v632
        %v635 = vrot.slane %v631, 4
        %v637 = vshrl.u32 %v595, 16
        %v639 = vrot.slane %v637, 7
        %v640 = vshll.u32 %v595, 16
        %v642 = vor.u32 %v639, %v640
        %v643 = vsel %vm627, %v635, %v642
        %v644 = vrot.slane %v639, 4
        %v646 = vshrl.u32 %v596, 16
        %v648 = vrot.slane %v646, 7
        %v649 = vshll.u32 %v596, 16
        %v651 = vor.u32 %v648, %v649
        %v652 = vrot.slane %v648, 4
        %v654 = vshrl.u32 %v597, 16
        %v656 = vrot.slane %v654, 7
        %v657 = vshll.u32 %v597, 16
        %v659 = vor.u32 %v656, %v657
        %v660 = vsel %vm627, %v652, %v659
        %v661 = vrot.slane %v656, 4
        %v663 = vshrl.u32 %v598, 16
        %v665 = vrot.slane %v663, 7
        %v666 = vshll.u32 %v598, 16
        %v668 = vor.u32 %v665, %v666
        %v669 = vrot.slane %v665, 4
        %v671 = vshrl.u32 %v599, 16
        %v673 = vrot.slane %v671, 7
        %v674 = vshll.u32 %v599, 16
        %v676 = vor.u32 %v673, %v674
        %v677 = vsel %vm627, %v669, %v676
        %v678 = vrot.slane %v673, 4
        %v680 = vshrl.u32 %v600, 16
        %v682 = vrot.slane %v680, 7
        %v683 = vshll.u32 %v600, 16
        %v685 = vor.u32 %v682, %v683
        %v686 = vrot.slane %v682, 4
        %v688 = vshrl.u32 %v601, 16
        %v690 = vrot.slane %v688, 7
        %v691 = vshll.u32 %v601, 16
        %v693 = vor.u32 %v690, %v691
        %v694 = vsel %vm627, %v686, %v693
        %v695 = vrot.slane %v690, 4
        %v697 = vshrl.u32 %v602, 16
        %v699 = vrot.slane %v697, 7
        %v700 = vshll.u32 %v602, 16
        %v702 = vor.u32 %v699, %v700
        %v703 = vrot.slane %v699, 4
        %v705 = vshrl.u32 %v603, 16
        %v707 = vrot.slane %v705, 7
        %v708 = vshll.u32 %v603, 16
        %v710 = vor.u32 %v707, %v708
        %v711 = vsel %vm627, %v703, %v710
        %v712 = vrot.slane %v707, 4
        %v714 = vshrl.u32 %v604, 16
        %v716 = vrot.slane %v714, 7
        %v717 = vshll.u32 %v604, 16
        %v719 = vor.u32 %v716, %v717
        %v720 = vrot.slane %v716, 4
        %v722 = vshrl.u32 %v605, 16
        %v724 = vrot.slane %v722, 7
        %v725 = vshll.u32 %v605, 16
        %v727 = vor.u32 %v724, %v725
        %v728 = vsel %vm627, %v720, %v727
        %v729 = vrot.slane %v724, 4
        %v731 = vshrl.u32 %v606, 16
        %v733 = vrot.slane %v731, 7
        %v734 = vshll.u32 %v606, 16
        %v736 = vor.u32 %v733, %v734
        %v737 = vrot.slane %v733, 4
        %v739 = vshrl.u32 %v607, 16
        %v741 = vrot.slane %v739, 7
        %v742 = vshll.u32 %v607, 16
        %v744 = vor.u32 %v741, %v742
        %v745 = vsel %vm627, %v737, %v744
        %v746 = vrot.slane %v741, 4
        %v748 = vshrl.u32 %v608, 16
        %v750 = vrot.slane %v748, 7
        %v751 = vshll.u32 %v608, 16
        %v753 = vor.u32 %v750, %v751
        %v754 = vrot.slane %v750, 4
        %v756 = vshrl.u32 %v609, 16
        %v758 = vrot.slane %v756, 7
        %v759 = vshll.u32 %v609, 16
        %v761 = vor.u32 %v758, %v759
        %v762 = vsel %vm627, %v754, %v761
        %v763 = vrot.slane %v758, 4
        %v765 = vshrl.u32 %v610, 16
        %v767 = vrot.slane %v765, 7
        %v768 = vshll.u32 %v610, 16
        %v770 = vor.u32 %v767, %v768
        %v771 = vrot.slane %v767, 4
        %v773 = vshrl.u32 %v611, 16
        %v775 = vrot.slane %v773, 7
        %v776 = vshll.u32 %v611, 16
        %v778 = vor.u32 %v775, %v776
        %v779 = vsel %vm627, %v771, %v778
        %v780 = vrot.slane %v775, 4
        %v782 = vshrl.u32 %v612, 16
        %v784 = vrot.slane %v782, 7
        %v785 = vshll.u32 %v612, 16
        %v787 = vor.u32 %v784, %v785
        %v788 = vrot.slane %v784, 4
        %v790 = vshrl.u32 %v613, 16
        %v792 = vrot.slane %v790, 7
        %v793 = vshll.u32 %v613, 16
        %v795 = vor.u32 %v792, %v793
        %v796 = vsel %vm627, %v788, %v795
        %v797 = vrot.slane %v792, 4
        %v799 = vshrl.u32 %v614, 16
        %v801 = vrot.slane %v799, 7
        %v802 = vshll.u32 %v614, 16
        %v804 = vor.u32 %v801, %v802
        %v805 = vrot.slane %v801, 4
        %v807 = vshrl.u32 %v615, 16
        %v809 = vrot.slane %v807, 7
        %v810 = vshll.u32 %v615, 16
        %v812 = vor.u32 %v809, %v810
        %v813 = vsel %vm627, %v805, %v812
        %v814 = vrot.slane %v809, 4
        %v816 = vshrl.u32 %v616, 16
        %v818 = vrot.slane %v816, 7
        %v819 = vshll.u32 %v616, 16
        %v821 = vor.u32 %v818, %v819
        %v822 = vrot.slane %v818, 4
        %v824 = vshrl.u32 %v617, 16
        %v826 = vrot.slane %v824, 7
        %v827 = vshll.u32 %v617, 16
        %v829 = vor.u32 %v826, %v827
        %v830 = vsel %vm627, %v822, %v829
        %v831 = vrot.slane %v826, 4
        %v833 = vshrl.u32 %v618, 16
        %v835 = vrot.slane %v833, 7
        %v836 = vshll.u32 %v618, 16
        %v838 = vor.u32 %v835, %v836
        %v839 = vrot.slane %v835, 4
        %v841 = vshrl.u32 %v619, 16
        %v843 = vrot.slane %v841, 7
        %v844 = vshll.u32 %v619, 16
        %v846 = vor.u32 %v843, %v844
        %v847 = vsel %vm627, %v839, %v846
        %v848 = vrot.slane %v843, 4
        %v850 = vshrl.u32 %v620, 16
        %v852 = vrot.slane %v850, 7
        %v853 = vshll.u32 %v620, 16
        %v855 = vor.u32 %v852, %v853
        %v856 = vrot.slane %v852, 4
        %v858 = vshrl.u32 %v621, 16
        %v860 = vrot.slane %v858, 7
        %v861 = vshll.u32 %v621, 16
        %v863 = vor.u32 %v860, %v861
        %v864 = vsel %vm627, %v856, %v863
        %v865 = vrot.slane %v860, 4
        %v867 = vshrl.u32 %v622, 16
        %v869 = vrot.slane %v867, 7
        %v870 = vshll.u32 %v622, 16
        %v872 = vor.u32 %v869, %v870
        %v873 = vrot.slane %v869, 4
        %v875 = vshrl.u32 %v623, 16
        %v877 = vrot.slane %v875, 7
        %v878 = vshll.u32 %v623, 16
        %v880 = vor.u32 %v877, %v878
        %v881 = vsel %vm627, %v873, %v880
        %v882 = vrot.slane %v877, 4
        %v884 = vshrl.u32 %v624, 16
        %v886 = vrot.slane %v884, 7
        %v887 = vshll.u32 %v624, 16
        %v889 = vor.u32 %v886, %v887
        %v890 = vrot.slane %v886, 4
        %v892 = vshrl.u32 %v625, 16
        %v894 = vrot.slane %v892, 7
        %v895 = vshll.u32 %v625, 16
        %v897 = vor.u32 %v894, %v895
        %v898 = vsel %vm627, %v890, %v897
        %v899 = vrot.slane %v894, 4
        %s948 = scalar_lea.vmem [#allocation2], 12
        %vm949 = vcmask 1043456
        %vm950 = vmand %vm949, %vm372
        %v951 = vld [vmem:[%s948] sm:$0xf]
        %v952 = vsel %vm950, %v634, %v951
        %953 = vst [vmem:[%s948] sm:$0xf] %v952
        %954 = vst [vmem:[%s948 + $0x4] sm:$0xf] %v643
        %v955 = vld [vmem:[%s948 + $0x8] sm:$0x1]
        %v956 = vsel %vm317, %v644, %v955
        %957 = vst [vmem:[%s948 + $0x8] sm:$0x1] %v956
        %v958 = vld [vmem:[%s948 + $0xc] sm:$0xf]
        %v959 = vsel %vm950, %v651, %v958
        %960 = vst [vmem:[%s948 + $0xc] sm:$0xf] %v959
        %961 = vst [vmem:[%s948 + $0x10] sm:$0xf] %v660
        %v962 = vld [vmem:[%s948 + $0x14] sm:$0x1]
        %v963 = vsel %vm317, %v661, %v962
        %964 = vst [vmem:[%s948 + $0x14] sm:$0x1] %v963
        %v965 = vld [vmem:[%s948 + $0x18] sm:$0xf]
        %v966 = vsel %vm950, %v668, %v965
        %967 = vst [vmem:[%s948 + $0x18] sm:$0xf] %v966
        %968 = vst [vmem:[%s948 + $0x1c] sm:$0xf] %v677
        %v969 = vld [vmem:[%s948 + $0x20] sm:$0x1]
        %v970 = vsel %vm317, %v678, %v969
        %971 = vst [vmem:[%s948 + $0x20] sm:$0x1] %v970
        %v972 = vld [vmem:[%s948 + $0x24] sm:$0xf]
        %v973 = vsel %vm950, %v685, %v972
        %974 = vst [vmem:[%s948 + $0x24] sm:$0xf] %v973
        %975 = vst [vmem:[%s948 + $0x28] sm:$0xf] %v694
        %v976 = vld [vmem:[%s948 + $0x2c] sm:$0x1]
        %v977 = vsel %vm317, %v695, %v976
        %978 = vst [vmem:[%s948 + $0x2c] sm:$0x1] %v977
        %v979 = vld [vmem:[%s948 + $0x30] sm:$0xf]
        %v980 = vsel %vm950, %v702, %v979
        %981 = vst [vmem:[%s948 + $0x30] sm:$0xf] %v980
        %982 = vst [vmem:[%s948 + $0x34] sm:$0xf] %v711
        %v983 = vld [vmem:[%s948 + $0x38] sm:$0x1]
        %v984 = vsel %vm317, %v712, %v983
        %985 = vst [vmem:[%s948 + $0x38] sm:$0x1] %v984
        %v986 = vld [vmem:[%s948 + $0x3c] sm:$0xf]
        %v987 = vsel %vm950, %v719, %v986
        %988 = vst [vmem:[%s948 + $0x3c] sm:$0xf] %v987
        %989 = vst [vmem:[%s948 + $0x40] sm:$0xf] %v728
        %v990 = vld [vmem:[%s948 + $0x44] sm:$0x1]
        %v991 = vsel %vm317, %v729, %v990
        %992 = vst [vmem:[%s948 + $0x44] sm:$0x1] %v991
        %v993 = vld [vmem:[%s948 + $0x48] sm:$0xf]
        %v994 = vsel %vm950, %v736, %v993
        %995 = vst [vmem:[%s948 + $0x48] sm:$0xf] %v994
        %996 = vst [vmem:[%s948 + $0x4c] sm:$0xf] %v745
        %v997 = vld [vmem:[%s948 + $0x50] sm:$0x1]
        %v998 = vsel %vm317, %v746, %v997
        %999 = vst [vmem:[%s948 + $0x50] sm:$0x1] %v998
        %v1000 = vld [vmem:[%s948 + $0x54] sm:$0xf]
        %v1001 = vsel %vm950, %v753, %v1000
        %1002 = vst [vmem:[%s948 + $0x54] sm:$0xf] %v1001
        %1003 = vst [vmem:[%s948 + $0x58] sm:$0xf] %v762
        %v1004 = vld [vmem:[%s948 + $0x5c] sm:$0x1]
        %v1005 = vsel %vm317, %v763, %v1004
        %1006 = vst [vmem:[%s948 + $0x5c] sm:$0x1] %v1005
        %v1007 = vld [vmem:[%s948 + $0x60] sm:$0xf]
        %v1008 = vsel %vm950, %v770, %v1007
        %1009 = vst [vmem:[%s948 + $0x60] sm:$0xf] %v1008
        %1010 = vst [vmem:[%s948 + $0x64] sm:$0xf] %v779
        %v1011 = vld [vmem:[%s948 + $0x68] sm:$0x1]
        %v1012 = vsel %vm317, %v780, %v1011
        %1013 = vst [vmem:[%s948 + $0x68] sm:$0x1] %v1012
        %v1014 = vld [vmem:[%s948 + $0x6c] sm:$0xf]
        %v1015 = vsel %vm950, %v787, %v1014
        %1016 = vst [vmem:[%s948 + $0x6c] sm:$0xf] %v1015
        %1017 = vst [vmem:[%s948 + $0x70] sm:$0xf] %v796
        %v1018 = vld [vmem:[%s948 + $0x74] sm:$0x1]
        %v1019 = vsel %vm317, %v797, %v1018
        %1020 = vst [vmem:[%s948 + $0x74] sm:$0x1] %v1019
        %v1021 = vld [vmem:[%s948 + $0x78] sm:$0xf]
        %v1022 = vsel %vm950, %v804, %v1021
        %1023 = vst [vmem:[%s948 + $0x78] sm:$0xf] %v1022
        %1024 = vst [vmem:[%s948 + $0x7c] sm:$0xf] %v813
        %v1025 = vld [vmem:[%s948 + $0x80] sm:$0x1]
        %v1026 = vsel %vm317, %v814, %v1025
        %1027 = vst [vmem:[%s948 + $0x80] sm:$0x1] %v1026
        %v1028 = vld [vmem:[%s948 + $0x84] sm:$0xf]
        %v1029 = vsel %vm950, %v821, %v1028
        %1030 = vst [vmem:[%s948 + $0x84] sm:$0xf] %v1029
        %1031 = vst [vmem:[%s948 + $0x88] sm:$0xf] %v830
        %v1032 = vld [vmem:[%s948 + $0x8c] sm:$0x1]
        %v1033 = vsel %vm317, %v831, %v1032
        %1034 = vst [vmem:[%s948 + $0x8c] sm:$0x1] %v1033
        %v1035 = vld [vmem:[%s948 + $0x90] sm:$0xf]
        %v1036 = vsel %vm950, %v838, %v1035
        %1037 = vst [vmem:[%s948 + $0x90] sm:$0xf] %v1036
        %1038 = vst [vmem:[%s948 + $0x94] sm:$0xf] %v847
        %v1039 = vld [vmem:[%s948 + $0x98] sm:$0x1]
        %v1040 = vsel %vm317, %v848, %v1039
        %1041 = vst [vmem:[%s948 + $0x98] sm:$0x1] %v1040
        %v1042 = vld [vmem:[%s948 + $0x9c] sm:$0xf]
        %v1043 = vsel %vm950, %v855, %v1042
        %1044 = vst [vmem:[%s948 + $0x9c] sm:$0xf] %v1043
        %1045 = vst [vmem:[%s948 + $0xa0] sm:$0xf] %v864
        %v1046 = vld [vmem:[%s948 + $0xa4] sm:$0x1]
        %v1047 = vsel %vm317, %v865, %v1046
        %1048 = vst [vmem:[%s948 + $0xa4] sm:$0x1] %v1047
        %v1049 = vld [vmem:[%s948 + $0xa8] sm:$0xf]
        %v1050 = vsel %vm950, %v872, %v1049
        %1051 = vst [vmem:[%s948 + $0xa8] sm:$0xf] %v1050
        %1052 = vst [vmem:[%s948 + $0xac] sm:$0xf] %v881
        %v1053 = vld [vmem:[%s948 + $0xb0] sm:$0x1]
        %v1054 = vsel %vm317, %v882, %v1053
        %1055 = vst [vmem:[%s948 + $0xb0] sm:$0x1] %v1054
        %v1056 = vld [vmem:[%s948 + $0xb4] sm:$0xf]
        %v1057 = vsel %vm950, %v889, %v1056
        %1058 = vst [vmem:[%s948 + $0xb4] sm:$0xf] %v1057
        %1059 = vst [vmem:[%s948 + $0xb8] sm:$0xf] %v898
        %v1060 = vld [vmem:[%s948 + $0xbc] sm:$0x1]
        %v1061 = vsel %vm317, %v899, %v1060
        %1062 = vst [vmem:[%s948 + $0xbc] sm:$0x1] %v1061
        %v1063 = vld [vmem:[#allocation2] sm:$0xf]
        %v1064 = vld [vmem:[#allocation2 + $0x4] sm:$0xf]
        %v1065 = vld [vmem:[#allocation2 + $0xc] sm:$0xf]
        %v1066 = vld [vmem:[#allocation2 + $0x10] sm:$0xf]
        %v1067 = vld [vmem:[#allocation2 + $0x18] sm:$0xf]
        %v1068 = vld [vmem:[#allocation2 + $0x1c] sm:$0xf]
        %v1069 = vld [vmem:[#allocation2 + $0x24] sm:$0xf]
        %v1070 = vld [vmem:[#allocation2 + $0x28] sm:$0xf]
        %v1071 = vld [vmem:[#allocation2 + $0x30] sm:$0xf]
        %v1072 = vld [vmem:[#allocation2 + $0x34] sm:$0xf]
        %v1073 = vld [vmem:[#allocation2 + $0x3c] sm:$0xf]
        %v1074 = vld [vmem:[#allocation2 + $0x40] sm:$0xf]
        %v1075 = vld [vmem:[#allocation2 + $0x48] sm:$0xf]
        %v1076 = vld [vmem:[#allocation2 + $0x4c] sm:$0xf]
        %v1077 = vld [vmem:[#allocation2 + $0x54] sm:$0xf]
        %v1078 = vld [vmem:[#allocation2 + $0x58] sm:$0xf]
        %v1079 = vld [vmem:[#allocation2 + $0x60] sm:$0xf]
        %v1080 = vld [vmem:[#allocation2 + $0x64] sm:$0xf]
        %v1081 = vld [vmem:[#allocation2 + $0x6c] sm:$0xf]
        %v1082 = vld [vmem:[#allocation2 + $0x70] sm:$0xf]
        %v1083 = vld [vmem:[#allocation2 + $0x78] sm:$0xf]
        %v1084 = vld [vmem:[#allocation2 + $0x7c] sm:$0xf]
        %v1085 = vld [vmem:[#allocation2 + $0x84] sm:$0xf]
        %v1086 = vld [vmem:[#allocation2 + $0x88] sm:$0xf]
        %v1087 = vld [vmem:[#allocation2 + $0x90] sm:$0xf]
        %v1088 = vld [vmem:[#allocation2 + $0x94] sm:$0xf]
        %v1089 = vld [vmem:[#allocation2 + $0x9c] sm:$0xf]
        %v1090 = vld [vmem:[#allocation2 + $0xa0] sm:$0xf]
        %v1091 = vld [vmem:[#allocation2 + $0xa8] sm:$0xf]
        %v1092 = vld [vmem:[#allocation2 + $0xac] sm:$0xf]
        %v1093 = vld [vmem:[#allocation2 + $0xb4] sm:$0xf]
        %v1094 = vld [vmem:[#allocation2 + $0xb8] sm:$0xf]
        %1095 = vst [vmem:[#allocation4] sm:$0xf] %v1063
        %1096 = vst [vmem:[#allocation4 + $0x24] sm:$0xf] %v1064
        %1097 = vst [vmem:[#allocation4 + $0x48] sm:$0xf] %v1065
        %1098 = vst [vmem:[#allocation4 + $0x6c] sm:$0xf] %v1066
        %1099 = vst [vmem:[#allocation4 + $0x90] sm:$0xf] %v1067
        %1100 = vst [vmem:[#allocation4 + $0xb4] sm:$0xf] %v1068
        %1101 = vst [vmem:[#allocation4 + $0xd8] sm:$0xf] %v1069
        %1102 = vst [vmem:[#allocation4 + $0xfc] sm:$0xf] %v1070
        %1103 = vst [vmem:[#allocation4 + $0x120] sm:$0xf] %v1071
        %1104 = vst [vmem:[#allocation4 + $0x144] sm:$0xf] %v1072
        %1105 = vst [vmem:[#allocation4 + $0x168] sm:$0xf] %v1073
        %1106 = vst [vmem:[#allocation4 + $0x18c] sm:$0xf] %v1074
        %1107 = vst [vmem:[#allocation4 + $0x1b0] sm:$0xf] %v1075
        %1108 = vst [vmem:[#allocation4 + $0x1d4] sm:$0xf] %v1076
        %1109 = vst [vmem:[#allocation4 + $0x1f8] sm:$0xf] %v1077
        %1110 = vst [vmem:[#allocation4 + $0x21c] sm:$0xf] %v1078
        %1111 = vst [vmem:[#allocation4 + $0x240] sm:$0xf] %v1079
        %1112 = vst [vmem:[#allocation4 + $0x264] sm:$0xf] %v1080
        %1113 = vst [vmem:[#allocation4 + $0x288] sm:$0xf] %v1081
        %1114 = vst [vmem:[#allocation4 + $0x2ac] sm:$0xf] %v1082
        %1115 = vst [vmem:[#allocation4 + $0x2d0] sm:$0xf] %v1083
        %1116 = vst [vmem:[#allocation4 + $0x2f4] sm:$0xf] %v1084
        %1117 = vst [vmem:[#allocation4 + $0x318] sm:$0xf] %v1085
        %1118 = vst [vmem:[#allocation4 + $0x33c] sm:$0xf] %v1086
        %1119 = vst [vmem:[#allocation4 + $0x360] sm:$0xf] %v1087
        %1120 = vst [vmem:[#allocation4 + $0x384] sm:$0xf] %v1088
        %1121 = vst [vmem:[#allocation4 + $0x3a8] sm:$0xf] %v1089
        %1122 = vst [vmem:[#allocation4 + $0x3cc] sm:$0xf] %v1090
        %1123 = vst [vmem:[#allocation4 + $0x3f0] sm:$0xf] %v1091
        %1124 = vst [vmem:[#allocation4 + $0x414] sm:$0xf] %v1092
        %1125 = vst [vmem:[#allocation4 + $0x438] sm:$0xf] %v1093
        %1126 = vst [vmem:[#allocation4 + $0x45c] sm:$0xf] %v1094
        %v1127 = vld [vmem:[#allocation2] sm:$0xf]
        %v1128 = vld [vmem:[#allocation2 + $0x4] sm:$0xf]
        %v1129 = vld [vmem:[#allocation2 + $0x8] sm:$0x1]
        %v1130 = vld [vmem:[#allocation2 + $0xc] sm:$0xf]
        %v1131 = vld [vmem:[#allocation2 + $0x10] sm:$0xf]
        %v1132 = vld [vmem:[#allocation2 + $0x14] sm:$0x1]
        %v1133 = vld [vmem:[#allocation2 + $0x18] sm:$0xf]
        %v1134 = vld [vmem:[#allocation2 + $0x1c] sm:$0xf]
        %v1135 = vld [vmem:[#allocation2 + $0x20] sm:$0x1]
        %v1136 = vld [vmem:[#allocation2 + $0x24] sm:$0xf]
        %v1137 = vld [vmem:[#allocation2 + $0x28] sm:$0xf]
        %v1138 = vld [vmem:[#allocation2 + $0x2c] sm:$0x1]
        %v1139 = vld [vmem:[#allocation2 + $0x30] sm:$0xf]
        %v1140 = vld [vmem:[#allocation2 + $0x34] sm:$0xf]
        %v1141 = vld [vmem:[#allocation2 + $0x38] sm:$0x1]
        %v1142 = vld [vmem:[#allocation2 + $0x3c] sm:$0xf]
        %v1143 = vld [vmem:[#allocation2 + $0x40] sm:$0xf]
        %v1144 = vld [vmem:[#allocation2 + $0x44] sm:$0x1]
        %v1145 = vld [vmem:[#allocation2 + $0x48] sm:$0xf]
        %v1146 = vld [vmem:[#allocation2 + $0x4c] sm:$0xf]
        %v1147 = vld [vmem:[#allocation2 + $0x50] sm:$0x1]
        %v1148 = vld [vmem:[#allocation2 + $0x54] sm:$0xf]
        %v1149 = vld [vmem:[#allocation2 + $0x58] sm:$0xf]
        %v1150 = vld [vmem:[#allocation2 + $0x5c] sm:$0x1]
        %v1151 = vld [vmem:[#allocation2 + $0x60] sm:$0xf]
        %v1152 = vld [vmem:[#allocation2 + $0x64] sm:$0xf]
        %v1153 = vld [vmem:[#allocation2 + $0x68] sm:$0x1]
        %v1154 = vld [vmem:[#allocation2 + $0x6c] sm:$0xf]
        %v1155 = vld [vmem:[#allocation2 + $0x70] sm:$0xf]
        %v1156 = vld [vmem:[#allocation2 + $0x74] sm:$0x1]
        %v1157 = vld [vmem:[#allocation2 + $0x78] sm:$0xf]
        %v1158 = vld [vmem:[#allocation2 + $0x7c] sm:$0xf]
        %v1159 = vld [vmem:[#allocation2 + $0x80] sm:$0x1]
        %v1160 = vld [vmem:[#allocation2 + $0x84] sm:$0xf]
        %v1161 = vld [vmem:[#allocation2 + $0x88] sm:$0xf]
        %v1162 = vld [vmem:[#allocation2 + $0x8c] sm:$0x1]
        %v1163 = vld [vmem:[#allocation2 + $0x90] sm:$0xf]
        %v1164 = vld [vmem:[#allocation2 + $0x94] sm:$0xf]
        %v1165 = vld [vmem:[#allocation2 + $0x98] sm:$0x1]
        %v1166 = vld [vmem:[#allocation2 + $0x9c] sm:$0xf]
        %v1167 = vld [vmem:[#allocation2 + $0xa0] sm:$0xf]
        %v1168 = vld [vmem:[#allocation2 + $0xa4] sm:$0x1]
        %v1169 = vld [vmem:[#allocation2 + $0xa8] sm:$0xf]
        %v1170 = vld [vmem:[#allocation2 + $0xac] sm:$0xf]
        %v1171 = vld [vmem:[#allocation2 + $0xb0] sm:$0x1]
        %v1172 = vld [vmem:[#allocation2 + $0xb4] sm:$0xf]
        %v1173 = vld [vmem:[#allocation2 + $0xb8] sm:$0xf]
        %v1174 = vld [vmem:[#allocation2 + $0xbc] sm:$0x1]
        %vm1175 = vsmask.f32 3328
        %vm1176 = vsmask.f32 7440
        %vm1177 = vmor %vm1175, %vm1176
        %v1179 = vshrl.u32 %v1127, 16
        %v1181 = vrot.slane %v1179, 4
        %v1182 = vshll.u32 %v1127, 16
        %v1184 = vrot.slane %v1182, 5
        %v1185 = vor.u32 %v1181, %v1184
        %v1186 = vrot.slane %v1185, 4
        %v1188 = vshll.u32 %v1128, 16
        %v1190 = vrot.slane %v1188, 5
        %v1191 = vsel %vm1177, %v1186, %v1190
        %v1192 = vshrl.u32 %v1128, 16
        %v1194 = vrot.slane %v1192, 4
        %v1195 = vor.u32 %v1194, %v1190
        %v1196 = vrot.slane %v1195, 4
        %v1198 = vshll.u32 %v1129, 16
        %v1200 = vrot.slane %v1198, 5
        %v1201 = vsel %vm1177, %v1196, %v1200
        %v1203 = vshrl.u32 %v1130, 16
        %v1205 = vrot.slane %v1203, 4
        %v1206 = vshll.u32 %v1130, 16
        %v1208 = vrot.slane %v1206, 5
        %v1209 = vor.u32 %v1205, %v1208
        %v1210 = vrot.slane %v1209, 4
        %v1212 = vshll.u32 %v1131, 16
        %v1214 = vrot.slane %v1212, 5
        %v1215 = vsel %vm1177, %v1210, %v1214
        %v1216 = vshrl.u32 %v1131, 16
        %v1218 = vrot.slane %v1216, 4
        %v1219 = vor.u32 %v1218, %v1214
        %v1220 = vrot.slane %v1219, 4
        %v1222 = vshll.u32 %v1132, 16
        %v1224 = vrot.slane %v1222, 5
        %v1225 = vsel %vm1177, %v1220, %v1224
        %v1227 = vshrl.u32 %v1133, 16
        %v1229 = vrot.slane %v1227, 4
        %v1230 = vshll.u32 %v1133, 16
        %v1232 = vrot.slane %v1230, 5
        %v1233 = vor.u32 %v1229, %v1232
        %v1234 = vrot.slane %v1233, 4
        %v1236 = vshll.u32 %v1134, 16
        %v1238 = vrot.slane %v1236, 5
        %v1239 = vsel %vm1177, %v1234, %v1238
        %v1240 = vshrl.u32 %v1134, 16
        %v1242 = vrot.slane %v1240, 4
        %v1243 = vor.u32 %v1242, %v1238
        %v1244 = vrot.slane %v1243, 4
        %v1246 = vshll.u32 %v1135, 16
        %v1248 = vrot.slane %v1246, 5
        %v1249 = vsel %vm1177, %v1244, %v1248
        %v1251 = vshrl.u32 %v1136, 16
        %v1253 = vrot.slane %v1251, 4
        %v1254 = vshll.u32 %v1136, 16
        %v1256 = vrot.slane %v1254, 5
        %v1257 = vor.u32 %v1253, %v1256
        %v1258 = vrot.slane %v1257, 4
        %v1260 = vshll.u32 %v1137, 16
        %v1262 = vrot.slane %v1260, 5
        %v1263 = vsel %vm1177, %v1258, %v1262
        %v1264 = vshrl.u32 %v1137, 16
        %v1266 = vrot.slane %v1264, 4
        %v1267 = vor.u32 %v1266, %v1262
        %v1268 = vrot.slane %v1267, 4
        %v1270 = vshll.u32 %v1138, 16
        %v1272 = vrot.slane %v1270, 5
        %v1273 = vsel %vm1177, %v1268, %v1272
        %v1275 = vshrl.u32 %v1139, 16
        %v1277 = vrot.slane %v1275, 4
        %v1278 = vshll.u32 %v1139, 16
        %v1280 = vrot.slane %v1278, 5
        %v1281 = vor.u32 %v1277, %v1280
        %v1282 = vrot.slane %v1281, 4
        %v1284 = vshll.u32 %v1140, 16
        %v1286 = vrot.slane %v1284, 5
        %v1287 = vsel %vm1177, %v1282, %v1286
        %v1288 = vshrl.u32 %v1140, 16
        %v1290 = vrot.slane %v1288, 4
        %v1291 = vor.u32 %v1290, %v1286
        %v1292 = vrot.slane %v1291, 4
        %v1294 = vshll.u32 %v1141, 16
        %v1296 = vrot.slane %v1294, 5
        %v1297 = vsel %vm1177, %v1292, %v1296
        %v1299 = vshrl.u32 %v1142, 16
        %v1301 = vrot.slane %v1299, 4
        %v1302 = vshll.u32 %v1142, 16
        %v1304 = vrot.slane %v1302, 5
        %v1305 = vor.u32 %v1301, %v1304
        %v1306 = vrot.slane %v1305, 4
        %v1308 = vshll.u32 %v1143, 16
        %v1310 = vrot.slane %v1308, 5
        %v1311 = vsel %vm1177, %v1306, %v1310
        %v1312 = vshrl.u32 %v1143, 16
        %v1314 = vrot.slane %v1312, 4
        %v1315 = vor.u32 %v1314, %v1310
        %v1316 = vrot.slane %v1315, 4
        %v1318 = vshll.u32 %v1144, 16
        %v1320 = vrot.slane %v1318, 5
        %v1321 = vsel %vm1177, %v1316, %v1320
        %v1323 = vshrl.u32 %v1145, 16
        %v1325 = vrot.slane %v1323, 4
        %v1326 = vshll.u32 %v1145, 16
        %v1328 = vrot.slane %v1326, 5
        %v1329 = vor.u32 %v1325, %v1328
        %v1330 = vrot.slane %v1329, 4
        %v1332 = vshll.u32 %v1146, 16
        %v1334 = vrot.slane %v1332, 5
        %v1335 = vsel %vm1177, %v1330, %v1334
        %v1336 = vshrl.u32 %v1146, 16
        %v1338 = vrot.slane %v1336, 4
        %v1339 = vor.u32 %v1338, %v1334
        %v1340 = vrot.slane %v1339, 4
        %v1342 = vshll.u32 %v1147, 16
        %v1344 = vrot.slane %v1342, 5
        %v1345 = vsel %vm1177, %v1340, %v1344
        %v1347 = vshrl.u32 %v1148, 16
        %v1349 = vrot.slane %v1347, 4
        %v1350 = vshll.u32 %v1148, 16
        %v1352 = vrot.slane %v1350, 5
        %v1353 = vor.u32 %v1349, %v1352
        %v1354 = vrot.slane %v1353, 4
        %v1356 = vshll.u32 %v1149, 16
        %v1358 = vrot.slane %v1356, 5
        %v1359 = vsel %vm1177, %v1354, %v1358
        %v1360 = vshrl.u32 %v1149, 16
        %v1362 = vrot.slane %v1360, 4
        %v1363 = vor.u32 %v1362, %v1358
        %v1364 = vrot.slane %v1363, 4
        %v1366 = vshll.u32 %v1150, 16
        %v1368 = vrot.slane %v1366, 5
        %v1369 = vsel %vm1177, %v1364, %v1368
        %v1371 = vshrl.u32 %v1151, 16
        %v1373 = vrot.slane %v1371, 4
        %v1374 = vshll.u32 %v1151, 16
        %v1376 = vrot.slane %v1374, 5
        %v1377 = vor.u32 %v1373, %v1376
        %v1378 = vrot.slane %v1377, 4
        %v1380 = vshll.u32 %v1152, 16
        %v1382 = vrot.slane %v1380, 5
        %v1383 = vsel %vm1177, %v1378, %v1382
        %v1384 = vshrl.u32 %v1152, 16
        %v1386 = vrot.slane %v1384, 4
        %v1387 = vor.u32 %v1386, %v1382
        %v1388 = vrot.slane %v1387, 4
        %v1390 = vshll.u32 %v1153, 16
        %v1392 = vrot.slane %v1390, 5
        %v1393 = vsel %vm1177, %v1388, %v1392
        %v1395 = vshrl.u32 %v1154, 16
        %v1397 = vrot.slane %v1395, 4
        %v1398 = vshll.u32 %v1154, 16
        %v1400 = vrot.slane %v1398, 5
        %v1401 = vor.u32 %v1397, %v1400
        %v1402 = vrot.slane %v1401, 4
        %v1404 = vshll.u32 %v1155, 16
        %v1406 = vrot.slane %v1404, 5
        %v1407 = vsel %vm1177, %v1402, %v1406
        %v1408 = vshrl.u32 %v1155, 16
        %v1410 = vrot.slane %v1408, 4
        %v1411 = vor.u32 %v1410, %v1406
        %v1412 = vrot.slane %v1411, 4
        %v1414 = vshll.u32 %v1156, 16
        %v1416 = vrot.slane %v1414, 5
        %v1417 = vsel %vm1177, %v1412, %v1416
        %v1419 = vshrl.u32 %v1157, 16
        %v1421 = vrot.slane %v1419, 4
        %v1422 = vshll.u32 %v1157, 16
        %v1424 = vrot.slane %v1422, 5
        %v1425 = vor.u32 %v1421, %v1424
        %v1426 = vrot.slane %v1425, 4
        %v1428 = vshll.u32 %v1158, 16
        %v1430 = vrot.slane %v1428, 5
        %v1431 = vsel %vm1177, %v1426, %v1430
        %v1432 = vshrl.u32 %v1158, 16
        %v1434 = vrot.slane %v1432, 4
        %v1435 = vor.u32 %v1434, %v1430
        %v1436 = vrot.slane %v1435, 4
        %v1438 = vshll.u32 %v1159, 16
        %v1440 = vrot.slane %v1438, 5
        %v1441 = vsel %vm1177, %v1436, %v1440
        %v1443 = vshrl.u32 %v1160, 16
        %v1445 = vrot.slane %v1443, 4
        %v1446 = vshll.u32 %v1160, 16
        %v1448 = vrot.slane %v1446, 5
        %v1449 = vor.u32 %v1445, %v1448
        %v1450 = vrot.slane %v1449, 4
        %v1452 = vshll.u32 %v1161, 16
        %v1454 = vrot.slane %v1452, 5
        %v1455 = vsel %vm1177, %v1450, %v1454
        %v1456 = vshrl.u32 %v1161, 16
        %v1458 = vrot.slane %v1456, 4
        %v1459 = vor.u32 %v1458, %v1454
        %v1460 = vrot.slane %v1459, 4
        %v1462 = vshll.u32 %v1162, 16
        %v1464 = vrot.slane %v1462, 5
        %v1465 = vsel %vm1177, %v1460, %v1464
        %v1467 = vshrl.u32 %v1163, 16
        %v1469 = vrot.slane %v1467, 4
        %v1470 = vshll.u32 %v1163, 16
        %v1472 = vrot.slane %v1470, 5
        %v1473 = vor.u32 %v1469, %v1472
        %v1474 = vrot.slane %v1473, 4
        %v1476 = vshll.u32 %v1164, 16
        %v1478 = vrot.slane %v1476, 5
        %v1479 = vsel %vm1177, %v1474, %v1478
        %v1480 = vshrl.u32 %v1164, 16
        %v1482 = vrot.slane %v1480, 4
        %v1483 = vor.u32 %v1482, %v1478
        %v1484 = vrot.slane %v1483, 4
        %v1486 = vshll.u32 %v1165, 16
        %v1488 = vrot.slane %v1486, 5
        %v1489 = vsel %vm1177, %v1484, %v1488
        %v1491 = vshrl.u32 %v1166, 16
        %v1493 = vrot.slane %v1491, 4
        %v1494 = vshll.u32 %v1166, 16
        %v1496 = vrot.slane %v1494, 5
        %v1497 = vor.u32 %v1493, %v1496
        %v1498 = vrot.slane %v1497, 4
        %v1500 = vshll.u32 %v1167, 16
        %v1502 = vrot.slane %v1500, 5
        %v1503 = vsel %vm1177, %v1498, %v1502
        %v1504 = vshrl.u32 %v1167, 16
        %v1506 = vrot.slane %v1504, 4
        %v1507 = vor.u32 %v1506, %v1502
        %v1508 = vrot.slane %v1507, 4
        %v1510 = vshll.u32 %v1168, 16
        %v1512 = vrot.slane %v1510, 5
        %v1513 = vsel %vm1177, %v1508, %v1512
        %v1515 = vshrl.u32 %v1169, 16
        %v1517 = vrot.slane %v1515, 4
        %v1518 = vshll.u32 %v1169, 16
        %v1520 = vrot.slane %v1518, 5
        %v1521 = vor.u32 %v1517, %v1520
        %v1522 = vrot.slane %v1521, 4
        %v1524 = vshll.u32 %v1170, 16
        %v1526 = vrot.slane %v1524, 5
        %v1527 = vsel %vm1177, %v1522, %v1526
        %v1528 = vshrl.u32 %v1170, 16
        %v1530 = vrot.slane %v1528, 4
        %v1531 = vor.u32 %v1530, %v1526
        %v1532 = vrot.slane %v1531, 4
        %v1534 = vshll.u32 %v1171, 16
        %v1536 = vrot.slane %v1534, 5
        %v1537 = vsel %vm1177, %v1532, %v1536
        %v1539 = vshrl.u32 %v1172, 16
        %v1541 = vrot.slane %v1539, 4
        %v1542 = vshll.u32 %v1172, 16
        %v1544 = vrot.slane %v1542, 5
        %v1545 = vor.u32 %v1541, %v1544
        %v1546 = vrot.slane %v1545, 4
        %v1548 = vshll.u32 %v1173, 16
        %v1550 = vrot.slane %v1548, 5
        %v1551 = vsel %vm1177, %v1546, %v1550
        %v1552 = vshrl.u32 %v1173, 16
        %v1554 = vrot.slane %v1552, 4
        %v1555 = vor.u32 %v1554, %v1550
        %v1556 = vrot.slane %v1555, 4
        %v1558 = vshll.u32 %v1174, 16
        %v1560 = vrot.slane %v1558, 5
        %v1561 = vsel %vm1177, %v1556, %v1560
        %1594 = vst [vmem:[#allocation4 + $0x4] sm:$0xf] %v1191
        %1595 = vst [vmem:[#allocation4 + $0x28] sm:$0xf] %v1201
        %1596 = vst [vmem:[#allocation4 + $0x4c] sm:$0xf] %v1215
        %1597 = vst [vmem:[#allocation4 + $0x70] sm:$0xf] %v1225
        %1598 = vst [vmem:[#allocation4 + $0x94] sm:$0xf] %v1239
        %1599 = vst [vmem:[#allocation4 + $0xb8] sm:$0xf] %v1249
        %1600 = vst [vmem:[#allocation4 + $0xdc] sm:$0xf] %v1263
        %1601 = vst [vmem:[#allocation4 + $0x100] sm:$0xf] %v1273
        %1602 = vst [vmem:[#allocation4 + $0x124] sm:$0xf] %v1287
        %1603 = vst [vmem:[#allocation4 + $0x148] sm:$0xf] %v1297
        %1604 = vst [vmem:[#allocation4 + $0x16c] sm:$0xf] %v1311
        %1605 = vst [vmem:[#allocation4 + $0x190] sm:$0xf] %v1321
        %1606 = vst [vmem:[#allocation4 + $0x1b4] sm:$0xf] %v1335
        %1607 = vst [vmem:[#allocation4 + $0x1d8] sm:$0xf] %v1345
        %1608 = vst [vmem:[#allocation4 + $0x1fc] sm:$0xf] %v1359
        %1609 = vst [vmem:[#allocation4 + $0x220] sm:$0xf] %v1369
        %1610 = vst [vmem:[#allocation4 + $0x244] sm:$0xf] %v1383
        %1611 = vst [vmem:[#allocation4 + $0x268] sm:$0xf] %v1393
        %1612 = vst [vmem:[#allocation4 + $0x28c] sm:$0xf] %v1407
        %1613 = vst [vmem:[#allocation4 + $0x2b0] sm:$0xf] %v1417
        %1614 = vst [vmem:[#allocation4 + $0x2d4] sm:$0xf] %v1431
        %1615 = vst [vmem:[#allocation4 + $0x2f8] sm:$0xf] %v1441
        %1616 = vst [vmem:[#allocation4 + $0x31c] sm:$0xf] %v1455
        %1617 = vst [vmem:[#allocation4 + $0x340] sm:$0xf] %v1465
        %1618 = vst [vmem:[#allocation4 + $0x364] sm:$0xf] %v1479
        %1619 = vst [vmem:[#allocation4 + $0x388] sm:$0xf] %v1489
        %1620 = vst [vmem:[#allocation4 + $0x3ac] sm:$0xf] %v1503
        %1621 = vst [vmem:[#allocation4 + $0x3d0] sm:$0xf] %v1513
        %1622 = vst [vmem:[#allocation4 + $0x3f4] sm:$0xf] %v1527
        %1623 = vst [vmem:[#allocation4 + $0x418] sm:$0xf] %v1537
        %1624 = vst [vmem:[#allocation4 + $0x43c] sm:$0xf] %v1551
        %1625 = vst [vmem:[#allocation4 + $0x460] sm:$0xf] %v1561
        %v1626 = vld [vmem:[#allocation2] sm:$0xe]
        %v1627 = vld [vmem:[#allocation2 + $0x4] sm:$0xf]
        %v1628 = vld [vmem:[#allocation2 + $0x8] sm:$0x1]
        %v1629 = vld [vmem:[#allocation2 + $0xc] sm:$0xe]
        %v1630 = vld [vmem:[#allocation2 + $0x10] sm:$0xf]
        %v1631 = vld [vmem:[#allocation2 + $0x14] sm:$0x1]
        %v1632 = vld [vmem:[#allocation2 + $0x18] sm:$0xe]
        %v1633 = vld [vmem:[#allocation2 + $0x1c] sm:$0xf]
        %v1634 = vld [vmem:[#allocation2 + $0x20] sm:$0x1]
        %v1635 = vld [vmem:[#allocation2 + $0x24] sm:$0xe]
        %v1636 = vld [vmem:[#allocation2 + $0x28] sm:$0xf]
        %v1637 = vld [vmem:[#allocation2 + $0x2c] sm:$0x1]
        %v1638 = vld [vmem:[#allocation2 + $0x30] sm:$0xe]
        %v1639 = vld [vmem:[#allocation2 + $0x34] sm:$0xf]
        %v1640 = vld [vmem:[#allocation2 + $0x38] sm:$0x1]
        %v1641 = vld [vmem:[#allocation2 + $0x3c] sm:$0xe]
        %v1642 = vld [vmem:[#allocation2 + $0x40] sm:$0xf]
        %v1643 = vld [vmem:[#allocation2 + $0x44] sm:$0x1]
        %v1644 = vld [vmem:[#allocation2 + $0x48] sm:$0xe]
        %v1645 = vld [vmem:[#allocation2 + $0x4c] sm:$0xf]
        %v1646 = vld [vmem:[#allocation2 + $0x50] sm:$0x1]
        %v1647 = vld [vmem:[#allocation2 + $0x54] sm:$0xe]
        %v1648 = vld [vmem:[#allocation2 + $0x58] sm:$0xf]
        %v1649 = vld [vmem:[#allocation2 + $0x5c] sm:$0x1]
        %v1650 = vld [vmem:[#allocation2 + $0x60] sm:$0xe]
        %v1651 = vld [vmem:[#allocation2 + $0x64] sm:$0xf]
        %v1652 = vld [vmem:[#allocation2 + $0x68] sm:$0x1]
        %v1653 = vld [vmem:[#allocation2 + $0x6c] sm:$0xe]
        %v1654 = vld [vmem:[#allocation2 + $0x70] sm:$0xf]
        %v1655 = vld [vmem:[#allocation2 + $0x74] sm:$0x1]
        %v1656 = vld [vmem:[#allocation2 + $0x78] sm:$0xe]
        %v1657 = vld [vmem:[#allocation2 + $0x7c] sm:$0xf]
        %v1658 = vld [vmem:[#allocation2 + $0x80] sm:$0x1]
        %v1659 = vld [vmem:[#allocation2 + $0x84] sm:$0xe]
        %v1660 = vld [vmem:[#allocation2 + $0x88] sm:$0xf]
        %v1661 = vld [vmem:[#allocation2 + $0x8c] sm:$0x1]
        %v1662 = vld [vmem:[#allocation2 + $0x90] sm:$0xe]
        %v1663 = vld [vmem:[#allocation2 + $0x94] sm:$0xf]
        %v1664 = vld [vmem:[#allocation2 + $0x98] sm:$0x1]
        %v1665 = vld [vmem:[#allocation2 + $0x9c] sm:$0xe]
        %v1666 = vld [vmem:[#allocation2 + $0xa0] sm:$0xf]
        %v1667 = vld [vmem:[#allocation2 + $0xa4] sm:$0x1]
        %v1668 = vld [vmem:[#allocation2 + $0xa8] sm:$0xe]
        %v1669 = vld [vmem:[#allocation2 + $0xac] sm:$0xf]
        %v1670 = vld [vmem:[#allocation2 + $0xb0] sm:$0x1]
        %v1671 = vld [vmem:[#allocation2 + $0xb4] sm:$0xe]
        %v1672 = vld [vmem:[#allocation2 + $0xb8] sm:$0xf]
        %v1673 = vld [vmem:[#allocation2 + $0xbc] sm:$0x1]
        %vm1722 = vcmask 1042432
        %vm1723 = vcmask 1046532
        %vm1724 = vmor %vm1722, %vm1723
        %v1725 = vrot.slane %v1626, 5
        %v1726 = vrot.slane %v1725, 4
        %v1727 = vrot.slane %v1627, 5
        %v1728 = vsel %vm1724, %v1726, %v1727
        %v1729 = vrot.slane %v1727, 4
        %v1730 = vrot.slane %v1628, 5
        %v1731 = vsel %vm1724, %v1729, %v1730
        %v1732 = vrot.slane %v1629, 5
        %v1733 = vrot.slane %v1732, 4
        %v1734 = vrot.slane %v1630, 5
        %v1735 = vsel %vm1724, %v1733, %v1734
        %v1736 = vrot.slane %v1734, 4
        %v1737 = vrot.slane %v1631, 5
        %v1738 = vsel %vm1724, %v1736, %v1737
        %v1739 = vrot.slane %v1632, 5
        %v1740 = vrot.slane %v1739, 4
        %v1741 = vrot.slane %v1633, 5
        %v1742 = vsel %vm1724, %v1740, %v1741
        %v1743 = vrot.slane %v1741, 4
        %v1744 = vrot.slane %v1634, 5
        %v1745 = vsel %vm1724, %v1743, %v1744
        %v1746 = vrot.slane %v1635, 5
        %v1747 = vrot.slane %v1746, 4
        %v1748 = vrot.slane %v1636, 5
        %v1749 = vsel %vm1724, %v1747, %v1748
        %v1750 = vrot.slane %v1748, 4
        %v1751 = vrot.slane %v1637, 5
        %v1752 = vsel %vm1724, %v1750, %v1751
        %v1753 = vrot.slane %v1638, 5
        %v1754 = vrot.slane %v1753, 4
        %v1755 = vrot.slane %v1639, 5
        %v1756 = vsel %vm1724, %v1754, %v1755
        %v1757 = vrot.slane %v1755, 4
        %v1758 = vrot.slane %v1640, 5
        %v1759 = vsel %vm1724, %v1757, %v1758
        %v1760 = vrot.slane %v1641, 5
        %v1761 = vrot.slane %v1760, 4
        %v1762 = vrot.slane %v1642, 5
        %v1763 = vsel %vm1724, %v1761, %v1762
        %v1764 = vrot.slane %v1762, 4
        %v1765 = vrot.slane %v1643, 5
        %v1766 = vsel %vm1724, %v1764, %v1765
        %v1767 = vrot.slane %v1644, 5
        %v1768 = vrot.slane %v1767, 4
        %v1769 = vrot.slane %v1645, 5
        %v1770 = vsel %vm1724, %v1768, %v1769
        %v1771 = vrot.slane %v1769, 4
        %v1772 = vrot.slane %v1646, 5
        %v1773 = vsel %vm1724, %v1771, %v1772
        %v1774 = vrot.slane %v1647, 5
        %v1775 = vrot.slane %v1774, 4
        %v1776 = vrot.slane %v1648, 5
        %v1777 = vsel %vm1724, %v1775, %v1776
        %v1778 = vrot.slane %v1776, 4
        %v1779 = vrot.slane %v1649, 5
        %v1780 = vsel %vm1724, %v1778, %v1779
        %v1781 = vrot.slane %v1650, 5
        %v1782 = vrot.slane %v1781, 4
        %v1783 = vrot.slane %v1651, 5
        %v1784 = vsel %vm1724, %v1782, %v1783
        %v1785 = vrot.slane %v1783, 4
        %v1786 = vrot.slane %v1652, 5
        %v1787 = vsel %vm1724, %v1785, %v1786
        %v1788 = vrot.slane %v1653, 5
        %v1789 = vrot.slane %v1788, 4
        %v1790 = vrot.slane %v1654, 5
        %v1791 = vsel %vm1724, %v1789, %v1790
        %v1792 = vrot.slane %v1790, 4
        %v1793 = vrot.slane %v1655, 5
        %v1794 = vsel %vm1724, %v1792, %v1793
        %v1795 = vrot.slane %v1656, 5
        %v1796 = vrot.slane %v1795, 4
        %v1797 = vrot.slane %v1657, 5
        %v1798 = vsel %vm1724, %v1796, %v1797
        %v1799 = vrot.slane %v1797, 4
        %v1800 = vrot.slane %v1658, 5
        %v1801 = vsel %vm1724, %v1799, %v1800
        %v1802 = vrot.slane %v1659, 5
        %v1803 = vrot.slane %v1802, 4
        %v1804 = vrot.slane %v1660, 5
        %v1805 = vsel %vm1724, %v1803, %v1804
        %v1806 = vrot.slane %v1804, 4
        %v1807 = vrot.slane %v1661, 5
        %v1808 = vsel %vm1724, %v1806, %v1807
        %v1809 = vrot.slane %v1662, 5
        %v1810 = vrot.slane %v1809, 4
        %v1811 = vrot.slane %v1663, 5
        %v1812 = vsel %vm1724, %v1810, %v1811
        %v1813 = vrot.slane %v1811, 4
        %v1814 = vrot.slane %v1664, 5
        %v1815 = vsel %vm1724, %v1813, %v1814
        %v1816 = vrot.slane %v1665, 5
        %v1817 = vrot.slane %v1816, 4
        %v1818 = vrot.slane %v1666, 5
        %v1819 = vsel %vm1724, %v1817, %v1818
        %v1820 = vrot.slane %v1818, 4
        %v1821 = vrot.slane %v1667, 5
        %v1822 = vsel %vm1724, %v1820, %v1821
        %v1823 = vrot.slane %v1668, 5
        %v1824 = vrot.slane %v1823, 4
        %v1825 = vrot.slane %v1669, 5
        %v1826 = vsel %vm1724, %v1824, %v1825
        %v1827 = vrot.slane %v1825, 4
        %v1828 = vrot.slane %v1670, 5
        %v1829 = vsel %vm1724, %v1827, %v1828
        %v1830 = vrot.slane %v1671, 5
        %v1831 = vrot.slane %v1830, 4
        %v1832 = vrot.slane %v1672, 5
        %v1833 = vsel %vm1724, %v1831, %v1832
        %v1834 = vrot.slane %v1832, 4
        %v1835 = vrot.slane %v1673, 5
        %v1836 = vsel %vm1724, %v1834, %v1835
        %1869 = vst [vmem:[#allocation4 + $0x8] sm:$0xf] %v1728
        %1870 = vst [vmem:[#allocation4 + $0x2c] sm:$0xf] %v1731
        %1871 = vst [vmem:[#allocation4 + $0x50] sm:$0xf] %v1735
        %1872 = vst [vmem:[#allocation4 + $0x74] sm:$0xf] %v1738
        %1873 = vst [vmem:[#allocation4 + $0x98] sm:$0xf] %v1742
        %1874 = vst [vmem:[#allocation4 + $0xbc] sm:$0xf] %v1745
        %1875 = vst [vmem:[#allocation4 + $0xe0] sm:$0xf] %v1749
        %1876 = vst [vmem:[#allocation4 + $0x104] sm:$0xf] %v1752
        %1877 = vst [vmem:[#allocation4 + $0x128] sm:$0xf] %v1756
        %1878 = vst [vmem:[#allocation4 + $0x14c] sm:$0xf] %v1759
        %1879 = vst [vmem:[#allocation4 + $0x170] sm:$0xf] %v1763
        %1880 = vst [vmem:[#allocation4 + $0x194] sm:$0xf] %v1766
        %1881 = vst [vmem:[#allocation4 + $0x1b8] sm:$0xf] %v1770
        %1882 = vst [vmem:[#allocation4 + $0x1dc] sm:$0xf] %v1773
        %1883 = vst [vmem:[#allocation4 + $0x200] sm:$0xf] %v1777
        %1884 = vst [vmem:[#allocation4 + $0x224] sm:$0xf] %v1780
        %1885 = vst [vmem:[#allocation4 + $0x248] sm:$0xf] %v1784
        %1886 = vst [vmem:[#allocation4 + $0x26c] sm:$0xf] %v1787
        %1887 = vst [vmem:[#allocation4 + $0x290] sm:$0xf] %v1791
        %1888 = vst [vmem:[#allocation4 + $0x2b4] sm:$0xf] %v1794
        %1889 = vst [vmem:[#allocation4 + $0x2d8] sm:$0xf] %v1798
        %1890 = vst [vmem:[#allocation4 + $0x2fc] sm:$0xf] %v1801
        %1891 = vst [vmem:[#allocation4 + $0x320] sm:$0xf] %v1805
        %1892 = vst [vmem:[#allocation4 + $0x344] sm:$0xf] %v1808
        %1893 = vst [vmem:[#allocation4 + $0x368] sm:$0xf] %v1812
        %1894 = vst [vmem:[#allocation4 + $0x38c] sm:$0xf] %v1815
        %1895 = vst [vmem:[#allocation4 + $0x3b0] sm:$0xf] %v1819
        %1896 = vst [vmem:[#allocation4 + $0x3d4] sm:$0xf] %v1822
        %1897 = vst [vmem:[#allocation4 + $0x3f8] sm:$0xf] %v1826
        %1898 = vst [vmem:[#allocation4 + $0x41c] sm:$0xf] %v1829
        %1899 = vst [vmem:[#allocation4 + $0x440] sm:$0xf] %v1833
        %1900 = vst [vmem:[#allocation4 + $0x464] sm:$0xf] %v1836
        %v1901 = vld [vmem:[%s948] sm:$0xf]
        %v1902 = vld [vmem:[%s948 + $0x4] sm:$0xf]
        %v1903 = vld [vmem:[%s948 + $0xc] sm:$0xf]
        %v1904 = vld [vmem:[%s948 + $0x10] sm:$0xf]
        %v1905 = vld [vmem:[%s948 + $0x18] sm:$0xf]
        %v1906 = vld [vmem:[%s948 + $0x1c] sm:$0xf]
        %v1907 = vld [vmem:[%s948 + $0x24] sm:$0xf]
        %v1908 = vld [vmem:[%s948 + $0x28] sm:$0xf]
        %v1909 = vld [vmem:[%s948 + $0x30] sm:$0xf]
        %v1910 = vld [vmem:[%s948 + $0x34] sm:$0xf]
        %v1911 = vld [vmem:[%s948 + $0x3c] sm:$0xf]
        %v1912 = vld [vmem:[%s948 + $0x40] sm:$0xf]
        %v1913 = vld [vmem:[%s948 + $0x48] sm:$0xf]
        %v1914 = vld [vmem:[%s948 + $0x4c] sm:$0xf]
        %v1915 = vld [vmem:[%s948 + $0x54] sm:$0xf]
        %v1916 = vld [vmem:[%s948 + $0x58] sm:$0xf]
        %v1917 = vld [vmem:[%s948 + $0x60] sm:$0xf]
        %v1918 = vld [vmem:[%s948 + $0x64] sm:$0xf]
        %v1919 = vld [vmem:[%s948 + $0x6c] sm:$0xf]
        %v1920 = vld [vmem:[%s948 + $0x70] sm:$0xf]
        %v1921 = vld [vmem:[%s948 + $0x78] sm:$0xf]
        %v1922 = vld [vmem:[%s948 + $0x7c] sm:$0xf]
        %v1923 = vld [vmem:[%s948 + $0x84] sm:$0xf]
        %v1924 = vld [vmem:[%s948 + $0x88] sm:$0xf]
        %v1925 = vld [vmem:[%s948 + $0x90] sm:$0xf]
        %v1926 = vld [vmem:[%s948 + $0x94] sm:$0xf]
        %v1927 = vld [vmem:[%s948 + $0x9c] sm:$0xf]
        %v1928 = vld [vmem:[%s948 + $0xa0] sm:$0xf]
        %v1929 = vld [vmem:[%s948 + $0xa8] sm:$0xf]
        %v1930 = vld [vmem:[%s948 + $0xac] sm:$0xf]
        %v1931 = vld [vmem:[%s948 + $0xb4] sm:$0xf]
        %v1932 = vld [vmem:[%s948 + $0xb8] sm:$0xf]
        %1933 = vst [vmem:[#allocation4 + $0xc] sm:$0xf] %v1901
        %1934 = vst [vmem:[#allocation4 + $0x30] sm:$0xf] %v1902
        %1935 = vst [vmem:[#allocation4 + $0x54] sm:$0xf] %v1903
        %1936 = vst [vmem:[#allocation4 + $0x78] sm:$0xf] %v1904
        %1937 = vst [vmem:[#allocation4 + $0x9c] sm:$0xf] %v1905
        %1938 = vst [vmem:[#allocation4 + $0xc0] sm:$0xf] %v1906
        %1939 = vst [vmem:[#allocation4 + $0xe4] sm:$0xf] %v1907
        %1940 = vst [vmem:[#allocation4 + $0x108] sm:$0xf] %v1908
        %1941 = vst [vmem:[#allocation4 + $0x12c] sm:$0xf] %v1909
        %1942 = vst [vmem:[#allocation4 + $0x150] sm:$0xf] %v1910
        %1943 = vst [vmem:[#allocation4 + $0x174] sm:$0xf] %v1911
        %1944 = vst [vmem:[#allocation4 + $0x198] sm:$0xf] %v1912
        %1945 = vst [vmem:[#allocation4 + $0x1bc] sm:$0xf] %v1913
        %1946 = vst [vmem:[#allocation4 + $0x1e0] sm:$0xf] %v1914
        %1947 = vst [vmem:[#allocation4 + $0x204] sm:$0xf] %v1915
        %1948 = vst [vmem:[#allocation4 + $0x228] sm:$0xf] %v1916
        %1949 = vst [vmem:[#allocation4 + $0x24c] sm:$0xf] %v1917
        %1950 = vst [vmem:[#allocation4 + $0x270] sm:$0xf] %v1918
        %1951 = vst [vmem:[#allocation4 + $0x294] sm:$0xf] %v1919
        %1952 = vst [vmem:[#allocation4 + $0x2b8] sm:$0xf] %v1920
        %1953 = vst [vmem:[#allocation4 + $0x2dc] sm:$0xf] %v1921
        %1954 = vst [vmem:[#allocation4 + $0x300] sm:$0xf] %v1922
        %1955 = vst [vmem:[#allocation4 + $0x324] sm:$0xf] %v1923
        %1956 = vst [vmem:[#allocation4 + $0x348] sm:$0xf] %v1924
        %1957 = vst [vmem:[#allocation4 + $0x36c] sm:$0xf] %v1925
        %1958 = vst [vmem:[#allocation4 + $0x390] sm:$0xf] %v1926
        %1959 = vst [vmem:[#allocation4 + $0x3b4] sm:$0xf] %v1927
        %1960 = vst [vmem:[#allocation4 + $0x3d8] sm:$0xf] %v1928
        %1961 = vst [vmem:[#allocation4 + $0x3fc] sm:$0xf] %v1929
        %1962 = vst [vmem:[#allocation4 + $0x420] sm:$0xf] %v1930
        %1963 = vst [vmem:[#allocation4 + $0x444] sm:$0xf] %v1931
        %1964 = vst [vmem:[#allocation4 + $0x468] sm:$0xf] %v1932
        %v1965 = vld [vmem:[%s948] sm:$0xf]
        %v1966 = vld [vmem:[%s948 + $0x4] sm:$0xf]
        %v1967 = vld [vmem:[%s948 + $0x8] sm:$0x1]
        %v1968 = vld [vmem:[%s948 + $0xc] sm:$0xf]
        %v1969 = vld [vmem:[%s948 + $0x10] sm:$0xf]
        %v1970 = vld [vmem:[%s948 + $0x14] sm:$0x1]
        %v1971 = vld [vmem:[%s948 + $0x18] sm:$0xf]
        %v1972 = vld [vmem:[%s948 + $0x1c] sm:$0xf]
        %v1973 = vld [vmem:[%s948 + $0x20] sm:$0x1]
        %v1974 = vld [vmem:[%s948 + $0x24] sm:$0xf]
        %v1975 = vld [vmem:[%s948 + $0x28] sm:$0xf]
        %v1976 = vld [vmem:[%s948 + $0x2c] sm:$0x1]
        %v1977 = vld [vmem:[%s948 + $0x30] sm:$0xf]
        %v1978 = vld [vmem:[%s948 + $0x34] sm:$0xf]
        %v1979 = vld [vmem:[%s948 + $0x38] sm:$0x1]
        %v1980 = vld [vmem:[%s948 + $0x3c] sm:$0xf]
        %v1981 = vld [vmem:[%s948 + $0x40] sm:$0xf]
        %v1982 = vld [vmem:[%s948 + $0x44] sm:$0x1]
        %v1983 = vld [vmem:[%s948 + $0x48] sm:$0xf]
        %v1984 = vld [vmem:[%s948 + $0x4c] sm:$0xf]
        %v1985 = vld [vmem:[%s948 + $0x50] sm:$0x1]
        %v1986 = vld [vmem:[%s948 + $0x54] sm:$0xf]
        %v1987 = vld [vmem:[%s948 + $0x58] sm:$0xf]
        %v1988 = vld [vmem:[%s948 + $0x5c] sm:$0x1]
        %v1989 = vld [vmem:[%s948 + $0x60] sm:$0xf]
        %v1990 = vld [vmem:[%s948 + $0x64] sm:$0xf]
        %v1991 = vld [vmem:[%s948 + $0x68] sm:$0x1]
        %v1992 = vld [vmem:[%s948 + $0x6c] sm:$0xf]
        %v1993 = vld [vmem:[%s948 + $0x70] sm:$0xf]
        %v1994 = vld [vmem:[%s948 + $0x74] sm:$0x1]
        %v1995 = vld [vmem:[%s948 + $0x78] sm:$0xf]
        %v1996 = vld [vmem:[%s948 + $0x7c] sm:$0xf]
        %v1997 = vld [vmem:[%s948 + $0x80] sm:$0x1]
        %v1998 = vld [vmem:[%s948 + $0x84] sm:$0xf]
        %v1999 = vld [vmem:[%s948 + $0x88] sm:$0xf]
        %v2000 = vld [vmem:[%s948 + $0x8c] sm:$0x1]
        %v2001 = vld [vmem:[%s948 + $0x90] sm:$0xf]
        %v2002 = vld [vmem:[%s948 + $0x94] sm:$0xf]
        %v2003 = vld [vmem:[%s948 + $0x98] sm:$0x1]
        %v2004 = vld [vmem:[%s948 + $0x9c] sm:$0xf]
        %v2005 = vld [vmem:[%s948 + $0xa0] sm:$0xf]
        %v2006 = vld [vmem:[%s948 + $0xa4] sm:$0x1]
        %v2007 = vld [vmem:[%s948 + $0xa8] sm:$0xf]
        %v2008 = vld [vmem:[%s948 + $0xac] sm:$0xf]
        %v2009 = vld [vmem:[%s948 + $0xb0] sm:$0x1]
        %v2010 = vld [vmem:[%s948 + $0xb4] sm:$0xf]
        %v2011 = vld [vmem:[%s948 + $0xb8] sm:$0xf]
        %v2012 = vld [vmem:[%s948 + $0xbc] sm:$0x1]
        %v2014 = vshrl.u32 %v1965, 16
        %v2016 = vrot.slane %v2014, 4
        %v2017 = vshll.u32 %v1965, 16
        %v2019 = vrot.slane %v2017, 5
        %v2020 = vor.u32 %v2016, %v2019
        %v2021 = vrot.slane %v2020, 4
        %v2023 = vshll.u32 %v1966, 16
        %v2025 = vrot.slane %v2023, 5
        %v2026 = vsel %vm1177, %v2021, %v2025
        %v2027 = vshrl.u32 %v1966, 16
        %v2029 = vrot.slane %v2027, 4
        %v2030 = vor.u32 %v2029, %v2025
        %v2031 = vrot.slane %v2030, 4
        %v2033 = vshll.u32 %v1967, 16
        %v2035 = vrot.slane %v2033, 5
        %v2036 = vsel %vm1177, %v2031, %v2035
        %v2038 = vshrl.u32 %v1968, 16
        %v2040 = vrot.slane %v2038, 4
        %v2041 = vshll.u32 %v1968, 16
        %v2043 = vrot.slane %v2041, 5
        %v2044 = vor.u32 %v2040, %v2043
        %v2045 = vrot.slane %v2044, 4
        %v2047 = vshll.u32 %v1969, 16
        %v2049 = vrot.slane %v2047, 5
        %v2050 = vsel %vm1177, %v2045, %v2049
        %v2051 = vshrl.u32 %v1969, 16
        %v2053 = vrot.slane %v2051, 4
        %v2054 = vor.u32 %v2053, %v2049
        %v2055 = vrot.slane %v2054, 4
        %v2057 = vshll.u32 %v1970, 16
        %v2059 = vrot.slane %v2057, 5
        %v2060 = vsel %vm1177, %v2055, %v2059
        %v2062 = vshrl.u32 %v1971, 16
        %v2064 = vrot.slane %v2062, 4
        %v2065 = vshll.u32 %v1971, 16
        %v2067 = vrot.slane %v2065, 5
        %v2068 = vor.u32 %v2064, %v2067
        %v2069 = vrot.slane %v2068, 4
        %v2071 = vshll.u32 %v1972, 16
        %v2073 = vrot.slane %v2071, 5
        %v2074 = vsel %vm1177, %v2069, %v2073
        %v2075 = vshrl.u32 %v1972, 16
        %v2077 = vrot.slane %v2075, 4
        %v2078 = vor.u32 %v2077, %v2073
        %v2079 = vrot.slane %v2078, 4
        %v2081 = vshll.u32 %v1973, 16
        %v2083 = vrot.slane %v2081, 5
        %v2084 = vsel %vm1177, %v2079, %v2083
        %v2086 = vshrl.u32 %v1974, 16
        %v2088 = vrot.slane %v2086, 4
        %v2089 = vshll.u32 %v1974, 16
        %v2091 = vrot.slane %v2089, 5
        %v2092 = vor.u32 %v2088, %v2091
        %v2093 = vrot.slane %v2092, 4
        %v2095 = vshll.u32 %v1975, 16
        %v2097 = vrot.slane %v2095, 5
        %v2098 = vsel %vm1177, %v2093, %v2097
        %v2099 = vshrl.u32 %v1975, 16
        %v2101 = vrot.slane %v2099, 4
        %v2102 = vor.u32 %v2101, %v2097
        %v2103 = vrot.slane %v2102, 4
        %v2105 = vshll.u32 %v1976, 16
        %v2107 = vrot.slane %v2105, 5
        %v2108 = vsel %vm1177, %v2103, %v2107
        %v2110 = vshrl.u32 %v1977, 16
        %v2112 = vrot.slane %v2110, 4
        %v2113 = vshll.u32 %v1977, 16
        %v2115 = vrot.slane %v2113, 5
        %v2116 = vor.u32 %v2112, %v2115
        %v2117 = vrot.slane %v2116, 4
        %v2119 = vshll.u32 %v1978, 16
        %v2121 = vrot.slane %v2119, 5
        %v2122 = vsel %vm1177, %v2117, %v2121
        %v2123 = vshrl.u32 %v1978, 16
        %v2125 = vrot.slane %v2123, 4
        %v2126 = vor.u32 %v2125, %v2121
        %v2127 = vrot.slane %v2126, 4
        %v2129 = vshll.u32 %v1979, 16
        %v2131 = vrot.slane %v2129, 5
        %v2132 = vsel %vm1177, %v2127, %v2131
        %v2134 = vshrl.u32 %v1980, 16
        %v2136 = vrot.slane %v2134, 4
        %v2137 = vshll.u32 %v1980, 16
        %v2139 = vrot.slane %v2137, 5
        %v2140 = vor.u32 %v2136, %v2139
        %v2141 = vrot.slane %v2140, 4
        %v2143 = vshll.u32 %v1981, 16
        %v2145 = vrot.slane %v2143, 5
        %v2146 = vsel %vm1177, %v2141, %v2145
        %v2147 = vshrl.u32 %v1981, 16
        %v2149 = vrot.slane %v2147, 4
        %v2150 = vor.u32 %v2149, %v2145
        %v2151 = vrot.slane %v2150, 4
        %v2153 = vshll.u32 %v1982, 16
        %v2155 = vrot.slane %v2153, 5
        %v2156 = vsel %vm1177, %v2151, %v2155
        %v2158 = vshrl.u32 %v1983, 16
        %v2160 = vrot.slane %v2158, 4
        %v2161 = vshll.u32 %v1983, 16
        %v2163 = vrot.slane %v2161, 5
        %v2164 = vor.u32 %v2160, %v2163
        %v2165 = vrot.slane %v2164, 4
        %v2167 = vshll.u32 %v1984, 16
        %v2169 = vrot.slane %v2167, 5
        %v2170 = vsel %vm1177, %v2165, %v2169
        %v2171 = vshrl.u32 %v1984, 16
        %v2173 = vrot.slane %v2171, 4
        %v2174 = vor.u32 %v2173, %v2169
        %v2175 = vrot.slane %v2174, 4
        %v2177 = vshll.u32 %v1985, 16
        %v2179 = vrot.slane %v2177, 5
        %v2180 = vsel %vm1177, %v2175, %v2179
        %v2182 = vshrl.u32 %v1986, 16
        %v2184 = vrot.slane %v2182, 4
        %v2185 = vshll.u32 %v1986, 16
        %v2187 = vrot.slane %v2185, 5
        %v2188 = vor.u32 %v2184, %v2187
        %v2189 = vrot.slane %v2188, 4
        %v2191 = vshll.u32 %v1987, 16
        %v2193 = vrot.slane %v2191, 5
        %v2194 = vsel %vm1177, %v2189, %v2193
        %v2195 = vshrl.u32 %v1987, 16
        %v2197 = vrot.slane %v2195, 4
        %v2198 = vor.u32 %v2197, %v2193
        %v2199 = vrot.slane %v2198, 4
        %v2201 = vshll.u32 %v1988, 16
        %v2203 = vrot.slane %v2201, 5
        %v2204 = vsel %vm1177, %v2199, %v2203
        %v2206 = vshrl.u32 %v1989, 16
        %v2208 = vrot.slane %v2206, 4
        %v2209 = vshll.u32 %v1989, 16
        %v2211 = vrot.slane %v2209, 5
        %v2212 = vor.u32 %v2208, %v2211
        %v2213 = vrot.slane %v2212, 4
        %v2215 = vshll.u32 %v1990, 16
        %v2217 = vrot.slane %v2215, 5
        %v2218 = vsel %vm1177, %v2213, %v2217
        %v2219 = vshrl.u32 %v1990, 16
        %v2221 = vrot.slane %v2219, 4
        %v2222 = vor.u32 %v2221, %v2217
        %v2223 = vrot.slane %v2222, 4
        %v2225 = vshll.u32 %v1991, 16
        %v2227 = vrot.slane %v2225, 5
        %v2228 = vsel %vm1177, %v2223, %v2227
        %v2230 = vshrl.u32 %v1992, 16
        %v2232 = vrot.slane %v2230, 4
        %v2233 = vshll.u32 %v1992, 16
        %v2235 = vrot.slane %v2233, 5
        %v2236 = vor.u32 %v2232, %v2235
        %v2237 = vrot.slane %v2236, 4
        %v2239 = vshll.u32 %v1993, 16
        %v2241 = vrot.slane %v2239, 5
        %v2242 = vsel %vm1177, %v2237, %v2241
        %v2243 = vshrl.u32 %v1993, 16
        %v2245 = vrot.slane %v2243, 4
        %v2246 = vor.u32 %v2245, %v2241
        %v2247 = vrot.slane %v2246, 4
        %v2249 = vshll.u32 %v1994, 16
        %v2251 = vrot.slane %v2249, 5
        %v2252 = vsel %vm1177, %v2247, %v2251
        %v2254 = vshrl.u32 %v1995, 16
        %v2256 = vrot.slane %v2254, 4
        %v2257 = vshll.u32 %v1995, 16
        %v2259 = vrot.slane %v2257, 5
        %v2260 = vor.u32 %v2256, %v2259
        %v2261 = vrot.slane %v2260, 4
        %v2263 = vshll.u32 %v1996, 16
        %v2265 = vrot.slane %v2263, 5
        %v2266 = vsel %vm1177, %v2261, %v2265
        %v2267 = vshrl.u32 %v1996, 16
        %v2269 = vrot.slane %v2267, 4
        %v2270 = vor.u32 %v2269, %v2265
        %v2271 = vrot.slane %v2270, 4
        %v2273 = vshll.u32 %v1997, 16
        %v2275 = vrot.slane %v2273, 5
        %v2276 = vsel %vm1177, %v2271, %v2275
        %v2278 = vshrl.u32 %v1998, 16
        %v2280 = vrot.slane %v2278, 4
        %v2281 = vshll.u32 %v1998, 16
        %v2283 = vrot.slane %v2281, 5
        %v2284 = vor.u32 %v2280, %v2283
        %v2285 = vrot.slane %v2284, 4
        %v2287 = vshll.u32 %v1999, 16
        %v2289 = vrot.slane %v2287, 5
        %v2290 = vsel %vm1177, %v2285, %v2289
        %v2291 = vshrl.u32 %v1999, 16
        %v2293 = vrot.slane %v2291, 4
        %v2294 = vor.u32 %v2293, %v2289
        %v2295 = vrot.slane %v2294, 4
        %v2297 = vshll.u32 %v2000, 16
        %v2299 = vrot.slane %v2297, 5
        %v2300 = vsel %vm1177, %v2295, %v2299
        %v2302 = vshrl.u32 %v2001, 16
        %v2304 = vrot.slane %v2302, 4
        %v2305 = vshll.u32 %v2001, 16
        %v2307 = vrot.slane %v2305, 5
        %v2308 = vor.u32 %v2304, %v2307
        %v2309 = vrot.slane %v2308, 4
        %v2311 = vshll.u32 %v2002, 16
        %v2313 = vrot.slane %v2311, 5
        %v2314 = vsel %vm1177, %v2309, %v2313
        %v2315 = vshrl.u32 %v2002, 16
        %v2317 = vrot.slane %v2315, 4
        %v2318 = vor.u32 %v2317, %v2313
        %v2319 = vrot.slane %v2318, 4
        %v2321 = vshll.u32 %v2003, 16
        %v2323 = vrot.slane %v2321, 5
        %v2324 = vsel %vm1177, %v2319, %v2323
        %v2326 = vshrl.u32 %v2004, 16
        %v2328 = vrot.slane %v2326, 4
        %v2329 = vshll.u32 %v2004, 16
        %v2331 = vrot.slane %v2329, 5
        %v2332 = vor.u32 %v2328, %v2331
        %v2333 = vrot.slane %v2332, 4
        %v2335 = vshll.u32 %v2005, 16
        %v2337 = vrot.slane %v2335, 5
        %v2338 = vsel %vm1177, %v2333, %v2337
        %v2339 = vshrl.u32 %v2005, 16
        %v2341 = vrot.slane %v2339, 4
        %v2342 = vor.u32 %v2341, %v2337
        %v2343 = vrot.slane %v2342, 4
        %v2345 = vshll.u32 %v2006, 16
        %v2347 = vrot.slane %v2345, 5
        %v2348 = vsel %vm1177, %v2343, %v2347
        %v2350 = vshrl.u32 %v2007, 16
        %v2352 = vrot.slane %v2350, 4
        %v2353 = vshll.u32 %v2007, 16
        %v2355 = vrot.slane %v2353, 5
        %v2356 = vor.u32 %v2352, %v2355
        %v2357 = vrot.slane %v2356, 4
        %v2359 = vshll.u32 %v2008, 16
        %v2361 = vrot.slane %v2359, 5
        %v2362 = vsel %vm1177, %v2357, %v2361
        %v2363 = vshrl.u32 %v2008, 16
        %v2365 = vrot.slane %v2363, 4
        %v2366 = vor.u32 %v2365, %v2361
        %v2367 = vrot.slane %v2366, 4
        %v2369 = vshll.u32 %v2009, 16
        %v2371 = vrot.slane %v2369, 5
        %v2372 = vsel %vm1177, %v2367, %v2371
        %v2374 = vshrl.u32 %v2010, 16
        %v2376 = vrot.slane %v2374, 4
        %v2377 = vshll.u32 %v2010, 16
        %v2379 = vrot.slane %v2377, 5
        %v2380 = vor.u32 %v2376, %v2379
        %v2381 = vrot.slane %v2380, 4
        %v2383 = vshll.u32 %v2011, 16
        %v2385 = vrot.slane %v2383, 5
        %v2386 = vsel %vm1177, %v2381, %v2385
        %v2387 = vshrl.u32 %v2011, 16
        %v2389 = vrot.slane %v2387, 4
        %v2390 = vor.u32 %v2389, %v2385
        %v2391 = vrot.slane %v2390, 4
        %v2393 = vshll.u32 %v2012, 16
        %v2395 = vrot.slane %v2393, 5
        %v2396 = vsel %vm1177, %v2391, %v2395
        %2429 = vst [vmem:[#allocation4 + $0x10] sm:$0xf] %v2026
        %2430 = vst [vmem:[#allocation4 + $0x34] sm:$0xf] %v2036
        %2431 = vst [vmem:[#allocation4 + $0x58] sm:$0xf] %v2050
        %2432 = vst [vmem:[#allocation4 + $0x7c] sm:$0xf] %v2060
        %2433 = vst [vmem:[#allocation4 + $0xa0] sm:$0xf] %v2074
        %2434 = vst [vmem:[#allocation4 + $0xc4] sm:$0xf] %v2084
        %2435 = vst [vmem:[#allocation4 + $0xe8] sm:$0xf] %v2098
        %2436 = vst [vmem:[#allocation4 + $0x10c] sm:$0xf] %v2108
        %2437 = vst [vmem:[#allocation4 + $0x130] sm:$0xf] %v2122
        %2438 = vst [vmem:[#allocation4 + $0x154] sm:$0xf] %v2132
        %2439 = vst [vmem:[#allocation4 + $0x178] sm:$0xf] %v2146
        %2440 = vst [vmem:[#allocation4 + $0x19c] sm:$0xf] %v2156
        %2441 = vst [vmem:[#allocation4 + $0x1c0] sm:$0xf] %v2170
        %2442 = vst [vmem:[#allocation4 + $0x1e4] sm:$0xf] %v2180
        %2443 = vst [vmem:[#allocation4 + $0x208] sm:$0xf] %v2194
        %2444 = vst [vmem:[#allocation4 + $0x22c] sm:$0xf] %v2204
        %2445 = vst [vmem:[#allocation4 + $0x250] sm:$0xf] %v2218
        %2446 = vst [vmem:[#allocation4 + $0x274] sm:$0xf] %v2228
        %2447 = vst [vmem:[#allocation4 + $0x298] sm:$0xf] %v2242
        %2448 = vst [vmem:[#allocation4 + $0x2bc] sm:$0xf] %v2252
        %2449 = vst [vmem:[#allocation4 + $0x2e0] sm:$0xf] %v2266
        %2450 = vst [vmem:[#allocation4 + $0x304] sm:$0xf] %v2276
        %2451 = vst [vmem:[#allocation4 + $0x328] sm:$0xf] %v2290
        %2452 = vst [vmem:[#allocation4 + $0x34c] sm:$0xf] %v2300
        %2453 = vst [vmem:[#allocation4 + $0x370] sm:$0xf] %v2314
        %2454 = vst [vmem:[#allocation4 + $0x394] sm:$0xf] %v2324
        %2455 = vst [vmem:[#allocation4 + $0x3b8] sm:$0xf] %v2338
        %2456 = vst [vmem:[#allocation4 + $0x3dc] sm:$0xf] %v2348
        %2457 = vst [vmem:[#allocation4 + $0x400] sm:$0xf] %v2362
        %2458 = vst [vmem:[#allocation4 + $0x424] sm:$0xf] %v2372
        %2459 = vst [vmem:[#allocation4 + $0x448] sm:$0xf] %v2386
        %2460 = vst [vmem:[#allocation4 + $0x46c] sm:$0xf] %v2396
        %v2461 = vld [vmem:[%s948] sm:$0xe]
        %v2462 = vld [vmem:[%s948 + $0x4] sm:$0xf]
        %v2463 = vld [vmem:[%s948 + $0x8] sm:$0x1]
        %v2464 = vld [vmem:[%s948 + $0xc] sm:$0xe]
        %v2465 = vld [vmem:[%s948 + $0x10] sm:$0xf]
        %v2466 = vld [vmem:[%s948 + $0x14] sm:$0x1]
        %v2467 = vld [vmem:[%s948 + $0x18] sm:$0xe]
        %v2468 = vld [vmem:[%s948 + $0x1c] sm:$0xf]
        %v2469 = vld [vmem:[%s948 + $0x20] sm:$0x1]
        %v2470 = vld [vmem:[%s948 + $0x24] sm:$0xe]
        %v2471 = vld [vmem:[%s948 + $0x28] sm:$0xf]
        %v2472 = vld [vmem:[%s948 + $0x2c] sm:$0x1]
        %v2473 = vld [vmem:[%s948 + $0x30] sm:$0xe]
        %v2474 = vld [vmem:[%s948 + $0x34] sm:$0xf]
        %v2475 = vld [vmem:[%s948 + $0x38] sm:$0x1]
        %v2476 = vld [vmem:[%s948 + $0x3c] sm:$0xe]
        %v2477 = vld [vmem:[%s948 + $0x40] sm:$0xf]
        %v2478 = vld [vmem:[%s948 + $0x44] sm:$0x1]
        %v2479 = vld [vmem:[%s948 + $0x48] sm:$0xe]
        %v2480 = vld [vmem:[%s948 + $0x4c] sm:$0xf]
        %v2481 = vld [vmem:[%s948 + $0x50] sm:$0x1]
        %v2482 = vld [vmem:[%s948 + $0x54] sm:$0xe]
        %v2483 = vld [vmem:[%s948 + $0x58] sm:$0xf]
        %v2484 = vld [vmem:[%s948 + $0x5c] sm:$0x1]
        %v2485 = vld [vmem:[%s948 + $0x60] sm:$0xe]
        %v2486 = vld [vmem:[%s948 + $0x64] sm:$0xf]
        %v2487 = vld [vmem:[%s948 + $0x68] sm:$0x1]
        %v2488 = vld [vmem:[%s948 + $0x6c] sm:$0xe]
        %v2489 = vld [vmem:[%s948 + $0x70] sm:$0xf]
        %v2490 = vld [vmem:[%s948 + $0x74] sm:$0x1]
        %v2491 = vld [vmem:[%s948 + $0x78] sm:$0xe]
        %v2492 = vld [vmem:[%s948 + $0x7c] sm:$0xf]
        %v2493 = vld [vmem:[%s948 + $0x80] sm:$0x1]
        %v2494 = vld [vmem:[%s948 + $0x84] sm:$0xe]
        %v2495 = vld [vmem:[%s948 + $0x88] sm:$0xf]
        %v2496 = vld [vmem:[%s948 + $0x8c] sm:$0x1]
        %v2497 = vld [vmem:[%s948 + $0x90] sm:$0xe]
        %v2498 = vld [vmem:[%s948 + $0x94] sm:$0xf]
        %v2499 = vld [vmem:[%s948 + $0x98] sm:$0x1]
        %v2500 = vld [vmem:[%s948 + $0x9c] sm:$0xe]
        %v2501 = vld [vmem:[%s948 + $0xa0] sm:$0xf]
        %v2502 = vld [vmem:[%s948 + $0xa4] sm:$0x1]
        %v2503 = vld [vmem:[%s948 + $0xa8] sm:$0xe]
        %v2504 = vld [vmem:[%s948 + $0xac] sm:$0xf]
        %v2505 = vld [vmem:[%s948 + $0xb0] sm:$0x1]
        %v2506 = vld [vmem:[%s948 + $0xb4] sm:$0xe]
        %v2507 = vld [vmem:[%s948 + $0xb8] sm:$0xf]
        %v2508 = vld [vmem:[%s948 + $0xbc] sm:$0x1]
        %v2557 = vrot.slane %v2461, 5
        %v2558 = vrot.slane %v2557, 4
        %v2559 = vrot.slane %v2462, 5
        %v2560 = vsel %vm1724, %v2558, %v2559
        %v2561 = vrot.slane %v2559, 4
        %v2562 = vrot.slane %v2463, 5
        %v2563 = vsel %vm1724, %v2561, %v2562
        %v2564 = vrot.slane %v2464, 5
        %v2565 = vrot.slane %v2564, 4
        %v2566 = vrot.slane %v2465, 5
        %v2567 = vsel %vm1724, %v2565, %v2566
        %v2568 = vrot.slane %v2566, 4
        %v2569 = vrot.slane %v2466, 5
        %v2570 = vsel %vm1724, %v2568, %v2569
        %v2571 = vrot.slane %v2467, 5
        %v2572 = vrot.slane %v2571, 4
        %v2573 = vrot.slane %v2468, 5
        %v2574 = vsel %vm1724, %v2572, %v2573
        %v2575 = vrot.slane %v2573, 4
        %v2576 = vrot.slane %v2469, 5
        %v2577 = vsel %vm1724, %v2575, %v2576
        %v2578 = vrot.slane %v2470, 5
        %v2579 = vrot.slane %v2578, 4
        %v2580 = vrot.slane %v2471, 5
        %v2581 = vsel %vm1724, %v2579, %v2580
        %v2582 = vrot.slane %v2580, 4
        %v2583 = vrot.slane %v2472, 5
        %v2584 = vsel %vm1724, %v2582, %v2583
        %v2585 = vrot.slane %v2473, 5
        %v2586 = vrot.slane %v2585, 4
        %v2587 = vrot.slane %v2474, 5
        %v2588 = vsel %vm1724, %v2586, %v2587
        %v2589 = vrot.slane %v2587, 4
        %v2590 = vrot.slane %v2475, 5
        %v2591 = vsel %vm1724, %v2589, %v2590
        %v2592 = vrot.slane %v2476, 5
        %v2593 = vrot.slane %v2592, 4
        %v2594 = vrot.slane %v2477, 5
        %v2595 = vsel %vm1724, %v2593, %v2594
        %v2596 = vrot.slane %v2594, 4
        %v2597 = vrot.slane %v2478, 5
        %v2598 = vsel %vm1724, %v2596, %v2597
        %v2599 = vrot.slane %v2479, 5
        %v2600 = vrot.slane %v2599, 4
        %v2601 = vrot.slane %v2480, 5
        %v2602 = vsel %vm1724, %v2600, %v2601
        %v2603 = vrot.slane %v2601, 4
        %v2604 = vrot.slane %v2481, 5
        %v2605 = vsel %vm1724, %v2603, %v2604
        %v2606 = vrot.slane %v2482, 5
        %v2607 = vrot.slane %v2606, 4
        %v2608 = vrot.slane %v2483, 5
        %v2609 = vsel %vm1724, %v2607, %v2608
        %v2610 = vrot.slane %v2608, 4
        %v2611 = vrot.slane %v2484, 5
        %v2612 = vsel %vm1724, %v2610, %v2611
        %v2613 = vrot.slane %v2485, 5
        %v2614 = vrot.slane %v2613, 4
        %v2615 = vrot.slane %v2486, 5
        %v2616 = vsel %vm1724, %v2614, %v2615
        %v2617 = vrot.slane %v2615, 4
        %v2618 = vrot.slane %v2487, 5
        %v2619 = vsel %vm1724, %v2617, %v2618
        %v2620 = vrot.slane %v2488, 5
        %v2621 = vrot.slane %v2620, 4
        %v2622 = vrot.slane %v2489, 5
        %v2623 = vsel %vm1724, %v2621, %v2622
        %v2624 = vrot.slane %v2622, 4
        %v2625 = vrot.slane %v2490, 5
        %v2626 = vsel %vm1724, %v2624, %v2625
        %v2627 = vrot.slane %v2491, 5
        %v2628 = vrot.slane %v2627, 4
        %v2629 = vrot.slane %v2492, 5
        %v2630 = vsel %vm1724, %v2628, %v2629
        %v2631 = vrot.slane %v2629, 4
        %v2632 = vrot.slane %v2493, 5
        %v2633 = vsel %vm1724, %v2631, %v2632
        %v2634 = vrot.slane %v2494, 5
        %v2635 = vrot.slane %v2634, 4
        %v2636 = vrot.slane %v2495, 5
        %v2637 = vsel %vm1724, %v2635, %v2636
        %v2638 = vrot.slane %v2636, 4
        %v2639 = vrot.slane %v2496, 5
        %v2640 = vsel %vm1724, %v2638, %v2639
        %v2641 = vrot.slane %v2497, 5
        %v2642 = vrot.slane %v2641, 4
        %v2643 = vrot.slane %v2498, 5
        %v2644 = vsel %vm1724, %v2642, %v2643
        %v2645 = vrot.slane %v2643, 4
        %v2646 = vrot.slane %v2499, 5
        %v2647 = vsel %vm1724, %v2645, %v2646
        %v2648 = vrot.slane %v2500, 5
        %v2649 = vrot.slane %v2648, 4
        %v2650 = vrot.slane %v2501, 5
        %v2651 = vsel %vm1724, %v2649, %v2650
        %v2652 = vrot.slane %v2650, 4
        %v2653 = vrot.slane %v2502, 5
        %v2654 = vsel %vm1724, %v2652, %v2653
        %v2655 = vrot.slane %v2503, 5
        %v2656 = vrot.slane %v2655, 4
        %v2657 = vrot.slane %v2504, 5
        %v2658 = vsel %vm1724, %v2656, %v2657
        %v2659 = vrot.slane %v2657, 4
        %v2660 = vrot.slane %v2505, 5
        %v2661 = vsel %vm1724, %v2659, %v2660
        %v2662 = vrot.slane %v2506, 5
        %v2663 = vrot.slane %v2662, 4
        %v2664 = vrot.slane %v2507, 5
        %v2665 = vsel %vm1724, %v2663, %v2664
        %v2666 = vrot.slane %v2664, 4
        %v2667 = vrot.slane %v2508, 5
        %v2668 = vsel %vm1724, %v2666, %v2667
        %2701 = vst [vmem:[#allocation4 + $0x14] sm:$0xf] %v2560
        %2702 = vst [vmem:[#allocation4 + $0x38] sm:$0xf] %v2563
        %2703 = vst [vmem:[#allocation4 + $0x5c] sm:$0xf] %v2567
        %2704 = vst [vmem:[#allocation4 + $0x80] sm:$0xf] %v2570
        %2705 = vst [vmem:[#allocation4 + $0xa4] sm:$0xf] %v2574
        %2706 = vst [vmem:[#allocation4 + $0xc8] sm:$0xf] %v2577
        %2707 = vst [vmem:[#allocation4 + $0xec] sm:$0xf] %v2581
        %2708 = vst [vmem:[#allocation4 + $0x110] sm:$0xf] %v2584
        %2709 = vst [vmem:[#allocation4 + $0x134] sm:$0xf] %v2588
        %2710 = vst [vmem:[#allocation4 + $0x158] sm:$0xf] %v2591
        %2711 = vst [vmem:[#allocation4 + $0x17c] sm:$0xf] %v2595
        %2712 = vst [vmem:[#allocation4 + $0x1a0] sm:$0xf] %v2598
        %2713 = vst [vmem:[#allocation4 + $0x1c4] sm:$0xf] %v2602
        %2714 = vst [vmem:[#allocation4 + $0x1e8] sm:$0xf] %v2605
        %2715 = vst [vmem:[#allocation4 + $0x20c] sm:$0xf] %v2609
        %2716 = vst [vmem:[#allocation4 + $0x230] sm:$0xf] %v2612
        %2717 = vst [vmem:[#allocation4 + $0x254] sm:$0xf] %v2616
        %2718 = vst [vmem:[#allocation4 + $0x278] sm:$0xf] %v2619
        %2719 = vst [vmem:[#allocation4 + $0x29c] sm:$0xf] %v2623
        %2720 = vst [vmem:[#allocation4 + $0x2c0] sm:$0xf] %v2626
        %2721 = vst [vmem:[#allocation4 + $0x2e4] sm:$0xf] %v2630
        %2722 = vst [vmem:[#allocation4 + $0x308] sm:$0xf] %v2633
        %2723 = vst [vmem:[#allocation4 + $0x32c] sm:$0xf] %v2637
        %2724 = vst [vmem:[#allocation4 + $0x350] sm:$0xf] %v2640
        %2725 = vst [vmem:[#allocation4 + $0x374] sm:$0xf] %v2644
        %2726 = vst [vmem:[#allocation4 + $0x398] sm:$0xf] %v2647
        %2727 = vst [vmem:[#allocation4 + $0x3bc] sm:$0xf] %v2651
        %2728 = vst [vmem:[#allocation4 + $0x3e0] sm:$0xf] %v2654
        %2729 = vst [vmem:[#allocation4 + $0x404] sm:$0xf] %v2658
        %2730 = vst [vmem:[#allocation4 + $0x428] sm:$0xf] %v2661
        %2731 = vst [vmem:[#allocation4 + $0x44c] sm:$0xf] %v2665
        %2732 = vst [vmem:[#allocation4 + $0x470] sm:$0xf] %v2668
        %s2733 = scalar_lea.vmem [#allocation2], 24
        %v2734 = vld [vmem:[%s2733] sm:$0xf]
        %v2735 = vld [vmem:[%s2733 + $0x4] sm:$0xf]
        %v2736 = vld [vmem:[%s2733 + $0xc] sm:$0xf]
        %v2737 = vld [vmem:[%s2733 + $0x10] sm:$0xf]
        %v2738 = vld [vmem:[%s2733 + $0x18] sm:$0xf]
        %v2739 = vld [vmem:[%s2733 + $0x1c] sm:$0xf]
        %v2740 = vld [vmem:[%s2733 + $0x24] sm:$0xf]
        %v2741 = vld [vmem:[%s2733 + $0x28] sm:$0xf]
        %v2742 = vld [vmem:[%s2733 + $0x30] sm:$0xf]
        %v2743 = vld [vmem:[%s2733 + $0x34] sm:$0xf]
        %v2744 = vld [vmem:[%s2733 + $0x3c] sm:$0xf]
        %v2745 = vld [vmem:[%s2733 + $0x40] sm:$0xf]
        %v2746 = vld [vmem:[%s2733 + $0x48] sm:$0xf]
        %v2747 = vld [vmem:[%s2733 + $0x4c] sm:$0xf]
        %v2748 = vld [vmem:[%s2733 + $0x54] sm:$0xf]
        %v2749 = vld [vmem:[%s2733 + $0x58] sm:$0xf]
        %v2750 = vld [vmem:[%s2733 + $0x60] sm:$0xf]
        %v2751 = vld [vmem:[%s2733 + $0x64] sm:$0xf]
        %v2752 = vld [vmem:[%s2733 + $0x6c] sm:$0xf]
        %v2753 = vld [vmem:[%s2733 + $0x70] sm:$0xf]
        %v2754 = vld [vmem:[%s2733 + $0x78] sm:$0xf]
        %v2755 = vld [vmem:[%s2733 + $0x7c] sm:$0xf]
        %v2756 = vld [vmem:[%s2733 + $0x84] sm:$0xf]
        %v2757 = vld [vmem:[%s2733 + $0x88] sm:$0xf]
        %v2758 = vld [vmem:[%s2733 + $0x90] sm:$0xf]
        %v2759 = vld [vmem:[%s2733 + $0x94] sm:$0xf]
        %v2760 = vld [vmem:[%s2733 + $0x9c] sm:$0xf]
        %v2761 = vld [vmem:[%s2733 + $0xa0] sm:$0xf]
        %v2762 = vld [vmem:[%s2733 + $0xa8] sm:$0xf]
        %v2763 = vld [vmem:[%s2733 + $0xac] sm:$0xf]
        %v2764 = vld [vmem:[%s2733 + $0xb4] sm:$0xf]
        %v2765 = vld [vmem:[%s2733 + $0xb8] sm:$0xf]
        %2766 = vst [vmem:[#allocation4 + $0x18] sm:$0xf] %v2734
        %2767 = vst [vmem:[#allocation4 + $0x3c] sm:$0xf] %v2735
        %2768 = vst [vmem:[#allocation4 + $0x60] sm:$0xf] %v2736
        %2769 = vst [vmem:[#allocation4 + $0x84] sm:$0xf] %v2737
        %2770 = vst [vmem:[#allocation4 + $0xa8] sm:$0xf] %v2738
        %2771 = vst [vmem:[#allocation4 + $0xcc] sm:$0xf] %v2739
        %2772 = vst [vmem:[#allocation4 + $0xf0] sm:$0xf] %v2740
        %2773 = vst [vmem:[#allocation4 + $0x114] sm:$0xf] %v2741
        %2774 = vst [vmem:[#allocation4 + $0x138] sm:$0xf] %v2742
        %2775 = vst [vmem:[#allocation4 + $0x15c] sm:$0xf] %v2743
        %2776 = vst [vmem:[#allocation4 + $0x180] sm:$0xf] %v2744
        %2777 = vst [vmem:[#allocation4 + $0x1a4] sm:$0xf] %v2745
        %2778 = vst [vmem:[#allocation4 + $0x1c8] sm:$0xf] %v2746
        %2779 = vst [vmem:[#allocation4 + $0x1ec] sm:$0xf] %v2747
        %2780 = vst [vmem:[#allocation4 + $0x210] sm:$0xf] %v2748
        %2781 = vst [vmem:[#allocation4 + $0x234] sm:$0xf] %v2749
        %2782 = vst [vmem:[#allocation4 + $0x258] sm:$0xf] %v2750
        %2783 = vst [vmem:[#allocation4 + $0x27c] sm:$0xf] %v2751
        %2784 = vst [vmem:[#allocation4 + $0x2a0] sm:$0xf] %v2752
        %2785 = vst [vmem:[#allocation4 + $0x2c4] sm:$0xf] %v2753
        %2786 = vst [vmem:[#allocation4 + $0x2e8] sm:$0xf] %v2754
        %2787 = vst [vmem:[#allocation4 + $0x30c] sm:$0xf] %v2755
        %2788 = vst [vmem:[#allocation4 + $0x330] sm:$0xf] %v2756
        %2789 = vst [vmem:[#allocation4 + $0x354] sm:$0xf] %v2757
        %2790 = vst [vmem:[#allocation4 + $0x378] sm:$0xf] %v2758
        %2791 = vst [vmem:[#allocation4 + $0x39c] sm:$0xf] %v2759
        %2792 = vst [vmem:[#allocation4 + $0x3c0] sm:$0xf] %v2760
        %2793 = vst [vmem:[#allocation4 + $0x3e4] sm:$0xf] %v2761
        %2794 = vst [vmem:[#allocation4 + $0x408] sm:$0xf] %v2762
        %2795 = vst [vmem:[#allocation4 + $0x42c] sm:$0xf] %v2763
        %2796 = vst [vmem:[#allocation4 + $0x450] sm:$0xf] %v2764
        %2797 = vst [vmem:[#allocation4 + $0x474] sm:$0xf] %v2765
        %v2798 = vld [vmem:[%s2733] sm:$0xf]
        %v2799 = vld [vmem:[%s2733 + $0x4] sm:$0xf]
        %v2800 = vld [vmem:[%s2733 + $0x8] sm:$0x1]
        %v2801 = vld [vmem:[%s2733 + $0xc] sm:$0xf]
        %v2802 = vld [vmem:[%s2733 + $0x10] sm:$0xf]
        %v2803 = vld [vmem:[%s2733 + $0x14] sm:$0x1]
        %v2804 = vld [vmem:[%s2733 + $0x18] sm:$0xf]
        %v2805 = vld [vmem:[%s2733 + $0x1c] sm:$0xf]
        %v2806 = vld [vmem:[%s2733 + $0x20] sm:$0x1]
        %v2807 = vld [vmem:[%s2733 + $0x24] sm:$0xf]
        %v2808 = vld [vmem:[%s2733 + $0x28] sm:$0xf]
        %v2809 = vld [vmem:[%s2733 + $0x2c] sm:$0x1]
        %v2810 = vld [vmem:[%s2733 + $0x30] sm:$0xf]
        %v2811 = vld [vmem:[%s2733 + $0x34] sm:$0xf]
        %v2812 = vld [vmem:[%s2733 + $0x38] sm:$0x1]
        %v2813 = vld [vmem:[%s2733 + $0x3c] sm:$0xf]
        %v2814 = vld [vmem:[%s2733 + $0x40] sm:$0xf]
        %v2815 = vld [vmem:[%s2733 + $0x44] sm:$0x1]
        %v2816 = vld [vmem:[%s2733 + $0x48] sm:$0xf]
        %v2817 = vld [vmem:[%s2733 + $0x4c] sm:$0xf]
        %v2818 = vld [vmem:[%s2733 + $0x50] sm:$0x1]
        %v2819 = vld [vmem:[%s2733 + $0x54] sm:$0xf]
        %v2820 = vld [vmem:[%s2733 + $0x58] sm:$0xf]
        %v2821 = vld [vmem:[%s2733 + $0x5c] sm:$0x1]
        %v2822 = vld [vmem:[%s2733 + $0x60] sm:$0xf]
        %v2823 = vld [vmem:[%s2733 + $0x64] sm:$0xf]
        %v2824 = vld [vmem:[%s2733 + $0x68] sm:$0x1]
        %v2825 = vld [vmem:[%s2733 + $0x6c] sm:$0xf]
        %v2826 = vld [vmem:[%s2733 + $0x70] sm:$0xf]
        %v2827 = vld [vmem:[%s2733 + $0x74] sm:$0x1]
        %v2828 = vld [vmem:[%s2733 + $0x78] sm:$0xf]
        %v2829 = vld [vmem:[%s2733 + $0x7c] sm:$0xf]
        %v2830 = vld [vmem:[%s2733 + $0x80] sm:$0x1]
        %v2831 = vld [vmem:[%s2733 + $0x84] sm:$0xf]
        %v2832 = vld [vmem:[%s2733 + $0x88] sm:$0xf]
        %v2833 = vld [vmem:[%s2733 + $0x8c] sm:$0x1]
        %v2834 = vld [vmem:[%s2733 + $0x90] sm:$0xf]
        %v2835 = vld [vmem:[%s2733 + $0x94] sm:$0xf]
        %v2836 = vld [vmem:[%s2733 + $0x98] sm:$0x1]
        %v2837 = vld [vmem:[%s2733 + $0x9c] sm:$0xf]
        %v2838 = vld [vmem:[%s2733 + $0xa0] sm:$0xf]
        %v2839 = vld [vmem:[%s2733 + $0xa4] sm:$0x1]
        %v2840 = vld [vmem:[%s2733 + $0xa8] sm:$0xf]
        %v2841 = vld [vmem:[%s2733 + $0xac] sm:$0xf]
        %v2842 = vld [vmem:[%s2733 + $0xb0] sm:$0x1]
        %v2843 = vld [vmem:[%s2733 + $0xb4] sm:$0xf]
        %v2844 = vld [vmem:[%s2733 + $0xb8] sm:$0xf]
        %v2845 = vld [vmem:[%s2733 + $0xbc] sm:$0x1]
        %v2847 = vshrl.u32 %v2798, 16
        %v2849 = vrot.slane %v2847, 4
        %v2850 = vshll.u32 %v2798, 16
        %v2852 = vrot.slane %v2850, 5
        %v2853 = vor.u32 %v2849, %v2852
        %v2854 = vrot.slane %v2853, 4
        %v2856 = vshll.u32 %v2799, 16
        %v2858 = vrot.slane %v2856, 5
        %v2859 = vsel %vm1177, %v2854, %v2858
        %v2860 = vshrl.u32 %v2799, 16
        %v2862 = vrot.slane %v2860, 4
        %v2863 = vor.u32 %v2862, %v2858
        %v2864 = vrot.slane %v2863, 4
        %v2866 = vshll.u32 %v2800, 16
        %v2868 = vrot.slane %v2866, 5
        %v2869 = vsel %vm1177, %v2864, %v2868
        %v2871 = vshrl.u32 %v2801, 16
        %v2873 = vrot.slane %v2871, 4
        %v2874 = vshll.u32 %v2801, 16
        %v2876 = vrot.slane %v2874, 5
        %v2877 = vor.u32 %v2873, %v2876
        %v2878 = vrot.slane %v2877, 4
        %v2880 = vshll.u32 %v2802, 16
        %v2882 = vrot.slane %v2880, 5
        %v2883 = vsel %vm1177, %v2878, %v2882
        %v2884 = vshrl.u32 %v2802, 16
        %v2886 = vrot.slane %v2884, 4
        %v2887 = vor.u32 %v2886, %v2882
        %v2888 = vrot.slane %v2887, 4
        %v2890 = vshll.u32 %v2803, 16
        %v2892 = vrot.slane %v2890, 5
        %v2893 = vsel %vm1177, %v2888, %v2892
        %v2895 = vshrl.u32 %v2804, 16
        %v2897 = vrot.slane %v2895, 4
        %v2898 = vshll.u32 %v2804, 16
        %v2900 = vrot.slane %v2898, 5
        %v2901 = vor.u32 %v2897, %v2900
        %v2902 = vrot.slane %v2901, 4
        %v2904 = vshll.u32 %v2805, 16
        %v2906 = vrot.slane %v2904, 5
        %v2907 = vsel %vm1177, %v2902, %v2906
        %v2908 = vshrl.u32 %v2805, 16
        %v2910 = vrot.slane %v2908, 4
        %v2911 = vor.u32 %v2910, %v2906
        %v2912 = vrot.slane %v2911, 4
        %v2914 = vshll.u32 %v2806, 16
        %v2916 = vrot.slane %v2914, 5
        %v2917 = vsel %vm1177, %v2912, %v2916
        %v2919 = vshrl.u32 %v2807, 16
        %v2921 = vrot.slane %v2919, 4
        %v2922 = vshll.u32 %v2807, 16
        %v2924 = vrot.slane %v2922, 5
        %v2925 = vor.u32 %v2921, %v2924
        %v2926 = vrot.slane %v2925, 4
        %v2928 = vshll.u32 %v2808, 16
        %v2930 = vrot.slane %v2928, 5
        %v2931 = vsel %vm1177, %v2926, %v2930
        %v2932 = vshrl.u32 %v2808, 16
        %v2934 = vrot.slane %v2932, 4
        %v2935 = vor.u32 %v2934, %v2930
        %v2936 = vrot.slane %v2935, 4
        %v2938 = vshll.u32 %v2809, 16
        %v2940 = vrot.slane %v2938, 5
        %v2941 = vsel %vm1177, %v2936, %v2940
        %v2943 = vshrl.u32 %v2810, 16
        %v2945 = vrot.slane %v2943, 4
        %v2946 = vshll.u32 %v2810, 16
        %v2948 = vrot.slane %v2946, 5
        %v2949 = vor.u32 %v2945, %v2948
        %v2950 = vrot.slane %v2949, 4
        %v2952 = vshll.u32 %v2811, 16
        %v2954 = vrot.slane %v2952, 5
        %v2955 = vsel %vm1177, %v2950, %v2954
        %v2956 = vshrl.u32 %v2811, 16
        %v2958 = vrot.slane %v2956, 4
        %v2959 = vor.u32 %v2958, %v2954
        %v2960 = vrot.slane %v2959, 4
        %v2962 = vshll.u32 %v2812, 16
        %v2964 = vrot.slane %v2962, 5
        %v2965 = vsel %vm1177, %v2960, %v2964
        %v2967 = vshrl.u32 %v2813, 16
        %v2969 = vrot.slane %v2967, 4
        %v2970 = vshll.u32 %v2813, 16
        %v2972 = vrot.slane %v2970, 5
        %v2973 = vor.u32 %v2969, %v2972
        %v2974 = vrot.slane %v2973, 4
        %v2976 = vshll.u32 %v2814, 16
        %v2978 = vrot.slane %v2976, 5
        %v2979 = vsel %vm1177, %v2974, %v2978
        %v2980 = vshrl.u32 %v2814, 16
        %v2982 = vrot.slane %v2980, 4
        %v2983 = vor.u32 %v2982, %v2978
        %v2984 = vrot.slane %v2983, 4
        %v2986 = vshll.u32 %v2815, 16
        %v2988 = vrot.slane %v2986, 5
        %v2989 = vsel %vm1177, %v2984, %v2988
        %v2991 = vshrl.u32 %v2816, 16
        %v2993 = vrot.slane %v2991, 4
        %v2994 = vshll.u32 %v2816, 16
        %v2996 = vrot.slane %v2994, 5
        %v2997 = vor.u32 %v2993, %v2996
        %v2998 = vrot.slane %v2997, 4
        %v3000 = vshll.u32 %v2817, 16
        %v3002 = vrot.slane %v3000, 5
        %v3003 = vsel %vm1177, %v2998, %v3002
        %v3004 = vshrl.u32 %v2817, 16
        %v3006 = vrot.slane %v3004, 4
        %v3007 = vor.u32 %v3006, %v3002
        %v3008 = vrot.slane %v3007, 4
        %v3010 = vshll.u32 %v2818, 16
        %v3012 = vrot.slane %v3010, 5
        %v3013 = vsel %vm1177, %v3008, %v3012
        %v3015 = vshrl.u32 %v2819, 16
        %v3017 = vrot.slane %v3015, 4
        %v3018 = vshll.u32 %v2819, 16
        %v3020 = vrot.slane %v3018, 5
        %v3021 = vor.u32 %v3017, %v3020
        %v3022 = vrot.slane %v3021, 4
        %v3024 = vshll.u32 %v2820, 16
        %v3026 = vrot.slane %v3024, 5
        %v3027 = vsel %vm1177, %v3022, %v3026
        %v3028 = vshrl.u32 %v2820, 16
        %v3030 = vrot.slane %v3028, 4
        %v3031 = vor.u32 %v3030, %v3026
        %v3032 = vrot.slane %v3031, 4
        %v3034 = vshll.u32 %v2821, 16
        %v3036 = vrot.slane %v3034, 5
        %v3037 = vsel %vm1177, %v3032, %v3036
        %v3039 = vshrl.u32 %v2822, 16
        %v3041 = vrot.slane %v3039, 4
        %v3042 = vshll.u32 %v2822, 16
        %v3044 = vrot.slane %v3042, 5
        %v3045 = vor.u32 %v3041, %v3044
        %v3046 = vrot.slane %v3045, 4
        %v3048 = vshll.u32 %v2823, 16
        %v3050 = vrot.slane %v3048, 5
        %v3051 = vsel %vm1177, %v3046, %v3050
        %v3052 = vshrl.u32 %v2823, 16
        %v3054 = vrot.slane %v3052, 4
        %v3055 = vor.u32 %v3054, %v3050
        %v3056 = vrot.slane %v3055, 4
        %v3058 = vshll.u32 %v2824, 16
        %v3060 = vrot.slane %v3058, 5
        %v3061 = vsel %vm1177, %v3056, %v3060
        %v3063 = vshrl.u32 %v2825, 16
        %v3065 = vrot.slane %v3063, 4
        %v3066 = vshll.u32 %v2825, 16
        %v3068 = vrot.slane %v3066, 5
        %v3069 = vor.u32 %v3065, %v3068
        %v3070 = vrot.slane %v3069, 4
        %v3072 = vshll.u32 %v2826, 16
        %v3074 = vrot.slane %v3072, 5
        %v3075 = vsel %vm1177, %v3070, %v3074
        %v3076 = vshrl.u32 %v2826, 16
        %v3078 = vrot.slane %v3076, 4
        %v3079 = vor.u32 %v3078, %v3074
        %v3080 = vrot.slane %v3079, 4
        %v3082 = vshll.u32 %v2827, 16
        %v3084 = vrot.slane %v3082, 5
        %v3085 = vsel %vm1177, %v3080, %v3084
        %v3087 = vshrl.u32 %v2828, 16
        %v3089 = vrot.slane %v3087, 4
        %v3090 = vshll.u32 %v2828, 16
        %v3092 = vrot.slane %v3090, 5
        %v3093 = vor.u32 %v3089, %v3092
        %v3094 = vrot.slane %v3093, 4
        %v3096 = vshll.u32 %v2829, 16
        %v3098 = vrot.slane %v3096, 5
        %v3099 = vsel %vm1177, %v3094, %v3098
        %v3100 = vshrl.u32 %v2829, 16
        %v3102 = vrot.slane %v3100, 4
        %v3103 = vor.u32 %v3102, %v3098
        %v3104 = vrot.slane %v3103, 4
        %v3106 = vshll.u32 %v2830, 16
        %v3108 = vrot.slane %v3106, 5
        %v3109 = vsel %vm1177, %v3104, %v3108
        %v3111 = vshrl.u32 %v2831, 16
        %v3113 = vrot.slane %v3111, 4
        %v3114 = vshll.u32 %v2831, 16
        %v3116 = vrot.slane %v3114, 5
        %v3117 = vor.u32 %v3113, %v3116
        %v3118 = vrot.slane %v3117, 4
        %v3120 = vshll.u32 %v2832, 16
        %v3122 = vrot.slane %v3120, 5
        %v3123 = vsel %vm1177, %v3118, %v3122
        %v3124 = vshrl.u32 %v2832, 16
        %v3126 = vrot.slane %v3124, 4
        %v3127 = vor.u32 %v3126, %v3122
        %v3128 = vrot.slane %v3127, 4
        %v3130 = vshll.u32 %v2833, 16
        %v3132 = vrot.slane %v3130, 5
        %v3133 = vsel %vm1177, %v3128, %v3132
        %v3135 = vshrl.u32 %v2834, 16
        %v3137 = vrot.slane %v3135, 4
        %v3138 = vshll.u32 %v2834, 16
        %v3140 = vrot.slane %v3138, 5
        %v3141 = vor.u32 %v3137, %v3140
        %v3142 = vrot.slane %v3141, 4
        %v3144 = vshll.u32 %v2835, 16
        %v3146 = vrot.slane %v3144, 5
        %v3147 = vsel %vm1177, %v3142, %v3146
        %v3148 = vshrl.u32 %v2835, 16
        %v3150 = vrot.slane %v3148, 4
        %v3151 = vor.u32 %v3150, %v3146
        %v3152 = vrot.slane %v3151, 4
        %v3154 = vshll.u32 %v2836, 16
        %v3156 = vrot.slane %v3154, 5
        %v3157 = vsel %vm1177, %v3152, %v3156
        %v3159 = vshrl.u32 %v2837, 16
        %v3161 = vrot.slane %v3159, 4
        %v3162 = vshll.u32 %v2837, 16
        %v3164 = vrot.slane %v3162, 5
        %v3165 = vor.u32 %v3161, %v3164
        %v3166 = vrot.slane %v3165, 4
        %v3168 = vshll.u32 %v2838, 16
        %v3170 = vrot.slane %v3168, 5
        %v3171 = vsel %vm1177, %v3166, %v3170
        %v3172 = vshrl.u32 %v2838, 16
        %v3174 = vrot.slane %v3172, 4
        %v3175 = vor.u32 %v3174, %v3170
        %v3176 = vrot.slane %v3175, 4
        %v3178 = vshll.u32 %v2839, 16
        %v3180 = vrot.slane %v3178, 5
        %v3181 = vsel %vm1177, %v3176, %v3180
        %v3183 = vshrl.u32 %v2840, 16
        %v3185 = vrot.slane %v3183, 4
        %v3186 = vshll.u32 %v2840, 16
        %v3188 = vrot.slane %v3186, 5
        %v3189 = vor.u32 %v3185, %v3188
        %v3190 = vrot.slane %v3189, 4
        %v3192 = vshll.u32 %v2841, 16
        %v3194 = vrot.slane %v3192, 5
        %v3195 = vsel %vm1177, %v3190, %v3194
        %v3196 = vshrl.u32 %v2841, 16
        %v3198 = vrot.slane %v3196, 4
        %v3199 = vor.u32 %v3198, %v3194
        %v3200 = vrot.slane %v3199, 4
        %v3202 = vshll.u32 %v2842, 16
        %v3204 = vrot.slane %v3202, 5
        %v3205 = vsel %vm1177, %v3200, %v3204
        %v3207 = vshrl.u32 %v2843, 16
        %v3209 = vrot.slane %v3207, 4
        %v3210 = vshll.u32 %v2843, 16
        %v3212 = vrot.slane %v3210, 5
        %v3213 = vor.u32 %v3209, %v3212
        %v3214 = vrot.slane %v3213, 4
        %v3216 = vshll.u32 %v2844, 16
        %v3218 = vrot.slane %v3216, 5
        %v3219 = vsel %vm1177, %v3214, %v3218
        %v3220 = vshrl.u32 %v2844, 16
        %v3222 = vrot.slane %v3220, 4
        %v3223 = vor.u32 %v3222, %v3218
        %v3224 = vrot.slane %v3223, 4
        %v3226 = vshll.u32 %v2845, 16
        %v3228 = vrot.slane %v3226, 5
        %v3229 = vsel %vm1177, %v3224, %v3228
        %3262 = vst [vmem:[#allocation4 + $0x1c] sm:$0xf] %v2859
        %3263 = vst [vmem:[#allocation4 + $0x40] sm:$0xf] %v2869
        %3264 = vst [vmem:[#allocation4 + $0x64] sm:$0xf] %v2883
        %3265 = vst [vmem:[#allocation4 + $0x88] sm:$0xf] %v2893
        %3266 = vst [vmem:[#allocation4 + $0xac] sm:$0xf] %v2907
        %3267 = vst [vmem:[#allocation4 + $0xd0] sm:$0xf] %v2917
        %3268 = vst [vmem:[#allocation4 + $0xf4] sm:$0xf] %v2931
        %3269 = vst [vmem:[#allocation4 + $0x118] sm:$0xf] %v2941
        %3270 = vst [vmem:[#allocation4 + $0x13c] sm:$0xf] %v2955
        %3271 = vst [vmem:[#allocation4 + $0x160] sm:$0xf] %v2965
        %3272 = vst [vmem:[#allocation4 + $0x184] sm:$0xf] %v2979
        %3273 = vst [vmem:[#allocation4 + $0x1a8] sm:$0xf] %v2989
        %3274 = vst [vmem:[#allocation4 + $0x1cc] sm:$0xf] %v3003
        %3275 = vst [vmem:[#allocation4 + $0x1f0] sm:$0xf] %v3013
        %3276 = vst [vmem:[#allocation4 + $0x214] sm:$0xf] %v3027
        %3277 = vst [vmem:[#allocation4 + $0x238] sm:$0xf] %v3037
        %3278 = vst [vmem:[#allocation4 + $0x25c] sm:$0xf] %v3051
        %3279 = vst [vmem:[#allocation4 + $0x280] sm:$0xf] %v3061
        %3280 = vst [vmem:[#allocation4 + $0x2a4] sm:$0xf] %v3075
        %3281 = vst [vmem:[#allocation4 + $0x2c8] sm:$0xf] %v3085
        %3282 = vst [vmem:[#allocation4 + $0x2ec] sm:$0xf] %v3099
        %3283 = vst [vmem:[#allocation4 + $0x310] sm:$0xf] %v3109
        %3284 = vst [vmem:[#allocation4 + $0x334] sm:$0xf] %v3123
        %3285 = vst [vmem:[#allocation4 + $0x358] sm:$0xf] %v3133
        %3286 = vst [vmem:[#allocation4 + $0x37c] sm:$0xf] %v3147
        %3287 = vst [vmem:[#allocation4 + $0x3a0] sm:$0xf] %v3157
        %3288 = vst [vmem:[#allocation4 + $0x3c4] sm:$0xf] %v3171
        %3289 = vst [vmem:[#allocation4 + $0x3e8] sm:$0xf] %v3181
        %3290 = vst [vmem:[#allocation4 + $0x40c] sm:$0xf] %v3195
        %3291 = vst [vmem:[#allocation4 + $0x430] sm:$0xf] %v3205
        %3292 = vst [vmem:[#allocation4 + $0x454] sm:$0xf] %v3219
        %3293 = vst [vmem:[#allocation4 + $0x478] sm:$0xf] %v3229
        %v3294 = vld [vmem:[%s2733] sm:$0xe]
        %v3295 = vld [vmem:[%s2733 + $0x4] sm:$0xf]
        %v3296 = vld [vmem:[%s2733 + $0x8] sm:$0x1]
        %v3297 = vld [vmem:[%s2733 + $0xc] sm:$0xe]
        %v3298 = vld [vmem:[%s2733 + $0x10] sm:$0xf]
        %v3299 = vld [vmem:[%s2733 + $0x14] sm:$0x1]
        %v3300 = vld [vmem:[%s2733 + $0x18] sm:$0xe]
        %v3301 = vld [vmem:[%s2733 + $0x1c] sm:$0xf]
        %v3302 = vld [vmem:[%s2733 + $0x20] sm:$0x1]
        %v3303 = vld [vmem:[%s2733 + $0x24] sm:$0xe]
        %v3304 = vld [vmem:[%s2733 + $0x28] sm:$0xf]
        %v3305 = vld [vmem:[%s2733 + $0x2c] sm:$0x1]
        %v3306 = vld [vmem:[%s2733 + $0x30] sm:$0xe]
        %v3307 = vld [vmem:[%s2733 + $0x34] sm:$0xf]
        %v3308 = vld [vmem:[%s2733 + $0x38] sm:$0x1]
        %v3309 = vld [vmem:[%s2733 + $0x3c] sm:$0xe]
        %v3310 = vld [vmem:[%s2733 + $0x40] sm:$0xf]
        %v3311 = vld [vmem:[%s2733 + $0x44] sm:$0x1]
        %v3312 = vld [vmem:[%s2733 + $0x48] sm:$0xe]
        %v3313 = vld [vmem:[%s2733 + $0x4c] sm:$0xf]
        %v3314 = vld [vmem:[%s2733 + $0x50] sm:$0x1]
        %v3315 = vld [vmem:[%s2733 + $0x54] sm:$0xe]
        %v3316 = vld [vmem:[%s2733 + $0x58] sm:$0xf]
        %v3317 = vld [vmem:[%s2733 + $0x5c] sm:$0x1]
        %v3318 = vld [vmem:[%s2733 + $0x60] sm:$0xe]
        %v3319 = vld [vmem:[%s2733 + $0x64] sm:$0xf]
        %v3320 = vld [vmem:[%s2733 + $0x68] sm:$0x1]
        %v3321 = vld [vmem:[%s2733 + $0x6c] sm:$0xe]
        %v3322 = vld [vmem:[%s2733 + $0x70] sm:$0xf]
        %v3323 = vld [vmem:[%s2733 + $0x74] sm:$0x1]
        %v3324 = vld [vmem:[%s2733 + $0x78] sm:$0xe]
        %v3325 = vld [vmem:[%s2733 + $0x7c] sm:$0xf]
        %v3326 = vld [vmem:[%s2733 + $0x80] sm:$0x1]
        %v3327 = vld [vmem:[%s2733 + $0x84] sm:$0xe]
        %v3328 = vld [vmem:[%s2733 + $0x88] sm:$0xf]
        %v3329 = vld [vmem:[%s2733 + $0x8c] sm:$0x1]
        %v3330 = vld [vmem:[%s2733 + $0x90] sm:$0xe]
        %v3331 = vld [vmem:[%s2733 + $0x94] sm:$0xf]
        %v3332 = vld [vmem:[%s2733 + $0x98] sm:$0x1]
        %v3333 = vld [vmem:[%s2733 + $0x9c] sm:$0xe]
        %v3334 = vld [vmem:[%s2733 + $0xa0] sm:$0xf]
        %v3335 = vld [vmem:[%s2733 + $0xa4] sm:$0x1]
        %v3336 = vld [vmem:[%s2733 + $0xa8] sm:$0xe]
        %v3337 = vld [vmem:[%s2733 + $0xac] sm:$0xf]
        %v3338 = vld [vmem:[%s2733 + $0xb0] sm:$0x1]
        %v3339 = vld [vmem:[%s2733 + $0xb4] sm:$0xe]
        %v3340 = vld [vmem:[%s2733 + $0xb8] sm:$0xf]
        %v3341 = vld [vmem:[%s2733 + $0xbc] sm:$0x1]
        %v3390 = vrot.slane %v3294, 5
        %v3391 = vrot.slane %v3390, 4
        %v3392 = vrot.slane %v3295, 5
        %v3393 = vsel %vm1724, %v3391, %v3392
        %v3394 = vrot.slane %v3392, 4
        %v3395 = vrot.slane %v3296, 5
        %v3396 = vsel %vm1724, %v3394, %v3395
        %v3397 = vrot.slane %v3297, 5
        %v3398 = vrot.slane %v3397, 4
        %v3399 = vrot.slane %v3298, 5
        %v3400 = vsel %vm1724, %v3398, %v3399
        %v3401 = vrot.slane %v3399, 4
        %v3402 = vrot.slane %v3299, 5
        %v3403 = vsel %vm1724, %v3401, %v3402
        %v3404 = vrot.slane %v3300, 5
        %v3405 = vrot.slane %v3404, 4
        %v3406 = vrot.slane %v3301, 5
        %v3407 = vsel %vm1724, %v3405, %v3406
        %v3408 = vrot.slane %v3406, 4
        %v3409 = vrot.slane %v3302, 5
        %v3410 = vsel %vm1724, %v3408, %v3409
        %v3411 = vrot.slane %v3303, 5
        %v3412 = vrot.slane %v3411, 4
        %v3413 = vrot.slane %v3304, 5
        %v3414 = vsel %vm1724, %v3412, %v3413
        %v3415 = vrot.slane %v3413, 4
        %v3416 = vrot.slane %v3305, 5
        %v3417 = vsel %vm1724, %v3415, %v3416
        %v3418 = vrot.slane %v3306, 5
        %v3419 = vrot.slane %v3418, 4
        %v3420 = vrot.slane %v3307, 5
        %v3421 = vsel %vm1724, %v3419, %v3420
        %v3422 = vrot.slane %v3420, 4
        %v3423 = vrot.slane %v3308, 5
        %v3424 = vsel %vm1724, %v3422, %v3423
        %v3425 = vrot.slane %v3309, 5
        %v3426 = vrot.slane %v3425, 4
        %v3427 = vrot.slane %v3310, 5
        %v3428 = vsel %vm1724, %v3426, %v3427
        %v3429 = vrot.slane %v3427, 4
        %v3430 = vrot.slane %v3311, 5
        %v3431 = vsel %vm1724, %v3429, %v3430
        %v3432 = vrot.slane %v3312, 5
        %v3433 = vrot.slane %v3432, 4
        %v3434 = vrot.slane %v3313, 5
        %v3435 = vsel %vm1724, %v3433, %v3434
        %v3436 = vrot.slane %v3434, 4
        %v3437 = vrot.slane %v3314, 5
        %v3438 = vsel %vm1724, %v3436, %v3437
        %v3439 = vrot.slane %v3315, 5
        %v3440 = vrot.slane %v3439, 4
        %v3441 = vrot.slane %v3316, 5
        %v3442 = vsel %vm1724, %v3440, %v3441
        %v3443 = vrot.slane %v3441, 4
        %v3444 = vrot.slane %v3317, 5
        %v3445 = vsel %vm1724, %v3443, %v3444
        %v3446 = vrot.slane %v3318, 5
        %v3447 = vrot.slane %v3446, 4
        %v3448 = vrot.slane %v3319, 5
        %v3449 = vsel %vm1724, %v3447, %v3448
        %v3450 = vrot.slane %v3448, 4
        %v3451 = vrot.slane %v3320, 5
        %v3452 = vsel %vm1724, %v3450, %v3451
        %v3453 = vrot.slane %v3321, 5
        %v3454 = vrot.slane %v3453, 4
        %v3455 = vrot.slane %v3322, 5
        %v3456 = vsel %vm1724, %v3454, %v3455
        %v3457 = vrot.slane %v3455, 4
        %v3458 = vrot.slane %v3323, 5
        %v3459 = vsel %vm1724, %v3457, %v3458
        %v3460 = vrot.slane %v3324, 5
        %v3461 = vrot.slane %v3460, 4
        %v3462 = vrot.slane %v3325, 5
        %v3463 = vsel %vm1724, %v3461, %v3462
        %v3464 = vrot.slane %v3462, 4
        %v3465 = vrot.slane %v3326, 5
        %v3466 = vsel %vm1724, %v3464, %v3465
        %v3467 = vrot.slane %v3327, 5
        %v3468 = vrot.slane %v3467, 4
        %v3469 = vrot.slane %v3328, 5
        %v3470 = vsel %vm1724, %v3468, %v3469
        %v3471 = vrot.slane %v3469, 4
        %v3472 = vrot.slane %v3329, 5
        %v3473 = vsel %vm1724, %v3471, %v3472
        %v3474 = vrot.slane %v3330, 5
        %v3475 = vrot.slane %v3474, 4
        %v3476 = vrot.slane %v3331, 5
        %v3477 = vsel %vm1724, %v3475, %v3476
        %v3478 = vrot.slane %v3476, 4
        %v3479 = vrot.slane %v3332, 5
        %v3480 = vsel %vm1724, %v3478, %v3479
        %v3481 = vrot.slane %v3333, 5
        %v3482 = vrot.slane %v3481, 4
        %v3483 = vrot.slane %v3334, 5
        %v3484 = vsel %vm1724, %v3482, %v3483
        %v3485 = vrot.slane %v3483, 4
        %v3486 = vrot.slane %v3335, 5
        %v3487 = vsel %vm1724, %v3485, %v3486
        %v3488 = vrot.slane %v3336, 5
        %v3489 = vrot.slane %v3488, 4
        %v3490 = vrot.slane %v3337, 5
        %v3491 = vsel %vm1724, %v3489, %v3490
        %v3492 = vrot.slane %v3490, 4
        %v3493 = vrot.slane %v3338, 5
        %v3494 = vsel %vm1724, %v3492, %v3493
        %v3495 = vrot.slane %v3339, 5
        %v3496 = vrot.slane %v3495, 4
        %v3497 = vrot.slane %v3340, 5
        %v3498 = vsel %vm1724, %v3496, %v3497
        %v3499 = vrot.slane %v3497, 4
        %v3500 = vrot.slane %v3341, 5
        %v3501 = vsel %vm1724, %v3499, %v3500
        %3534 = vst [vmem:[#allocation4 + $0x20] sm:$0xf] %v3393
        %3535 = vst [vmem:[#allocation4 + $0x44] sm:$0xf] %v3396
        %3536 = vst [vmem:[#allocation4 + $0x68] sm:$0xf] %v3400
        %3537 = vst [vmem:[#allocation4 + $0x8c] sm:$0xf] %v3403
        %3538 = vst [vmem:[#allocation4 + $0xb0] sm:$0xf] %v3407
        %3539 = vst [vmem:[#allocation4 + $0xd4] sm:$0xf] %v3410
        %3540 = vst [vmem:[#allocation4 + $0xf8] sm:$0xf] %v3414
        %3541 = vst [vmem:[#allocation4 + $0x11c] sm:$0xf] %v3417
        %3542 = vst [vmem:[#allocation4 + $0x140] sm:$0xf] %v3421
        %3543 = vst [vmem:[#allocation4 + $0x164] sm:$0xf] %v3424
        %3544 = vst [vmem:[#allocation4 + $0x188] sm:$0xf] %v3428
        %3545 = vst [vmem:[#allocation4 + $0x1ac] sm:$0xf] %v3431
        %3546 = vst [vmem:[#allocation4 + $0x1d0] sm:$0xf] %v3435
        %3547 = vst [vmem:[#allocation4 + $0x1f4] sm:$0xf] %v3438
        %3548 = vst [vmem:[#allocation4 + $0x218] sm:$0xf] %v3442
        %3549 = vst [vmem:[#allocation4 + $0x23c] sm:$0xf] %v3445
        %3550 = vst [vmem:[#allocation4 + $0x260] sm:$0xf] %v3449
        %3551 = vst [vmem:[#allocation4 + $0x284] sm:$0xf] %v3452
        %3552 = vst [vmem:[#allocation4 + $0x2a8] sm:$0xf] %v3456
        %3553 = vst [vmem:[#allocation4 + $0x2cc] sm:$0xf] %v3459
        %3554 = vst [vmem:[#allocation4 + $0x2f0] sm:$0xf] %v3463
        %3555 = vst [vmem:[#allocation4 + $0x314] sm:$0xf] %v3466
        %3556 = vst [vmem:[#allocation4 + $0x338] sm:$0xf] %v3470
        %3557 = vst [vmem:[#allocation4 + $0x35c] sm:$0xf] %v3473
        %3558 = vst [vmem:[#allocation4 + $0x380] sm:$0xf] %v3477
        %3559 = vst [vmem:[#allocation4 + $0x3a4] sm:$0xf] %v3480
        %3560 = vst [vmem:[#allocation4 + $0x3c8] sm:$0xf] %v3484
        %3561 = vst [vmem:[#allocation4 + $0x3ec] sm:$0xf] %v3487
        %3562 = vst [vmem:[#allocation4 + $0x410] sm:$0xf] %v3491
        %3563 = vst [vmem:[#allocation4 + $0x434] sm:$0xf] %v3494
        %3564 = vst [vmem:[#allocation4 + $0x458] sm:$0xf] %v3498
        %3565 = vst [vmem:[#allocation4 + $0x47c] sm:$0xf] %v3501
        %v3566 = vld [vmem:[#allocation4] sm:$0xff]
        %v3567 = vld [vmem:[#allocation4 + $0x8] sm:$0xff]
        %v3568 = vld [vmem:[#allocation4 + $0x10] sm:$0xff]
        %v3569 = vld [vmem:[#allocation4 + $0x18] sm:$0xff]
        %v3570 = vld [vmem:[#allocation4 + $0x20] sm:$0xf]
        %v3571 = vld [vmem:[#allocation4 + $0x24] sm:$0xff]
        %v3572 = vld [vmem:[#allocation4 + $0x2c] sm:$0xff]
        %v3573 = vld [vmem:[#allocation4 + $0x34] sm:$0xff]
        %v3574 = vld [vmem:[#allocation4 + $0x3c] sm:$0xff]
        %v3575 = vld [vmem:[#allocation4 + $0x44] sm:$0xf]
        %v3576 = vld [vmem:[#allocation4 + $0x48] sm:$0xff]
        %v3577 = vld [vmem:[#allocation4 + $0x50] sm:$0xff]
        %v3578 = vld [vmem:[#allocation4 + $0x58] sm:$0xff]
        %v3579 = vld [vmem:[#allocation4 + $0x60] sm:$0xff]
        %v3580 = vld [vmem:[#allocation4 + $0x68] sm:$0xf]
        %v3581 = vld [vmem:[#allocation4 + $0x6c] sm:$0xff]
        %v3582 = vld [vmem:[#allocation4 + $0x74] sm:$0xff]
        %v3583 = vld [vmem:[#allocation4 + $0x7c] sm:$0xff]
        %v3584 = vld [vmem:[#allocation4 + $0x84] sm:$0xff]
        %v3585 = vld [vmem:[#allocation4 + $0x8c] sm:$0xf]
        %v3586 = vld [vmem:[#allocation4 + $0x90] sm:$0xff]
        %v3587 = vld [vmem:[#allocation4 + $0x98] sm:$0xff]
        %v3588 = vld [vmem:[#allocation4 + $0xa0] sm:$0xff]
        %v3589 = vld [vmem:[#allocation4 + $0xa8] sm:$0xff]
        %v3590 = vld [vmem:[#allocation4 + $0xb0] sm:$0xf]
        %v3591 = vld [vmem:[#allocation4 + $0xb4] sm:$0xff]
        %v3592 = vld [vmem:[#allocation4 + $0xbc] sm:$0xff]
        %v3593 = vld [vmem:[#allocation4 + $0xc4] sm:$0xff]
        %v3594 = vld [vmem:[#allocation4 + $0xcc] sm:$0xff]
        %v3595 = vld [vmem:[#allocation4 + $0xd4] sm:$0xf]
        %v3596 = vld [vmem:[#allocation4 + $0xd8] sm:$0xff]
        %v3597 = vld [vmem:[#allocation4 + $0xe0] sm:$0xff]
        %v3598 = vld [vmem:[#allocation4 + $0xe8] sm:$0xff]
        %v3599 = vld [vmem:[#allocation4 + $0xf0] sm:$0xff]
        %v3600 = vld [vmem:[#allocation4 + $0xf8] sm:$0xf]
        %v3601 = vld [vmem:[#allocation4 + $0xfc] sm:$0xff]
        %v3602 = vld [vmem:[#allocation4 + $0x104] sm:$0xff]
        %v3603 = vld [vmem:[#allocation4 + $0x10c] sm:$0xff]
        %v3604 = vld [vmem:[#allocation4 + $0x114] sm:$0xff]
        %v3605 = vld [vmem:[#allocation4 + $0x11c] sm:$0xf]
        %v3606 = vld [vmem:[#allocation4 + $0x120] sm:$0xff]
        %v3607 = vld [vmem:[#allocation4 + $0x128] sm:$0xff]
        %v3608 = vld [vmem:[#allocation4 + $0x130] sm:$0xff]
        %v3609 = vld [vmem:[#allocation4 + $0x138] sm:$0xff]
        %v3610 = vld [vmem:[#allocation4 + $0x140] sm:$0xf]
        %v3611 = vld [vmem:[#allocation4 + $0x144] sm:$0xff]
        %v3612 = vld [vmem:[#allocation4 + $0x14c] sm:$0xff]
        %v3613 = vld [vmem:[#allocation4 + $0x154] sm:$0xff]
        %v3614 = vld [vmem:[#allocation4 + $0x15c] sm:$0xff]
        %v3615 = vld [vmem:[#allocation4 + $0x164] sm:$0xf]
        %v3616 = vld [vmem:[#allocation4 + $0x168] sm:$0xff]
        %v3617 = vld [vmem:[#allocation4 + $0x170] sm:$0xff]
        %v3618 = vld [vmem:[#allocation4 + $0x178] sm:$0xff]
        %v3619 = vld [vmem:[#allocation4 + $0x180] sm:$0xff]
        %v3620 = vld [vmem:[#allocation4 + $0x188] sm:$0xf]
        %v3621 = vld [vmem:[#allocation4 + $0x18c] sm:$0xff]
        %v3622 = vld [vmem:[#allocation4 + $0x194] sm:$0xff]
        %v3623 = vld [vmem:[#allocation4 + $0x19c] sm:$0xff]
        %v3624 = vld [vmem:[#allocation4 + $0x1a4] sm:$0xff]
        %v3625 = vld [vmem:[#allocation4 + $0x1ac] sm:$0xf]
        %v3626 = vld [vmem:[#allocation4 + $0x1b0] sm:$0xff]
        %v3627 = vld [vmem:[#allocation4 + $0x1b8] sm:$0xff]
        %v3628 = vld [vmem:[#allocation4 + $0x1c0] sm:$0xff]
        %v3629 = vld [vmem:[#allocation4 + $0x1c8] sm:$0xff]
        %v3630 = vld [vmem:[#allocation4 + $0x1d0] sm:$0xf]
        %v3631 = vld [vmem:[#allocation4 + $0x1d4] sm:$0xff]
        %v3632 = vld [vmem:[#allocation4 + $0x1dc] sm:$0xff]
        %v3633 = vld [vmem:[#allocation4 + $0x1e4] sm:$0xff]
        %v3634 = vld [vmem:[#allocation4 + $0x1ec] sm:$0xff]
        %v3635 = vld [vmem:[#allocation4 + $0x1f4] sm:$0xf]
        %v3636 = vld [vmem:[#allocation4 + $0x1f8] sm:$0xff]
        %v3637 = vld [vmem:[#allocation4 + $0x200] sm:$0xff]
        %v3638 = vld [vmem:[#allocation4 + $0x208] sm:$0xff]
        %v3639 = vld [vmem:[#allocation4 + $0x210] sm:$0xff]
        %v3640 = vld [vmem:[#allocation4 + $0x218] sm:$0xf]
        %v3641 = vld [vmem:[#allocation4 + $0x21c] sm:$0xff]
        %v3642 = vld [vmem:[#allocation4 + $0x224] sm:$0xff]
        %v3643 = vld [vmem:[#allocation4 + $0x22c] sm:$0xff]
        %v3644 = vld [vmem:[#allocation4 + $0x234] sm:$0xff]
        %v3645 = vld [vmem:[#allocation4 + $0x23c] sm:$0xf]
        %v3646 = vld [vmem:[#allocation4 + $0x240] sm:$0xff]
        %v3647 = vld [vmem:[#allocation4 + $0x248] sm:$0xff]
        %v3648 = vld [vmem:[#allocation4 + $0x250] sm:$0xff]
        %v3649 = vld [vmem:[#allocation4 + $0x258] sm:$0xff]
        %v3650 = vld [vmem:[#allocation4 + $0x260] sm:$0xf]
        %v3651 = vld [vmem:[#allocation4 + $0x264] sm:$0xff]
        %v3652 = vld [vmem:[#allocation4 + $0x26c] sm:$0xff]
        %v3653 = vld [vmem:[#allocation4 + $0x274] sm:$0xff]
        %v3654 = vld [vmem:[#allocation4 + $0x27c] sm:$0xff]
        %v3655 = vld [vmem:[#allocation4 + $0x284] sm:$0xf]
        %v3656 = vld [vmem:[#allocation4 + $0x288] sm:$0xff]
        %v3657 = vld [vmem:[#allocation4 + $0x290] sm:$0xff]
        %v3658 = vld [vmem:[#allocation4 + $0x298] sm:$0xff]
        %v3659 = vld [vmem:[#allocation4 + $0x2a0] sm:$0xff]
        %v3660 = vld [vmem:[#allocation4 + $0x2a8] sm:$0xf]
        %v3661 = vld [vmem:[#allocation4 + $0x2ac] sm:$0xff]
        %v3662 = vld [vmem:[#allocation4 + $0x2b4] sm:$0xff]
        %v3663 = vld [vmem:[#allocation4 + $0x2bc] sm:$0xff]
        %v3664 = vld [vmem:[#allocation4 + $0x2c4] sm:$0xff]
        %v3665 = vld [vmem:[#allocation4 + $0x2cc] sm:$0xf]
        %v3666 = vld [vmem:[#allocation4 + $0x2d0] sm:$0xff]
        %v3667 = vld [vmem:[#allocation4 + $0x2d8] sm:$0xff]
        %v3668 = vld [vmem:[#allocation4 + $0x2e0] sm:$0xff]
        %v3669 = vld [vmem:[#allocation4 + $0x2e8] sm:$0xff]
        %v3670 = vld [vmem:[#allocation4 + $0x2f0] sm:$0xf]
        %v3671 = vld [vmem:[#allocation4 + $0x2f4] sm:$0xff]
        %v3672 = vld [vmem:[#allocation4 + $0x2fc] sm:$0xff]
        %v3673 = vld [vmem:[#allocation4 + $0x304] sm:$0xff]
        %v3674 = vld [vmem:[#allocation4 + $0x30c] sm:$0xff]
        %v3675 = vld [vmem:[#allocation4 + $0x314] sm:$0xf]
        %v3676 = vld [vmem:[#allocation4 + $0x318] sm:$0xff]
        %v3677 = vld [vmem:[#allocation4 + $0x320] sm:$0xff]
        %v3678 = vld [vmem:[#allocation4 + $0x328] sm:$0xff]
        %v3679 = vld [vmem:[#allocation4 + $0x330] sm:$0xff]
        %v3680 = vld [vmem:[#allocation4 + $0x338] sm:$0xf]
        %v3681 = vld [vmem:[#allocation4 + $0x33c] sm:$0xff]
        %v3682 = vld [vmem:[#allocation4 + $0x344] sm:$0xff]
        %v3683 = vld [vmem:[#allocation4 + $0x34c] sm:$0xff]
        %v3684 = vld [vmem:[#allocation4 + $0x354] sm:$0xff]
        %v3685 = vld [vmem:[#allocation4 + $0x35c] sm:$0xf]
        %v3686 = vld [vmem:[#allocation4 + $0x360] sm:$0xff]
        %v3687 = vld [vmem:[#allocation4 + $0x368] sm:$0xff]
        %v3688 = vld [vmem:[#allocation4 + $0x370] sm:$0xff]
        %v3689 = vld [vmem:[#allocation4 + $0x378] sm:$0xff]
        %v3690 = vld [vmem:[#allocation4 + $0x380] sm:$0xf]
        %v3691 = vld [vmem:[#allocation4 + $0x384] sm:$0xff]
        %v3692 = vld [vmem:[#allocation4 + $0x38c] sm:$0xff]
        %v3693 = vld [vmem:[#allocation4 + $0x394] sm:$0xff]
        %v3694 = vld [vmem:[#allocation4 + $0x39c] sm:$0xff]
        %v3695 = vld [vmem:[#allocation4 + $0x3a4] sm:$0xf]
        %v3696 = vld [vmem:[#allocation4 + $0x3a8] sm:$0xff]
        %v3697 = vld [vmem:[#allocation4 + $0x3b0] sm:$0xff]
        %v3698 = vld [vmem:[#allocation4 + $0x3b8] sm:$0xff]
        %v3699 = vld [vmem:[#allocation4 + $0x3c0] sm:$0xff]
        %v3700 = vld [vmem:[#allocation4 + $0x3c8] sm:$0xf]
        %v3701 = vld [vmem:[#allocation4 + $0x3cc] sm:$0xff]
        %v3702 = vld [vmem:[#allocation4 + $0x3d4] sm:$0xff]
        %v3703 = vld [vmem:[#allocation4 + $0x3dc] sm:$0xff]
        %v3704 = vld [vmem:[#allocation4 + $0x3e4] sm:$0xff]
        %v3705 = vld [vmem:[#allocation4 + $0x3ec] sm:$0xf]
        %v3706 = vld [vmem:[#allocation4 + $0x3f0] sm:$0xff]
        %v3707 = vld [vmem:[#allocation4 + $0x3f8] sm:$0xff]
        %v3708 = vld [vmem:[#allocation4 + $0x400] sm:$0xff]
        %v3709 = vld [vmem:[#allocation4 + $0x408] sm:$0xff]
        %v3710 = vld [vmem:[#allocation4 + $0x410] sm:$0xf]
        %v3711 = vld [vmem:[#allocation4 + $0x414] sm:$0xff]
        %v3712 = vld [vmem:[#allocation4 + $0x41c] sm:$0xff]
        %v3713 = vld [vmem:[#allocation4 + $0x424] sm:$0xff]
        %v3714 = vld [vmem:[#allocation4 + $0x42c] sm:$0xff]
        %v3715 = vld [vmem:[#allocation4 + $0x434] sm:$0xf]
        %v3716 = vld [vmem:[#allocation4 + $0x438] sm:$0xff]
        %v3717 = vld [vmem:[#allocation4 + $0x440] sm:$0xff]
        %v3718 = vld [vmem:[#allocation4 + $0x448] sm:$0xff]
        %v3719 = vld [vmem:[#allocation4 + $0x450] sm:$0xff]
        %v3720 = vld [vmem:[#allocation4 + $0x458] sm:$0xf]
        %v3721 = vld [vmem:[#allocation4 + $0x45c] sm:$0xff]
        %v3722 = vld [vmem:[#allocation4 + $0x464] sm:$0xff]
        %v3723 = vld [vmem:[#allocation4 + $0x46c] sm:$0xff]
        %v3724 = vld [vmem:[#allocation4 + $0x474] sm:$0xff]
        %v3725 = vld [vmem:[#allocation4 + $0x47c] sm:$0xf]
        %v3726 = vld [vmem:[#allocation8] sm:$0xff]
        %v3727 = vld [vmem:[#allocation8 + $0x8] sm:$0xff]
        %v3728 = vld [vmem:[#allocation8 + $0x10] sm:$0xff]
        %v3729 = vld [vmem:[#allocation8 + $0x18] sm:$0xff]
        %v3730 = vld [vmem:[#allocation8 + $0x20] sm:$0xff]
        %v3731 = vld [vmem:[#allocation8 + $0x28] sm:$0xff]
        %v3732 = vld [vmem:[#allocation8 + $0x30] sm:$0xff]
        %v3733 = vld [vmem:[#allocation8 + $0x38] sm:$0xff]
        %v3734 = vld [vmem:[#allocation8 + $0x40] sm:$0xff]
        %v3735 = vld [vmem:[#allocation8 + $0x48] sm:$0xff]
        %v3736 = vld [vmem:[#allocation8 + $0x50] sm:$0xff]
        %v3737 = vld [vmem:[#allocation8 + $0x58] sm:$0xff]
        %v3738 = vld [vmem:[#allocation8 + $0x60] sm:$0xff]
        %v3739 = vld [vmem:[#allocation8 + $0x68] sm:$0xff]
        %v3740 = vld [vmem:[#allocation8 + $0x70] sm:$0xff]
        %v3741 = vld [vmem:[#allocation8 + $0x78] sm:$0xff]
        %v3742 = vld [vmem:[#allocation8 + $0x80] sm:$0xff]
        %v3743 = vld [vmem:[#allocation8 + $0x88] sm:$0xff]
        %v3744 = vld [vmem:[#allocation8 + $0x90] sm:$0xff]
        %v3745 = vld [vmem:[#allocation8 + $0x98] sm:$0xff]
        %v3746 = vld [vmem:[#allocation8 + $0xa0] sm:$0xff]
        %v3747 = vld [vmem:[#allocation8 + $0xa8] sm:$0xff]
        %v3748 = vld [vmem:[#allocation8 + $0xb0] sm:$0xff]
        %v3749 = vld [vmem:[#allocation8 + $0xb8] sm:$0xff]
        %v3750 = vld [vmem:[#allocation8 + $0xc0] sm:$0xff]
        %v3751 = vld [vmem:[#allocation8 + $0xc8] sm:$0xff]
        %v3752 = vld [vmem:[#allocation8 + $0xd0] sm:$0xff]
        %v3753 = vld [vmem:[#allocation8 + $0xd8] sm:$0xff]
        %v3754 = vld [vmem:[#allocation8 + $0xe0] sm:$0xff]
        %v3755 = vld [vmem:[#allocation8 + $0xe8] sm:$0xff]
        %v3756 = vld [vmem:[#allocation8 + $0xf0] sm:$0xff]
        %v3757 = vld [vmem:[#allocation8 + $0xf8] sm:$0xff]
        %v3758 = vld [vmem:[#allocation8 + $0x100] sm:$0xff]
        %v3759 = vld [vmem:[#allocation8 + $0x108] sm:$0xff]
        %v3760 = vld [vmem:[#allocation8 + $0x110] sm:$0xff]
        %v3761 = vld [vmem:[#allocation8 + $0x118] sm:$0xff]
        %v3762 = vld [vmem:[#allocation8 + $0x120] sm:$0xff]
        %v3763 = vld [vmem:[#allocation8 + $0x128] sm:$0xff]
        %v3764 = vld [vmem:[#allocation8 + $0x130] sm:$0xff]
        %v3765 = vld [vmem:[#allocation8 + $0x138] sm:$0xff]
        %v3766 = vld [vmem:[#allocation8 + $0x140] sm:$0xff]
        %v3767 = vld [vmem:[#allocation8 + $0x148] sm:$0xff]
        %v3768 = vld [vmem:[#allocation8 + $0x150] sm:$0xff]
        %v3769 = vld [vmem:[#allocation8 + $0x158] sm:$0xff]
        %v3770 = vld [vmem:[#allocation8 + $0x160] sm:$0xff]
        %v3771 = vld [vmem:[#allocation8 + $0x168] sm:$0xff]
        %v3772 = vld [vmem:[#allocation8 + $0x170] sm:$0xff]
        %v3773 = vld [vmem:[#allocation8 + $0x178] sm:$0xff]
        %v3774 = vld [vmem:[#allocation8 + $0x180] sm:$0xff]
        %v3775 = vld [vmem:[#allocation8 + $0x188] sm:$0xff]
        %v3776 = vld [vmem:[#allocation8 + $0x190] sm:$0xff]
        %v3777 = vld [vmem:[#allocation8 + $0x198] sm:$0xff]
        %v3778 = vld [vmem:[#allocation8 + $0x1a0] sm:$0xff]
        %v3779 = vld [vmem:[#allocation8 + $0x1a8] sm:$0xff]
        %v3780 = vld [vmem:[#allocation8 + $0x1b0] sm:$0xff]
        %v3781 = vld [vmem:[#allocation8 + $0x1b8] sm:$0xff]
        %v3782 = vld [vmem:[#allocation8 + $0x1c0] sm:$0xff]
        %v3783 = vld [vmem:[#allocation8 + $0x1c8] sm:$0xff]
        %v3784 = vld [vmem:[#allocation8 + $0x1d0] sm:$0xff]
        %v3785 = vld [vmem:[#allocation8 + $0x1d8] sm:$0xff]
        %v3786 = vld [vmem:[#allocation8 + $0x1e0] sm:$0xff]
        %v3787 = vld [vmem:[#allocation8 + $0x1e8] sm:$0xff]
        %v3788 = vld [vmem:[#allocation8 + $0x1f0] sm:$0xff]
        %v3789 = vld [vmem:[#allocation8 + $0x1f8] sm:$0xff]
        %v3790 = vld [vmem:[#allocation8 + $0x200] sm:$0xff]
        %v3791 = vld [vmem:[#allocation8 + $0x208] sm:$0xff]
        %v3792 = vld [vmem:[#allocation8 + $0x210] sm:$0xff]
        %v3793 = vld [vmem:[#allocation8 + $0x218] sm:$0xff]
        %v3794 = vld [vmem:[#allocation8 + $0x220] sm:$0xff]
        %v3795 = vld [vmem:[#allocation8 + $0x228] sm:$0xff]
        %v3796 = vld [vmem:[#allocation8 + $0x230] sm:$0xff]
        %v3797 = vld [vmem:[#allocation8 + $0x238] sm:$0xff]
        %v3798 = vld [vmem:[#allocation8 + $0x240] sm:$0xff]
        %v3799 = vld [vmem:[#allocation8 + $0x248] sm:$0xff]
        %v3800 = vld [vmem:[#allocation8 + $0x250] sm:$0xff]
        %v3801 = vld [vmem:[#allocation8 + $0x258] sm:$0xff]
        %v3802 = vld [vmem:[#allocation8 + $0x260] sm:$0xff]
        %v3803 = vld [vmem:[#allocation8 + $0x268] sm:$0xff]
        %v3804 = vld [vmem:[#allocation8 + $0x270] sm:$0xff]
        %v3805 = vld [vmem:[#allocation8 + $0x278] sm:$0xff]
        %v3806 = vld [vmem:[#allocation8 + $0x280] sm:$0xff]
        %v3807 = vld [vmem:[#allocation8 + $0x288] sm:$0xff]
        %v3808 = vld [vmem:[#allocation8 + $0x290] sm:$0xff]
        %v3809 = vld [vmem:[#allocation8 + $0x298] sm:$0xff]
        %v3810 = vld [vmem:[#allocation8 + $0x2a0] sm:$0xff]
        %v3811 = vld [vmem:[#allocation8 + $0x2a8] sm:$0xff]
        %v3812 = vld [vmem:[#allocation8 + $0x2b0] sm:$0xff]
        %v3813 = vld [vmem:[#allocation8 + $0x2b8] sm:$0xff]
        %v3814 = vld [vmem:[#allocation8 + $0x2c0] sm:$0xff]
        %v3815 = vld [vmem:[#allocation8 + $0x2c8] sm:$0xff]
        %v3816 = vld [vmem:[#allocation8 + $0x2d0] sm:$0xff]
        %v3817 = vld [vmem:[#allocation8 + $0x2d8] sm:$0xff]
        %v3818 = vld [vmem:[#allocation8 + $0x2e0] sm:$0xff]
        %v3819 = vld [vmem:[#allocation8 + $0x2e8] sm:$0xff]
        %v3820 = vld [vmem:[#allocation8 + $0x2f0] sm:$0xff]
        %v3821 = vld [vmem:[#allocation8 + $0x2f8] sm:$0xff]
        %v3822 = vld [vmem:[#allocation8 + $0x300] sm:$0xff]
        %v3823 = vld [vmem:[#allocation8 + $0x308] sm:$0xff]
        %v3824 = vld [vmem:[#allocation8 + $0x310] sm:$0xff]
        %v3825 = vld [vmem:[#allocation8 + $0x318] sm:$0xff]
        %v3826 = vld [vmem:[#allocation8 + $0x320] sm:$0xff]
        %v3827 = vld [vmem:[#allocation8 + $0x328] sm:$0xff]
        %v3828 = vld [vmem:[#allocation8 + $0x330] sm:$0xff]
        %v3829 = vld [vmem:[#allocation8 + $0x338] sm:$0xff]
        %v3830 = vld [vmem:[#allocation8 + $0x340] sm:$0xff]
        %v3831 = vld [vmem:[#allocation8 + $0x348] sm:$0xff]
        %v3832 = vld [vmem:[#allocation8 + $0x350] sm:$0xff]
        %v3833 = vld [vmem:[#allocation8 + $0x358] sm:$0xff]
        %v3834 = vld [vmem:[#allocation8 + $0x360] sm:$0xff]
        %v3835 = vld [vmem:[#allocation8 + $0x368] sm:$0xff]
        %v3836 = vld [vmem:[#allocation8 + $0x370] sm:$0xff]
        %v3837 = vld [vmem:[#allocation8 + $0x378] sm:$0xff]
        %v3838 = vld [vmem:[#allocation8 + $0x380] sm:$0xff]
        %v3839 = vld [vmem:[#allocation8 + $0x388] sm:$0xff]
        %v3840 = vld [vmem:[#allocation8 + $0x390] sm:$0xff]
        %v3841 = vld [vmem:[#allocation8 + $0x398] sm:$0xff]
        %v3842 = vld [vmem:[#allocation8 + $0x3a0] sm:$0xff]
        %v3843 = vld [vmem:[#allocation8 + $0x3a8] sm:$0xff]
        %v3844 = vld [vmem:[#allocation8 + $0x3b0] sm:$0xff]
        %v3845 = vld [vmem:[#allocation8 + $0x3b8] sm:$0xff]
        %v3846 = vld [vmem:[#allocation8 + $0x3c0] sm:$0xff]
        %v3847 = vld [vmem:[#allocation8 + $0x3c8] sm:$0xff]
        %v3848 = vld [vmem:[#allocation8 + $0x3d0] sm:$0xff]
        %v3849 = vld [vmem:[#allocation8 + $0x3d8] sm:$0xff]
        %v3850 = vld [vmem:[#allocation8 + $0x3e0] sm:$0xff]
        %v3851 = vld [vmem:[#allocation8 + $0x3e8] sm:$0xff]
        %v3852 = vld [vmem:[#allocation8 + $0x3f0] sm:$0xff]
        %v3853 = vld [vmem:[#allocation8 + $0x3f8] sm:$0xff]
        %v3854 = vld [vmem:[#allocation8 + $0x400] sm:$0xff]
        %v3855 = vld [vmem:[#allocation8 + $0x408] sm:$0xff]
        %v3856 = vld [vmem:[#allocation8 + $0x410] sm:$0xff]
        %v3857 = vld [vmem:[#allocation8 + $0x418] sm:$0xff]
        %v3858 = vld [vmem:[#allocation8 + $0x420] sm:$0xff]
        %v3859 = vld [vmem:[#allocation8 + $0x428] sm:$0xff]
        %v3860 = vld [vmem:[#allocation8 + $0x430] sm:$0xff]
        %v3861 = vld [vmem:[#allocation8 + $0x438] sm:$0xff]
        %v3862 = vld [vmem:[#allocation8 + $0x440] sm:$0xff]
        %v3863 = vld [vmem:[#allocation8 + $0x448] sm:$0xff]
        %v3864 = vld [vmem:[#allocation8 + $0x450] sm:$0xff]
        %v3865 = vld [vmem:[#allocation8 + $0x458] sm:$0xff]
        %v3866 = vld [vmem:[#allocation8 + $0x460] sm:$0xff]
        %v3867 = vld [vmem:[#allocation8 + $0x468] sm:$0xff]
        %v3868 = vld [vmem:[#allocation8 + $0x470] sm:$0xff]
        %v3869 = vld [vmem:[#allocation8 + $0x478] sm:$0xff]
        %v4030 = vunpack.c.l.b16 %v3566
        %v4031 = vunpack.c.h.b16 %v3566
        %v4032 = vunpack.c.l.b16 %v3567
        %v4033 = vunpack.c.h.b16 %v3567
        %v4034 = vunpack.c.l.b16 %v3568
        %v4035 = vunpack.c.h.b16 %v3568
        %v4036 = vunpack.c.l.b16 %v3569
        %v4037 = vunpack.c.h.b16 %v3569
        %v4038 = vunpack.c.l.b16 %v3570
        %v4039 = vunpack.c.l.b16 %v3571
        %v4040 = vunpack.c.h.b16 %v3571
        %v4041 = vunpack.c.l.b16 %v3572
        %v4042 = vunpack.c.h.b16 %v3572
        %v4043 = vunpack.c.l.b16 %v3573
        %v4044 = vunpack.c.h.b16 %v3573
        %v4045 = vunpack.c.l.b16 %v3574
        %v4046 = vunpack.c.h.b16 %v3574
        %v4047 = vunpack.c.l.b16 %v3575
        %v4048 = vunpack.c.l.b16 %v3576
        %v4049 = vunpack.c.h.b16 %v3576
        %v4050 = vunpack.c.l.b16 %v3577
        %v4051 = vunpack.c.h.b16 %v3577
        %v4052 = vunpack.c.l.b16 %v3578
        %v4053 = vunpack.c.h.b16 %v3578
        %v4054 = vunpack.c.l.b16 %v3579
        %v4055 = vunpack.c.h.b16 %v3579
        %v4056 = vunpack.c.l.b16 %v3580
        %v4057 = vunpack.c.l.b16 %v3581
        %v4058 = vunpack.c.h.b16 %v3581
        %v4059 = vunpack.c.l.b16 %v3582
        %v4060 = vunpack.c.h.b16 %v3582
        %v4061 = vunpack.c.l.b16 %v3583
        %v4062 = vunpack.c.h.b16 %v3583
        %v4063 = vunpack.c.l.b16 %v3584
        %v4064 = vunpack.c.h.b16 %v3584
        %v4065 = vunpack.c.l.b16 %v3585
        %v4066 = vunpack.c.l.b16 %v3586
        %v4067 = vunpack.c.h.b16 %v3586
        %v4068 = vunpack.c.l.b16 %v3587
        %v4069 = vunpack.c.h.b16 %v3587
        %v4070 = vunpack.c.l.b16 %v3588
        %v4071 = vunpack.c.h.b16 %v3588
        %v4072 = vunpack.c.l.b16 %v3589
        %v4073 = vunpack.c.h.b16 %v3589
        %v4074 = vunpack.c.l.b16 %v3590
        %v4075 = vunpack.c.l.b16 %v3591
        %v4076 = vunpack.c.h.b16 %v3591
        %v4077 = vunpack.c.l.b16 %v3592
        %v4078 = vunpack.c.h.b16 %v3592
        %v4079 = vunpack.c.l.b16 %v3593
        %v4080 = vunpack.c.h.b16 %v3593
        %v4081 = vunpack.c.l.b16 %v3594
        %v4082 = vunpack.c.h.b16 %v3594
        %v4083 = vunpack.c.l.b16 %v3595
        %v4084 = vunpack.c.l.b16 %v3596
        %v4085 = vunpack.c.h.b16 %v3596
        %v4086 = vunpack.c.l.b16 %v3597
        %v4087 = vunpack.c.h.b16 %v3597
        %v4088 = vunpack.c.l.b16 %v3598
        %v4089 = vunpack.c.h.b16 %v3598
        %v4090 = vunpack.c.l.b16 %v3599
        %v4091 = vunpack.c.h.b16 %v3599
        %v4092 = vunpack.c.l.b16 %v3600
        %v4093 = vunpack.c.l.b16 %v3601
        %v4094 = vunpack.c.h.b16 %v3601
        %v4095 = vunpack.c.l.b16 %v3602
        %v4096 = vunpack.c.h.b16 %v3602
        %v4097 = vunpack.c.l.b16 %v3603
        %v4098 = vunpack.c.h.b16 %v3603
        %v4099 = vunpack.c.l.b16 %v3604
        %v4100 = vunpack.c.h.b16 %v3604
        %v4101 = vunpack.c.l.b16 %v3605
        %v4102 = vunpack.c.l.b16 %v3606
        %v4103 = vunpack.c.h.b16 %v3606
        %v4104 = vunpack.c.l.b16 %v3607
        %v4105 = vunpack.c.h.b16 %v3607
        %v4106 = vunpack.c.l.b16 %v3608
        %v4107 = vunpack.c.h.b16 %v3608
        %v4108 = vunpack.c.l.b16 %v3609
        %v4109 = vunpack.c.h.b16 %v3609
        %v4110 = vunpack.c.l.b16 %v3610
        %v4111 = vunpack.c.l.b16 %v3611
        %v4112 = vunpack.c.h.b16 %v3611
        %v4113 = vunpack.c.l.b16 %v3612
        %v4114 = vunpack.c.h.b16 %v3612
        %v4115 = vunpack.c.l.b16 %v3613
        %v4116 = vunpack.c.h.b16 %v3613
        %v4117 = vunpack.c.l.b16 %v3614
        %v4118 = vunpack.c.h.b16 %v3614
        %v4119 = vunpack.c.l.b16 %v3615
        %v4120 = vunpack.c.l.b16 %v3616
        %v4121 = vunpack.c.h.b16 %v3616
        %v4122 = vunpack.c.l.b16 %v3617
        %v4123 = vunpack.c.h.b16 %v3617
        %v4124 = vunpack.c.l.b16 %v3618
        %v4125 = vunpack.c.h.b16 %v3618
        %v4126 = vunpack.c.l.b16 %v3619
        %v4127 = vunpack.c.h.b16 %v3619
        %v4128 = vunpack.c.l.b16 %v3620
        %v4129 = vunpack.c.l.b16 %v3621
        %v4130 = vunpack.c.h.b16 %v3621
        %v4131 = vunpack.c.l.b16 %v3622
        %v4132 = vunpack.c.h.b16 %v3622
        %v4133 = vunpack.c.l.b16 %v3623
        %v4134 = vunpack.c.h.b16 %v3623
        %v4135 = vunpack.c.l.b16 %v3624
        %v4136 = vunpack.c.h.b16 %v3624
        %v4137 = vunpack.c.l.b16 %v3625
        %v4138 = vunpack.c.l.b16 %v3626
        %v4139 = vunpack.c.h.b16 %v3626
        %v4140 = vunpack.c.l.b16 %v3627
        %v4141 = vunpack.c.h.b16 %v3627
        %v4142 = vunpack.c.l.b16 %v3628
        %v4143 = vunpack.c.h.b16 %v3628
        %v4144 = vunpack.c.l.b16 %v3629
        %v4145 = vunpack.c.h.b16 %v3629
        %v4146 = vunpack.c.l.b16 %v3630
        %v4147 = vunpack.c.l.b16 %v3631
        %v4148 = vunpack.c.h.b16 %v3631
        %v4149 = vunpack.c.l.b16 %v3632
        %v4150 = vunpack.c.h.b16 %v3632
        %v4151 = vunpack.c.l.b16 %v3633
        %v4152 = vunpack.c.h.b16 %v3633
        %v4153 = vunpack.c.l.b16 %v3634
        %v4154 = vunpack.c.h.b16 %v3634
        %v4155 = vunpack.c.l.b16 %v3635
        %v4156 = vunpack.c.l.b16 %v3636
        %v4157 = vunpack.c.h.b16 %v3636
        %v4158 = vunpack.c.l.b16 %v3637
        %v4159 = vunpack.c.h.b16 %v3637
        %v4160 = vunpack.c.l.b16 %v3638
        %v4161 = vunpack.c.h.b16 %v3638
        %v4162 = vunpack.c.l.b16 %v3639
        %v4163 = vunpack.c.h.b16 %v3639
        %v4164 = vunpack.c.l.b16 %v3640
        %v4165 = vunpack.c.l.b16 %v3641
        %v4166 = vunpack.c.h.b16 %v3641
        %v4167 = vunpack.c.l.b16 %v3642
        %v4168 = vunpack.c.h.b16 %v3642
        %v4169 = vunpack.c.l.b16 %v3643
        %v4170 = vunpack.c.h.b16 %v3643
        %v4171 = vunpack.c.l.b16 %v3644
        %v4172 = vunpack.c.h.b16 %v3644
        %v4173 = vunpack.c.l.b16 %v3645
        %v4174 = vunpack.c.l.b16 %v3646
        %v4175 = vunpack.c.h.b16 %v3646
        %v4176 = vunpack.c.l.b16 %v3647
        %v4177 = vunpack.c.h.b16 %v3647
        %v4178 = vunpack.c.l.b16 %v3648
        %v4179 = vunpack.c.h.b16 %v3648
        %v4180 = vunpack.c.l.b16 %v3649
        %v4181 = vunpack.c.h.b16 %v3649
        %v4182 = vunpack.c.l.b16 %v3650
        %v4183 = vunpack.c.l.b16 %v3651
        %v4184 = vunpack.c.h.b16 %v3651
        %v4185 = vunpack.c.l.b16 %v3652
        %v4186 = vunpack.c.h.b16 %v3652
        %v4187 = vunpack.c.l.b16 %v3653
        %v4188 = vunpack.c.h.b16 %v3653
        %v4189 = vunpack.c.l.b16 %v3654
        %v4190 = vunpack.c.h.b16 %v3654
        %v4191 = vunpack.c.l.b16 %v3655
        %v4192 = vunpack.c.l.b16 %v3656
        %v4193 = vunpack.c.h.b16 %v3656
        %v4194 = vunpack.c.l.b16 %v3657
        %v4195 = vunpack.c.h.b16 %v3657
        %v4196 = vunpack.c.l.b16 %v3658
        %v4197 = vunpack.c.h.b16 %v3658
        %v4198 = vunpack.c.l.b16 %v3659
        %v4199 = vunpack.c.h.b16 %v3659
        %v4200 = vunpack.c.l.b16 %v3660
        %v4201 = vunpack.c.l.b16 %v3661
        %v4202 = vunpack.c.h.b16 %v3661
        %v4203 = vunpack.c.l.b16 %v3662
        %v4204 = vunpack.c.h.b16 %v3662
        %v4205 = vunpack.c.l.b16 %v3663
        %v4206 = vunpack.c.h.b16 %v3663
        %v4207 = vunpack.c.l.b16 %v3664
        %v4208 = vunpack.c.h.b16 %v3664
        %v4209 = vunpack.c.l.b16 %v3665
        %v4210 = vunpack.c.l.b16 %v3666
        %v4211 = vunpack.c.h.b16 %v3666
        %v4212 = vunpack.c.l.b16 %v3667
        %v4213 = vunpack.c.h.b16 %v3667
        %v4214 = vunpack.c.l.b16 %v3668
        %v4215 = vunpack.c.h.b16 %v3668
        %v4216 = vunpack.c.l.b16 %v3669
        %v4217 = vunpack.c.h.b16 %v3669
        %v4218 = vunpack.c.l.b16 %v3670
        %v4219 = vunpack.c.l.b16 %v3671
        %v4220 = vunpack.c.h.b16 %v3671
        %v4221 = vunpack.c.l.b16 %v3672
        %v4222 = vunpack.c.h.b16 %v3672
        %v4223 = vunpack.c.l.b16 %v3673
        %v4224 = vunpack.c.h.b16 %v3673
        %v4225 = vunpack.c.l.b16 %v3674
        %v4226 = vunpack.c.h.b16 %v3674
        %v4227 = vunpack.c.l.b16 %v3675
        %v4228 = vunpack.c.l.b16 %v3676
        %v4229 = vunpack.c.h.b16 %v3676
        %v4230 = vunpack.c.l.b16 %v3677
        %v4231 = vunpack.c.h.b16 %v3677
        %v4232 = vunpack.c.l.b16 %v3678
        %v4233 = vunpack.c.h.b16 %v3678
        %v4234 = vunpack.c.l.b16 %v3679
        %v4235 = vunpack.c.h.b16 %v3679
        %v4236 = vunpack.c.l.b16 %v3680
        %v4237 = vunpack.c.l.b16 %v3681
        %v4238 = vunpack.c.h.b16 %v3681
        %v4239 = vunpack.c.l.b16 %v3682
        %v4240 = vunpack.c.h.b16 %v3682
        %v4241 = vunpack.c.l.b16 %v3683
        %v4242 = vunpack.c.h.b16 %v3683
        %v4243 = vunpack.c.l.b16 %v3684
        %v4244 = vunpack.c.h.b16 %v3684
        %v4245 = vunpack.c.l.b16 %v3685
        %v4246 = vunpack.c.l.b16 %v3686
        %v4247 = vunpack.c.h.b16 %v3686
        %v4248 = vunpack.c.l.b16 %v3687
        %v4249 = vunpack.c.h.b16 %v3687
        %v4250 = vunpack.c.l.b16 %v3688
        %v4251 = vunpack.c.h.b16 %v3688
        %v4252 = vunpack.c.l.b16 %v3689
        %v4253 = vunpack.c.h.b16 %v3689
        %v4254 = vunpack.c.l.b16 %v3690
        %v4255 = vunpack.c.l.b16 %v3691
        %v4256 = vunpack.c.h.b16 %v3691
        %v4257 = vunpack.c.l.b16 %v3692
        %v4258 = vunpack.c.h.b16 %v3692
        %v4259 = vunpack.c.l.b16 %v3693
        %v4260 = vunpack.c.h.b16 %v3693
        %v4261 = vunpack.c.l.b16 %v3694
        %v4262 = vunpack.c.h.b16 %v3694
        %v4263 = vunpack.c.l.b16 %v3695
        %v4264 = vunpack.c.l.b16 %v3696
        %v4265 = vunpack.c.h.b16 %v3696
        %v4266 = vunpack.c.l.b16 %v3697
        %v4267 = vunpack.c.h.b16 %v3697
        %v4268 = vunpack.c.l.b16 %v3698
        %v4269 = vunpack.c.h.b16 %v3698
        %v4270 = vunpack.c.l.b16 %v3699
        %v4271 = vunpack.c.h.b16 %v3699
        %v4272 = vunpack.c.l.b16 %v3700
        %v4273 = vunpack.c.l.b16 %v3701
        %v4274 = vunpack.c.h.b16 %v3701
        %v4275 = vunpack.c.l.b16 %v3702
        %v4276 = vunpack.c.h.b16 %v3702
        %v4277 = vunpack.c.l.b16 %v3703
        %v4278 = vunpack.c.h.b16 %v3703
        %v4279 = vunpack.c.l.b16 %v3704
        %v4280 = vunpack.c.h.b16 %v3704
        %v4281 = vunpack.c.l.b16 %v3705
        %v4282 = vunpack.c.l.b16 %v3706
        %v4283 = vunpack.c.h.b16 %v3706
        %v4284 = vunpack.c.l.b16 %v3707
        %v4285 = vunpack.c.h.b16 %v3707
        %v4286 = vunpack.c.l.b16 %v3708
        %v4287 = vunpack.c.h.b16 %v3708
        %v4288 = vunpack.c.l.b16 %v3709
        %v4289 = vunpack.c.h.b16 %v3709
        %v4290 = vunpack.c.l.b16 %v3710
        %v4291 = vunpack.c.l.b16 %v3711
        %v4292 = vunpack.c.h.b16 %v3711
        %v4293 = vunpack.c.l.b16 %v3712
        %v4294 = vunpack.c.h.b16 %v3712
        %v4295 = vunpack.c.l.b16 %v3713
        %v4296 = vunpack.c.h.b16 %v3713
        %v4297 = vunpack.c.l.b16 %v3714
        %v4298 = vunpack.c.h.b16 %v3714
        %v4299 = vunpack.c.l.b16 %v3715
        %v4300 = vunpack.c.l.b16 %v3716
        %v4301 = vunpack.c.h.b16 %v3716
        %v4302 = vunpack.c.l.b16 %v3717
        %v4303 = vunpack.c.h.b16 %v3717
        %v4304 = vunpack.c.l.b16 %v3718
        %v4305 = vunpack.c.h.b16 %v3718
        %v4306 = vunpack.c.l.b16 %v3719
        %v4307 = vunpack.c.h.b16 %v3719
        %v4308 = vunpack.c.l.b16 %v3720
        %v4309 = vunpack.c.l.b16 %v3721
        %v4310 = vunpack.c.h.b16 %v3721
        %v4311 = vunpack.c.l.b16 %v3722
        %v4312 = vunpack.c.h.b16 %v3722
        %v4313 = vunpack.c.l.b16 %v3723
        %v4314 = vunpack.c.h.b16 %v3723
        %v4315 = vunpack.c.l.b16 %v3724
        %v4316 = vunpack.c.h.b16 %v3724
        %v4317 = vunpack.c.l.b16 %v3725
        %v4318 = vpack.c.b16 %v4039, %v4030
        %v4319 = vpack.c.b16 %v4040, %v4031
        %v4320 = vpack.c.b16 %v4041, %v4032
        %v4321 = vpack.c.b16 %v4042, %v4033
        %v4322 = vpack.c.b16 %v4043, %v4034
        %v4323 = vpack.c.b16 %v4044, %v4035
        %v4324 = vpack.c.b16 %v4045, %v4036
        %v4325 = vpack.c.b16 %v4046, %v4037
        %v4326 = vpack.c.b16 %v4047, %v4038
        %v4327 = vpack.c.b16 %v4057, %v4048
        %v4328 = vpack.c.b16 %v4058, %v4049
        %v4329 = vpack.c.b16 %v4059, %v4050
        %v4330 = vpack.c.b16 %v4060, %v4051
        %v4331 = vpack.c.b16 %v4061, %v4052
        %v4332 = vpack.c.b16 %v4062, %v4053
        %v4333 = vpack.c.b16 %v4063, %v4054
        %v4334 = vpack.c.b16 %v4064, %v4055
        %v4335 = vpack.c.b16 %v4065, %v4056
        %v4336 = vpack.c.b16 %v4075, %v4066
        %v4337 = vpack.c.b16 %v4076, %v4067
        %v4338 = vpack.c.b16 %v4077, %v4068
        %v4339 = vpack.c.b16 %v4078, %v4069
        %v4340 = vpack.c.b16 %v4079, %v4070
        %v4341 = vpack.c.b16 %v4080, %v4071
        %v4342 = vpack.c.b16 %v4081, %v4072
        %v4343 = vpack.c.b16 %v4082, %v4073
        %v4344 = vpack.c.b16 %v4083, %v4074
        %v4345 = vpack.c.b16 %v4093, %v4084
        %v4346 = vpack.c.b16 %v4094, %v4085
        %v4347 = vpack.c.b16 %v4095, %v4086
        %v4348 = vpack.c.b16 %v4096, %v4087
        %v4349 = vpack.c.b16 %v4097, %v4088
        %v4350 = vpack.c.b16 %v4098, %v4089
        %v4351 = vpack.c.b16 %v4099, %v4090
        %v4352 = vpack.c.b16 %v4100, %v4091
        %v4353 = vpack.c.b16 %v4101, %v4092
        %v4354 = vpack.c.b16 %v4111, %v4102
        %v4355 = vpack.c.b16 %v4112, %v4103
        %v4356 = vpack.c.b16 %v4113, %v4104
        %v4357 = vpack.c.b16 %v4114, %v4105
        %v4358 = vpack.c.b16 %v4115, %v4106
        %v4359 = vpack.c.b16 %v4116, %v4107
        %v4360 = vpack.c.b16 %v4117, %v4108
        %v4361 = vpack.c.b16 %v4118, %v4109
        %v4362 = vpack.c.b16 %v4119, %v4110
        %v4363 = vpack.c.b16 %v4129, %v4120
        %v4364 = vpack.c.b16 %v4130, %v4121
        %v4365 = vpack.c.b16 %v4131, %v4122
        %v4366 = vpack.c.b16 %v4132, %v4123
        %v4367 = vpack.c.b16 %v4133, %v4124
        %v4368 = vpack.c.b16 %v4134, %v4125
        %v4369 = vpack.c.b16 %v4135, %v4126
        %v4370 = vpack.c.b16 %v4136, %v4127
        %v4371 = vpack.c.b16 %v4137, %v4128
        %v4372 = vpack.c.b16 %v4147, %v4138
        %v4373 = vpack.c.b16 %v4148, %v4139
        %v4374 = vpack.c.b16 %v4149, %v4140
        %v4375 = vpack.c.b16 %v4150, %v4141
        %v4376 = vpack.c.b16 %v4151, %v4142
        %v4377 = vpack.c.b16 %v4152, %v4143
        %v4378 = vpack.c.b16 %v4153, %v4144
        %v4379 = vpack.c.b16 %v4154, %v4145
        %v4380 = vpack.c.b16 %v4155, %v4146
        %v4381 = vpack.c.b16 %v4165, %v4156
        %v4382 = vpack.c.b16 %v4166, %v4157
        %v4383 = vpack.c.b16 %v4167, %v4158
        %v4384 = vpack.c.b16 %v4168, %v4159
        %v4385 = vpack.c.b16 %v4169, %v4160
        %v4386 = vpack.c.b16 %v4170, %v4161
        %v4387 = vpack.c.b16 %v4171, %v4162
        %v4388 = vpack.c.b16 %v4172, %v4163
        %v4389 = vpack.c.b16 %v4173, %v4164
        %v4390 = vpack.c.b16 %v4183, %v4174
        %v4391 = vpack.c.b16 %v4184, %v4175
        %v4392 = vpack.c.b16 %v4185, %v4176
        %v4393 = vpack.c.b16 %v4186, %v4177
        %v4394 = vpack.c.b16 %v4187, %v4178
        %v4395 = vpack.c.b16 %v4188, %v4179
        %v4396 = vpack.c.b16 %v4189, %v4180
        %v4397 = vpack.c.b16 %v4190, %v4181
        %v4398 = vpack.c.b16 %v4191, %v4182
        %v4399 = vpack.c.b16 %v4201, %v4192
        %v4400 = vpack.c.b16 %v4202, %v4193
        %v4401 = vpack.c.b16 %v4203, %v4194
        %v4402 = vpack.c.b16 %v4204, %v4195
        %v4403 = vpack.c.b16 %v4205, %v4196
        %v4404 = vpack.c.b16 %v4206, %v4197
        %v4405 = vpack.c.b16 %v4207, %v4198
        %v4406 = vpack.c.b16 %v4208, %v4199
        %v4407 = vpack.c.b16 %v4209, %v4200
        %v4408 = vpack.c.b16 %v4219, %v4210
        %v4409 = vpack.c.b16 %v4220, %v4211
        %v4410 = vpack.c.b16 %v4221, %v4212
        %v4411 = vpack.c.b16 %v4222, %v4213
        %v4412 = vpack.c.b16 %v4223, %v4214
        %v4413 = vpack.c.b16 %v4224, %v4215
        %v4414 = vpack.c.b16 %v4225, %v4216
        %v4415 = vpack.c.b16 %v4226, %v4217
        %v4416 = vpack.c.b16 %v4227, %v4218
        %v4417 = vpack.c.b16 %v4237, %v4228
        %v4418 = vpack.c.b16 %v4238, %v4229
        %v4419 = vpack.c.b16 %v4239, %v4230
        %v4420 = vpack.c.b16 %v4240, %v4231
        %v4421 = vpack.c.b16 %v4241, %v4232
        %v4422 = vpack.c.b16 %v4242, %v4233
        %v4423 = vpack.c.b16 %v4243, %v4234
        %v4424 = vpack.c.b16 %v4244, %v4235
        %v4425 = vpack.c.b16 %v4245, %v4236
        %v4426 = vpack.c.b16 %v4255, %v4246
        %v4427 = vpack.c.b16 %v4256, %v4247
        %v4428 = vpack.c.b16 %v4257, %v4248
        %v4429 = vpack.c.b16 %v4258, %v4249
        %v4430 = vpack.c.b16 %v4259, %v4250
        %v4431 = vpack.c.b16 %v4260, %v4251
        %v4432 = vpack.c.b16 %v4261, %v4252
        %v4433 = vpack.c.b16 %v4262, %v4253
        %v4434 = vpack.c.b16 %v4263, %v4254
        %v4435 = vpack.c.b16 %v4273, %v4264
        %v4436 = vpack.c.b16 %v4274, %v4265
        %v4437 = vpack.c.b16 %v4275, %v4266
        %v4438 = vpack.c.b16 %v4276, %v4267
        %v4439 = vpack.c.b16 %v4277, %v4268
        %v4440 = vpack.c.b16 %v4278, %v4269
        %v4441 = vpack.c.b16 %v4279, %v4270
        %v4442 = vpack.c.b16 %v4280, %v4271
        %v4443 = vpack.c.b16 %v4281, %v4272
        %v4444 = vpack.c.b16 %v4291, %v4282
        %v4445 = vpack.c.b16 %v4292, %v4283
        %v4446 = vpack.c.b16 %v4293, %v4284
        %v4447 = vpack.c.b16 %v4294, %v4285
        %v4448 = vpack.c.b16 %v4295, %v4286
        %v4449 = vpack.c.b16 %v4296, %v4287
        %v4450 = vpack.c.b16 %v4297, %v4288
        %v4451 = vpack.c.b16 %v4298, %v4289
        %v4452 = vpack.c.b16 %v4299, %v4290
        %v4453 = vpack.c.b16 %v4309, %v4300
        %v4454 = vpack.c.b16 %v4310, %v4301
        %v4455 = vpack.c.b16 %v4311, %v4302
        %v4456 = vpack.c.b16 %v4312, %v4303
        %v4457 = vpack.c.b16 %v4313, %v4304
        %v4458 = vpack.c.b16 %v4314, %v4305
        %v4459 = vpack.c.b16 %v4315, %v4306
        %v4460 = vpack.c.b16 %v4316, %v4307
        %v4461 = vpack.c.b16 %v4317, %v4308
        %v4750 = vunpack.c.l.b16 %v3726
        %v4751 = vunpack.c.h.b16 %v3726
        %v4752 = vunpack.c.l.b16 %v3727
        %v4753 = vunpack.c.h.b16 %v3727
        %v4754 = vunpack.c.l.b16 %v3728
        %v4755 = vunpack.c.h.b16 %v3728
        %v4756 = vunpack.c.l.b16 %v3729
        %v4757 = vunpack.c.h.b16 %v3729
        %v4758 = vunpack.c.l.b16 %v3730
        %v4759 = vunpack.c.h.b16 %v3730
        %v4760 = vunpack.c.l.b16 %v3731
        %v4761 = vunpack.c.h.b16 %v3731
        %v4762 = vunpack.c.l.b16 %v3732
        %v4763 = vunpack.c.h.b16 %v3732
        %v4764 = vunpack.c.l.b16 %v3733
        %v4765 = vunpack.c.h.b16 %v3733
        %v4766 = vunpack.c.l.b16 %v3734
        %v4767 = vunpack.c.h.b16 %v3734
        %v4768 = vunpack.c.l.b16 %v3735
        %v4769 = vunpack.c.h.b16 %v3735
        %v4770 = vunpack.c.l.b16 %v3736
        %v4771 = vunpack.c.h.b16 %v3736
        %v4772 = vunpack.c.l.b16 %v3737
        %v4773 = vunpack.c.h.b16 %v3737
        %v4774 = vunpack.c.l.b16 %v3738
        %v4775 = vunpack.c.h.b16 %v3738
        %v4776 = vunpack.c.l.b16 %v3739
        %v4777 = vunpack.c.h.b16 %v3739
        %v4778 = vunpack.c.l.b16 %v3740
        %v4779 = vunpack.c.h.b16 %v3740
        %v4780 = vunpack.c.l.b16 %v3741
        %v4781 = vunpack.c.h.b16 %v3741
        %v4782 = vunpack.c.l.b16 %v3742
        %v4783 = vunpack.c.h.b16 %v3742
        %v4784 = vunpack.c.l.b16 %v3743
        %v4785 = vunpack.c.h.b16 %v3743
        %v4786 = vunpack.c.l.b16 %v3744
        %v4787 = vunpack.c.h.b16 %v3744
        %v4788 = vunpack.c.l.b16 %v3745
        %v4789 = vunpack.c.h.b16 %v3745
        %v4790 = vunpack.c.l.b16 %v3746
        %v4791 = vunpack.c.h.b16 %v3746
        %v4792 = vunpack.c.l.b16 %v3747
        %v4793 = vunpack.c.h.b16 %v3747
        %v4794 = vunpack.c.l.b16 %v3748
        %v4795 = vunpack.c.h.b16 %v3748
        %v4796 = vunpack.c.l.b16 %v3749
        %v4797 = vunpack.c.h.b16 %v3749
        %v4798 = vunpack.c.l.b16 %v3750
        %v4799 = vunpack.c.h.b16 %v3750
        %v4800 = vunpack.c.l.b16 %v3751
        %v4801 = vunpack.c.h.b16 %v3751
        %v4802 = vunpack.c.l.b16 %v3752
        %v4803 = vunpack.c.h.b16 %v3752
        %v4804 = vunpack.c.l.b16 %v3753
        %v4805 = vunpack.c.h.b16 %v3753
        %v4806 = vunpack.c.l.b16 %v3754
        %v4807 = vunpack.c.h.b16 %v3754
        %v4808 = vunpack.c.l.b16 %v3755
        %v4809 = vunpack.c.h.b16 %v3755
        %v4810 = vunpack.c.l.b16 %v3756
        %v4811 = vunpack.c.h.b16 %v3756
        %v4812 = vunpack.c.l.b16 %v3757
        %v4813 = vunpack.c.h.b16 %v3757
        %v4814 = vunpack.c.l.b16 %v3758
        %v4815 = vunpack.c.h.b16 %v3758
        %v4816 = vunpack.c.l.b16 %v3759
        %v4817 = vunpack.c.h.b16 %v3759
        %v4818 = vunpack.c.l.b16 %v3760
        %v4819 = vunpack.c.h.b16 %v3760
        %v4820 = vunpack.c.l.b16 %v3761
        %v4821 = vunpack.c.h.b16 %v3761
        %v4822 = vunpack.c.l.b16 %v3762
        %v4823 = vunpack.c.h.b16 %v3762
        %v4824 = vunpack.c.l.b16 %v3763
        %v4825 = vunpack.c.h.b16 %v3763
        %v4826 = vunpack.c.l.b16 %v3764
        %v4827 = vunpack.c.h.b16 %v3764
        %v4828 = vunpack.c.l.b16 %v3765
        %v4829 = vunpack.c.h.b16 %v3765
        %v4830 = vunpack.c.l.b16 %v3766
        %v4831 = vunpack.c.h.b16 %v3766
        %v4832 = vunpack.c.l.b16 %v3767
        %v4833 = vunpack.c.h.b16 %v3767
        %v4834 = vunpack.c.l.b16 %v3768
        %v4835 = vunpack.c.h.b16 %v3768
        %v4836 = vunpack.c.l.b16 %v3769
        %v4837 = vunpack.c.h.b16 %v3769
        %v4838 = vunpack.c.l.b16 %v3770
        %v4839 = vunpack.c.h.b16 %v3770
        %v4840 = vunpack.c.l.b16 %v3771
        %v4841 = vunpack.c.h.b16 %v3771
        %v4842 = vunpack.c.l.b16 %v3772
        %v4843 = vunpack.c.h.b16 %v3772
        %v4844 = vunpack.c.l.b16 %v3773
        %v4845 = vunpack.c.h.b16 %v3773
        %v4846 = vunpack.c.l.b16 %v3774
        %v4847 = vunpack.c.h.b16 %v3774
        %v4848 = vunpack.c.l.b16 %v3775
        %v4849 = vunpack.c.h.b16 %v3775
        %v4850 = vunpack.c.l.b16 %v3776
        %v4851 = vunpack.c.h.b16 %v3776
        %v4852 = vunpack.c.l.b16 %v3777
        %v4853 = vunpack.c.h.b16 %v3777
        %v4854 = vunpack.c.l.b16 %v3778
        %v4855 = vunpack.c.h.b16 %v3778
        %v4856 = vunpack.c.l.b16 %v3779
        %v4857 = vunpack.c.h.b16 %v3779
        %v4858 = vunpack.c.l.b16 %v3780
        %v4859 = vunpack.c.h.b16 %v3780
        %v4860 = vunpack.c.l.b16 %v3781
        %v4861 = vunpack.c.h.b16 %v3781
        %v4862 = vunpack.c.l.b16 %v3782
        %v4863 = vunpack.c.h.b16 %v3782
        %v4864 = vunpack.c.l.b16 %v3783
        %v4865 = vunpack.c.h.b16 %v3783
        %v4866 = vunpack.c.l.b16 %v3784
        %v4867 = vunpack.c.h.b16 %v3784
        %v4868 = vunpack.c.l.b16 %v3785
        %v4869 = vunpack.c.h.b16 %v3785
        %v4870 = vunpack.c.l.b16 %v3786
        %v4871 = vunpack.c.h.b16 %v3786
        %v4872 = vunpack.c.l.b16 %v3787
        %v4873 = vunpack.c.h.b16 %v3787
        %v4874 = vunpack.c.l.b16 %v3788
        %v4875 = vunpack.c.h.b16 %v3788
        %v4876 = vunpack.c.l.b16 %v3789
        %v4877 = vunpack.c.h.b16 %v3789
        %v4878 = vunpack.c.l.b16 %v3790
        %v4879 = vunpack.c.h.b16 %v3790
        %v4880 = vunpack.c.l.b16 %v3791
        %v4881 = vunpack.c.h.b16 %v3791
        %v4882 = vunpack.c.l.b16 %v3792
        %v4883 = vunpack.c.h.b16 %v3792
        %v4884 = vunpack.c.l.b16 %v3793
        %v4885 = vunpack.c.h.b16 %v3793
        %v4886 = vunpack.c.l.b16 %v3794
        %v4887 = vunpack.c.h.b16 %v3794
        %v4888 = vunpack.c.l.b16 %v3795
        %v4889 = vunpack.c.h.b16 %v3795
        %v4890 = vunpack.c.l.b16 %v3796
        %v4891 = vunpack.c.h.b16 %v3796
        %v4892 = vunpack.c.l.b16 %v3797
        %v4893 = vunpack.c.h.b16 %v3797
        %v4894 = vunpack.c.l.b16 %v3798
        %v4895 = vunpack.c.h.b16 %v3798
        %v4896 = vunpack.c.l.b16 %v3799
        %v4897 = vunpack.c.h.b16 %v3799
        %v4898 = vunpack.c.l.b16 %v3800
        %v4899 = vunpack.c.h.b16 %v3800
        %v4900 = vunpack.c.l.b16 %v3801
        %v4901 = vunpack.c.h.b16 %v3801
        %v4902 = vunpack.c.l.b16 %v3802
        %v4903 = vunpack.c.h.b16 %v3802
        %v4904 = vunpack.c.l.b16 %v3803
        %v4905 = vunpack.c.h.b16 %v3803
        %v4906 = vunpack.c.l.b16 %v3804
        %v4907 = vunpack.c.h.b16 %v3804
        %v4908 = vunpack.c.l.b16 %v3805
        %v4909 = vunpack.c.h.b16 %v3805
        %v4910 = vunpack.c.l.b16 %v3806
        %v4911 = vunpack.c.h.b16 %v3806
        %v4912 = vunpack.c.l.b16 %v3807
        %v4913 = vunpack.c.h.b16 %v3807
        %v4914 = vunpack.c.l.b16 %v3808
        %v4915 = vunpack.c.h.b16 %v3808
        %v4916 = vunpack.c.l.b16 %v3809
        %v4917 = vunpack.c.h.b16 %v3809
        %v4918 = vunpack.c.l.b16 %v3810
        %v4919 = vunpack.c.h.b16 %v3810
        %v4920 = vunpack.c.l.b16 %v3811
        %v4921 = vunpack.c.h.b16 %v3811
        %v4922 = vunpack.c.l.b16 %v3812
        %v4923 = vunpack.c.h.b16 %v3812
        %v4924 = vunpack.c.l.b16 %v3813
        %v4925 = vunpack.c.h.b16 %v3813
        %v4926 = vunpack.c.l.b16 %v3814
        %v4927 = vunpack.c.h.b16 %v3814
        %v4928 = vunpack.c.l.b16 %v3815
        %v4929 = vunpack.c.h.b16 %v3815
        %v4930 = vunpack.c.l.b16 %v3816
        %v4931 = vunpack.c.h.b16 %v3816
        %v4932 = vunpack.c.l.b16 %v3817
        %v4933 = vunpack.c.h.b16 %v3817
        %v4934 = vunpack.c.l.b16 %v3818
        %v4935 = vunpack.c.h.b16 %v3818
        %v4936 = vunpack.c.l.b16 %v3819
        %v4937 = vunpack.c.h.b16 %v3819
        %v4938 = vunpack.c.l.b16 %v3820
        %v4939 = vunpack.c.h.b16 %v3820
        %v4940 = vunpack.c.l.b16 %v3821
        %v4941 = vunpack.c.h.b16 %v3821
        %v4942 = vunpack.c.l.b16 %v3822
        %v4943 = vunpack.c.h.b16 %v3822
        %v4944 = vunpack.c.l.b16 %v3823
        %v4945 = vunpack.c.h.b16 %v3823
        %v4946 = vunpack.c.l.b16 %v3824
        %v4947 = vunpack.c.h.b16 %v3824
        %v4948 = vunpack.c.l.b16 %v3825
        %v4949 = vunpack.c.h.b16 %v3825
        %v4950 = vunpack.c.l.b16 %v3826
        %v4951 = vunpack.c.h.b16 %v3826
        %v4952 = vunpack.c.l.b16 %v3827
        %v4953 = vunpack.c.h.b16 %v3827
        %v4954 = vunpack.c.l.b16 %v3828
        %v4955 = vunpack.c.h.b16 %v3828
        %v4956 = vunpack.c.l.b16 %v3829
        %v4957 = vunpack.c.h.b16 %v3829
        %v4958 = vunpack.c.l.b16 %v3830
        %v4959 = vunpack.c.h.b16 %v3830
        %v4960 = vunpack.c.l.b16 %v3831
        %v4961 = vunpack.c.h.b16 %v3831
        %v4962 = vunpack.c.l.b16 %v3832
        %v4963 = vunpack.c.h.b16 %v3832
        %v4964 = vunpack.c.l.b16 %v3833
        %v4965 = vunpack.c.h.b16 %v3833
        %v4966 = vunpack.c.l.b16 %v3834
        %v4967 = vunpack.c.h.b16 %v3834
        %v4968 = vunpack.c.l.b16 %v3835
        %v4969 = vunpack.c.h.b16 %v3835
        %v4970 = vunpack.c.l.b16 %v3836
        %v4971 = vunpack.c.h.b16 %v3836
        %v4972 = vunpack.c.l.b16 %v3837
        %v4973 = vunpack.c.h.b16 %v3837
        %v4974 = vunpack.c.l.b16 %v3838
        %v4975 = vunpack.c.h.b16 %v3838
        %v4976 = vunpack.c.l.b16 %v3839
        %v4977 = vunpack.c.h.b16 %v3839
        %v4978 = vunpack.c.l.b16 %v3840
        %v4979 = vunpack.c.h.b16 %v3840
        %v4980 = vunpack.c.l.b16 %v3841
        %v4981 = vunpack.c.h.b16 %v3841
        %v4982 = vunpack.c.l.b16 %v3842
        %v4983 = vunpack.c.h.b16 %v3842
        %v4984 = vunpack.c.l.b16 %v3843
        %v4985 = vunpack.c.h.b16 %v3843
        %v4986 = vunpack.c.l.b16 %v3844
        %v4987 = vunpack.c.h.b16 %v3844
        %v4988 = vunpack.c.l.b16 %v3845
        %v4989 = vunpack.c.h.b16 %v3845
        %v4990 = vunpack.c.l.b16 %v3846
        %v4991 = vunpack.c.h.b16 %v3846
        %v4992 = vunpack.c.l.b16 %v3847
        %v4993 = vunpack.c.h.b16 %v3847
        %v4994 = vunpack.c.l.b16 %v3848
        %v4995 = vunpack.c.h.b16 %v3848
        %v4996 = vunpack.c.l.b16 %v3849
        %v4997 = vunpack.c.h.b16 %v3849
        %v4998 = vunpack.c.l.b16 %v3850
        %v4999 = vunpack.c.h.b16 %v3850
        %v5000 = vunpack.c.l.b16 %v3851
        %v5001 = vunpack.c.h.b16 %v3851
        %v5002 = vunpack.c.l.b16 %v3852
        %v5003 = vunpack.c.h.b16 %v3852
        %v5004 = vunpack.c.l.b16 %v3853
        %v5005 = vunpack.c.h.b16 %v3853
        %v5006 = vunpack.c.l.b16 %v3854
        %v5007 = vunpack.c.h.b16 %v3854
        %v5008 = vunpack.c.l.b16 %v3855
        %v5009 = vunpack.c.h.b16 %v3855
        %v5010 = vunpack.c.l.b16 %v3856
        %v5011 = vunpack.c.h.b16 %v3856
        %v5012 = vunpack.c.l.b16 %v3857
        %v5013 = vunpack.c.h.b16 %v3857
        %v5014 = vunpack.c.l.b16 %v3858
        %v5015 = vunpack.c.h.b16 %v3858
        %v5016 = vunpack.c.l.b16 %v3859
        %v5017 = vunpack.c.h.b16 %v3859
        %v5018 = vunpack.c.l.b16 %v3860
        %v5019 = vunpack.c.h.b16 %v3860
        %v5020 = vunpack.c.l.b16 %v3861
        %v5021 = vunpack.c.h.b16 %v3861
        %v5022 = vunpack.c.l.b16 %v3862
        %v5023 = vunpack.c.h.b16 %v3862
        %v5024 = vunpack.c.l.b16 %v3863
        %v5025 = vunpack.c.h.b16 %v3863
        %v5026 = vunpack.c.l.b16 %v3864
        %v5027 = vunpack.c.h.b16 %v3864
        %v5028 = vunpack.c.l.b16 %v3865
        %v5029 = vunpack.c.h.b16 %v3865
        %v5030 = vunpack.c.l.b16 %v3866
        %v5031 = vunpack.c.h.b16 %v3866
        %v5032 = vunpack.c.l.b16 %v3867
        %v5033 = vunpack.c.h.b16 %v3867
        %v5034 = vunpack.c.l.b16 %v3868
        %v5035 = vunpack.c.h.b16 %v3868
        %v5036 = vunpack.c.l.b16 %v3869
        %v5037 = vunpack.c.h.b16 %v3869
        %v5038 = vpack.c.b16 %v4752, %v4750
        %v5039 = vpack.c.b16 %v4753, %v4751
        %v5040 = vpack.c.b16 %v4756, %v4754
        %v5041 = vpack.c.b16 %v4757, %v4755
        %v5042 = vpack.c.b16 %v4760, %v4758
        %v5043 = vpack.c.b16 %v4761, %v4759
        %v5044 = vpack.c.b16 %v4764, %v4762
        %v5045 = vpack.c.b16 %v4765, %v4763
        %v5046 = vpack.c.b16 %v4768, %v4766
        %v5047 = vpack.c.b16 %v4769, %v4767
        %v5048 = vpack.c.b16 %v4772, %v4770
        %v5049 = vpack.c.b16 %v4773, %v4771
        %v5050 = vpack.c.b16 %v4776, %v4774
        %v5051 = vpack.c.b16 %v4777, %v4775
        %v5052 = vpack.c.b16 %v4780, %v4778
        %v5053 = vpack.c.b16 %v4781, %v4779
        %v5054 = vpack.c.b16 %v4784, %v4782
        %v5055 = vpack.c.b16 %v4785, %v4783
        %v5056 = vpack.c.b16 %v4788, %v4786
        %v5057 = vpack.c.b16 %v4789, %v4787
        %v5058 = vpack.c.b16 %v4792, %v4790
        %v5059 = vpack.c.b16 %v4793, %v4791
        %v5060 = vpack.c.b16 %v4796, %v4794
        %v5061 = vpack.c.b16 %v4797, %v4795
        %v5062 = vpack.c.b16 %v4800, %v4798
        %v5063 = vpack.c.b16 %v4801, %v4799
        %v5064 = vpack.c.b16 %v4804, %v4802
        %v5065 = vpack.c.b16 %v4805, %v4803
        %v5066 = vpack.c.b16 %v4808, %v4806
        %v5067 = vpack.c.b16 %v4809, %v4807
        %v5068 = vpack.c.b16 %v4812, %v4810
        %v5069 = vpack.c.b16 %v4813, %v4811
        %v5070 = vpack.c.b16 %v4816, %v4814
        %v5071 = vpack.c.b16 %v4817, %v4815
        %v5072 = vpack.c.b16 %v4820, %v4818
        %v5073 = vpack.c.b16 %v4821, %v4819
        %v5074 = vpack.c.b16 %v4824, %v4822
        %v5075 = vpack.c.b16 %v4825, %v4823
        %v5076 = vpack.c.b16 %v4828, %v4826
        %v5077 = vpack.c.b16 %v4829, %v4827
        %v5078 = vpack.c.b16 %v4832, %v4830
        %v5079 = vpack.c.b16 %v4833, %v4831
        %v5080 = vpack.c.b16 %v4836, %v4834
        %v5081 = vpack.c.b16 %v4837, %v4835
        %v5082 = vpack.c.b16 %v4840, %v4838
        %v5083 = vpack.c.b16 %v4841, %v4839
        %v5084 = vpack.c.b16 %v4844, %v4842
        %v5085 = vpack.c.b16 %v4845, %v4843
        %v5086 = vpack.c.b16 %v4848, %v4846
        %v5087 = vpack.c.b16 %v4849, %v4847
        %v5088 = vpack.c.b16 %v4852, %v4850
        %v5089 = vpack.c.b16 %v4853, %v4851
        %v5090 = vpack.c.b16 %v4856, %v4854
        %v5091 = vpack.c.b16 %v4857, %v4855
        %v5092 = vpack.c.b16 %v4860, %v4858
        %v5093 = vpack.c.b16 %v4861, %v4859
        %v5094 = vpack.c.b16 %v4864, %v4862
        %v5095 = vpack.c.b16 %v4865, %v4863
        %v5096 = vpack.c.b16 %v4868, %v4866
        %v5097 = vpack.c.b16 %v4869, %v4867
        %v5098 = vpack.c.b16 %v4872, %v4870
        %v5099 = vpack.c.b16 %v4873, %v4871
        %v5100 = vpack.c.b16 %v4876, %v4874
        %v5101 = vpack.c.b16 %v4877, %v4875
        %v5102 = vpack.c.b16 %v4880, %v4878
        %v5103 = vpack.c.b16 %v4881, %v4879
        %v5104 = vpack.c.b16 %v4884, %v4882
        %v5105 = vpack.c.b16 %v4885, %v4883
        %v5106 = vpack.c.b16 %v4888, %v4886
        %v5107 = vpack.c.b16 %v4889, %v4887
        %v5108 = vpack.c.b16 %v4892, %v4890
        %v5109 = vpack.c.b16 %v4893, %v4891
        %v5110 = vpack.c.b16 %v4896, %v4894
        %v5111 = vpack.c.b16 %v4897, %v4895
        %v5112 = vpack.c.b16 %v4900, %v4898
        %v5113 = vpack.c.b16 %v4901, %v4899
        %v5114 = vpack.c.b16 %v4904, %v4902
        %v5115 = vpack.c.b16 %v4905, %v4903
        %v5116 = vpack.c.b16 %v4908, %v4906
        %v5117 = vpack.c.b16 %v4909, %v4907
        %v5118 = vpack.c.b16 %v4912, %v4910
        %v5119 = vpack.c.b16 %v4913, %v4911
        %v5120 = vpack.c.b16 %v4916, %v4914
        %v5121 = vpack.c.b16 %v4917, %v4915
        %v5122 = vpack.c.b16 %v4920, %v4918
        %v5123 = vpack.c.b16 %v4921, %v4919
        %v5124 = vpack.c.b16 %v4924, %v4922
        %v5125 = vpack.c.b16 %v4925, %v4923
        %v5126 = vpack.c.b16 %v4928, %v4926
        %v5127 = vpack.c.b16 %v4929, %v4927
        %v5128 = vpack.c.b16 %v4932, %v4930
        %v5129 = vpack.c.b16 %v4933, %v4931
        %v5130 = vpack.c.b16 %v4936, %v4934
        %v5131 = vpack.c.b16 %v4937, %v4935
        %v5132 = vpack.c.b16 %v4940, %v4938
        %v5133 = vpack.c.b16 %v4941, %v4939
        %v5134 = vpack.c.b16 %v4944, %v4942
        %v5135 = vpack.c.b16 %v4945, %v4943
        %v5136 = vpack.c.b16 %v4948, %v4946
        %v5137 = vpack.c.b16 %v4949, %v4947
        %v5138 = vpack.c.b16 %v4952, %v4950
        %v5139 = vpack.c.b16 %v4953, %v4951
        %v5140 = vpack.c.b16 %v4956, %v4954
        %v5141 = vpack.c.b16 %v4957, %v4955
        %v5142 = vpack.c.b16 %v4960, %v4958
        %v5143 = vpack.c.b16 %v4961, %v4959
        %v5144 = vpack.c.b16 %v4964, %v4962
        %v5145 = vpack.c.b16 %v4965, %v4963
        %v5146 = vpack.c.b16 %v4968, %v4966
        %v5147 = vpack.c.b16 %v4969, %v4967
        %v5148 = vpack.c.b16 %v4972, %v4970
        %v5149 = vpack.c.b16 %v4973, %v4971
        %v5150 = vpack.c.b16 %v4976, %v4974
        %v5151 = vpack.c.b16 %v4977, %v4975
        %v5152 = vpack.c.b16 %v4980, %v4978
        %v5153 = vpack.c.b16 %v4981, %v4979
        %v5154 = vpack.c.b16 %v4984, %v4982
        %v5155 = vpack.c.b16 %v4985, %v4983
        %v5156 = vpack.c.b16 %v4988, %v4986
        %v5157 = vpack.c.b16 %v4989, %v4987
        %v5158 = vpack.c.b16 %v4992, %v4990
        %v5159 = vpack.c.b16 %v4993, %v4991
        %v5160 = vpack.c.b16 %v4996, %v4994
        %v5161 = vpack.c.b16 %v4997, %v4995
        %v5162 = vpack.c.b16 %v5000, %v4998
        %v5163 = vpack.c.b16 %v5001, %v4999
        %v5164 = vpack.c.b16 %v5004, %v5002
        %v5165 = vpack.c.b16 %v5005, %v5003
        %v5166 = vpack.c.b16 %v5008, %v5006
        %v5167 = vpack.c.b16 %v5009, %v5007
        %v5168 = vpack.c.b16 %v5012, %v5010
        %v5169 = vpack.c.b16 %v5013, %v5011
        %v5170 = vpack.c.b16 %v5016, %v5014
        %v5171 = vpack.c.b16 %v5017, %v5015
        %v5172 = vpack.c.b16 %v5020, %v5018
        %v5173 = vpack.c.b16 %v5021, %v5019
        %v5174 = vpack.c.b16 %v5024, %v5022
        %v5175 = vpack.c.b16 %v5025, %v5023
        %v5176 = vpack.c.b16 %v5028, %v5026
        %v5177 = vpack.c.b16 %v5029, %v5027
        %v5178 = vpack.c.b16 %v5032, %v5030
        %v5179 = vpack.c.b16 %v5033, %v5031
        %v5180 = vpack.c.b16 %v5036, %v5034
        %v5181 = vpack.c.b16 %v5037, %v5035
        %5326 = vmatpush.bf16.msra.mxu0 %v5052
        %5327 = vmatpush.bf16.msra.mxu0 %v5050
        %5328 = vmatpush.bf16.msra.mxu0 %v5048
        %5329 = vmatpush.bf16.msra.mxu0 %v5046
        %5330 = vmatpush.bf16.msra.mxu0 %v5044
        %5331 = vmatpush.bf16.msra.mxu0 %v5042
        %5332 = vmatpush.bf16.msra.mxu0 %v5040
        %5333 = vmatpush.bf16.msra.mxu0 %v5038
        %5334 = vmatmul.bf16.gmra.mxu0 %v4318
        %v5335 = vpop.f32.mrf.mxu0
        %v5336 = vadd.f32 0.0, %v5335
        %v5337 = vpop.f32.mrf.mxu0
        %v5338 = vadd.f32 0.0, %v5337
        %5339 = vmatmul.bf16.gmra.mxu0 %v4327
        %v5340 = vpop.f32.mrf.mxu0
        %v5341 = vadd.f32 0.0, %v5340
        %v5342 = vpop.f32.mrf.mxu0
        %v5343 = vadd.f32 0.0, %v5342
        %5344 = vmatmul.bf16.gmra.mxu0 %v4336
        %v5345 = vpop.f32.mrf.mxu0
        %v5346 = vadd.f32 0.0, %v5345
        %v5347 = vpop.f32.mrf.mxu0
        %v5348 = vadd.f32 0.0, %v5347
        %5349 = vmatmul.bf16.gmra.mxu0 %v4345
        %v5350 = vpop.f32.mrf.mxu0
        %v5351 = vadd.f32 0.0, %v5350
        %v5352 = vpop.f32.mrf.mxu0
        %v5353 = vadd.f32 0.0, %v5352
        %5354 = vmatmul.bf16.gmra.mxu0 %v4354
        %v5355 = vpop.f32.mrf.mxu0
        %v5356 = vadd.f32 0.0, %v5355
        %v5357 = vpop.f32.mrf.mxu0
        %v5358 = vadd.f32 0.0, %v5357
        %5359 = vmatmul.bf16.gmra.mxu0 %v4363
        %v5360 = vpop.f32.mrf.mxu0
        %v5361 = vadd.f32 0.0, %v5360
        %v5362 = vpop.f32.mrf.mxu0
        %v5363 = vadd.f32 0.0, %v5362
        %5364 = vmatmul.bf16.gmra.mxu0 %v4372
        %v5365 = vpop.f32.mrf.mxu0
        %v5366 = vadd.f32 0.0, %v5365
        %v5367 = vpop.f32.mrf.mxu0
        %v5368 = vadd.f32 0.0, %v5367
        %5369 = vmatmul.bf16.gmra.mxu0 %v4381
        %v5370 = vpop.f32.mrf.mxu0
        %v5371 = vadd.f32 0.0, %v5370
        %v5372 = vpop.f32.mrf.mxu0
        %v5373 = vadd.f32 0.0, %v5372
        %5374 = vmatmul.bf16.gmra.mxu0 %v4390
        %v5375 = vpop.f32.mrf.mxu0
        %v5376 = vadd.f32 0.0, %v5375
        %v5377 = vpop.f32.mrf.mxu0
        %v5378 = vadd.f32 0.0, %v5377
        %5379 = vmatmul.bf16.gmra.mxu0 %v4399
        %v5380 = vpop.f32.mrf.mxu0
        %v5381 = vadd.f32 0.0, %v5380
        %v5382 = vpop.f32.mrf.mxu0
        %v5383 = vadd.f32 0.0, %v5382
        %5384 = vmatmul.bf16.gmra.mxu0 %v4408
        %v5385 = vpop.f32.mrf.mxu0
        %v5386 = vadd.f32 0.0, %v5385
        %v5387 = vpop.f32.mrf.mxu0
        %v5388 = vadd.f32 0.0, %v5387
        %5389 = vmatmul.bf16.gmra.mxu0 %v4417
        %v5390 = vpop.f32.mrf.mxu0
        %v5391 = vadd.f32 0.0, %v5390
        %v5392 = vpop.f32.mrf.mxu0
        %v5393 = vadd.f32 0.0, %v5392
        %5394 = vmatmul.bf16.gmra.mxu0 %v4426
        %v5395 = vpop.f32.mrf.mxu0
        %v5396 = vadd.f32 0.0, %v5395
        %v5397 = vpop.f32.mrf.mxu0
        %v5398 = vadd.f32 0.0, %v5397
        %5399 = vmatmul.bf16.gmra.mxu0 %v4435
        %v5400 = vpop.f32.mrf.mxu0
        %v5401 = vadd.f32 0.0, %v5400
        %v5402 = vpop.f32.mrf.mxu0
        %v5403 = vadd.f32 0.0, %v5402
        %5404 = vmatmul.bf16.gmra.mxu0 %v4444
        %v5405 = vpop.f32.mrf.mxu0
        %v5406 = vadd.f32 0.0, %v5405
        %v5407 = vpop.f32.mrf.mxu0
        %v5408 = vadd.f32 0.0, %v5407
        %5409 = vmatmul.bf16.gmra.mxu0 %v4453
        %v5410 = vpop.f32.mrf.mxu0
        %v5411 = vadd.f32 0.0, %v5410
        %v5412 = vpop.f32.mrf.mxu0
        %v5413 = vadd.f32 0.0, %v5412
        %5414 = vdwg.mxu0
        %5415 = vmatpush.bf16.msra.mxu0 %v5068
        %5416 = vmatpush.bf16.msra.mxu0 %v5066
        %5417 = vmatpush.bf16.msra.mxu0 %v5064
        %5418 = vmatpush.bf16.msra.mxu0 %v5062
        %5419 = vmatpush.bf16.msra.mxu0 %v5060
        %5420 = vmatpush.bf16.msra.mxu0 %v5058
        %5421 = vmatpush.bf16.msra.mxu0 %v5056
        %5422 = vmatpush.bf16.msra.mxu0 %v5054
        %5423 = vmatmul.bf16.gmra.mxu0 %v4319
        %v5424 = vpop.f32.mrf.mxu0
        %v5425 = vadd.f32 %v5336, %v5424
        %v5426 = vpop.f32.mrf.mxu0
        %v5427 = vadd.f32 %v5338, %v5426
        %5428 = vmatmul.bf16.gmra.mxu0 %v4328
        %v5429 = vpop.f32.mrf.mxu0
        %v5430 = vadd.f32 %v5341, %v5429
        %v5431 = vpop.f32.mrf.mxu0
        %v5432 = vadd.f32 %v5343, %v5431
        %5433 = vmatmul.bf16.gmra.mxu0 %v4337
        %v5434 = vpop.f32.mrf.mxu0
        %v5435 = vadd.f32 %v5346, %v5434
        %v5436 = vpop.f32.mrf.mxu0
        %v5437 = vadd.f32 %v5348, %v5436
        %5438 = vmatmul.bf16.gmra.mxu0 %v4346
        %v5439 = vpop.f32.mrf.mxu0
        %v5440 = vadd.f32 %v5351, %v5439
        %v5441 = vpop.f32.mrf.mxu0
        %v5442 = vadd.f32 %v5353, %v5441
        %5443 = vmatmul.bf16.gmra.mxu0 %v4355
        %v5444 = vpop.f32.mrf.mxu0
        %v5445 = vadd.f32 %v5356, %v5444
        %v5446 = vpop.f32.mrf.mxu0
        %v5447 = vadd.f32 %v5358, %v5446
        %5448 = vmatmul.bf16.gmra.mxu0 %v4364
        %v5449 = vpop.f32.mrf.mxu0
        %v5450 = vadd.f32 %v5361, %v5449
        %v5451 = vpop.f32.mrf.mxu0
        %v5452 = vadd.f32 %v5363, %v5451
        %5453 = vmatmul.bf16.gmra.mxu0 %v4373
        %v5454 = vpop.f32.mrf.mxu0
        %v5455 = vadd.f32 %v5366, %v5454
        %v5456 = vpop.f32.mrf.mxu0
        %v5457 = vadd.f32 %v5368, %v5456
        %5458 = vmatmul.bf16.gmra.mxu0 %v4382
        %v5459 = vpop.f32.mrf.mxu0
        %v5460 = vadd.f32 %v5371, %v5459
        %v5461 = vpop.f32.mrf.mxu0
        %v5462 = vadd.f32 %v5373, %v5461
        %5463 = vmatmul.bf16.gmra.mxu0 %v4391
        %v5464 = vpop.f32.mrf.mxu0
        %v5465 = vadd.f32 %v5376, %v5464
        %v5466 = vpop.f32.mrf.mxu0
        %v5467 = vadd.f32 %v5378, %v5466
        %5468 = vmatmul.bf16.gmra.mxu0 %v4400
        %v5469 = vpop.f32.mrf.mxu0
        %v5470 = vadd.f32 %v5381, %v5469
        %v5471 = vpop.f32.mrf.mxu0
        %v5472 = vadd.f32 %v5383, %v5471
        %5473 = vmatmul.bf16.gmra.mxu0 %v4409
        %v5474 = vpop.f32.mrf.mxu0
        %v5475 = vadd.f32 %v5386, %v5474
        %v5476 = vpop.f32.mrf.mxu0
        %v5477 = vadd.f32 %v5388, %v5476
        %5478 = vmatmul.bf16.gmra.mxu0 %v4418
        %v5479 = vpop.f32.mrf.mxu0
        %v5480 = vadd.f32 %v5391, %v5479
        %v5481 = vpop.f32.mrf.mxu0
        %v5482 = vadd.f32 %v5393, %v5481
        %5483 = vmatmul.bf16.gmra.mxu0 %v4427
        %v5484 = vpop.f32.mrf.mxu0
        %v5485 = vadd.f32 %v5396, %v5484
        %v5486 = vpop.f32.mrf.mxu0
        %v5487 = vadd.f32 %v5398, %v5486
        %5488 = vmatmul.bf16.gmra.mxu0 %v4436
        %v5489 = vpop.f32.mrf.mxu0
        %v5490 = vadd.f32 %v5401, %v5489
        %v5491 = vpop.f32.mrf.mxu0
        %v5492 = vadd.f32 %v5403, %v5491
        %5493 = vmatmul.bf16.gmra.mxu0 %v4445
        %v5494 = vpop.f32.mrf.mxu0
        %v5495 = vadd.f32 %v5406, %v5494
        %v5496 = vpop.f32.mrf.mxu0
        %v5497 = vadd.f32 %v5408, %v5496
        %5498 = vmatmul.bf16.gmra.mxu0 %v4454
        %v5499 = vpop.f32.mrf.mxu0
        %v5500 = vadd.f32 %v5411, %v5499
        %v5501 = vpop.f32.mrf.mxu0
        %v5502 = vadd.f32 %v5413, %v5501
        %5503 = vdwg.mxu0
        %5504 = vmatpush.bf16.msra.mxu0 %v5084
        %5505 = vmatpush.bf16.msra.mxu0 %v5082
        %5506 = vmatpush.bf16.msra.mxu0 %v5080
        %5507 = vmatpush.bf16.msra.mxu0 %v5078
        %5508 = vmatpush.bf16.msra.mxu0 %v5076
        %5509 = vmatpush.bf16.msra.mxu0 %v5074
        %5510 = vmatpush.bf16.msra.mxu0 %v5072
        %5511 = vmatpush.bf16.msra.mxu0 %v5070
        %5512 = vmatmul.bf16.gmra.mxu0 %v4320
        %v5513 = vpop.f32.mrf.mxu0
        %v5514 = vadd.f32 %v5425, %v5513
        %v5515 = vpop.f32.mrf.mxu0
        %v5516 = vadd.f32 %v5427, %v5515
        %5517 = vmatmul.bf16.gmra.mxu0 %v4329
        %v5518 = vpop.f32.mrf.mxu0
        %v5519 = vadd.f32 %v5430, %v5518
        %v5520 = vpop.f32.mrf.mxu0
        %v5521 = vadd.f32 %v5432, %v5520
        %5522 = vmatmul.bf16.gmra.mxu0 %v4338
        %v5523 = vpop.f32.mrf.mxu0
        %v5524 = vadd.f32 %v5435, %v5523
        %v5525 = vpop.f32.mrf.mxu0
        %v5526 = vadd.f32 %v5437, %v5525
        %5527 = vmatmul.bf16.gmra.mxu0 %v4347
        %v5528 = vpop.f32.mrf.mxu0
        %v5529 = vadd.f32 %v5440, %v5528
        %v5530 = vpop.f32.mrf.mxu0
        %v5531 = vadd.f32 %v5442, %v5530
        %5532 = vmatmul.bf16.gmra.mxu0 %v4356
        %v5533 = vpop.f32.mrf.mxu0
        %v5534 = vadd.f32 %v5445, %v5533
        %v5535 = vpop.f32.mrf.mxu0
        %v5536 = vadd.f32 %v5447, %v5535
        %5537 = vmatmul.bf16.gmra.mxu0 %v4365
        %v5538 = vpop.f32.mrf.mxu0
        %v5539 = vadd.f32 %v5450, %v5538
        %v5540 = vpop.f32.mrf.mxu0
        %v5541 = vadd.f32 %v5452, %v5540
        %5542 = vmatmul.bf16.gmra.mxu0 %v4374
        %v5543 = vpop.f32.mrf.mxu0
        %v5544 = vadd.f32 %v5455, %v5543
        %v5545 = vpop.f32.mrf.mxu0
        %v5546 = vadd.f32 %v5457, %v5545
        %5547 = vmatmul.bf16.gmra.mxu0 %v4383
        %v5548 = vpop.f32.mrf.mxu0
        %v5549 = vadd.f32 %v5460, %v5548
        %v5550 = vpop.f32.mrf.mxu0
        %v5551 = vadd.f32 %v5462, %v5550
        %5552 = vmatmul.bf16.gmra.mxu0 %v4392
        %v5553 = vpop.f32.mrf.mxu0
        %v5554 = vadd.f32 %v5465, %v5553
        %v5555 = vpop.f32.mrf.mxu0
        %v5556 = vadd.f32 %v5467, %v5555
        %5557 = vmatmul.bf16.gmra.mxu0 %v4401
        %v5558 = vpop.f32.mrf.mxu0
        %v5559 = vadd.f32 %v5470, %v5558
        %v5560 = vpop.f32.mrf.mxu0
        %v5561 = vadd.f32 %v5472, %v5560
        %5562 = vmatmul.bf16.gmra.mxu0 %v4410
        %v5563 = vpop.f32.mrf.mxu0
        %v5564 = vadd.f32 %v5475, %v5563
        %v5565 = vpop.f32.mrf.mxu0
        %v5566 = vadd.f32 %v5477, %v5565
        %5567 = vmatmul.bf16.gmra.mxu0 %v4419
        %v5568 = vpop.f32.mrf.mxu0
        %v5569 = vadd.f32 %v5480, %v5568
        %v5570 = vpop.f32.mrf.mxu0
        %v5571 = vadd.f32 %v5482, %v5570
        %5572 = vmatmul.bf16.gmra.mxu0 %v4428
        %v5573 = vpop.f32.mrf.mxu0
        %v5574 = vadd.f32 %v5485, %v5573
        %v5575 = vpop.f32.mrf.mxu0
        %v5576 = vadd.f32 %v5487, %v5575
        %5577 = vmatmul.bf16.gmra.mxu0 %v4437
        %v5578 = vpop.f32.mrf.mxu0
        %v5579 = vadd.f32 %v5490, %v5578
        %v5580 = vpop.f32.mrf.mxu0
        %v5581 = vadd.f32 %v5492, %v5580
        %5582 = vmatmul.bf16.gmra.mxu0 %v4446
        %v5583 = vpop.f32.mrf.mxu0
        %v5584 = vadd.f32 %v5495, %v5583
        %v5585 = vpop.f32.mrf.mxu0
        %v5586 = vadd.f32 %v5497, %v5585
        %5587 = vmatmul.bf16.gmra.mxu0 %v4455
        %v5588 = vpop.f32.mrf.mxu0
        %v5589 = vadd.f32 %v5500, %v5588
        %v5590 = vpop.f32.mrf.mxu0
        %v5591 = vadd.f32 %v5502, %v5590
        %5592 = vdwg.mxu0
        %5593 = vmatpush.bf16.msra.mxu0 %v5100
        %5594 = vmatpush.bf16.msra.mxu0 %v5098
        %5595 = vmatpush.bf16.msra.mxu0 %v5096
        %5596 = vmatpush.bf16.msra.mxu0 %v5094
        %5597 = vmatpush.bf16.msra.mxu0 %v5092
        %5598 = vmatpush.bf16.msra.mxu0 %v5090
        %5599 = vmatpush.bf16.msra.mxu0 %v5088
        %5600 = vmatpush.bf16.msra.mxu0 %v5086
        %5601 = vmatmul.bf16.gmra.mxu0 %v4321
        %v5602 = vpop.f32.mrf.mxu0
        %v5603 = vadd.f32 %v5514, %v5602
        %v5604 = vpop.f32.mrf.mxu0
        %v5605 = vadd.f32 %v5516, %v5604
        %5606 = vmatmul.bf16.gmra.mxu0 %v4330
        %v5607 = vpop.f32.mrf.mxu0
        %v5608 = vadd.f32 %v5519, %v5607
        %v5609 = vpop.f32.mrf.mxu0
        %v5610 = vadd.f32 %v5521, %v5609
        %5611 = vmatmul.bf16.gmra.mxu0 %v4339
        %v5612 = vpop.f32.mrf.mxu0
        %v5613 = vadd.f32 %v5524, %v5612
        %v5614 = vpop.f32.mrf.mxu0
        %v5615 = vadd.f32 %v5526, %v5614
        %5616 = vmatmul.bf16.gmra.mxu0 %v4348
        %v5617 = vpop.f32.mrf.mxu0
        %v5618 = vadd.f32 %v5529, %v5617
        %v5619 = vpop.f32.mrf.mxu0
        %v5620 = vadd.f32 %v5531, %v5619
        %5621 = vmatmul.bf16.gmra.mxu0 %v4357
        %v5622 = vpop.f32.mrf.mxu0
        %v5623 = vadd.f32 %v5534, %v5622
        %v5624 = vpop.f32.mrf.mxu0
        %v5625 = vadd.f32 %v5536, %v5624
        %5626 = vmatmul.bf16.gmra.mxu0 %v4366
        %v5627 = vpop.f32.mrf.mxu0
        %v5628 = vadd.f32 %v5539, %v5627
        %v5629 = vpop.f32.mrf.mxu0
        %v5630 = vadd.f32 %v5541, %v5629
        %5631 = vmatmul.bf16.gmra.mxu0 %v4375
        %v5632 = vpop.f32.mrf.mxu0
        %v5633 = vadd.f32 %v5544, %v5632
        %v5634 = vpop.f32.mrf.mxu0
        %v5635 = vadd.f32 %v5546, %v5634
        %5636 = vmatmul.bf16.gmra.mxu0 %v4384
        %v5637 = vpop.f32.mrf.mxu0
        %v5638 = vadd.f32 %v5549, %v5637
        %v5639 = vpop.f32.mrf.mxu0
        %v5640 = vadd.f32 %v5551, %v5639
        %5641 = vmatmul.bf16.gmra.mxu0 %v4393
        %v5642 = vpop.f32.mrf.mxu0
        %v5643 = vadd.f32 %v5554, %v5642
        %v5644 = vpop.f32.mrf.mxu0
        %v5645 = vadd.f32 %v5556, %v5644
        %5646 = vmatmul.bf16.gmra.mxu0 %v4402
        %v5647 = vpop.f32.mrf.mxu0
        %v5648 = vadd.f32 %v5559, %v5647
        %v5649 = vpop.f32.mrf.mxu0
        %v5650 = vadd.f32 %v5561, %v5649
        %5651 = vmatmul.bf16.gmra.mxu0 %v4411
        %v5652 = vpop.f32.mrf.mxu0
        %v5653 = vadd.f32 %v5564, %v5652
        %v5654 = vpop.f32.mrf.mxu0
        %v5655 = vadd.f32 %v5566, %v5654
        %5656 = vmatmul.bf16.gmra.mxu0 %v4420
        %v5657 = vpop.f32.mrf.mxu0
        %v5658 = vadd.f32 %v5569, %v5657
        %v5659 = vpop.f32.mrf.mxu0
        %v5660 = vadd.f32 %v5571, %v5659
        %5661 = vmatmul.bf16.gmra.mxu0 %v4429
        %v5662 = vpop.f32.mrf.mxu0
        %v5663 = vadd.f32 %v5574, %v5662
        %v5664 = vpop.f32.mrf.mxu0
        %v5665 = vadd.f32 %v5576, %v5664
        %5666 = vmatmul.bf16.gmra.mxu0 %v4438
        %v5667 = vpop.f32.mrf.mxu0
        %v5668 = vadd.f32 %v5579, %v5667
        %v5669 = vpop.f32.mrf.mxu0
        %v5670 = vadd.f32 %v5581, %v5669
        %5671 = vmatmul.bf16.gmra.mxu0 %v4447
        %v5672 = vpop.f32.mrf.mxu0
        %v5673 = vadd.f32 %v5584, %v5672
        %v5674 = vpop.f32.mrf.mxu0
        %v5675 = vadd.f32 %v5586, %v5674
        %5676 = vmatmul.bf16.gmra.mxu0 %v4456
        %v5677 = vpop.f32.mrf.mxu0
        %v5678 = vadd.f32 %v5589, %v5677
        %v5679 = vpop.f32.mrf.mxu0
        %v5680 = vadd.f32 %v5591, %v5679
        %5681 = vdwg.mxu0
        %5682 = vmatpush.bf16.msra.mxu0 %v5116
        %5683 = vmatpush.bf16.msra.mxu0 %v5114
        %5684 = vmatpush.bf16.msra.mxu0 %v5112
        %5685 = vmatpush.bf16.msra.mxu0 %v5110
        %5686 = vmatpush.bf16.msra.mxu0 %v5108
        %5687 = vmatpush.bf16.msra.mxu0 %v5106
        %5688 = vmatpush.bf16.msra.mxu0 %v5104
        %5689 = vmatpush.bf16.msra.mxu0 %v5102
        %5690 = vmatmul.bf16.gmra.mxu0 %v4322
        %v5691 = vpop.f32.mrf.mxu0
        %v5692 = vadd.f32 %v5603, %v5691
        %v5693 = vpop.f32.mrf.mxu0
        %v5694 = vadd.f32 %v5605, %v5693
        %5695 = vmatmul.bf16.gmra.mxu0 %v4331
        %v5696 = vpop.f32.mrf.mxu0
        %v5697 = vadd.f32 %v5608, %v5696
        %v5698 = vpop.f32.mrf.mxu0
        %v5699 = vadd.f32 %v5610, %v5698
        %5700 = vmatmul.bf16.gmra.mxu0 %v4340
        %v5701 = vpop.f32.mrf.mxu0
        %v5702 = vadd.f32 %v5613, %v5701
        %v5703 = vpop.f32.mrf.mxu0
        %v5704 = vadd.f32 %v5615, %v5703
        %5705 = vmatmul.bf16.gmra.mxu0 %v4349
        %v5706 = vpop.f32.mrf.mxu0
        %v5707 = vadd.f32 %v5618, %v5706
        %v5708 = vpop.f32.mrf.mxu0
        %v5709 = vadd.f32 %v5620, %v5708
        %5710 = vmatmul.bf16.gmra.mxu0 %v4358
        %v5711 = vpop.f32.mrf.mxu0
        %v5712 = vadd.f32 %v5623, %v5711
        %v5713 = vpop.f32.mrf.mxu0
        %v5714 = vadd.f32 %v5625, %v5713
        %5715 = vmatmul.bf16.gmra.mxu0 %v4367
        %v5716 = vpop.f32.mrf.mxu0
        %v5717 = vadd.f32 %v5628, %v5716
        %v5718 = vpop.f32.mrf.mxu0
        %v5719 = vadd.f32 %v5630, %v5718
        %5720 = vmatmul.bf16.gmra.mxu0 %v4376
        %v5721 = vpop.f32.mrf.mxu0
        %v5722 = vadd.f32 %v5633, %v5721
        %v5723 = vpop.f32.mrf.mxu0
        %v5724 = vadd.f32 %v5635, %v5723
        %5725 = vmatmul.bf16.gmra.mxu0 %v4385
        %v5726 = vpop.f32.mrf.mxu0
        %v5727 = vadd.f32 %v5638, %v5726
        %v5728 = vpop.f32.mrf.mxu0
        %v5729 = vadd.f32 %v5640, %v5728
        %5730 = vmatmul.bf16.gmra.mxu0 %v4394
        %v5731 = vpop.f32.mrf.mxu0
        %v5732 = vadd.f32 %v5643, %v5731
        %v5733 = vpop.f32.mrf.mxu0
        %v5734 = vadd.f32 %v5645, %v5733
        %5735 = vmatmul.bf16.gmra.mxu0 %v4403
        %v5736 = vpop.f32.mrf.mxu0
        %v5737 = vadd.f32 %v5648, %v5736
        %v5738 = vpop.f32.mrf.mxu0
        %v5739 = vadd.f32 %v5650, %v5738
        %5740 = vmatmul.bf16.gmra.mxu0 %v4412
        %v5741 = vpop.f32.mrf.mxu0
        %v5742 = vadd.f32 %v5653, %v5741
        %v5743 = vpop.f32.mrf.mxu0
        %v5744 = vadd.f32 %v5655, %v5743
        %5745 = vmatmul.bf16.gmra.mxu0 %v4421
        %v5746 = vpop.f32.mrf.mxu0
        %v5747 = vadd.f32 %v5658, %v5746
        %v5748 = vpop.f32.mrf.mxu0
        %v5749 = vadd.f32 %v5660, %v5748
        %5750 = vmatmul.bf16.gmra.mxu0 %v4430
        %v5751 = vpop.f32.mrf.mxu0
        %v5752 = vadd.f32 %v5663, %v5751
        %v5753 = vpop.f32.mrf.mxu0
        %v5754 = vadd.f32 %v5665, %v5753
        %5755 = vmatmul.bf16.gmra.mxu0 %v4439
        %v5756 = vpop.f32.mrf.mxu0
        %v5757 = vadd.f32 %v5668, %v5756
        %v5758 = vpop.f32.mrf.mxu0
        %v5759 = vadd.f32 %v5670, %v5758
        %5760 = vmatmul.bf16.gmra.mxu0 %v4448
        %v5761 = vpop.f32.mrf.mxu0
        %v5762 = vadd.f32 %v5673, %v5761
        %v5763 = vpop.f32.mrf.mxu0
        %v5764 = vadd.f32 %v5675, %v5763
        %5765 = vmatmul.bf16.gmra.mxu0 %v4457
        %v5766 = vpop.f32.mrf.mxu0
        %v5767 = vadd.f32 %v5678, %v5766
        %v5768 = vpop.f32.mrf.mxu0
        %v5769 = vadd.f32 %v5680, %v5768
        %5770 = vdwg.mxu0
        %5771 = vmatpush.bf16.msra.mxu0 %v5132
        %5772 = vmatpush.bf16.msra.mxu0 %v5130
        %5773 = vmatpush.bf16.msra.mxu0 %v5128
        %5774 = vmatpush.bf16.msra.mxu0 %v5126
        %5775 = vmatpush.bf16.msra.mxu0 %v5124
        %5776 = vmatpush.bf16.msra.mxu0 %v5122
        %5777 = vmatpush.bf16.msra.mxu0 %v5120
        %5778 = vmatpush.bf16.msra.mxu0 %v5118
        %5779 = vmatmul.bf16.gmra.mxu0 %v4323
        %v5780 = vpop.f32.mrf.mxu0
        %v5781 = vadd.f32 %v5692, %v5780
        %v5782 = vpop.f32.mrf.mxu0
        %v5783 = vadd.f32 %v5694, %v5782
        %5784 = vmatmul.bf16.gmra.mxu0 %v4332
        %v5785 = vpop.f32.mrf.mxu0
        %v5786 = vadd.f32 %v5697, %v5785
        %v5787 = vpop.f32.mrf.mxu0
        %v5788 = vadd.f32 %v5699, %v5787
        %5789 = vmatmul.bf16.gmra.mxu0 %v4341
        %v5790 = vpop.f32.mrf.mxu0
        %v5791 = vadd.f32 %v5702, %v5790
        %v5792 = vpop.f32.mrf.mxu0
        %v5793 = vadd.f32 %v5704, %v5792
        %5794 = vmatmul.bf16.gmra.mxu0 %v4350
        %v5795 = vpop.f32.mrf.mxu0
        %v5796 = vadd.f32 %v5707, %v5795
        %v5797 = vpop.f32.mrf.mxu0
        %v5798 = vadd.f32 %v5709, %v5797
        %5799 = vmatmul.bf16.gmra.mxu0 %v4359
        %v5800 = vpop.f32.mrf.mxu0
        %v5801 = vadd.f32 %v5712, %v5800
        %v5802 = vpop.f32.mrf.mxu0
        %v5803 = vadd.f32 %v5714, %v5802
        %5804 = vmatmul.bf16.gmra.mxu0 %v4368
        %v5805 = vpop.f32.mrf.mxu0
        %v5806 = vadd.f32 %v5717, %v5805
        %v5807 = vpop.f32.mrf.mxu0
        %v5808 = vadd.f32 %v5719, %v5807
        %5809 = vmatmul.bf16.gmra.mxu0 %v4377
        %v5810 = vpop.f32.mrf.mxu0
        %v5811 = vadd.f32 %v5722, %v5810
        %v5812 = vpop.f32.mrf.mxu0
        %v5813 = vadd.f32 %v5724, %v5812
        %5814 = vmatmul.bf16.gmra.mxu0 %v4386
        %v5815 = vpop.f32.mrf.mxu0
        %v5816 = vadd.f32 %v5727, %v5815
        %v5817 = vpop.f32.mrf.mxu0
        %v5818 = vadd.f32 %v5729, %v5817
        %5819 = vmatmul.bf16.gmra.mxu0 %v4395
        %v5820 = vpop.f32.mrf.mxu0
        %v5821 = vadd.f32 %v5732, %v5820
        %v5822 = vpop.f32.mrf.mxu0
        %v5823 = vadd.f32 %v5734, %v5822
        %5824 = vmatmul.bf16.gmra.mxu0 %v4404
        %v5825 = vpop.f32.mrf.mxu0
        %v5826 = vadd.f32 %v5737, %v5825
        %v5827 = vpop.f32.mrf.mxu0
        %v5828 = vadd.f32 %v5739, %v5827
        %5829 = vmatmul.bf16.gmra.mxu0 %v4413
        %v5830 = vpop.f32.mrf.mxu0
        %v5831 = vadd.f32 %v5742, %v5830
        %v5832 = vpop.f32.mrf.mxu0
        %v5833 = vadd.f32 %v5744, %v5832
        %5834 = vmatmul.bf16.gmra.mxu0 %v4422
        %v5835 = vpop.f32.mrf.mxu0
        %v5836 = vadd.f32 %v5747, %v5835
        %v5837 = vpop.f32.mrf.mxu0
        %v5838 = vadd.f32 %v5749, %v5837
        %5839 = vmatmul.bf16.gmra.mxu0 %v4431
        %v5840 = vpop.f32.mrf.mxu0
        %v5841 = vadd.f32 %v5752, %v5840
        %v5842 = vpop.f32.mrf.mxu0
        %v5843 = vadd.f32 %v5754, %v5842
        %5844 = vmatmul.bf16.gmra.mxu0 %v4440
        %v5845 = vpop.f32.mrf.mxu0
        %v5846 = vadd.f32 %v5757, %v5845
        %v5847 = vpop.f32.mrf.mxu0
        %v5848 = vadd.f32 %v5759, %v5847
        %5849 = vmatmul.bf16.gmra.mxu0 %v4449
        %v5850 = vpop.f32.mrf.mxu0
        %v5851 = vadd.f32 %v5762, %v5850
        %v5852 = vpop.f32.mrf.mxu0
        %v5853 = vadd.f32 %v5764, %v5852
        %5854 = vmatmul.bf16.gmra.mxu0 %v4458
        %v5855 = vpop.f32.mrf.mxu0
        %v5856 = vadd.f32 %v5767, %v5855
        %v5857 = vpop.f32.mrf.mxu0
        %v5858 = vadd.f32 %v5769, %v5857
        %5859 = vdwg.mxu0
        %5860 = vmatpush.bf16.msra.mxu0 %v5148
        %5861 = vmatpush.bf16.msra.mxu0 %v5146
        %5862 = vmatpush.bf16.msra.mxu0 %v5144
        %5863 = vmatpush.bf16.msra.mxu0 %v5142
        %5864 = vmatpush.bf16.msra.mxu0 %v5140
        %5865 = vmatpush.bf16.msra.mxu0 %v5138
        %5866 = vmatpush.bf16.msra.mxu0 %v5136
        %5867 = vmatpush.bf16.msra.mxu0 %v5134
        %5868 = vmatmul.bf16.gmra.mxu0 %v4324
        %v5869 = vpop.f32.mrf.mxu0
        %v5870 = vadd.f32 %v5781, %v5869
        %v5871 = vpop.f32.mrf.mxu0
        %v5872 = vadd.f32 %v5783, %v5871
        %5873 = vmatmul.bf16.gmra.mxu0 %v4333
        %v5874 = vpop.f32.mrf.mxu0
        %v5875 = vadd.f32 %v5786, %v5874
        %v5876 = vpop.f32.mrf.mxu0
        %v5877 = vadd.f32 %v5788, %v5876
        %5878 = vmatmul.bf16.gmra.mxu0 %v4342
        %v5879 = vpop.f32.mrf.mxu0
        %v5880 = vadd.f32 %v5791, %v5879
        %v5881 = vpop.f32.mrf.mxu0
        %v5882 = vadd.f32 %v5793, %v5881
        %5883 = vmatmul.bf16.gmra.mxu0 %v4351
        %v5884 = vpop.f32.mrf.mxu0
        %v5885 = vadd.f32 %v5796, %v5884
        %v5886 = vpop.f32.mrf.mxu0
        %v5887 = vadd.f32 %v5798, %v5886
        %5888 = vmatmul.bf16.gmra.mxu0 %v4360
        %v5889 = vpop.f32.mrf.mxu0
        %v5890 = vadd.f32 %v5801, %v5889
        %v5891 = vpop.f32.mrf.mxu0
        %v5892 = vadd.f32 %v5803, %v5891
        %5893 = vmatmul.bf16.gmra.mxu0 %v4369
        %v5894 = vpop.f32.mrf.mxu0
        %v5895 = vadd.f32 %v5806, %v5894
        %v5896 = vpop.f32.mrf.mxu0
        %v5897 = vadd.f32 %v5808, %v5896
        %5898 = vmatmul.bf16.gmra.mxu0 %v4378
        %v5899 = vpop.f32.mrf.mxu0
        %v5900 = vadd.f32 %v5811, %v5899
        %v5901 = vpop.f32.mrf.mxu0
        %v5902 = vadd.f32 %v5813, %v5901
        %5903 = vmatmul.bf16.gmra.mxu0 %v4387
        %v5904 = vpop.f32.mrf.mxu0
        %v5905 = vadd.f32 %v5816, %v5904
        %v5906 = vpop.f32.mrf.mxu0
        %v5907 = vadd.f32 %v5818, %v5906
        %5908 = vmatmul.bf16.gmra.mxu0 %v4396
        %v5909 = vpop.f32.mrf.mxu0
        %v5910 = vadd.f32 %v5821, %v5909
        %v5911 = vpop.f32.mrf.mxu0
        %v5912 = vadd.f32 %v5823, %v5911
        %5913 = vmatmul.bf16.gmra.mxu0 %v4405
        %v5914 = vpop.f32.mrf.mxu0
        %v5915 = vadd.f32 %v5826, %v5914
        %v5916 = vpop.f32.mrf.mxu0
        %v5917 = vadd.f32 %v5828, %v5916
        %5918 = vmatmul.bf16.gmra.mxu0 %v4414
        %v5919 = vpop.f32.mrf.mxu0
        %v5920 = vadd.f32 %v5831, %v5919
        %v5921 = vpop.f32.mrf.mxu0
        %v5922 = vadd.f32 %v5833, %v5921
        %5923 = vmatmul.bf16.gmra.mxu0 %v4423
        %v5924 = vpop.f32.mrf.mxu0
        %v5925 = vadd.f32 %v5836, %v5924
        %v5926 = vpop.f32.mrf.mxu0
        %v5927 = vadd.f32 %v5838, %v5926
        %5928 = vmatmul.bf16.gmra.mxu0 %v4432
        %v5929 = vpop.f32.mrf.mxu0
        %v5930 = vadd.f32 %v5841, %v5929
        %v5931 = vpop.f32.mrf.mxu0
        %v5932 = vadd.f32 %v5843, %v5931
        %5933 = vmatmul.bf16.gmra.mxu0 %v4441
        %v5934 = vpop.f32.mrf.mxu0
        %v5935 = vadd.f32 %v5846, %v5934
        %v5936 = vpop.f32.mrf.mxu0
        %v5937 = vadd.f32 %v5848, %v5936
        %5938 = vmatmul.bf16.gmra.mxu0 %v4450
        %v5939 = vpop.f32.mrf.mxu0
        %v5940 = vadd.f32 %v5851, %v5939
        %v5941 = vpop.f32.mrf.mxu0
        %v5942 = vadd.f32 %v5853, %v5941
        %5943 = vmatmul.bf16.gmra.mxu0 %v4459
        %v5944 = vpop.f32.mrf.mxu0
        %v5945 = vadd.f32 %v5856, %v5944
        %v5946 = vpop.f32.mrf.mxu0
        %v5947 = vadd.f32 %v5858, %v5946
        %5948 = vdwg.mxu0
        %5949 = vmatpush.bf16.msra.mxu0 %v5164
        %5950 = vmatpush.bf16.msra.mxu0 %v5162
        %5951 = vmatpush.bf16.msra.mxu0 %v5160
        %5952 = vmatpush.bf16.msra.mxu0 %v5158
        %5953 = vmatpush.bf16.msra.mxu0 %v5156
        %5954 = vmatpush.bf16.msra.mxu0 %v5154
        %5955 = vmatpush.bf16.msra.mxu0 %v5152
        %5956 = vmatpush.bf16.msra.mxu0 %v5150
        %5957 = vmatmul.bf16.gmra.mxu0 %v4325
        %v5958 = vpop.f32.mrf.mxu0
        %v5959 = vadd.f32 %v5870, %v5958
        %v5960 = vpop.f32.mrf.mxu0
        %v5961 = vadd.f32 %v5872, %v5960
        %5962 = vmatmul.bf16.gmra.mxu0 %v4334
        %v5963 = vpop.f32.mrf.mxu0
        %v5964 = vadd.f32 %v5875, %v5963
        %v5965 = vpop.f32.mrf.mxu0
        %v5966 = vadd.f32 %v5877, %v5965
        %5967 = vmatmul.bf16.gmra.mxu0 %v4343
        %v5968 = vpop.f32.mrf.mxu0
        %v5969 = vadd.f32 %v5880, %v5968
        %v5970 = vpop.f32.mrf.mxu0
        %v5971 = vadd.f32 %v5882, %v5970
        %5972 = vmatmul.bf16.gmra.mxu0 %v4352
        %v5973 = vpop.f32.mrf.mxu0
        %v5974 = vadd.f32 %v5885, %v5973
        %v5975 = vpop.f32.mrf.mxu0
        %v5976 = vadd.f32 %v5887, %v5975
        %5977 = vmatmul.bf16.gmra.mxu0 %v4361
        %v5978 = vpop.f32.mrf.mxu0
        %v5979 = vadd.f32 %v5890, %v5978
        %v5980 = vpop.f32.mrf.mxu0
        %v5981 = vadd.f32 %v5892, %v5980
        %5982 = vmatmul.bf16.gmra.mxu0 %v4370
        %v5983 = vpop.f32.mrf.mxu0
        %v5984 = vadd.f32 %v5895, %v5983
        %v5985 = vpop.f32.mrf.mxu0
        %v5986 = vadd.f32 %v5897, %v5985
        %5987 = vmatmul.bf16.gmra.mxu0 %v4379
        %v5988 = vpop.f32.mrf.mxu0
        %v5989 = vadd.f32 %v5900, %v5988
        %v5990 = vpop.f32.mrf.mxu0
        %v5991 = vadd.f32 %v5902, %v5990
        %5992 = vmatmul.bf16.gmra.mxu0 %v4388
        %v5993 = vpop.f32.mrf.mxu0
        %v5994 = vadd.f32 %v5905, %v5993
        %v5995 = vpop.f32.mrf.mxu0
        %v5996 = vadd.f32 %v5907, %v5995
        %5997 = vmatmul.bf16.gmra.mxu0 %v4397
        %v5998 = vpop.f32.mrf.mxu0
        %v5999 = vadd.f32 %v5910, %v5998
        %v6000 = vpop.f32.mrf.mxu0
        %v6001 = vadd.f32 %v5912, %v6000
        %6002 = vmatmul.bf16.gmra.mxu0 %v4406
        %v6003 = vpop.f32.mrf.mxu0
        %v6004 = vadd.f32 %v5915, %v6003
        %v6005 = vpop.f32.mrf.mxu0
        %v6006 = vadd.f32 %v5917, %v6005
        %6007 = vmatmul.bf16.gmra.mxu0 %v4415
        %v6008 = vpop.f32.mrf.mxu0
        %v6009 = vadd.f32 %v5920, %v6008
        %v6010 = vpop.f32.mrf.mxu0
        %v6011 = vadd.f32 %v5922, %v6010
        %6012 = vmatmul.bf16.gmra.mxu0 %v4424
        %v6013 = vpop.f32.mrf.mxu0
        %v6014 = vadd.f32 %v5925, %v6013
        %v6015 = vpop.f32.mrf.mxu0
        %v6016 = vadd.f32 %v5927, %v6015
        %6017 = vmatmul.bf16.gmra.mxu0 %v4433
        %v6018 = vpop.f32.mrf.mxu0
        %v6019 = vadd.f32 %v5930, %v6018
        %v6020 = vpop.f32.mrf.mxu0
        %v6021 = vadd.f32 %v5932, %v6020
        %6022 = vmatmul.bf16.gmra.mxu0 %v4442
        %v6023 = vpop.f32.mrf.mxu0
        %v6024 = vadd.f32 %v5935, %v6023
        %v6025 = vpop.f32.mrf.mxu0
        %v6026 = vadd.f32 %v5937, %v6025
        %6027 = vmatmul.bf16.gmra.mxu0 %v4451
        %v6028 = vpop.f32.mrf.mxu0
        %v6029 = vadd.f32 %v5940, %v6028
        %v6030 = vpop.f32.mrf.mxu0
        %v6031 = vadd.f32 %v5942, %v6030
        %6032 = vmatmul.bf16.gmra.mxu0 %v4460
        %v6033 = vpop.f32.mrf.mxu0
        %v6034 = vadd.f32 %v5945, %v6033
        %v6035 = vpop.f32.mrf.mxu0
        %v6036 = vadd.f32 %v5947, %v6035
        %6037 = vdwg.mxu0
        %6038 = vmatpush.bf16.msra.mxu0 %v5180
        %6039 = vmatpush.bf16.msra.mxu0 %v5178
        %6040 = vmatpush.bf16.msra.mxu0 %v5176
        %6041 = vmatpush.bf16.msra.mxu0 %v5174
        %6042 = vmatpush.bf16.msra.mxu0 %v5172
        %6043 = vmatpush.bf16.msra.mxu0 %v5170
        %6044 = vmatpush.bf16.msra.mxu0 %v5168
        %6045 = vmatpush.bf16.msra.mxu0 %v5166
        %6046 = vmatmul.bf16.gmra.mxu0 %v4326
        %v6047 = vpop.f32.mrf.mxu0
        %v6048 = vadd.f32 %v5959, %v6047
        %v6049 = vpop.f32.mrf.mxu0
        %v6050 = vadd.f32 %v5961, %v6049
        %6051 = vmatmul.bf16.gmra.mxu0 %v4335
        %v6052 = vpop.f32.mrf.mxu0
        %v6053 = vadd.f32 %v5964, %v6052
        %v6054 = vpop.f32.mrf.mxu0
        %v6055 = vadd.f32 %v5966, %v6054
        %6056 = vmatmul.bf16.gmra.mxu0 %v4344
        %v6057 = vpop.f32.mrf.mxu0
        %v6058 = vadd.f32 %v5969, %v6057
        %v6059 = vpop.f32.mrf.mxu0
        %v6060 = vadd.f32 %v5971, %v6059
        %6061 = vmatmul.bf16.gmra.mxu0 %v4353
        %v6062 = vpop.f32.mrf.mxu0
        %v6063 = vadd.f32 %v5974, %v6062
        %v6064 = vpop.f32.mrf.mxu0
        %v6065 = vadd.f32 %v5976, %v6064
        %6066 = vmatmul.bf16.gmra.mxu0 %v4362
        %v6067 = vpop.f32.mrf.mxu0
        %v6068 = vadd.f32 %v5979, %v6067
        %v6069 = vpop.f32.mrf.mxu0
        %v6070 = vadd.f32 %v5981, %v6069
        %6071 = vmatmul.bf16.gmra.mxu0 %v4371
        %v6072 = vpop.f32.mrf.mxu0
        %v6073 = vadd.f32 %v5984, %v6072
        %v6074 = vpop.f32.mrf.mxu0
        %v6075 = vadd.f32 %v5986, %v6074
        %6076 = vmatmul.bf16.gmra.mxu0 %v4380
        %v6077 = vpop.f32.mrf.mxu0
        %v6078 = vadd.f32 %v5989, %v6077
        %v6079 = vpop.f32.mrf.mxu0
        %v6080 = vadd.f32 %v5991, %v6079
        %6081 = vmatmul.bf16.gmra.mxu0 %v4389
        %v6082 = vpop.f32.mrf.mxu0
        %v6083 = vadd.f32 %v5994, %v6082
        %v6084 = vpop.f32.mrf.mxu0
        %v6085 = vadd.f32 %v5996, %v6084
        %6086 = vmatmul.bf16.gmra.mxu0 %v4398
        %v6087 = vpop.f32.mrf.mxu0
        %v6088 = vadd.f32 %v5999, %v6087
        %v6089 = vpop.f32.mrf.mxu0
        %v6090 = vadd.f32 %v6001, %v6089
        %6091 = vmatmul.bf16.gmra.mxu0 %v4407
        %v6092 = vpop.f32.mrf.mxu0
        %v6093 = vadd.f32 %v6004, %v6092
        %v6094 = vpop.f32.mrf.mxu0
        %v6095 = vadd.f32 %v6006, %v6094
        %6096 = vmatmul.bf16.gmra.mxu0 %v4416
        %v6097 = vpop.f32.mrf.mxu0
        %v6098 = vadd.f32 %v6009, %v6097
        %v6099 = vpop.f32.mrf.mxu0
        %v6100 = vadd.f32 %v6011, %v6099
        %6101 = vmatmul.bf16.gmra.mxu0 %v4425
        %v6102 = vpop.f32.mrf.mxu0
        %v6103 = vadd.f32 %v6014, %v6102
        %v6104 = vpop.f32.mrf.mxu0
        %v6105 = vadd.f32 %v6016, %v6104
        %6106 = vmatmul.bf16.gmra.mxu0 %v4434
        %v6107 = vpop.f32.mrf.mxu0
        %v6108 = vadd.f32 %v6019, %v6107
        %v6109 = vpop.f32.mrf.mxu0
        %v6110 = vadd.f32 %v6021, %v6109
        %6111 = vmatmul.bf16.gmra.mxu0 %v4443
        %v6112 = vpop.f32.mrf.mxu0
        %v6113 = vadd.f32 %v6024, %v6112
        %v6114 = vpop.f32.mrf.mxu0
        %v6115 = vadd.f32 %v6026, %v6114
        %6116 = vmatmul.bf16.gmra.mxu0 %v4452
        %v6117 = vpop.f32.mrf.mxu0
        %v6118 = vadd.f32 %v6029, %v6117
        %v6119 = vpop.f32.mrf.mxu0
        %v6120 = vadd.f32 %v6031, %v6119
        %6121 = vmatmul.bf16.gmra.mxu0 %v4461
        %v6122 = vpop.f32.mrf.mxu0
        %v6123 = vadd.f32 %v6034, %v6122
        %v6124 = vpop.f32.mrf.mxu0
        %v6125 = vadd.f32 %v6036, %v6124
        %6126 = vdwg.mxu0
        %6127 = vmatpush.bf16.msra.mxu0 %v5053
        %6128 = vmatpush.bf16.msra.mxu0 %v5051
        %6129 = vmatpush.bf16.msra.mxu0 %v5049
        %6130 = vmatpush.bf16.msra.mxu0 %v5047
        %6131 = vmatpush.bf16.msra.mxu0 %v5045
        %6132 = vmatpush.bf16.msra.mxu0 %v5043
        %6133 = vmatpush.bf16.msra.mxu0 %v5041
        %6134 = vmatpush.bf16.msra.mxu0 %v5039
        %6135 = vmatmul.bf16.gmra.mxu0 %v4318
        %v6136 = vpop.f32.mrf.mxu0
        %v6137 = vadd.f32 0.0, %v6136
        %v6138 = vpop.f32.mrf.mxu0
        %v6139 = vadd.f32 0.0, %v6138
        %6140 = vmatmul.bf16.gmra.mxu0 %v4327
        %v6141 = vpop.f32.mrf.mxu0
        %v6142 = vadd.f32 0.0, %v6141
        %v6143 = vpop.f32.mrf.mxu0
        %v6144 = vadd.f32 0.0, %v6143
        %6145 = vmatmul.bf16.gmra.mxu0 %v4336
        %v6146 = vpop.f32.mrf.mxu0
        %v6147 = vadd.f32 0.0, %v6146
        %v6148 = vpop.f32.mrf.mxu0
        %v6149 = vadd.f32 0.0, %v6148
        %6150 = vmatmul.bf16.gmra.mxu0 %v4345
        %v6151 = vpop.f32.mrf.mxu0
        %v6152 = vadd.f32 0.0, %v6151
        %v6153 = vpop.f32.mrf.mxu0
        %v6154 = vadd.f32 0.0, %v6153
        %6155 = vmatmul.bf16.gmra.mxu0 %v4354
        %v6156 = vpop.f32.mrf.mxu0
        %v6157 = vadd.f32 0.0, %v6156
        %v6158 = vpop.f32.mrf.mxu0
        %v6159 = vadd.f32 0.0, %v6158
        %6160 = vmatmul.bf16.gmra.mxu0 %v4363
        %v6161 = vpop.f32.mrf.mxu0
        %v6162 = vadd.f32 0.0, %v6161
        %v6163 = vpop.f32.mrf.mxu0
        %v6164 = vadd.f32 0.0, %v6163
        %6165 = vmatmul.bf16.gmra.mxu0 %v4372
        %v6166 = vpop.f32.mrf.mxu0
        %v6167 = vadd.f32 0.0, %v6166
        %v6168 = vpop.f32.mrf.mxu0
        %v6169 = vadd.f32 0.0, %v6168
        %6170 = vmatmul.bf16.gmra.mxu0 %v4381
        %v6171 = vpop.f32.mrf.mxu0
        %v6172 = vadd.f32 0.0, %v6171
        %v6173 = vpop.f32.mrf.mxu0
        %v6174 = vadd.f32 0.0, %v6173
        %6175 = vmatmul.bf16.gmra.mxu0 %v4390
        %v6176 = vpop.f32.mrf.mxu0
        %v6177 = vadd.f32 0.0, %v6176
        %v6178 = vpop.f32.mrf.mxu0
        %v6179 = vadd.f32 0.0, %v6178
        %6180 = vmatmul.bf16.gmra.mxu0 %v4399
        %v6181 = vpop.f32.mrf.mxu0
        %v6182 = vadd.f32 0.0, %v6181
        %v6183 = vpop.f32.mrf.mxu0
        %v6184 = vadd.f32 0.0, %v6183
        %6185 = vmatmul.bf16.gmra.mxu0 %v4408
        %v6186 = vpop.f32.mrf.mxu0
        %v6187 = vadd.f32 0.0, %v6186
        %v6188 = vpop.f32.mrf.mxu0
        %v6189 = vadd.f32 0.0, %v6188
        %6190 = vmatmul.bf16.gmra.mxu0 %v4417
        %v6191 = vpop.f32.mrf.mxu0
        %v6192 = vadd.f32 0.0, %v6191
        %v6193 = vpop.f32.mrf.mxu0
        %v6194 = vadd.f32 0.0, %v6193
        %6195 = vmatmul.bf16.gmra.mxu0 %v4426
        %v6196 = vpop.f32.mrf.mxu0
        %v6197 = vadd.f32 0.0, %v6196
        %v6198 = vpop.f32.mrf.mxu0
        %v6199 = vadd.f32 0.0, %v6198
        %6200 = vmatmul.bf16.gmra.mxu0 %v4435
        %v6201 = vpop.f32.mrf.mxu0
        %v6202 = vadd.f32 0.0, %v6201
        %v6203 = vpop.f32.mrf.mxu0
        %v6204 = vadd.f32 0.0, %v6203
        %6205 = vmatmul.bf16.gmra.mxu0 %v4444
        %v6206 = vpop.f32.mrf.mxu0
        %v6207 = vadd.f32 0.0, %v6206
        %v6208 = vpop.f32.mrf.mxu0
        %v6209 = vadd.f32 0.0, %v6208
        %6210 = vmatmul.bf16.gmra.mxu0 %v4453
        %v6211 = vpop.f32.mrf.mxu0
        %v6212 = vadd.f32 0.0, %v6211
        %v6213 = vpop.f32.mrf.mxu0
        %v6214 = vadd.f32 0.0, %v6213
        %6215 = vdwg.mxu0
        %6216 = vmatpush.bf16.msra.mxu0 %v5069
        %6217 = vmatpush.bf16.msra.mxu0 %v5067
        %6218 = vmatpush.bf16.msra.mxu0 %v5065
        %6219 = vmatpush.bf16.msra.mxu0 %v5063
        %6220 = vmatpush.bf16.msra.mxu0 %v5061
        %6221 = vmatpush.bf16.msra.mxu0 %v5059
        %6222 = vmatpush.bf16.msra.mxu0 %v5057
        %6223 = vmatpush.bf16.msra.mxu0 %v5055
        %6224 = vmatmul.bf16.gmra.mxu0 %v4319
        %v6225 = vpop.f32.mrf.mxu0
        %v6226 = vadd.f32 %v6137, %v6225
        %v6227 = vpop.f32.mrf.mxu0
        %v6228 = vadd.f32 %v6139, %v6227
        %6229 = vmatmul.bf16.gmra.mxu0 %v4328
        %v6230 = vpop.f32.mrf.mxu0
        %v6231 = vadd.f32 %v6142, %v6230
        %v6232 = vpop.f32.mrf.mxu0
        %v6233 = vadd.f32 %v6144, %v6232
        %6234 = vmatmul.bf16.gmra.mxu0 %v4337
        %v6235 = vpop.f32.mrf.mxu0
        %v6236 = vadd.f32 %v6147, %v6235
        %v6237 = vpop.f32.mrf.mxu0
        %v6238 = vadd.f32 %v6149, %v6237
        %6239 = vmatmul.bf16.gmra.mxu0 %v4346
        %v6240 = vpop.f32.mrf.mxu0
        %v6241 = vadd.f32 %v6152, %v6240
        %v6242 = vpop.f32.mrf.mxu0
        %v6243 = vadd.f32 %v6154, %v6242
        %6244 = vmatmul.bf16.gmra.mxu0 %v4355
        %v6245 = vpop.f32.mrf.mxu0
        %v6246 = vadd.f32 %v6157, %v6245
        %v6247 = vpop.f32.mrf.mxu0
        %v6248 = vadd.f32 %v6159, %v6247
        %6249 = vmatmul.bf16.gmra.mxu0 %v4364
        %v6250 = vpop.f32.mrf.mxu0
        %v6251 = vadd.f32 %v6162, %v6250
        %v6252 = vpop.f32.mrf.mxu0
        %v6253 = vadd.f32 %v6164, %v6252
        %6254 = vmatmul.bf16.gmra.mxu0 %v4373
        %v6255 = vpop.f32.mrf.mxu0
        %v6256 = vadd.f32 %v6167, %v6255
        %v6257 = vpop.f32.mrf.mxu0
        %v6258 = vadd.f32 %v6169, %v6257
        %6259 = vmatmul.bf16.gmra.mxu0 %v4382
        %v6260 = vpop.f32.mrf.mxu0
        %v6261 = vadd.f32 %v6172, %v6260
        %v6262 = vpop.f32.mrf.mxu0
        %v6263 = vadd.f32 %v6174, %v6262
        %6264 = vmatmul.bf16.gmra.mxu0 %v4391
        %v6265 = vpop.f32.mrf.mxu0
        %v6266 = vadd.f32 %v6177, %v6265
        %v6267 = vpop.f32.mrf.mxu0
        %v6268 = vadd.f32 %v6179, %v6267
        %6269 = vmatmul.bf16.gmra.mxu0 %v4400
        %v6270 = vpop.f32.mrf.mxu0
        %v6271 = vadd.f32 %v6182, %v6270
        %v6272 = vpop.f32.mrf.mxu0
        %v6273 = vadd.f32 %v6184, %v6272
        %6274 = vmatmul.bf16.gmra.mxu0 %v4409
        %v6275 = vpop.f32.mrf.mxu0
        %v6276 = vadd.f32 %v6187, %v6275
        %v6277 = vpop.f32.mrf.mxu0
        %v6278 = vadd.f32 %v6189, %v6277
        %6279 = vmatmul.bf16.gmra.mxu0 %v4418
        %v6280 = vpop.f32.mrf.mxu0
        %v6281 = vadd.f32 %v6192, %v6280
        %v6282 = vpop.f32.mrf.mxu0
        %v6283 = vadd.f32 %v6194, %v6282
        %6284 = vmatmul.bf16.gmra.mxu0 %v4427
        %v6285 = vpop.f32.mrf.mxu0
        %v6286 = vadd.f32 %v6197, %v6285
        %v6287 = vpop.f32.mrf.mxu0
        %v6288 = vadd.f32 %v6199, %v6287
        %6289 = vmatmul.bf16.gmra.mxu0 %v4436
        %v6290 = vpop.f32.mrf.mxu0
        %v6291 = vadd.f32 %v6202, %v6290
        %v6292 = vpop.f32.mrf.mxu0
        %v6293 = vadd.f32 %v6204, %v6292
        %6294 = vmatmul.bf16.gmra.mxu0 %v4445
        %v6295 = vpop.f32.mrf.mxu0
        %v6296 = vadd.f32 %v6207, %v6295
        %v6297 = vpop.f32.mrf.mxu0
        %v6298 = vadd.f32 %v6209, %v6297
        %6299 = vmatmul.bf16.gmra.mxu0 %v4454
        %v6300 = vpop.f32.mrf.mxu0
        %v6301 = vadd.f32 %v6212, %v6300
        %v6302 = vpop.f32.mrf.mxu0
        %v6303 = vadd.f32 %v6214, %v6302
        %6304 = vdwg.mxu0
        %6305 = vmatpush.bf16.msra.mxu0 %v5085
        %6306 = vmatpush.bf16.msra.mxu0 %v5083
        %6307 = vmatpush.bf16.msra.mxu0 %v5081
        %6308 = vmatpush.bf16.msra.mxu0 %v5079
        %6309 = vmatpush.bf16.msra.mxu0 %v5077
        %6310 = vmatpush.bf16.msra.mxu0 %v5075
        %6311 = vmatpush.bf16.msra.mxu0 %v5073
        %6312 = vmatpush.bf16.msra.mxu0 %v5071
        %6313 = vmatmul.bf16.gmra.mxu0 %v4320
        %v6314 = vpop.f32.mrf.mxu0
        %v6315 = vadd.f32 %v6226, %v6314
        %v6316 = vpop.f32.mrf.mxu0
        %v6317 = vadd.f32 %v6228, %v6316
        %6318 = vmatmul.bf16.gmra.mxu0 %v4329
        %v6319 = vpop.f32.mrf.mxu0
        %v6320 = vadd.f32 %v6231, %v6319
        %v6321 = vpop.f32.mrf.mxu0
        %v6322 = vadd.f32 %v6233, %v6321
        %6323 = vmatmul.bf16.gmra.mxu0 %v4338
        %v6324 = vpop.f32.mrf.mxu0
        %v6325 = vadd.f32 %v6236, %v6324
        %v6326 = vpop.f32.mrf.mxu0
        %v6327 = vadd.f32 %v6238, %v6326
        %6328 = vmatmul.bf16.gmra.mxu0 %v4347
        %v6329 = vpop.f32.mrf.mxu0
        %v6330 = vadd.f32 %v6241, %v6329
        %v6331 = vpop.f32.mrf.mxu0
        %v6332 = vadd.f32 %v6243, %v6331
        %6333 = vmatmul.bf16.gmra.mxu0 %v4356
        %v6334 = vpop.f32.mrf.mxu0
        %v6335 = vadd.f32 %v6246, %v6334
        %v6336 = vpop.f32.mrf.mxu0
        %v6337 = vadd.f32 %v6248, %v6336
        %6338 = vmatmul.bf16.gmra.mxu0 %v4365
        %v6339 = vpop.f32.mrf.mxu0
        %v6340 = vadd.f32 %v6251, %v6339
        %v6341 = vpop.f32.mrf.mxu0
        %v6342 = vadd.f32 %v6253, %v6341
        %6343 = vmatmul.bf16.gmra.mxu0 %v4374
        %v6344 = vpop.f32.mrf.mxu0
        %v6345 = vadd.f32 %v6256, %v6344
        %v6346 = vpop.f32.mrf.mxu0
        %v6347 = vadd.f32 %v6258, %v6346
        %6348 = vmatmul.bf16.gmra.mxu0 %v4383
        %v6349 = vpop.f32.mrf.mxu0
        %v6350 = vadd.f32 %v6261, %v6349
        %v6351 = vpop.f32.mrf.mxu0
        %v6352 = vadd.f32 %v6263, %v6351
        %6353 = vmatmul.bf16.gmra.mxu0 %v4392
        %v6354 = vpop.f32.mrf.mxu0
        %v6355 = vadd.f32 %v6266, %v6354
        %v6356 = vpop.f32.mrf.mxu0
        %v6357 = vadd.f32 %v6268, %v6356
        %6358 = vmatmul.bf16.gmra.mxu0 %v4401
        %v6359 = vpop.f32.mrf.mxu0
        %v6360 = vadd.f32 %v6271, %v6359
        %v6361 = vpop.f32.mrf.mxu0
        %v6362 = vadd.f32 %v6273, %v6361
        %6363 = vmatmul.bf16.gmra.mxu0 %v4410
        %v6364 = vpop.f32.mrf.mxu0
        %v6365 = vadd.f32 %v6276, %v6364
        %v6366 = vpop.f32.mrf.mxu0
        %v6367 = vadd.f32 %v6278, %v6366
        %6368 = vmatmul.bf16.gmra.mxu0 %v4419
        %v6369 = vpop.f32.mrf.mxu0
        %v6370 = vadd.f32 %v6281, %v6369
        %v6371 = vpop.f32.mrf.mxu0
        %v6372 = vadd.f32 %v6283, %v6371
        %6373 = vmatmul.bf16.gmra.mxu0 %v4428
        %v6374 = vpop.f32.mrf.mxu0
        %v6375 = vadd.f32 %v6286, %v6374
        %v6376 = vpop.f32.mrf.mxu0
        %v6377 = vadd.f32 %v6288, %v6376
        %6378 = vmatmul.bf16.gmra.mxu0 %v4437
        %v6379 = vpop.f32.mrf.mxu0
        %v6380 = vadd.f32 %v6291, %v6379
        %v6381 = vpop.f32.mrf.mxu0
        %v6382 = vadd.f32 %v6293, %v6381
        %6383 = vmatmul.bf16.gmra.mxu0 %v4446
        %v6384 = vpop.f32.mrf.mxu0
        %v6385 = vadd.f32 %v6296, %v6384
        %v6386 = vpop.f32.mrf.mxu0
        %v6387 = vadd.f32 %v6298, %v6386
        %6388 = vmatmul.bf16.gmra.mxu0 %v4455
        %v6389 = vpop.f32.mrf.mxu0
        %v6390 = vadd.f32 %v6301, %v6389
        %v6391 = vpop.f32.mrf.mxu0
        %v6392 = vadd.f32 %v6303, %v6391
        %6393 = vdwg.mxu0
        %6394 = vmatpush.bf16.msra.mxu0 %v5101
        %6395 = vmatpush.bf16.msra.mxu0 %v5099
        %6396 = vmatpush.bf16.msra.mxu0 %v5097
        %6397 = vmatpush.bf16.msra.mxu0 %v5095
        %6398 = vmatpush.bf16.msra.mxu0 %v5093
        %6399 = vmatpush.bf16.msra.mxu0 %v5091
        %6400 = vmatpush.bf16.msra.mxu0 %v5089
        %6401 = vmatpush.bf16.msra.mxu0 %v5087
        %6402 = vmatmul.bf16.gmra.mxu0 %v4321
        %v6403 = vpop.f32.mrf.mxu0
        %v6404 = vadd.f32 %v6315, %v6403
        %v6405 = vpop.f32.mrf.mxu0
        %v6406 = vadd.f32 %v6317, %v6405
        %6407 = vmatmul.bf16.gmra.mxu0 %v4330
        %v6408 = vpop.f32.mrf.mxu0
        %v6409 = vadd.f32 %v6320, %v6408
        %v6410 = vpop.f32.mrf.mxu0
        %v6411 = vadd.f32 %v6322, %v6410
        %6412 = vmatmul.bf16.gmra.mxu0 %v4339
        %v6413 = vpop.f32.mrf.mxu0
        %v6414 = vadd.f32 %v6325, %v6413
        %v6415 = vpop.f32.mrf.mxu0
        %v6416 = vadd.f32 %v6327, %v6415
        %6417 = vmatmul.bf16.gmra.mxu0 %v4348
        %v6418 = vpop.f32.mrf.mxu0
        %v6419 = vadd.f32 %v6330, %v6418
        %v6420 = vpop.f32.mrf.mxu0
        %v6421 = vadd.f32 %v6332, %v6420
        %6422 = vmatmul.bf16.gmra.mxu0 %v4357
        %v6423 = vpop.f32.mrf.mxu0
        %v6424 = vadd.f32 %v6335, %v6423
        %v6425 = vpop.f32.mrf.mxu0
        %v6426 = vadd.f32 %v6337, %v6425
        %6427 = vmatmul.bf16.gmra.mxu0 %v4366
        %v6428 = vpop.f32.mrf.mxu0
        %v6429 = vadd.f32 %v6340, %v6428
        %v6430 = vpop.f32.mrf.mxu0
        %v6431 = vadd.f32 %v6342, %v6430
        %6432 = vmatmul.bf16.gmra.mxu0 %v4375
        %v6433 = vpop.f32.mrf.mxu0
        %v6434 = vadd.f32 %v6345, %v6433
        %v6435 = vpop.f32.mrf.mxu0
        %v6436 = vadd.f32 %v6347, %v6435
        %6437 = vmatmul.bf16.gmra.mxu0 %v4384
        %v6438 = vpop.f32.mrf.mxu0
        %v6439 = vadd.f32 %v6350, %v6438
        %v6440 = vpop.f32.mrf.mxu0
        %v6441 = vadd.f32 %v6352, %v6440
        %6442 = vmatmul.bf16.gmra.mxu0 %v4393
        %v6443 = vpop.f32.mrf.mxu0
        %v6444 = vadd.f32 %v6355, %v6443
        %v6445 = vpop.f32.mrf.mxu0
        %v6446 = vadd.f32 %v6357, %v6445
        %6447 = vmatmul.bf16.gmra.mxu0 %v4402
        %v6448 = vpop.f32.mrf.mxu0
        %v6449 = vadd.f32 %v6360, %v6448
        %v6450 = vpop.f32.mrf.mxu0
        %v6451 = vadd.f32 %v6362, %v6450
        %6452 = vmatmul.bf16.gmra.mxu0 %v4411
        %v6453 = vpop.f32.mrf.mxu0
        %v6454 = vadd.f32 %v6365, %v6453
        %v6455 = vpop.f32.mrf.mxu0
        %v6456 = vadd.f32 %v6367, %v6455
        %6457 = vmatmul.bf16.gmra.mxu0 %v4420
        %v6458 = vpop.f32.mrf.mxu0
        %v6459 = vadd.f32 %v6370, %v6458
        %v6460 = vpop.f32.mrf.mxu0
        %v6461 = vadd.f32 %v6372, %v6460
        %6462 = vmatmul.bf16.gmra.mxu0 %v4429
        %v6463 = vpop.f32.mrf.mxu0
        %v6464 = vadd.f32 %v6375, %v6463
        %v6465 = vpop.f32.mrf.mxu0
        %v6466 = vadd.f32 %v6377, %v6465
        %6467 = vmatmul.bf16.gmra.mxu0 %v4438
        %v6468 = vpop.f32.mrf.mxu0
        %v6469 = vadd.f32 %v6380, %v6468
        %v6470 = vpop.f32.mrf.mxu0
        %v6471 = vadd.f32 %v6382, %v6470
        %6472 = vmatmul.bf16.gmra.mxu0 %v4447
        %v6473 = vpop.f32.mrf.mxu0
        %v6474 = vadd.f32 %v6385, %v6473
        %v6475 = vpop.f32.mrf.mxu0
        %v6476 = vadd.f32 %v6387, %v6475
        %6477 = vmatmul.bf16.gmra.mxu0 %v4456
        %v6478 = vpop.f32.mrf.mxu0
        %v6479 = vadd.f32 %v6390, %v6478
        %v6480 = vpop.f32.mrf.mxu0
        %v6481 = vadd.f32 %v6392, %v6480
        %6482 = vdwg.mxu0
        %6483 = vmatpush.bf16.msra.mxu0 %v5117
        %6484 = vmatpush.bf16.msra.mxu0 %v5115
        %6485 = vmatpush.bf16.msra.mxu0 %v5113
        %6486 = vmatpush.bf16.msra.mxu0 %v5111
        %6487 = vmatpush.bf16.msra.mxu0 %v5109
        %6488 = vmatpush.bf16.msra.mxu0 %v5107
        %6489 = vmatpush.bf16.msra.mxu0 %v5105
        %6490 = vmatpush.bf16.msra.mxu0 %v5103
        %6491 = vmatmul.bf16.gmra.mxu0 %v4322
        %v6492 = vpop.f32.mrf.mxu0
        %v6493 = vadd.f32 %v6404, %v6492
        %v6494 = vpop.f32.mrf.mxu0
        %v6495 = vadd.f32 %v6406, %v6494
        %6496 = vmatmul.bf16.gmra.mxu0 %v4331
        %v6497 = vpop.f32.mrf.mxu0
        %v6498 = vadd.f32 %v6409, %v6497
        %v6499 = vpop.f32.mrf.mxu0
        %v6500 = vadd.f32 %v6411, %v6499
        %6501 = vmatmul.bf16.gmra.mxu0 %v4340
        %v6502 = vpop.f32.mrf.mxu0
        %v6503 = vadd.f32 %v6414, %v6502
        %v6504 = vpop.f32.mrf.mxu0
        %v6505 = vadd.f32 %v6416, %v6504
        %6506 = vmatmul.bf16.gmra.mxu0 %v4349
        %v6507 = vpop.f32.mrf.mxu0
        %v6508 = vadd.f32 %v6419, %v6507
        %v6509 = vpop.f32.mrf.mxu0
        %v6510 = vadd.f32 %v6421, %v6509
        %6511 = vmatmul.bf16.gmra.mxu0 %v4358
        %v6512 = vpop.f32.mrf.mxu0
        %v6513 = vadd.f32 %v6424, %v6512
        %v6514 = vpop.f32.mrf.mxu0
        %v6515 = vadd.f32 %v6426, %v6514
        %6516 = vmatmul.bf16.gmra.mxu0 %v4367
        %v6517 = vpop.f32.mrf.mxu0
        %v6518 = vadd.f32 %v6429, %v6517
        %v6519 = vpop.f32.mrf.mxu0
        %v6520 = vadd.f32 %v6431, %v6519
        %6521 = vmatmul.bf16.gmra.mxu0 %v4376
        %v6522 = vpop.f32.mrf.mxu0
        %v6523 = vadd.f32 %v6434, %v6522
        %v6524 = vpop.f32.mrf.mxu0
        %v6525 = vadd.f32 %v6436, %v6524
        %6526 = vmatmul.bf16.gmra.mxu0 %v4385
        %v6527 = vpop.f32.mrf.mxu0
        %v6528 = vadd.f32 %v6439, %v6527
        %v6529 = vpop.f32.mrf.mxu0
        %v6530 = vadd.f32 %v6441, %v6529
        %6531 = vmatmul.bf16.gmra.mxu0 %v4394
        %v6532 = vpop.f32.mrf.mxu0
        %v6533 = vadd.f32 %v6444, %v6532
        %v6534 = vpop.f32.mrf.mxu0
        %v6535 = vadd.f32 %v6446, %v6534
        %6536 = vmatmul.bf16.gmra.mxu0 %v4403
        %v6537 = vpop.f32.mrf.mxu0
        %v6538 = vadd.f32 %v6449, %v6537
        %v6539 = vpop.f32.mrf.mxu0
        %v6540 = vadd.f32 %v6451, %v6539
        %6541 = vmatmul.bf16.gmra.mxu0 %v4412
        %v6542 = vpop.f32.mrf.mxu0
        %v6543 = vadd.f32 %v6454, %v6542
        %v6544 = vpop.f32.mrf.mxu0
        %v6545 = vadd.f32 %v6456, %v6544
        %6546 = vmatmul.bf16.gmra.mxu0 %v4421
        %v6547 = vpop.f32.mrf.mxu0
        %v6548 = vadd.f32 %v6459, %v6547
        %v6549 = vpop.f32.mrf.mxu0
        %v6550 = vadd.f32 %v6461, %v6549
        %6551 = vmatmul.bf16.gmra.mxu0 %v4430
        %v6552 = vpop.f32.mrf.mxu0
        %v6553 = vadd.f32 %v6464, %v6552
        %v6554 = vpop.f32.mrf.mxu0
        %v6555 = vadd.f32 %v6466, %v6554
        %6556 = vmatmul.bf16.gmra.mxu0 %v4439
        %v6557 = vpop.f32.mrf.mxu0
        %v6558 = vadd.f32 %v6469, %v6557
        %v6559 = vpop.f32.mrf.mxu0
        %v6560 = vadd.f32 %v6471, %v6559
        %6561 = vmatmul.bf16.gmra.mxu0 %v4448
        %v6562 = vpop.f32.mrf.mxu0
        %v6563 = vadd.f32 %v6474, %v6562
        %v6564 = vpop.f32.mrf.mxu0
        %v6565 = vadd.f32 %v6476, %v6564
        %6566 = vmatmul.bf16.gmra.mxu0 %v4457
        %v6567 = vpop.f32.mrf.mxu0
        %v6568 = vadd.f32 %v6479, %v6567
        %v6569 = vpop.f32.mrf.mxu0
        %v6570 = vadd.f32 %v6481, %v6569
        %6571 = vdwg.mxu0
        %6572 = vmatpush.bf16.msra.mxu0 %v5133
        %6573 = vmatpush.bf16.msra.mxu0 %v5131
        %6574 = vmatpush.bf16.msra.mxu0 %v5129
        %6575 = vmatpush.bf16.msra.mxu0 %v5127
        %6576 = vmatpush.bf16.msra.mxu0 %v5125
        %6577 = vmatpush.bf16.msra.mxu0 %v5123
        %6578 = vmatpush.bf16.msra.mxu0 %v5121
        %6579 = vmatpush.bf16.msra.mxu0 %v5119
        %6580 = vmatmul.bf16.gmra.mxu0 %v4323
        %v6581 = vpop.f32.mrf.mxu0
        %v6582 = vadd.f32 %v6493, %v6581
        %v6583 = vpop.f32.mrf.mxu0
        %v6584 = vadd.f32 %v6495, %v6583
        %6585 = vmatmul.bf16.gmra.mxu0 %v4332
        %v6586 = vpop.f32.mrf.mxu0
        %v6587 = vadd.f32 %v6498, %v6586
        %v6588 = vpop.f32.mrf.mxu0
        %v6589 = vadd.f32 %v6500, %v6588
        %6590 = vmatmul.bf16.gmra.mxu0 %v4341
        %v6591 = vpop.f32.mrf.mxu0
        %v6592 = vadd.f32 %v6503, %v6591
        %v6593 = vpop.f32.mrf.mxu0
        %v6594 = vadd.f32 %v6505, %v6593
        %6595 = vmatmul.bf16.gmra.mxu0 %v4350
        %v6596 = vpop.f32.mrf.mxu0
        %v6597 = vadd.f32 %v6508, %v6596
        %v6598 = vpop.f32.mrf.mxu0
        %v6599 = vadd.f32 %v6510, %v6598
        %6600 = vmatmul.bf16.gmra.mxu0 %v4359
        %v6601 = vpop.f32.mrf.mxu0
        %v6602 = vadd.f32 %v6513, %v6601
        %v6603 = vpop.f32.mrf.mxu0
        %v6604 = vadd.f32 %v6515, %v6603
        %6605 = vmatmul.bf16.gmra.mxu0 %v4368
        %v6606 = vpop.f32.mrf.mxu0
        %v6607 = vadd.f32 %v6518, %v6606
        %v6608 = vpop.f32.mrf.mxu0
        %v6609 = vadd.f32 %v6520, %v6608
        %6610 = vmatmul.bf16.gmra.mxu0 %v4377
        %v6611 = vpop.f32.mrf.mxu0
        %v6612 = vadd.f32 %v6523, %v6611
        %v6613 = vpop.f32.mrf.mxu0
        %v6614 = vadd.f32 %v6525, %v6613
        %6615 = vmatmul.bf16.gmra.mxu0 %v4386
        %v6616 = vpop.f32.mrf.mxu0
        %v6617 = vadd.f32 %v6528, %v6616
        %v6618 = vpop.f32.mrf.mxu0
        %v6619 = vadd.f32 %v6530, %v6618
        %6620 = vmatmul.bf16.gmra.mxu0 %v4395
        %v6621 = vpop.f32.mrf.mxu0
        %v6622 = vadd.f32 %v6533, %v6621
        %v6623 = vpop.f32.mrf.mxu0
        %v6624 = vadd.f32 %v6535, %v6623
        %6625 = vmatmul.bf16.gmra.mxu0 %v4404
        %v6626 = vpop.f32.mrf.mxu0
        %v6627 = vadd.f32 %v6538, %v6626
        %v6628 = vpop.f32.mrf.mxu0
        %v6629 = vadd.f32 %v6540, %v6628
        %6630 = vmatmul.bf16.gmra.mxu0 %v4413
        %v6631 = vpop.f32.mrf.mxu0
        %v6632 = vadd.f32 %v6543, %v6631
        %v6633 = vpop.f32.mrf.mxu0
        %v6634 = vadd.f32 %v6545, %v6633
        %6635 = vmatmul.bf16.gmra.mxu0 %v4422
        %v6636 = vpop.f32.mrf.mxu0
        %v6637 = vadd.f32 %v6548, %v6636
        %v6638 = vpop.f32.mrf.mxu0
        %v6639 = vadd.f32 %v6550, %v6638
        %6640 = vmatmul.bf16.gmra.mxu0 %v4431
        %v6641 = vpop.f32.mrf.mxu0
        %v6642 = vadd.f32 %v6553, %v6641
        %v6643 = vpop.f32.mrf.mxu0
        %v6644 = vadd.f32 %v6555, %v6643
        %6645 = vmatmul.bf16.gmra.mxu0 %v4440
        %v6646 = vpop.f32.mrf.mxu0
        %v6647 = vadd.f32 %v6558, %v6646
        %v6648 = vpop.f32.mrf.mxu0
        %v6649 = vadd.f32 %v6560, %v6648
        %6650 = vmatmul.bf16.gmra.mxu0 %v4449
        %v6651 = vpop.f32.mrf.mxu0
        %v6652 = vadd.f32 %v6563, %v6651
        %v6653 = vpop.f32.mrf.mxu0
        %v6654 = vadd.f32 %v6565, %v6653
        %6655 = vmatmul.bf16.gmra.mxu0 %v4458
        %v6656 = vpop.f32.mrf.mxu0
        %v6657 = vadd.f32 %v6568, %v6656
        %v6658 = vpop.f32.mrf.mxu0
        %v6659 = vadd.f32 %v6570, %v6658
        %6660 = vdwg.mxu0
        %6661 = vmatpush.bf16.msra.mxu0 %v5149
        %6662 = vmatpush.bf16.msra.mxu0 %v5147
        %6663 = vmatpush.bf16.msra.mxu0 %v5145
        %6664 = vmatpush.bf16.msra.mxu0 %v5143
        %6665 = vmatpush.bf16.msra.mxu0 %v5141
        %6666 = vmatpush.bf16.msra.mxu0 %v5139
        %6667 = vmatpush.bf16.msra.mxu0 %v5137
        %6668 = vmatpush.bf16.msra.mxu0 %v5135
        %6669 = vmatmul.bf16.gmra.mxu0 %v4324
        %v6670 = vpop.f32.mrf.mxu0
        %v6671 = vadd.f32 %v6582, %v6670
        %v6672 = vpop.f32.mrf.mxu0
        %v6673 = vadd.f32 %v6584, %v6672
        %6674 = vmatmul.bf16.gmra.mxu0 %v4333
        %v6675 = vpop.f32.mrf.mxu0
        %v6676 = vadd.f32 %v6587, %v6675
        %v6677 = vpop.f32.mrf.mxu0
        %v6678 = vadd.f32 %v6589, %v6677
        %6679 = vmatmul.bf16.gmra.mxu0 %v4342
        %v6680 = vpop.f32.mrf.mxu0
        %v6681 = vadd.f32 %v6592, %v6680
        %v6682 = vpop.f32.mrf.mxu0
        %v6683 = vadd.f32 %v6594, %v6682
        %6684 = vmatmul.bf16.gmra.mxu0 %v4351
        %v6685 = vpop.f32.mrf.mxu0
        %v6686 = vadd.f32 %v6597, %v6685
        %v6687 = vpop.f32.mrf.mxu0
        %v6688 = vadd.f32 %v6599, %v6687
        %6689 = vmatmul.bf16.gmra.mxu0 %v4360
        %v6690 = vpop.f32.mrf.mxu0
        %v6691 = vadd.f32 %v6602, %v6690
        %v6692 = vpop.f32.mrf.mxu0
        %v6693 = vadd.f32 %v6604, %v6692
        %6694 = vmatmul.bf16.gmra.mxu0 %v4369
        %v6695 = vpop.f32.mrf.mxu0
        %v6696 = vadd.f32 %v6607, %v6695
        %v6697 = vpop.f32.mrf.mxu0
        %v6698 = vadd.f32 %v6609, %v6697
        %6699 = vmatmul.bf16.gmra.mxu0 %v4378
        %v6700 = vpop.f32.mrf.mxu0
        %v6701 = vadd.f32 %v6612, %v6700
        %v6702 = vpop.f32.mrf.mxu0
        %v6703 = vadd.f32 %v6614, %v6702
        %6704 = vmatmul.bf16.gmra.mxu0 %v4387
        %v6705 = vpop.f32.mrf.mxu0
        %v6706 = vadd.f32 %v6617, %v6705
        %v6707 = vpop.f32.mrf.mxu0
        %v6708 = vadd.f32 %v6619, %v6707
        %6709 = vmatmul.bf16.gmra.mxu0 %v4396
        %v6710 = vpop.f32.mrf.mxu0
        %v6711 = vadd.f32 %v6622, %v6710
        %v6712 = vpop.f32.mrf.mxu0
        %v6713 = vadd.f32 %v6624, %v6712
        %6714 = vmatmul.bf16.gmra.mxu0 %v4405
        %v6715 = vpop.f32.mrf.mxu0
        %v6716 = vadd.f32 %v6627, %v6715
        %v6717 = vpop.f32.mrf.mxu0
        %v6718 = vadd.f32 %v6629, %v6717
        %6719 = vmatmul.bf16.gmra.mxu0 %v4414
        %v6720 = vpop.f32.mrf.mxu0
        %v6721 = vadd.f32 %v6632, %v6720
        %v6722 = vpop.f32.mrf.mxu0
        %v6723 = vadd.f32 %v6634, %v6722
        %6724 = vmatmul.bf16.gmra.mxu0 %v4423
        %v6725 = vpop.f32.mrf.mxu0
        %v6726 = vadd.f32 %v6637, %v6725
        %v6727 = vpop.f32.mrf.mxu0
        %v6728 = vadd.f32 %v6639, %v6727
        %6729 = vmatmul.bf16.gmra.mxu0 %v4432
        %v6730 = vpop.f32.mrf.mxu0
        %v6731 = vadd.f32 %v6642, %v6730
        %v6732 = vpop.f32.mrf.mxu0
        %v6733 = vadd.f32 %v6644, %v6732
        %6734 = vmatmul.bf16.gmra.mxu0 %v4441
        %v6735 = vpop.f32.mrf.mxu0
        %v6736 = vadd.f32 %v6647, %v6735
        %v6737 = vpop.f32.mrf.mxu0
        %v6738 = vadd.f32 %v6649, %v6737
        %6739 = vmatmul.bf16.gmra.mxu0 %v4450
        %v6740 = vpop.f32.mrf.mxu0
        %v6741 = vadd.f32 %v6652, %v6740
        %v6742 = vpop.f32.mrf.mxu0
        %v6743 = vadd.f32 %v6654, %v6742
        %6744 = vmatmul.bf16.gmra.mxu0 %v4459
        %v6745 = vpop.f32.mrf.mxu0
        %v6746 = vadd.f32 %v6657, %v6745
        %v6747 = vpop.f32.mrf.mxu0
        %v6748 = vadd.f32 %v6659, %v6747
        %6749 = vdwg.mxu0
        %6750 = vmatpush.bf16.msra.mxu0 %v5165
        %6751 = vmatpush.bf16.msra.mxu0 %v5163
        %6752 = vmatpush.bf16.msra.mxu0 %v5161
        %6753 = vmatpush.bf16.msra.mxu0 %v5159
        %6754 = vmatpush.bf16.msra.mxu0 %v5157
        %6755 = vmatpush.bf16.msra.mxu0 %v5155
        %6756 = vmatpush.bf16.msra.mxu0 %v5153
        %6757 = vmatpush.bf16.msra.mxu0 %v5151
        %6758 = vmatmul.bf16.gmra.mxu0 %v4325
        %v6759 = vpop.f32.mrf.mxu0
        %v6760 = vadd.f32 %v6671, %v6759
        %v6761 = vpop.f32.mrf.mxu0
        %v6762 = vadd.f32 %v6673, %v6761
        %6763 = vmatmul.bf16.gmra.mxu0 %v4334
        %v6764 = vpop.f32.mrf.mxu0
        %v6765 = vadd.f32 %v6676, %v6764
        %v6766 = vpop.f32.mrf.mxu0
        %v6767 = vadd.f32 %v6678, %v6766
        %6768 = vmatmul.bf16.gmra.mxu0 %v4343
        %v6769 = vpop.f32.mrf.mxu0
        %v6770 = vadd.f32 %v6681, %v6769
        %v6771 = vpop.f32.mrf.mxu0
        %v6772 = vadd.f32 %v6683, %v6771
        %6773 = vmatmul.bf16.gmra.mxu0 %v4352
        %v6774 = vpop.f32.mrf.mxu0
        %v6775 = vadd.f32 %v6686, %v6774
        %v6776 = vpop.f32.mrf.mxu0
        %v6777 = vadd.f32 %v6688, %v6776
        %6778 = vmatmul.bf16.gmra.mxu0 %v4361
        %v6779 = vpop.f32.mrf.mxu0
        %v6780 = vadd.f32 %v6691, %v6779
        %v6781 = vpop.f32.mrf.mxu0
        %v6782 = vadd.f32 %v6693, %v6781
        %6783 = vmatmul.bf16.gmra.mxu0 %v4370
        %v6784 = vpop.f32.mrf.mxu0
        %v6785 = vadd.f32 %v6696, %v6784
        %v6786 = vpop.f32.mrf.mxu0
        %v6787 = vadd.f32 %v6698, %v6786
        %6788 = vmatmul.bf16.gmra.mxu0 %v4379
        %v6789 = vpop.f32.mrf.mxu0
        %v6790 = vadd.f32 %v6701, %v6789
        %v6791 = vpop.f32.mrf.mxu0
        %v6792 = vadd.f32 %v6703, %v6791
        %6793 = vmatmul.bf16.gmra.mxu0 %v4388
        %v6794 = vpop.f32.mrf.mxu0
        %v6795 = vadd.f32 %v6706, %v6794
        %v6796 = vpop.f32.mrf.mxu0
        %v6797 = vadd.f32 %v6708, %v6796
        %6798 = vmatmul.bf16.gmra.mxu0 %v4397
        %v6799 = vpop.f32.mrf.mxu0
        %v6800 = vadd.f32 %v6711, %v6799
        %v6801 = vpop.f32.mrf.mxu0
        %v6802 = vadd.f32 %v6713, %v6801
        %6803 = vmatmul.bf16.gmra.mxu0 %v4406
        %v6804 = vpop.f32.mrf.mxu0
        %v6805 = vadd.f32 %v6716, %v6804
        %v6806 = vpop.f32.mrf.mxu0
        %v6807 = vadd.f32 %v6718, %v6806
        %6808 = vmatmul.bf16.gmra.mxu0 %v4415
        %v6809 = vpop.f32.mrf.mxu0
        %v6810 = vadd.f32 %v6721, %v6809
        %v6811 = vpop.f32.mrf.mxu0
        %v6812 = vadd.f32 %v6723, %v6811
        %6813 = vmatmul.bf16.gmra.mxu0 %v4424
        %v6814 = vpop.f32.mrf.mxu0
        %v6815 = vadd.f32 %v6726, %v6814
        %v6816 = vpop.f32.mrf.mxu0
        %v6817 = vadd.f32 %v6728, %v6816
        %6818 = vmatmul.bf16.gmra.mxu0 %v4433
        %v6819 = vpop.f32.mrf.mxu0
        %v6820 = vadd.f32 %v6731, %v6819
        %v6821 = vpop.f32.mrf.mxu0
        %v6822 = vadd.f32 %v6733, %v6821
        %6823 = vmatmul.bf16.gmra.mxu0 %v4442
        %v6824 = vpop.f32.mrf.mxu0
        %v6825 = vadd.f32 %v6736, %v6824
        %v6826 = vpop.f32.mrf.mxu0
        %v6827 = vadd.f32 %v6738, %v6826
        %6828 = vmatmul.bf16.gmra.mxu0 %v4451
        %v6829 = vpop.f32.mrf.mxu0
        %v6830 = vadd.f32 %v6741, %v6829
        %v6831 = vpop.f32.mrf.mxu0
        %v6832 = vadd.f32 %v6743, %v6831
        %6833 = vmatmul.bf16.gmra.mxu0 %v4460
        %v6834 = vpop.f32.mrf.mxu0
        %v6835 = vadd.f32 %v6746, %v6834
        %v6836 = vpop.f32.mrf.mxu0
        %v6837 = vadd.f32 %v6748, %v6836
        %6838 = vdwg.mxu0
        %6839 = vmatpush.bf16.msra.mxu0 %v5181
        %6840 = vmatpush.bf16.msra.mxu0 %v5179
        %6841 = vmatpush.bf16.msra.mxu0 %v5177
        %6842 = vmatpush.bf16.msra.mxu0 %v5175
        %6843 = vmatpush.bf16.msra.mxu0 %v5173
        %6844 = vmatpush.bf16.msra.mxu0 %v5171
        %6845 = vmatpush.bf16.msra.mxu0 %v5169
        %6846 = vmatpush.bf16.msra.mxu0 %v5167
        %6847 = vmatmul.bf16.gmra.mxu0 %v4326
        %v6848 = vpop.f32.mrf.mxu0
        %v6849 = vadd.f32 %v6760, %v6848
        %v6850 = vpop.f32.mrf.mxu0
        %v6851 = vadd.f32 %v6762, %v6850
        %6852 = vmatmul.bf16.gmra.mxu0 %v4335
        %v6853 = vpop.f32.mrf.mxu0
        %v6854 = vadd.f32 %v6765, %v6853
        %v6855 = vpop.f32.mrf.mxu0
        %v6856 = vadd.f32 %v6767, %v6855
        %6857 = vmatmul.bf16.gmra.mxu0 %v4344
        %v6858 = vpop.f32.mrf.mxu0
        %v6859 = vadd.f32 %v6770, %v6858
        %v6860 = vpop.f32.mrf.mxu0
        %v6861 = vadd.f32 %v6772, %v6860
        %6862 = vmatmul.bf16.gmra.mxu0 %v4353
        %v6863 = vpop.f32.mrf.mxu0
        %v6864 = vadd.f32 %v6775, %v6863
        %v6865 = vpop.f32.mrf.mxu0
        %v6866 = vadd.f32 %v6777, %v6865
        %6867 = vmatmul.bf16.gmra.mxu0 %v4362
        %v6868 = vpop.f32.mrf.mxu0
        %v6869 = vadd.f32 %v6780, %v6868
        %v6870 = vpop.f32.mrf.mxu0
        %v6871 = vadd.f32 %v6782, %v6870
        %6872 = vmatmul.bf16.gmra.mxu0 %v4371
        %v6873 = vpop.f32.mrf.mxu0
        %v6874 = vadd.f32 %v6785, %v6873
        %v6875 = vpop.f32.mrf.mxu0
        %v6876 = vadd.f32 %v6787, %v6875
        %6877 = vmatmul.bf16.gmra.mxu0 %v4380
        %v6878 = vpop.f32.mrf.mxu0
        %v6879 = vadd.f32 %v6790, %v6878
        %v6880 = vpop.f32.mrf.mxu0
        %v6881 = vadd.f32 %v6792, %v6880
        %6882 = vmatmul.bf16.gmra.mxu0 %v4389
        %v6883 = vpop.f32.mrf.mxu0
        %v6884 = vadd.f32 %v6795, %v6883
        %v6885 = vpop.f32.mrf.mxu0
        %v6886 = vadd.f32 %v6797, %v6885
        %6887 = vmatmul.bf16.gmra.mxu0 %v4398
        %v6888 = vpop.f32.mrf.mxu0
        %v6889 = vadd.f32 %v6800, %v6888
        %v6890 = vpop.f32.mrf.mxu0
        %v6891 = vadd.f32 %v6802, %v6890
        %6892 = vmatmul.bf16.gmra.mxu0 %v4407
        %v6893 = vpop.f32.mrf.mxu0
        %v6894 = vadd.f32 %v6805, %v6893
        %v6895 = vpop.f32.mrf.mxu0
        %v6896 = vadd.f32 %v6807, %v6895
        %6897 = vmatmul.bf16.gmra.mxu0 %v4416
        %v6898 = vpop.f32.mrf.mxu0
        %v6899 = vadd.f32 %v6810, %v6898
        %v6900 = vpop.f32.mrf.mxu0
        %v6901 = vadd.f32 %v6812, %v6900
        %6902 = vmatmul.bf16.gmra.mxu0 %v4425
        %v6903 = vpop.f32.mrf.mxu0
        %v6904 = vadd.f32 %v6815, %v6903
        %v6905 = vpop.f32.mrf.mxu0
        %v6906 = vadd.f32 %v6817, %v6905
        %6907 = vmatmul.bf16.gmra.mxu0 %v4434
        %v6908 = vpop.f32.mrf.mxu0
        %v6909 = vadd.f32 %v6820, %v6908
        %v6910 = vpop.f32.mrf.mxu0
        %v6911 = vadd.f32 %v6822, %v6910
        %6912 = vmatmul.bf16.gmra.mxu0 %v4443
        %v6913 = vpop.f32.mrf.mxu0
        %v6914 = vadd.f32 %v6825, %v6913
        %v6915 = vpop.f32.mrf.mxu0
        %v6916 = vadd.f32 %v6827, %v6915
        %6917 = vmatmul.bf16.gmra.mxu0 %v4452
        %v6918 = vpop.f32.mrf.mxu0
        %v6919 = vadd.f32 %v6830, %v6918
        %v6920 = vpop.f32.mrf.mxu0
        %v6921 = vadd.f32 %v6832, %v6920
        %6922 = vmatmul.bf16.gmra.mxu0 %v4461
        %v6923 = vpop.f32.mrf.mxu0
        %v6924 = vadd.f32 %v6835, %v6923
        %v6925 = vpop.f32.mrf.mxu0
        %v6926 = vadd.f32 %v6837, %v6925
        %6927 = vdwg.mxu0
        %v6928 = vld [vmem:[%s5] sm:$0x1]
        %v6930 = vperm.slane %v6928, 0
        %v6932 = vadd.f32 %v6048, %v6930
        %v6933 = vadd.f32 %v6050, %v6930
        %v6934 = vadd.f32 %v6053, %v6930
        %v6935 = vadd.f32 %v6055, %v6930
        %v6936 = vadd.f32 %v6058, %v6930
        %v6937 = vadd.f32 %v6060, %v6930
        %v6938 = vadd.f32 %v6063, %v6930
        %v6939 = vadd.f32 %v6065, %v6930
        %v6940 = vadd.f32 %v6068, %v6930
        %v6941 = vadd.f32 %v6070, %v6930
        %v6942 = vadd.f32 %v6073, %v6930
        %v6943 = vadd.f32 %v6075, %v6930
        %v6944 = vadd.f32 %v6078, %v6930
        %v6945 = vadd.f32 %v6080, %v6930
        %v6946 = vadd.f32 %v6083, %v6930
        %v6947 = vadd.f32 %v6085, %v6930
        %v6948 = vadd.f32 %v6088, %v6930
        %v6949 = vadd.f32 %v6090, %v6930
        %v6950 = vadd.f32 %v6093, %v6930
        %v6951 = vadd.f32 %v6095, %v6930
        %v6952 = vadd.f32 %v6098, %v6930
        %v6953 = vadd.f32 %v6100, %v6930
        %v6954 = vadd.f32 %v6103, %v6930
        %v6955 = vadd.f32 %v6105, %v6930
        %v6956 = vadd.f32 %v6108, %v6930
        %v6957 = vadd.f32 %v6110, %v6930
        %v6958 = vadd.f32 %v6113, %v6930
        %v6959 = vadd.f32 %v6115, %v6930
        %v6960 = vadd.f32 %v6118, %v6930
        %v6961 = vadd.f32 %v6120, %v6930
        %v6962 = vadd.f32 %v6123, %v6930
        %v6963 = vadd.f32 %v6125, %v6930
        %v6964 = vmax.f32 %v6932, 0.0
        %v6965 = vmax.f32 %v6933, 0.0
        %v6966 = vmax.f32 %v6934, 0.0
        %v6967 = vmax.f32 %v6935, 0.0
        %v6968 = vmax.f32 %v6936, 0.0
        %v6969 = vmax.f32 %v6937, 0.0
        %v6970 = vmax.f32 %v6938, 0.0
        %v6971 = vmax.f32 %v6939, 0.0
        %v6972 = vmax.f32 %v6940, 0.0
        %v6973 = vmax.f32 %v6941, 0.0
        %v6974 = vmax.f32 %v6942, 0.0
        %v6975 = vmax.f32 %v6943, 0.0
        %v6976 = vmax.f32 %v6944, 0.0
        %v6977 = vmax.f32 %v6945, 0.0
        %v6978 = vmax.f32 %v6946, 0.0
        %v6979 = vmax.f32 %v6947, 0.0
        %v6980 = vmax.f32 %v6948, 0.0
        %v6981 = vmax.f32 %v6949, 0.0
        %v6982 = vmax.f32 %v6950, 0.0
        %v6983 = vmax.f32 %v6951, 0.0
        %v6984 = vmax.f32 %v6952, 0.0
        %v6985 = vmax.f32 %v6953, 0.0
        %v6986 = vmax.f32 %v6954, 0.0
        %v6987 = vmax.f32 %v6955, 0.0
        %v6988 = vmax.f32 %v6956, 0.0
        %v6989 = vmax.f32 %v6957, 0.0
        %v6990 = vmax.f32 %v6958, 0.0
        %v6991 = vmax.f32 %v6959, 0.0
        %v6992 = vmax.f32 %v6960, 0.0
        %v6993 = vmax.f32 %v6961, 0.0
        %v6994 = vmax.f32 %v6962, 0.0
        %v6995 = vmax.f32 %v6963, 0.0
        %6996 = vst [vmem:[#allocation3] sm:$0xf] 0
        %6997 = vst [vmem:[#allocation3 + $0x4] sm:$0xf] 0
        %6998 = vst [vmem:[#allocation3 + $0x8] sm:$0x1] 0
        %s6999 = scalar_lea.vmem [#allocation3], 204
        %7000 = vst [vmem:[%s6999] sm:$0xf] 0
        %7001 = vst [vmem:[%s6999 + $0x4] sm:$0xf] 0
        %7002 = vst [vmem:[%s6999 + $0x8] sm:$0x1] 0
        %v7003 = vld [vmem:[#allocation3] sm:$0x1]
        %v7004 = vsel %vm317, 0, %v7003
        %7005 = vst [vmem:[#allocation3] sm:$0x1] %v7004
        %v7006 = vld [vmem:[#allocation3 + $0xc] sm:$0x1]
        %v7007 = vsel %vm317, 0, %v7006
        %7008 = vst [vmem:[#allocation3 + $0xc] sm:$0x1] %v7007
        %v7009 = vld [vmem:[#allocation3 + $0x18] sm:$0x1]
        %v7010 = vsel %vm317, 0, %v7009
        %7011 = vst [vmem:[#allocation3 + $0x18] sm:$0x1] %v7010
        %v7012 = vld [vmem:[#allocation3 + $0x24] sm:$0x1]
        %v7013 = vsel %vm317, 0, %v7012
        %7014 = vst [vmem:[#allocation3 + $0x24] sm:$0x1] %v7013
        %v7015 = vld [vmem:[#allocation3 + $0x30] sm:$0x1]
        %v7016 = vsel %vm317, 0, %v7015
        %7017 = vst [vmem:[#allocation3 + $0x30] sm:$0x1] %v7016
        %v7018 = vld [vmem:[#allocation3 + $0x3c] sm:$0x1]
        %v7019 = vsel %vm317, 0, %v7018
        %7020 = vst [vmem:[#allocation3 + $0x3c] sm:$0x1] %v7019
        %v7021 = vld [vmem:[#allocation3 + $0x48] sm:$0x1]
        %v7022 = vsel %vm317, 0, %v7021
        %7023 = vst [vmem:[#allocation3 + $0x48] sm:$0x1] %v7022
        %v7024 = vld [vmem:[#allocation3 + $0x54] sm:$0x1]
        %v7025 = vsel %vm317, 0, %v7024
        %7026 = vst [vmem:[#allocation3 + $0x54] sm:$0x1] %v7025
        %v7027 = vld [vmem:[#allocation3 + $0x60] sm:$0x1]
        %v7028 = vsel %vm317, 0, %v7027
        %7029 = vst [vmem:[#allocation3 + $0x60] sm:$0x1] %v7028
        %v7030 = vld [vmem:[#allocation3 + $0x6c] sm:$0x1]
        %v7031 = vsel %vm317, 0, %v7030
        %7032 = vst [vmem:[#allocation3 + $0x6c] sm:$0x1] %v7031
        %v7033 = vld [vmem:[#allocation3 + $0x78] sm:$0x1]
        %v7034 = vsel %vm317, 0, %v7033
        %7035 = vst [vmem:[#allocation3 + $0x78] sm:$0x1] %v7034
        %v7036 = vld [vmem:[#allocation3 + $0x84] sm:$0x1]
        %v7037 = vsel %vm317, 0, %v7036
        %7038 = vst [vmem:[#allocation3 + $0x84] sm:$0x1] %v7037
        %v7039 = vld [vmem:[#allocation3 + $0x90] sm:$0x1]
        %v7040 = vsel %vm317, 0, %v7039
        %7041 = vst [vmem:[#allocation3 + $0x90] sm:$0x1] %v7040
        %v7042 = vld [vmem:[#allocation3 + $0x9c] sm:$0x1]
        %v7043 = vsel %vm317, 0, %v7042
        %7044 = vst [vmem:[#allocation3 + $0x9c] sm:$0x1] %v7043
        %v7045 = vld [vmem:[#allocation3 + $0xa8] sm:$0x1]
        %v7046 = vsel %vm317, 0, %v7045
        %7047 = vst [vmem:[#allocation3 + $0xa8] sm:$0x1] %v7046
        %v7048 = vld [vmem:[#allocation3 + $0xb4] sm:$0x1]
        %v7049 = vsel %vm317, 0, %v7048
        %7050 = vst [vmem:[#allocation3 + $0xb4] sm:$0x1] %v7049
        %v7051 = vld [vmem:[#allocation3 + $0xc0] sm:$0x1]
        %v7052 = vsel %vm317, 0, %v7051
        %7053 = vst [vmem:[#allocation3 + $0xc0] sm:$0x1] %v7052
        %v7054 = vld [vmem:[#allocation3 + $0xcc] sm:$0x1]
        %v7055 = vsel %vm317, 0, %v7054
        %7056 = vst [vmem:[#allocation3 + $0xcc] sm:$0x1] %v7055
        %v7057 = vld [vmem:[#allocation3 + $0x8] sm:$0x1]
        %v7058 = vsel %vm373, 0, %v7057
        %7059 = vst [vmem:[#allocation3 + $0x8] sm:$0x1] %v7058
        %v7060 = vld [vmem:[#allocation3 + $0x14] sm:$0x1]
        %v7061 = vsel %vm373, 0, %v7060
        %7062 = vst [vmem:[#allocation3 + $0x14] sm:$0x1] %v7061
        %v7063 = vld [vmem:[#allocation3 + $0x20] sm:$0x1]
        %v7064 = vsel %vm373, 0, %v7063
        %7065 = vst [vmem:[#allocation3 + $0x20] sm:$0x1] %v7064
        %v7066 = vld [vmem:[#allocation3 + $0x2c] sm:$0x1]
        %v7067 = vsel %vm373, 0, %v7066
        %7068 = vst [vmem:[#allocation3 + $0x2c] sm:$0x1] %v7067
        %v7069 = vld [vmem:[#allocation3 + $0x38] sm:$0x1]
        %v7070 = vsel %vm373, 0, %v7069
        %7071 = vst [vmem:[#allocation3 + $0x38] sm:$0x1] %v7070
        %v7072 = vld [vmem:[#allocation3 + $0x44] sm:$0x1]
        %v7073 = vsel %vm373, 0, %v7072
        %7074 = vst [vmem:[#allocation3 + $0x44] sm:$0x1] %v7073
        %v7075 = vld [vmem:[#allocation3 + $0x50] sm:$0x1]
        %v7076 = vsel %vm373, 0, %v7075
        %7077 = vst [vmem:[#allocation3 + $0x50] sm:$0x1] %v7076
        %v7078 = vld [vmem:[#allocation3 + $0x5c] sm:$0x1]
        %v7079 = vsel %vm373, 0, %v7078
        %7080 = vst [vmem:[#allocation3 + $0x5c] sm:$0x1] %v7079
        %v7081 = vld [vmem:[#allocation3 + $0x68] sm:$0x1]
        %v7082 = vsel %vm373, 0, %v7081
        %7083 = vst [vmem:[#allocation3 + $0x68] sm:$0x1] %v7082
        %v7084 = vld [vmem:[#allocation3 + $0x74] sm:$0x1]
        %v7085 = vsel %vm373, 0, %v7084
        %7086 = vst [vmem:[#allocation3 + $0x74] sm:$0x1] %v7085
        %v7087 = vld [vmem:[#allocation3 + $0x80] sm:$0x1]
        %v7088 = vsel %vm373, 0, %v7087
        %7089 = vst [vmem:[#allocation3 + $0x80] sm:$0x1] %v7088
        %v7090 = vld [vmem:[#allocation3 + $0x8c] sm:$0x1]
        %v7091 = vsel %vm373, 0, %v7090
        %7092 = vst [vmem:[#allocation3 + $0x8c] sm:$0x1] %v7091
        %v7093 = vld [vmem:[#allocation3 + $0x98] sm:$0x1]
        %v7094 = vsel %vm373, 0, %v7093
        %7095 = vst [vmem:[#allocation3 + $0x98] sm:$0x1] %v7094
        %v7096 = vld [vmem:[#allocation3 + $0xa4] sm:$0x1]
        %v7097 = vsel %vm373, 0, %v7096
        %7098 = vst [vmem:[#allocation3 + $0xa4] sm:$0x1] %v7097
        %v7099 = vld [vmem:[#allocation3 + $0xb0] sm:$0x1]
        %v7100 = vsel %vm373, 0, %v7099
        %7101 = vst [vmem:[#allocation3 + $0xb0] sm:$0x1] %v7100
        %v7102 = vld [vmem:[#allocation3 + $0xbc] sm:$0x1]
        %v7103 = vsel %vm373, 0, %v7102
        %7104 = vst [vmem:[#allocation3 + $0xbc] sm:$0x1] %v7103
        %v7105 = vld [vmem:[#allocation3 + $0xc8] sm:$0x1]
        %v7106 = vsel %vm373, 0, %v7105
        %7107 = vst [vmem:[#allocation3 + $0xc8] sm:$0x1] %v7106
        %v7108 = vld [vmem:[#allocation3 + $0xd4] sm:$0x1]
        %v7109 = vsel %vm373, 0, %v7108
        %7110 = vst [vmem:[#allocation3 + $0xd4] sm:$0x1] %v7109
        %v7111 = vpack.c.bf16 %v6964, %v6964
        %v7112 = vpack.c.bf16 %v6965, %v6965
        %v7113 = vpack.c.bf16 %v6966, %v6966
        %v7114 = vpack.c.bf16 %v6967, %v6967
        %v7115 = vpack.c.bf16 %v6968, %v6968
        %v7116 = vpack.c.bf16 %v6969, %v6969
        %v7117 = vpack.c.bf16 %v6970, %v6970
        %v7118 = vpack.c.bf16 %v6971, %v6971
        %v7119 = vpack.c.bf16 %v6972, %v6972
        %v7120 = vpack.c.bf16 %v6973, %v6973
        %v7121 = vpack.c.bf16 %v6974, %v6974
        %v7122 = vpack.c.bf16 %v6975, %v6975
        %v7123 = vpack.c.bf16 %v6976, %v6976
        %v7124 = vpack.c.bf16 %v6977, %v6977
        %v7125 = vpack.c.bf16 %v6978, %v6978
        %v7126 = vpack.c.bf16 %v6979, %v6979
        %v7127 = vpack.c.bf16 %v6980, %v6980
        %v7128 = vpack.c.bf16 %v6981, %v6981
        %v7129 = vpack.c.bf16 %v6982, %v6982
        %v7130 = vpack.c.bf16 %v6983, %v6983
        %v7131 = vpack.c.bf16 %v6984, %v6984
        %v7132 = vpack.c.bf16 %v6985, %v6985
        %v7133 = vpack.c.bf16 %v6986, %v6986
        %v7134 = vpack.c.bf16 %v6987, %v6987
        %v7135 = vpack.c.bf16 %v6988, %v6988
        %v7136 = vpack.c.bf16 %v6989, %v6989
        %v7137 = vpack.c.bf16 %v6990, %v6990
        %v7138 = vpack.c.bf16 %v6991, %v6991
        %v7139 = vpack.c.bf16 %v6992, %v6992
        %v7140 = vpack.c.bf16 %v6993, %v6993
        %v7141 = vpack.c.bf16 %v6994, %v6994
        %v7142 = vpack.c.bf16 %v6995, %v6995
        %v7144 = vshrl.u32 %v7111, 16
        %v7146 = vrot.slane %v7144, 7
        %v7147 = vshll.u32 %v7111, 16
        %v7149 = vor.u32 %v7146, %v7147
        %v7150 = vrot.slane %v7146, 4
        %v7152 = vshrl.u32 %v7112, 16
        %v7154 = vrot.slane %v7152, 7
        %v7155 = vshll.u32 %v7112, 16
        %v7157 = vor.u32 %v7154, %v7155
        %v7158 = vsel %vm627, %v7150, %v7157
        %v7159 = vrot.slane %v7154, 4
        %v7161 = vshrl.u32 %v7113, 16
        %v7163 = vrot.slane %v7161, 7
        %v7164 = vshll.u32 %v7113, 16
        %v7166 = vor.u32 %v7163, %v7164
        %v7167 = vrot.slane %v7163, 4
        %v7169 = vshrl.u32 %v7114, 16
        %v7171 = vrot.slane %v7169, 7
        %v7172 = vshll.u32 %v7114, 16
        %v7174 = vor.u32 %v7171, %v7172
        %v7175 = vsel %vm627, %v7167, %v7174
        %v7176 = vrot.slane %v7171, 4
        %v7178 = vshrl.u32 %v7115, 16
        %v7180 = vrot.slane %v7178, 7
        %v7181 = vshll.u32 %v7115, 16
        %v7183 = vor.u32 %v7180, %v7181
        %v7184 = vrot.slane %v7180, 4
        %v7186 = vshrl.u32 %v7116, 16
        %v7188 = vrot.slane %v7186, 7
        %v7189 = vshll.u32 %v7116, 16
        %v7191 = vor.u32 %v7188, %v7189
        %v7192 = vsel %vm627, %v7184, %v7191
        %v7193 = vrot.slane %v7188, 4
        %v7195 = vshrl.u32 %v7117, 16
        %v7197 = vrot.slane %v7195, 7
        %v7198 = vshll.u32 %v7117, 16
        %v7200 = vor.u32 %v7197, %v7198
        %v7201 = vrot.slane %v7197, 4
        %v7203 = vshrl.u32 %v7118, 16
        %v7205 = vrot.slane %v7203, 7
        %v7206 = vshll.u32 %v7118, 16
        %v7208 = vor.u32 %v7205, %v7206
        %v7209 = vsel %vm627, %v7201, %v7208
        %v7210 = vrot.slane %v7205, 4
        %v7212 = vshrl.u32 %v7119, 16
        %v7214 = vrot.slane %v7212, 7
        %v7215 = vshll.u32 %v7119, 16
        %v7217 = vor.u32 %v7214, %v7215
        %v7218 = vrot.slane %v7214, 4
        %v7220 = vshrl.u32 %v7120, 16
        %v7222 = vrot.slane %v7220, 7
        %v7223 = vshll.u32 %v7120, 16
        %v7225 = vor.u32 %v7222, %v7223
        %v7226 = vsel %vm627, %v7218, %v7225
        %v7227 = vrot.slane %v7222, 4
        %v7229 = vshrl.u32 %v7121, 16
        %v7231 = vrot.slane %v7229, 7
        %v7232 = vshll.u32 %v7121, 16
        %v7234 = vor.u32 %v7231, %v7232
        %v7235 = vrot.slane %v7231, 4
        %v7237 = vshrl.u32 %v7122, 16
        %v7239 = vrot.slane %v7237, 7
        %v7240 = vshll.u32 %v7122, 16
        %v7242 = vor.u32 %v7239, %v7240
        %v7243 = vsel %vm627, %v7235, %v7242
        %v7244 = vrot.slane %v7239, 4
        %v7246 = vshrl.u32 %v7123, 16
        %v7248 = vrot.slane %v7246, 7
        %v7249 = vshll.u32 %v7123, 16
        %v7251 = vor.u32 %v7248, %v7249
        %v7252 = vrot.slane %v7248, 4
        %v7254 = vshrl.u32 %v7124, 16
        %v7256 = vrot.slane %v7254, 7
        %v7257 = vshll.u32 %v7124, 16
        %v7259 = vor.u32 %v7256, %v7257
        %v7260 = vsel %vm627, %v7252, %v7259
        %v7261 = vrot.slane %v7256, 4
        %v7263 = vshrl.u32 %v7125, 16
        %v7265 = vrot.slane %v7263, 7
        %v7266 = vshll.u32 %v7125, 16
        %v7268 = vor.u32 %v7265, %v7266
        %v7269 = vrot.slane %v7265, 4
        %v7271 = vshrl.u32 %v7126, 16
        %v7273 = vrot.slane %v7271, 7
        %v7274 = vshll.u32 %v7126, 16
        %v7276 = vor.u32 %v7273, %v7274
        %v7277 = vsel %vm627, %v7269, %v7276
        %v7278 = vrot.slane %v7273, 4
        %v7280 = vshrl.u32 %v7127, 16
        %v7282 = vrot.slane %v7280, 7
        %v7283 = vshll.u32 %v7127, 16
        %v7285 = vor.u32 %v7282, %v7283
        %v7286 = vrot.slane %v7282, 4
        %v7288 = vshrl.u32 %v7128, 16
        %v7290 = vrot.slane %v7288, 7
        %v7291 = vshll.u32 %v7128, 16
        %v7293 = vor.u32 %v7290, %v7291
        %v7294 = vsel %vm627, %v7286, %v7293
        %v7295 = vrot.slane %v7290, 4
        %v7297 = vshrl.u32 %v7129, 16
        %v7299 = vrot.slane %v7297, 7
        %v7300 = vshll.u32 %v7129, 16
        %v7302 = vor.u32 %v7299, %v7300
        %v7303 = vrot.slane %v7299, 4
        %v7305 = vshrl.u32 %v7130, 16
        %v7307 = vrot.slane %v7305, 7
        %v7308 = vshll.u32 %v7130, 16
        %v7310 = vor.u32 %v7307, %v7308
        %v7311 = vsel %vm627, %v7303, %v7310
        %v7312 = vrot.slane %v7307, 4
        %v7314 = vshrl.u32 %v7131, 16
        %v7316 = vrot.slane %v7314, 7
        %v7317 = vshll.u32 %v7131, 16
        %v7319 = vor.u32 %v7316, %v7317
        %v7320 = vrot.slane %v7316, 4
        %v7322 = vshrl.u32 %v7132, 16
        %v7324 = vrot.slane %v7322, 7
        %v7325 = vshll.u32 %v7132, 16
        %v7327 = vor.u32 %v7324, %v7325
        %v7328 = vsel %vm627, %v7320, %v7327
        %v7329 = vrot.slane %v7324, 4
        %v7331 = vshrl.u32 %v7133, 16
        %v7333 = vrot.slane %v7331, 7
        %v7334 = vshll.u32 %v7133, 16
        %v7336 = vor.u32 %v7333, %v7334
        %v7337 = vrot.slane %v7333, 4
        %v7339 = vshrl.u32 %v7134, 16
        %v7341 = vrot.slane %v7339, 7
        %v7342 = vshll.u32 %v7134, 16
        %v7344 = vor.u32 %v7341, %v7342
        %v7345 = vsel %vm627, %v7337, %v7344
        %v7346 = vrot.slane %v7341, 4
        %v7348 = vshrl.u32 %v7135, 16
        %v7350 = vrot.slane %v7348, 7
        %v7351 = vshll.u32 %v7135, 16
        %v7353 = vor.u32 %v7350, %v7351
        %v7354 = vrot.slane %v7350, 4
        %v7356 = vshrl.u32 %v7136, 16
        %v7358 = vrot.slane %v7356, 7
        %v7359 = vshll.u32 %v7136, 16
        %v7361 = vor.u32 %v7358, %v7359
        %v7362 = vsel %vm627, %v7354, %v7361
        %v7363 = vrot.slane %v7358, 4
        %v7365 = vshrl.u32 %v7137, 16
        %v7367 = vrot.slane %v7365, 7
        %v7368 = vshll.u32 %v7137, 16
        %v7370 = vor.u32 %v7367, %v7368
        %v7371 = vrot.slane %v7367, 4
        %v7373 = vshrl.u32 %v7138, 16
        %v7375 = vrot.slane %v7373, 7
        %v7376 = vshll.u32 %v7138, 16
        %v7378 = vor.u32 %v7375, %v7376
        %v7379 = vsel %vm627, %v7371, %v7378
        %v7380 = vrot.slane %v7375, 4
        %v7382 = vshrl.u32 %v7139, 16
        %v7384 = vrot.slane %v7382, 7
        %v7385 = vshll.u32 %v7139, 16
        %v7387 = vor.u32 %v7384, %v7385
        %v7388 = vrot.slane %v7384, 4
        %v7390 = vshrl.u32 %v7140, 16
        %v7392 = vrot.slane %v7390, 7
        %v7393 = vshll.u32 %v7140, 16
        %v7395 = vor.u32 %v7392, %v7393
        %v7396 = vsel %vm627, %v7388, %v7395
        %v7397 = vrot.slane %v7392, 4
        %v7399 = vshrl.u32 %v7141, 16
        %v7401 = vrot.slane %v7399, 7
        %v7402 = vshll.u32 %v7141, 16
        %v7404 = vor.u32 %v7401, %v7402
        %v7405 = vrot.slane %v7401, 4
        %v7407 = vshrl.u32 %v7142, 16
        %v7409 = vrot.slane %v7407, 7
        %v7410 = vshll.u32 %v7142, 16
        %v7412 = vor.u32 %v7409, %v7410
        %v7413 = vsel %vm627, %v7405, %v7412
        %v7414 = vrot.slane %v7409, 4
        %s7463 = scalar_lea.vmem [#allocation3], 12
        %v7464 = vld [vmem:[%s7463] sm:$0xf]
        %v7465 = vsel %vm950, %v7149, %v7464
        %7466 = vst [vmem:[%s7463] sm:$0xf] %v7465
        %7467 = vst [vmem:[%s7463 + $0x4] sm:$0xf] %v7158
        %v7468 = vld [vmem:[%s7463 + $0x8] sm:$0x1]
        %v7469 = vsel %vm317, %v7159, %v7468
        %7470 = vst [vmem:[%s7463 + $0x8] sm:$0x1] %v7469
        %v7471 = vld [vmem:[%s7463 + $0xc] sm:$0xf]
        %v7472 = vsel %vm950, %v7166, %v7471
        %7473 = vst [vmem:[%s7463 + $0xc] sm:$0xf] %v7472
        %7474 = vst [vmem:[%s7463 + $0x10] sm:$0xf] %v7175
        %v7475 = vld [vmem:[%s7463 + $0x14] sm:$0x1]
        %v7476 = vsel %vm317, %v7176, %v7475
        %7477 = vst [vmem:[%s7463 + $0x14] sm:$0x1] %v7476
        %v7478 = vld [vmem:[%s7463 + $0x18] sm:$0xf]
        %v7479 = vsel %vm950, %v7183, %v7478
        %7480 = vst [vmem:[%s7463 + $0x18] sm:$0xf] %v7479
        %7481 = vst [vmem:[%s7463 + $0x1c] sm:$0xf] %v7192
        %v7482 = vld [vmem:[%s7463 + $0x20] sm:$0x1]
        %v7483 = vsel %vm317, %v7193, %v7482
        %7484 = vst [vmem:[%s7463 + $0x20] sm:$0x1] %v7483
        %v7485 = vld [vmem:[%s7463 + $0x24] sm:$0xf]
        %v7486 = vsel %vm950, %v7200, %v7485
        %7487 = vst [vmem:[%s7463 + $0x24] sm:$0xf] %v7486
        %7488 = vst [vmem:[%s7463 + $0x28] sm:$0xf] %v7209
        %v7489 = vld [vmem:[%s7463 + $0x2c] sm:$0x1]
        %v7490 = vsel %vm317, %v7210, %v7489
        %7491 = vst [vmem:[%s7463 + $0x2c] sm:$0x1] %v7490
        %v7492 = vld [vmem:[%s7463 + $0x30] sm:$0xf]
        %v7493 = vsel %vm950, %v7217, %v7492
        %7494 = vst [vmem:[%s7463 + $0x30] sm:$0xf] %v7493
        %7495 = vst [vmem:[%s7463 + $0x34] sm:$0xf] %v7226
        %v7496 = vld [vmem:[%s7463 + $0x38] sm:$0x1]
        %v7497 = vsel %vm317, %v7227, %v7496
        %7498 = vst [vmem:[%s7463 + $0x38] sm:$0x1] %v7497
        %v7499 = vld [vmem:[%s7463 + $0x3c] sm:$0xf]
        %v7500 = vsel %vm950, %v7234, %v7499
        %7501 = vst [vmem:[%s7463 + $0x3c] sm:$0xf] %v7500
        %7502 = vst [vmem:[%s7463 + $0x40] sm:$0xf] %v7243
        %v7503 = vld [vmem:[%s7463 + $0x44] sm:$0x1]
        %v7504 = vsel %vm317, %v7244, %v7503
        %7505 = vst [vmem:[%s7463 + $0x44] sm:$0x1] %v7504
        %v7506 = vld [vmem:[%s7463 + $0x48] sm:$0xf]
        %v7507 = vsel %vm950, %v7251, %v7506
        %7508 = vst [vmem:[%s7463 + $0x48] sm:$0xf] %v7507
        %7509 = vst [vmem:[%s7463 + $0x4c] sm:$0xf] %v7260
        %v7510 = vld [vmem:[%s7463 + $0x50] sm:$0x1]
        %v7511 = vsel %vm317, %v7261, %v7510
        %7512 = vst [vmem:[%s7463 + $0x50] sm:$0x1] %v7511
        %v7513 = vld [vmem:[%s7463 + $0x54] sm:$0xf]
        %v7514 = vsel %vm950, %v7268, %v7513
        %7515 = vst [vmem:[%s7463 + $0x54] sm:$0xf] %v7514
        %7516 = vst [vmem:[%s7463 + $0x58] sm:$0xf] %v7277
        %v7517 = vld [vmem:[%s7463 + $0x5c] sm:$0x1]
        %v7518 = vsel %vm317, %v7278, %v7517
        %7519 = vst [vmem:[%s7463 + $0x5c] sm:$0x1] %v7518
        %v7520 = vld [vmem:[%s7463 + $0x60] sm:$0xf]
        %v7521 = vsel %vm950, %v7285, %v7520
        %7522 = vst [vmem:[%s7463 + $0x60] sm:$0xf] %v7521
        %7523 = vst [vmem:[%s7463 + $0x64] sm:$0xf] %v7294
        %v7524 = vld [vmem:[%s7463 + $0x68] sm:$0x1]
        %v7525 = vsel %vm317, %v7295, %v7524
        %7526 = vst [vmem:[%s7463 + $0x68] sm:$0x1] %v7525
        %v7527 = vld [vmem:[%s7463 + $0x6c] sm:$0xf]
        %v7528 = vsel %vm950, %v7302, %v7527
        %7529 = vst [vmem:[%s7463 + $0x6c] sm:$0xf] %v7528
        %7530 = vst [vmem:[%s7463 + $0x70] sm:$0xf] %v7311
        %v7531 = vld [vmem:[%s7463 + $0x74] sm:$0x1]
        %v7532 = vsel %vm317, %v7312, %v7531
        %7533 = vst [vmem:[%s7463 + $0x74] sm:$0x1] %v7532
        %v7534 = vld [vmem:[%s7463 + $0x78] sm:$0xf]
        %v7535 = vsel %vm950, %v7319, %v7534
        %7536 = vst [vmem:[%s7463 + $0x78] sm:$0xf] %v7535
        %7537 = vst [vmem:[%s7463 + $0x7c] sm:$0xf] %v7328
        %v7538 = vld [vmem:[%s7463 + $0x80] sm:$0x1]
        %v7539 = vsel %vm317, %v7329, %v7538
        %7540 = vst [vmem:[%s7463 + $0x80] sm:$0x1] %v7539
        %v7541 = vld [vmem:[%s7463 + $0x84] sm:$0xf]
        %v7542 = vsel %vm950, %v7336, %v7541
        %7543 = vst [vmem:[%s7463 + $0x84] sm:$0xf] %v7542
        %7544 = vst [vmem:[%s7463 + $0x88] sm:$0xf] %v7345
        %v7545 = vld [vmem:[%s7463 + $0x8c] sm:$0x1]
        %v7546 = vsel %vm317, %v7346, %v7545
        %7547 = vst [vmem:[%s7463 + $0x8c] sm:$0x1] %v7546
        %v7548 = vld [vmem:[%s7463 + $0x90] sm:$0xf]
        %v7549 = vsel %vm950, %v7353, %v7548
        %7550 = vst [vmem:[%s7463 + $0x90] sm:$0xf] %v7549
        %7551 = vst [vmem:[%s7463 + $0x94] sm:$0xf] %v7362
        %v7552 = vld [vmem:[%s7463 + $0x98] sm:$0x1]
        %v7553 = vsel %vm317, %v7363, %v7552
        %7554 = vst [vmem:[%s7463 + $0x98] sm:$0x1] %v7553
        %v7555 = vld [vmem:[%s7463 + $0x9c] sm:$0xf]
        %v7556 = vsel %vm950, %v7370, %v7555
        %7557 = vst [vmem:[%s7463 + $0x9c] sm:$0xf] %v7556
        %7558 = vst [vmem:[%s7463 + $0xa0] sm:$0xf] %v7379
        %v7559 = vld [vmem:[%s7463 + $0xa4] sm:$0x1]
        %v7560 = vsel %vm317, %v7380, %v7559
        %7561 = vst [vmem:[%s7463 + $0xa4] sm:$0x1] %v7560
        %v7562 = vld [vmem:[%s7463 + $0xa8] sm:$0xf]
        %v7563 = vsel %vm950, %v7387, %v7562
        %7564 = vst [vmem:[%s7463 + $0xa8] sm:$0xf] %v7563
        %7565 = vst [vmem:[%s7463 + $0xac] sm:$0xf] %v7396
        %v7566 = vld [vmem:[%s7463 + $0xb0] sm:$0x1]
        %v7567 = vsel %vm317, %v7397, %v7566
        %7568 = vst [vmem:[%s7463 + $0xb0] sm:$0x1] %v7567
        %v7569 = vld [vmem:[%s7463 + $0xb4] sm:$0xf]
        %v7570 = vsel %vm950, %v7404, %v7569
        %7571 = vst [vmem:[%s7463 + $0xb4] sm:$0xf] %v7570
        %7572 = vst [vmem:[%s7463 + $0xb8] sm:$0xf] %v7413
        %v7573 = vld [vmem:[%s7463 + $0xbc] sm:$0x1]
        %v7574 = vsel %vm317, %v7414, %v7573
        %7575 = vst [vmem:[%s7463 + $0xbc] sm:$0x1] %v7574
        %v7576 = vld [vmem:[#allocation3] sm:$0xf]
        %v7577 = vld [vmem:[#allocation3 + $0x4] sm:$0xf]
        %v7578 = vld [vmem:[#allocation3 + $0xc] sm:$0xf]
        %v7579 = vld [vmem:[#allocation3 + $0x10] sm:$0xf]
        %v7580 = vld [vmem:[#allocation3 + $0x18] sm:$0xf]
        %v7581 = vld [vmem:[#allocation3 + $0x1c] sm:$0xf]
        %v7582 = vld [vmem:[#allocation3 + $0x24] sm:$0xf]
        %v7583 = vld [vmem:[#allocation3 + $0x28] sm:$0xf]
        %v7584 = vld [vmem:[#allocation3 + $0x30] sm:$0xf]
        %v7585 = vld [vmem:[#allocation3 + $0x34] sm:$0xf]
        %v7586 = vld [vmem:[#allocation3 + $0x3c] sm:$0xf]
        %v7587 = vld [vmem:[#allocation3 + $0x40] sm:$0xf]
        %v7588 = vld [vmem:[#allocation3 + $0x48] sm:$0xf]
        %v7589 = vld [vmem:[#allocation3 + $0x4c] sm:$0xf]
        %v7590 = vld [vmem:[#allocation3 + $0x54] sm:$0xf]
        %v7591 = vld [vmem:[#allocation3 + $0x58] sm:$0xf]
        %v7592 = vld [vmem:[#allocation3 + $0x60] sm:$0xf]
        %v7593 = vld [vmem:[#allocation3 + $0x64] sm:$0xf]
        %v7594 = vld [vmem:[#allocation3 + $0x6c] sm:$0xf]
        %v7595 = vld [vmem:[#allocation3 + $0x70] sm:$0xf]
        %v7596 = vld [vmem:[#allocation3 + $0x78] sm:$0xf]
        %v7597 = vld [vmem:[#allocation3 + $0x7c] sm:$0xf]
        %v7598 = vld [vmem:[#allocation3 + $0x84] sm:$0xf]
        %v7599 = vld [vmem:[#allocation3 + $0x88] sm:$0xf]
        %v7600 = vld [vmem:[#allocation3 + $0x90] sm:$0xf]
        %v7601 = vld [vmem:[#allocation3 + $0x94] sm:$0xf]
        %v7602 = vld [vmem:[#allocation3 + $0x9c] sm:$0xf]
        %v7603 = vld [vmem:[#allocation3 + $0xa0] sm:$0xf]
        %v7604 = vld [vmem:[#allocation3 + $0xa8] sm:$0xf]
        %v7605 = vld [vmem:[#allocation3 + $0xac] sm:$0xf]
        %v7606 = vld [vmem:[#allocation3 + $0xb4] sm:$0xf]
        %v7607 = vld [vmem:[#allocation3 + $0xb8] sm:$0xf]
        %v7608 = vld [vmem:[#allocation10] sm:$0xf]
        %v7609 = vld [vmem:[#allocation10 + $0x4] sm:$0xf]
        %v7610 = vld [vmem:[#allocation10 + $0x8] sm:$0xf]
        %v7611 = vld [vmem:[#allocation10 + $0xc] sm:$0xf]
        %v7612 = vld [vmem:[#allocation10 + $0x10] sm:$0xf]
        %v7613 = vld [vmem:[#allocation10 + $0x14] sm:$0xf]
        %v7614 = vld [vmem:[#allocation10 + $0x18] sm:$0xf]
        %v7615 = vld [vmem:[#allocation10 + $0x1c] sm:$0xf]
        %v7616 = vld [vmem:[#allocation10 + $0x20] sm:$0xf]
        %v7617 = vld [vmem:[#allocation10 + $0x24] sm:$0xf]
        %v7618 = vld [vmem:[#allocation10 + $0x28] sm:$0xf]
        %v7619 = vld [vmem:[#allocation10 + $0x2c] sm:$0xf]
        %v7620 = vld [vmem:[#allocation10 + $0x30] sm:$0xf]
        %v7621 = vld [vmem:[#allocation10 + $0x34] sm:$0xf]
        %v7622 = vld [vmem:[#allocation10 + $0x38] sm:$0xf]
        %v7623 = vld [vmem:[#allocation10 + $0x3c] sm:$0xf]
        %v7656 = vunpack.c.l.b16 %v7576
        %v7657 = vunpack.c.l.b16 %v7577
        %v7658 = vunpack.c.l.b16 %v7578
        %v7659 = vunpack.c.l.b16 %v7579
        %v7660 = vunpack.c.l.b16 %v7580
        %v7661 = vunpack.c.l.b16 %v7581
        %v7662 = vunpack.c.l.b16 %v7582
        %v7663 = vunpack.c.l.b16 %v7583
        %v7664 = vunpack.c.l.b16 %v7584
        %v7665 = vunpack.c.l.b16 %v7585
        %v7666 = vunpack.c.l.b16 %v7586
        %v7667 = vunpack.c.l.b16 %v7587
        %v7668 = vunpack.c.l.b16 %v7588
        %v7669 = vunpack.c.l.b16 %v7589
        %v7670 = vunpack.c.l.b16 %v7590
        %v7671 = vunpack.c.l.b16 %v7591
        %v7672 = vunpack.c.l.b16 %v7592
        %v7673 = vunpack.c.l.b16 %v7593
        %v7674 = vunpack.c.l.b16 %v7594
        %v7675 = vunpack.c.l.b16 %v7595
        %v7676 = vunpack.c.l.b16 %v7596
        %v7677 = vunpack.c.l.b16 %v7597
        %v7678 = vunpack.c.l.b16 %v7598
        %v7679 = vunpack.c.l.b16 %v7599
        %v7680 = vunpack.c.l.b16 %v7600
        %v7681 = vunpack.c.l.b16 %v7601
        %v7682 = vunpack.c.l.b16 %v7602
        %v7683 = vunpack.c.l.b16 %v7603
        %v7684 = vunpack.c.l.b16 %v7604
        %v7685 = vunpack.c.l.b16 %v7605
        %v7686 = vunpack.c.l.b16 %v7606
        %v7687 = vunpack.c.l.b16 %v7607
        %v7688 = vpack.c.b16 %v7657, %v7656
        %v7689 = vpack.c.b16 %v7659, %v7658
        %v7690 = vpack.c.b16 %v7661, %v7660
        %v7691 = vpack.c.b16 %v7663, %v7662
        %v7692 = vpack.c.b16 %v7665, %v7664
        %v7693 = vpack.c.b16 %v7667, %v7666
        %v7694 = vpack.c.b16 %v7669, %v7668
        %v7695 = vpack.c.b16 %v7671, %v7670
        %v7696 = vpack.c.b16 %v7673, %v7672
        %v7697 = vpack.c.b16 %v7675, %v7674
        %v7698 = vpack.c.b16 %v7677, %v7676
        %v7699 = vpack.c.b16 %v7679, %v7678
        %v7700 = vpack.c.b16 %v7681, %v7680
        %v7701 = vpack.c.b16 %v7683, %v7682
        %v7702 = vpack.c.b16 %v7685, %v7684
        %v7703 = vpack.c.b16 %v7687, %v7686
        %v7736 = vunpack.c.l.b16 %v7608
        %v7737 = vunpack.c.l.b16 %v7609
        %v7738 = vunpack.c.l.b16 %v7610
        %v7739 = vunpack.c.l.b16 %v7611
        %v7740 = vunpack.c.l.b16 %v7612
        %v7741 = vunpack.c.l.b16 %v7613
        %v7742 = vunpack.c.l.b16 %v7614
        %v7743 = vunpack.c.l.b16 %v7615
        %v7744 = vunpack.c.l.b16 %v7616
        %v7745 = vunpack.c.l.b16 %v7617
        %v7746 = vunpack.c.l.b16 %v7618
        %v7747 = vunpack.c.l.b16 %v7619
        %v7748 = vunpack.c.l.b16 %v7620
        %v7749 = vunpack.c.l.b16 %v7621
        %v7750 = vunpack.c.l.b16 %v7622
        %v7751 = vunpack.c.l.b16 %v7623
        %v7752 = vpack.c.b16 %v7737, %v7736
        %v7753 = vpack.c.b16 %v7739, %v7738
        %v7754 = vpack.c.b16 %v7741, %v7740
        %v7755 = vpack.c.b16 %v7743, %v7742
        %v7756 = vpack.c.b16 %v7745, %v7744
        %v7757 = vpack.c.b16 %v7747, %v7746
        %v7758 = vpack.c.b16 %v7749, %v7748
        %v7759 = vpack.c.b16 %v7751, %v7750
        %7768 = vmatpush.bf16.msra.mxu0 %v7759
        %7769 = vmatpush.bf16.msra.mxu0 %v7758
        %7770 = vmatpush.bf16.msra.mxu0 %v7757
        %7771 = vmatpush.bf16.msra.mxu0 %v7756
        %7772 = vmatpush.bf16.msra.mxu0 %v7755
        %7773 = vmatpush.bf16.msra.mxu0 %v7754
        %7774 = vmatpush.bf16.msra.mxu0 %v7753
        %7775 = vmatpush.bf16.msra.mxu0 %v7752
        %7776 = vmatmul.bf16.gmra.mxu0 %v7688
        %v7777 = vpop.f32.mrf.mxu0
        %v7778 = vadd.f32 0.0, %v7777
        %v7779 = vpop.f32.mrf.mxu0
        %v7780 = vadd.f32 0.0, %v7779
        %7781 = vmatmul.bf16.gmra.mxu0 %v7689
        %v7782 = vpop.f32.mrf.mxu0
        %v7783 = vadd.f32 0.0, %v7782
        %v7784 = vpop.f32.mrf.mxu0
        %v7785 = vadd.f32 0.0, %v7784
        %7786 = vmatmul.bf16.gmra.mxu0 %v7690
        %v7787 = vpop.f32.mrf.mxu0
        %v7788 = vadd.f32 0.0, %v7787
        %v7789 = vpop.f32.mrf.mxu0
        %v7790 = vadd.f32 0.0, %v7789
        %7791 = vmatmul.bf16.gmra.mxu0 %v7691
        %v7792 = vpop.f32.mrf.mxu0
        %v7793 = vadd.f32 0.0, %v7792
        %v7794 = vpop.f32.mrf.mxu0
        %v7795 = vadd.f32 0.0, %v7794
        %7796 = vmatmul.bf16.gmra.mxu0 %v7692
        %v7797 = vpop.f32.mrf.mxu0
        %v7798 = vadd.f32 0.0, %v7797
        %v7799 = vpop.f32.mrf.mxu0
        %v7800 = vadd.f32 0.0, %v7799
        %7801 = vmatmul.bf16.gmra.mxu0 %v7693
        %v7802 = vpop.f32.mrf.mxu0
        %v7803 = vadd.f32 0.0, %v7802
        %v7804 = vpop.f32.mrf.mxu0
        %v7805 = vadd.f32 0.0, %v7804
        %7806 = vmatmul.bf16.gmra.mxu0 %v7694
        %v7807 = vpop.f32.mrf.mxu0
        %v7808 = vadd.f32 0.0, %v7807
        %v7809 = vpop.f32.mrf.mxu0
        %v7810 = vadd.f32 0.0, %v7809
        %7811 = vmatmul.bf16.gmra.mxu0 %v7695
        %v7812 = vpop.f32.mrf.mxu0
        %v7813 = vadd.f32 0.0, %v7812
        %v7814 = vpop.f32.mrf.mxu0
        %v7815 = vadd.f32 0.0, %v7814
        %7816 = vmatmul.bf16.gmra.mxu0 %v7696
        %v7817 = vpop.f32.mrf.mxu0
        %v7818 = vadd.f32 0.0, %v7817
        %v7819 = vpop.f32.mrf.mxu0
        %v7820 = vadd.f32 0.0, %v7819
        %7821 = vmatmul.bf16.gmra.mxu0 %v7697
        %v7822 = vpop.f32.mrf.mxu0
        %v7823 = vadd.f32 0.0, %v7822
        %v7824 = vpop.f32.mrf.mxu0
        %v7825 = vadd.f32 0.0, %v7824
        %7826 = vmatmul.bf16.gmra.mxu0 %v7698
        %v7827 = vpop.f32.mrf.mxu0
        %v7828 = vadd.f32 0.0, %v7827
        %v7829 = vpop.f32.mrf.mxu0
        %v7830 = vadd.f32 0.0, %v7829
        %7831 = vmatmul.bf16.gmra.mxu0 %v7699
        %v7832 = vpop.f32.mrf.mxu0
        %v7833 = vadd.f32 0.0, %v7832
        %v7834 = vpop.f32.mrf.mxu0
        %v7835 = vadd.f32 0.0, %v7834
        %7836 = vmatmul.bf16.gmra.mxu0 %v7700
        %v7837 = vpop.f32.mrf.mxu0
        %v7838 = vadd.f32 0.0, %v7837
        %v7839 = vpop.f32.mrf.mxu0
        %v7840 = vadd.f32 0.0, %v7839
        %7841 = vmatmul.bf16.gmra.mxu0 %v7701
        %v7842 = vpop.f32.mrf.mxu0
        %v7843 = vadd.f32 0.0, %v7842
        %v7844 = vpop.f32.mrf.mxu0
        %v7845 = vadd.f32 0.0, %v7844
        %7846 = vmatmul.bf16.gmra.mxu0 %v7702
        %v7847 = vpop.f32.mrf.mxu0
        %v7848 = vadd.f32 0.0, %v7847
        %v7849 = vpop.f32.mrf.mxu0
        %v7850 = vadd.f32 0.0, %v7849
        %7851 = vmatmul.bf16.gmra.mxu0 %v7703
        %v7852 = vpop.f32.mrf.mxu0
        %v7853 = vadd.f32 0.0, %v7852
        %v7854 = vpop.f32.mrf.mxu0
        %v7855 = vadd.f32 0.0, %v7854
        %7856 = vdwg.mxu0
        %v7857 = vadd.f32 %v6849, %v7778
        %v7858 = vadd.f32 %v6851, %v7780
        %v7859 = vadd.f32 %v6854, %v7783
        %v7860 = vadd.f32 %v6856, %v7785
        %v7861 = vadd.f32 %v6859, %v7788
        %v7862 = vadd.f32 %v6861, %v7790
        %v7863 = vadd.f32 %v6864, %v7793
        %v7864 = vadd.f32 %v6866, %v7795
        %v7865 = vadd.f32 %v6869, %v7798
        %v7866 = vadd.f32 %v6871, %v7800
        %v7867 = vadd.f32 %v6874, %v7803
        %v7868 = vadd.f32 %v6876, %v7805
        %v7869 = vadd.f32 %v6879, %v7808
        %v7870 = vadd.f32 %v6881, %v7810
        %v7871 = vadd.f32 %v6884, %v7813
        %v7872 = vadd.f32 %v6886, %v7815
        %v7873 = vadd.f32 %v6889, %v7818
        %v7874 = vadd.f32 %v6891, %v7820
        %v7875 = vadd.f32 %v6894, %v7823
        %v7876 = vadd.f32 %v6896, %v7825
        %v7877 = vadd.f32 %v6899, %v7828
        %v7878 = vadd.f32 %v6901, %v7830
        %v7879 = vadd.f32 %v6904, %v7833
        %v7880 = vadd.f32 %v6906, %v7835
        %v7881 = vadd.f32 %v6909, %v7838
        %v7882 = vadd.f32 %v6911, %v7840
        %v7883 = vadd.f32 %v6914, %v7843
        %v7884 = vadd.f32 %v6916, %v7845
        %v7885 = vadd.f32 %v6919, %v7848
        %v7886 = vadd.f32 %v6921, %v7850
        %v7887 = vadd.f32 %v6924, %v7853
        %v7888 = vadd.f32 %v6926, %v7855
        %v7889 = vld [vmem:[#allocation3] sm:$0xf]
        %v7890 = vld [vmem:[#allocation3 + $0x4] sm:$0xf]
        %v7891 = vld [vmem:[#allocation3 + $0x8] sm:$0x1]
        %v7892 = vld [vmem:[#allocation3 + $0xc] sm:$0xf]
        %v7893 = vld [vmem:[#allocation3 + $0x10] sm:$0xf]
        %v7894 = vld [vmem:[#allocation3 + $0x14] sm:$0x1]
        %v7895 = vld [vmem:[#allocation3 + $0x18] sm:$0xf]
        %v7896 = vld [vmem:[#allocation3 + $0x1c] sm:$0xf]
        %v7897 = vld [vmem:[#allocation3 + $0x20] sm:$0x1]
        %v7898 = vld [vmem:[#allocation3 + $0x24] sm:$0xf]
        %v7899 = vld [vmem:[#allocation3 + $0x28] sm:$0xf]
        %v7900 = vld [vmem:[#allocation3 + $0x2c] sm:$0x1]
        %v7901 = vld [vmem:[#allocation3 + $0x30] sm:$0xf]
        %v7902 = vld [vmem:[#allocation3 + $0x34] sm:$0xf]
        %v7903 = vld [vmem:[#allocation3 + $0x38] sm:$0x1]
        %v7904 = vld [vmem:[#allocation3 + $0x3c] sm:$0xf]
        %v7905 = vld [vmem:[#allocation3 + $0x40] sm:$0xf]
        %v7906 = vld [vmem:[#allocation3 + $0x44] sm:$0x1]
        %v7907 = vld [vmem:[#allocation3 + $0x48] sm:$0xf]
        %v7908 = vld [vmem:[#allocation3 + $0x4c] sm:$0xf]
        %v7909 = vld [vmem:[#allocation3 + $0x50] sm:$0x1]
        %v7910 = vld [vmem:[#allocation3 + $0x54] sm:$0xf]
        %v7911 = vld [vmem:[#allocation3 + $0x58] sm:$0xf]
        %v7912 = vld [vmem:[#allocation3 + $0x5c] sm:$0x1]
        %v7913 = vld [vmem:[#allocation3 + $0x60] sm:$0xf]
        %v7914 = vld [vmem:[#allocation3 + $0x64] sm:$0xf]
        %v7915 = vld [vmem:[#allocation3 + $0x68] sm:$0x1]
        %v7916 = vld [vmem:[#allocation3 + $0x6c] sm:$0xf]
        %v7917 = vld [vmem:[#allocation3 + $0x70] sm:$0xf]
        %v7918 = vld [vmem:[#allocation3 + $0x74] sm:$0x1]
        %v7919 = vld [vmem:[#allocation3 + $0x78] sm:$0xf]
        %v7920 = vld [vmem:[#allocation3 + $0x7c] sm:$0xf]
        %v7921 = vld [vmem:[#allocation3 + $0x80] sm:$0x1]
        %v7922 = vld [vmem:[#allocation3 + $0x84] sm:$0xf]
        %v7923 = vld [vmem:[#allocation3 + $0x88] sm:$0xf]
        %v7924 = vld [vmem:[#allocation3 + $0x8c] sm:$0x1]
        %v7925 = vld [vmem:[#allocation3 + $0x90] sm:$0xf]
        %v7926 = vld [vmem:[#allocation3 + $0x94] sm:$0xf]
        %v7927 = vld [vmem:[#allocation3 + $0x98] sm:$0x1]
        %v7928 = vld [vmem:[#allocation3 + $0x9c] sm:$0xf]
        %v7929 = vld [vmem:[#allocation3 + $0xa0] sm:$0xf]
        %v7930 = vld [vmem:[#allocation3 + $0xa4] sm:$0x1]
        %v7931 = vld [vmem:[#allocation3 + $0xa8] sm:$0xf]
        %v7932 = vld [vmem:[#allocation3 + $0xac] sm:$0xf]
        %v7933 = vld [vmem:[#allocation3 + $0xb0] sm:$0x1]
        %v7934 = vld [vmem:[#allocation3 + $0xb4] sm:$0xf]
        %v7935 = vld [vmem:[#allocation3 + $0xb8] sm:$0xf]
        %v7936 = vld [vmem:[#allocation3 + $0xbc] sm:$0x1]
        %v7938 = vshrl.u32 %v7889, 16
        %v7940 = vrot.slane %v7938, 4
        %v7941 = vshll.u32 %v7889, 16
        %v7943 = vrot.slane %v7941, 5
        %v7944 = vor.u32 %v7940, %v7943
        %v7945 = vrot.slane %v7944, 4
        %v7947 = vshll.u32 %v7890, 16
        %v7949 = vrot.slane %v7947, 5
        %v7950 = vsel %vm1177, %v7945, %v7949
        %v7951 = vshrl.u32 %v7890, 16
        %v7953 = vrot.slane %v7951, 4
        %v7954 = vor.u32 %v7953, %v7949
        %v7955 = vrot.slane %v7954, 4
        %v7957 = vshll.u32 %v7891, 16
        %v7959 = vrot.slane %v7957, 5
        %v7960 = vsel %vm1177, %v7955, %v7959
        %v7962 = vshrl.u32 %v7892, 16
        %v7964 = vrot.slane %v7962, 4
        %v7965 = vshll.u32 %v7892, 16
        %v7967 = vrot.slane %v7965, 5
        %v7968 = vor.u32 %v7964, %v7967
        %v7969 = vrot.slane %v7968, 4
        %v7971 = vshll.u32 %v7893, 16
        %v7973 = vrot.slane %v7971, 5
        %v7974 = vsel %vm1177, %v7969, %v7973
        %v7975 = vshrl.u32 %v7893, 16
        %v7977 = vrot.slane %v7975, 4
        %v7978 = vor.u32 %v7977, %v7973
        %v7979 = vrot.slane %v7978, 4
        %v7981 = vshll.u32 %v7894, 16
        %v7983 = vrot.slane %v7981, 5
        %v7984 = vsel %vm1177, %v7979, %v7983
        %v7986 = vshrl.u32 %v7895, 16
        %v7988 = vrot.slane %v7986, 4
        %v7989 = vshll.u32 %v7895, 16
        %v7991 = vrot.slane %v7989, 5
        %v7992 = vor.u32 %v7988, %v7991
        %v7993 = vrot.slane %v7992, 4
        %v7995 = vshll.u32 %v7896, 16
        %v7997 = vrot.slane %v7995, 5
        %v7998 = vsel %vm1177, %v7993, %v7997
        %v7999 = vshrl.u32 %v7896, 16
        %v8001 = vrot.slane %v7999, 4
        %v8002 = vor.u32 %v8001, %v7997
        %v8003 = vrot.slane %v8002, 4
        %v8005 = vshll.u32 %v7897, 16
        %v8007 = vrot.slane %v8005, 5
        %v8008 = vsel %vm1177, %v8003, %v8007
        %v8010 = vshrl.u32 %v7898, 16
        %v8012 = vrot.slane %v8010, 4
        %v8013 = vshll.u32 %v7898, 16
        %v8015 = vrot.slane %v8013, 5
        %v8016 = vor.u32 %v8012, %v8015
        %v8017 = vrot.slane %v8016, 4
        %v8019 = vshll.u32 %v7899, 16
        %v8021 = vrot.slane %v8019, 5
        %v8022 = vsel %vm1177, %v8017, %v8021
        %v8023 = vshrl.u32 %v7899, 16
        %v8025 = vrot.slane %v8023, 4
        %v8026 = vor.u32 %v8025, %v8021
        %v8027 = vrot.slane %v8026, 4
        %v8029 = vshll.u32 %v7900, 16
        %v8031 = vrot.slane %v8029, 5
        %v8032 = vsel %vm1177, %v8027, %v8031
        %v8034 = vshrl.u32 %v7901, 16
        %v8036 = vrot.slane %v8034, 4
        %v8037 = vshll.u32 %v7901, 16
        %v8039 = vrot.slane %v8037, 5
        %v8040 = vor.u32 %v8036, %v8039
        %v8041 = vrot.slane %v8040, 4
        %v8043 = vshll.u32 %v7902, 16
        %v8045 = vrot.slane %v8043, 5
        %v8046 = vsel %vm1177, %v8041, %v8045
        %v8047 = vshrl.u32 %v7902, 16
        %v8049 = vrot.slane %v8047, 4
        %v8050 = vor.u32 %v8049, %v8045
        %v8051 = vrot.slane %v8050, 4
        %v8053 = vshll.u32 %v7903, 16
        %v8055 = vrot.slane %v8053, 5
        %v8056 = vsel %vm1177, %v8051, %v8055
        %v8058 = vshrl.u32 %v7904, 16
        %v8060 = vrot.slane %v8058, 4
        %v8061 = vshll.u32 %v7904, 16
        %v8063 = vrot.slane %v8061, 5
        %v8064 = vor.u32 %v8060, %v8063
        %v8065 = vrot.slane %v8064, 4
        %v8067 = vshll.u32 %v7905, 16
        %v8069 = vrot.slane %v8067, 5
        %v8070 = vsel %vm1177, %v8065, %v8069
        %v8071 = vshrl.u32 %v7905, 16
        %v8073 = vrot.slane %v8071, 4
        %v8074 = vor.u32 %v8073, %v8069
        %v8075 = vrot.slane %v8074, 4
        %v8077 = vshll.u32 %v7906, 16
        %v8079 = vrot.slane %v8077, 5
        %v8080 = vsel %vm1177, %v8075, %v8079
        %v8082 = vshrl.u32 %v7907, 16
        %v8084 = vrot.slane %v8082, 4
        %v8085 = vshll.u32 %v7907, 16
        %v8087 = vrot.slane %v8085, 5
        %v8088 = vor.u32 %v8084, %v8087
        %v8089 = vrot.slane %v8088, 4
        %v8091 = vshll.u32 %v7908, 16
        %v8093 = vrot.slane %v8091, 5
        %v8094 = vsel %vm1177, %v8089, %v8093
        %v8095 = vshrl.u32 %v7908, 16
        %v8097 = vrot.slane %v8095, 4
        %v8098 = vor.u32 %v8097, %v8093
        %v8099 = vrot.slane %v8098, 4
        %v8101 = vshll.u32 %v7909, 16
        %v8103 = vrot.slane %v8101, 5
        %v8104 = vsel %vm1177, %v8099, %v8103
        %v8106 = vshrl.u32 %v7910, 16
        %v8108 = vrot.slane %v8106, 4
        %v8109 = vshll.u32 %v7910, 16
        %v8111 = vrot.slane %v8109, 5
        %v8112 = vor.u32 %v8108, %v8111
        %v8113 = vrot.slane %v8112, 4
        %v8115 = vshll.u32 %v7911, 16
        %v8117 = vrot.slane %v8115, 5
        %v8118 = vsel %vm1177, %v8113, %v8117
        %v8119 = vshrl.u32 %v7911, 16
        %v8121 = vrot.slane %v8119, 4
        %v8122 = vor.u32 %v8121, %v8117
        %v8123 = vrot.slane %v8122, 4
        %v8125 = vshll.u32 %v7912, 16
        %v8127 = vrot.slane %v8125, 5
        %v8128 = vsel %vm1177, %v8123, %v8127
        %v8130 = vshrl.u32 %v7913, 16
        %v8132 = vrot.slane %v8130, 4
        %v8133 = vshll.u32 %v7913, 16
        %v8135 = vrot.slane %v8133, 5
        %v8136 = vor.u32 %v8132, %v8135
        %v8137 = vrot.slane %v8136, 4
        %v8139 = vshll.u32 %v7914, 16
        %v8141 = vrot.slane %v8139, 5
        %v8142 = vsel %vm1177, %v8137, %v8141
        %v8143 = vshrl.u32 %v7914, 16
        %v8145 = vrot.slane %v8143, 4
        %v8146 = vor.u32 %v8145, %v8141
        %v8147 = vrot.slane %v8146, 4
        %v8149 = vshll.u32 %v7915, 16
        %v8151 = vrot.slane %v8149, 5
        %v8152 = vsel %vm1177, %v8147, %v8151
        %v8154 = vshrl.u32 %v7916, 16
        %v8156 = vrot.slane %v8154, 4
        %v8157 = vshll.u32 %v7916, 16
        %v8159 = vrot.slane %v8157, 5
        %v8160 = vor.u32 %v8156, %v8159
        %v8161 = vrot.slane %v8160, 4
        %v8163 = vshll.u32 %v7917, 16
        %v8165 = vrot.slane %v8163, 5
        %v8166 = vsel %vm1177, %v8161, %v8165
        %v8167 = vshrl.u32 %v7917, 16
        %v8169 = vrot.slane %v8167, 4
        %v8170 = vor.u32 %v8169, %v8165
        %v8171 = vrot.slane %v8170, 4
        %v8173 = vshll.u32 %v7918, 16
        %v8175 = vrot.slane %v8173, 5
        %v8176 = vsel %vm1177, %v8171, %v8175
        %v8178 = vshrl.u32 %v7919, 16
        %v8180 = vrot.slane %v8178, 4
        %v8181 = vshll.u32 %v7919, 16
        %v8183 = vrot.slane %v8181, 5
        %v8184 = vor.u32 %v8180, %v8183
        %v8185 = vrot.slane %v8184, 4
        %v8187 = vshll.u32 %v7920, 16
        %v8189 = vrot.slane %v8187, 5
        %v8190 = vsel %vm1177, %v8185, %v8189
        %v8191 = vshrl.u32 %v7920, 16
        %v8193 = vrot.slane %v8191, 4
        %v8194 = vor.u32 %v8193, %v8189
        %v8195 = vrot.slane %v8194, 4
        %v8197 = vshll.u32 %v7921, 16
        %v8199 = vrot.slane %v8197, 5
        %v8200 = vsel %vm1177, %v8195, %v8199
        %v8202 = vshrl.u32 %v7922, 16
        %v8204 = vrot.slane %v8202, 4
        %v8205 = vshll.u32 %v7922, 16
        %v8207 = vrot.slane %v8205, 5
        %v8208 = vor.u32 %v8204, %v8207
        %v8209 = vrot.slane %v8208, 4
        %v8211 = vshll.u32 %v7923, 16
        %v8213 = vrot.slane %v8211, 5
        %v8214 = vsel %vm1177, %v8209, %v8213
        %v8215 = vshrl.u32 %v7923, 16
        %v8217 = vrot.slane %v8215, 4
        %v8218 = vor.u32 %v8217, %v8213
        %v8219 = vrot.slane %v8218, 4
        %v8221 = vshll.u32 %v7924, 16
        %v8223 = vrot.slane %v8221, 5
        %v8224 = vsel %vm1177, %v8219, %v8223
        %v8226 = vshrl.u32 %v7925, 16
        %v8228 = vrot.slane %v8226, 4
        %v8229 = vshll.u32 %v7925, 16
        %v8231 = vrot.slane %v8229, 5
        %v8232 = vor.u32 %v8228, %v8231
        %v8233 = vrot.slane %v8232, 4
        %v8235 = vshll.u32 %v7926, 16
        %v8237 = vrot.slane %v8235, 5
        %v8238 = vsel %vm1177, %v8233, %v8237
        %v8239 = vshrl.u32 %v7926, 16
        %v8241 = vrot.slane %v8239, 4
        %v8242 = vor.u32 %v8241, %v8237
        %v8243 = vrot.slane %v8242, 4
        %v8245 = vshll.u32 %v7927, 16
        %v8247 = vrot.slane %v8245, 5
        %v8248 = vsel %vm1177, %v8243, %v8247
        %v8250 = vshrl.u32 %v7928, 16
        %v8252 = vrot.slane %v8250, 4
        %v8253 = vshll.u32 %v7928, 16
        %v8255 = vrot.slane %v8253, 5
        %v8256 = vor.u32 %v8252, %v8255
        %v8257 = vrot.slane %v8256, 4
        %v8259 = vshll.u32 %v7929, 16
        %v8261 = vrot.slane %v8259, 5
        %v8262 = vsel %vm1177, %v8257, %v8261
        %v8263 = vshrl.u32 %v7929, 16
        %v8265 = vrot.slane %v8263, 4
        %v8266 = vor.u32 %v8265, %v8261
        %v8267 = vrot.slane %v8266, 4
        %v8269 = vshll.u32 %v7930, 16
        %v8271 = vrot.slane %v8269, 5
        %v8272 = vsel %vm1177, %v8267, %v8271
        %v8274 = vshrl.u32 %v7931, 16
        %v8276 = vrot.slane %v8274, 4
        %v8277 = vshll.u32 %v7931, 16
        %v8279 = vrot.slane %v8277, 5
        %v8280 = vor.u32 %v8276, %v8279
        %v8281 = vrot.slane %v8280, 4
        %v8283 = vshll.u32 %v7932, 16
        %v8285 = vrot.slane %v8283, 5
        %v8286 = vsel %vm1177, %v8281, %v8285
        %v8287 = vshrl.u32 %v7932, 16
        %v8289 = vrot.slane %v8287, 4
        %v8290 = vor.u32 %v8289, %v8285
        %v8291 = vrot.slane %v8290, 4
        %v8293 = vshll.u32 %v7933, 16
        %v8295 = vrot.slane %v8293, 5
        %v8296 = vsel %vm1177, %v8291, %v8295
        %v8298 = vshrl.u32 %v7934, 16
        %v8300 = vrot.slane %v8298, 4
        %v8301 = vshll.u32 %v7934, 16
        %v8303 = vrot.slane %v8301, 5
        %v8304 = vor.u32 %v8300, %v8303
        %v8305 = vrot.slane %v8304, 4
        %v8307 = vshll.u32 %v7935, 16
        %v8309 = vrot.slane %v8307, 5
        %v8310 = vsel %vm1177, %v8305, %v8309
        %v8311 = vshrl.u32 %v7935, 16
        %v8313 = vrot.slane %v8311, 4
        %v8314 = vor.u32 %v8313, %v8309
        %v8315 = vrot.slane %v8314, 4
        %v8317 = vshll.u32 %v7936, 16
        %v8319 = vrot.slane %v8317, 5
        %v8320 = vsel %vm1177, %v8315, %v8319
        %v8321 = vld [vmem:[#allocation10 + $0x40] sm:$0xf]
        %v8322 = vld [vmem:[#allocation10 + $0x44] sm:$0xf]
        %v8323 = vld [vmem:[#allocation10 + $0x48] sm:$0xf]
        %v8324 = vld [vmem:[#allocation10 + $0x4c] sm:$0xf]
        %v8325 = vld [vmem:[#allocation10 + $0x50] sm:$0xf]
        %v8326 = vld [vmem:[#allocation10 + $0x54] sm:$0xf]
        %v8327 = vld [vmem:[#allocation10 + $0x58] sm:$0xf]
        %v8328 = vld [vmem:[#allocation10 + $0x5c] sm:$0xf]
        %v8329 = vld [vmem:[#allocation10 + $0x60] sm:$0xf]
        %v8330 = vld [vmem:[#allocation10 + $0x64] sm:$0xf]
        %v8331 = vld [vmem:[#allocation10 + $0x68] sm:$0xf]
        %v8332 = vld [vmem:[#allocation10 + $0x6c] sm:$0xf]
        %v8333 = vld [vmem:[#allocation10 + $0x70] sm:$0xf]
        %v8334 = vld [vmem:[#allocation10 + $0x74] sm:$0xf]
        %v8335 = vld [vmem:[#allocation10 + $0x78] sm:$0xf]
        %v8336 = vld [vmem:[#allocation10 + $0x7c] sm:$0xf]
        %v8337 = vunpack.c.l.b16 %v7950
        %v8338 = vunpack.c.l.b16 %v7960
        %v8339 = vunpack.c.l.b16 %v7974
        %v8340 = vunpack.c.l.b16 %v7984
        %v8341 = vunpack.c.l.b16 %v7998
        %v8342 = vunpack.c.l.b16 %v8008
        %v8343 = vunpack.c.l.b16 %v8022
        %v8344 = vunpack.c.l.b16 %v8032
        %v8345 = vunpack.c.l.b16 %v8046
        %v8346 = vunpack.c.l.b16 %v8056
        %v8347 = vunpack.c.l.b16 %v8070
        %v8348 = vunpack.c.l.b16 %v8080
        %v8349 = vunpack.c.l.b16 %v8094
        %v8350 = vunpack.c.l.b16 %v8104
        %v8351 = vunpack.c.l.b16 %v8118
        %v8352 = vunpack.c.l.b16 %v8128
        %v8353 = vunpack.c.l.b16 %v8142
        %v8354 = vunpack.c.l.b16 %v8152
        %v8355 = vunpack.c.l.b16 %v8166
        %v8356 = vunpack.c.l.b16 %v8176
        %v8357 = vunpack.c.l.b16 %v8190
        %v8358 = vunpack.c.l.b16 %v8200
        %v8359 = vunpack.c.l.b16 %v8214
        %v8360 = vunpack.c.l.b16 %v8224
        %v8361 = vunpack.c.l.b16 %v8238
        %v8362 = vunpack.c.l.b16 %v8248
        %v8363 = vunpack.c.l.b16 %v8262
        %v8364 = vunpack.c.l.b16 %v8272
        %v8365 = vunpack.c.l.b16 %v8286
        %v8366 = vunpack.c.l.b16 %v8296
        %v8367 = vunpack.c.l.b16 %v8310
        %v8368 = vunpack.c.l.b16 %v8320
        %v8369 = vpack.c.b16 %v8338, %v8337
        %v8370 = vpack.c.b16 %v8340, %v8339
        %v8371 = vpack.c.b16 %v8342, %v8341
        %v8372 = vpack.c.b16 %v8344, %v8343
        %v8373 = vpack.c.b16 %v8346, %v8345
        %v8374 = vpack.c.b16 %v8348, %v8347
        %v8375 = vpack.c.b16 %v8350, %v8349
        %v8376 = vpack.c.b16 %v8352, %v8351
        %v8377 = vpack.c.b16 %v8354, %v8353
        %v8378 = vpack.c.b16 %v8356, %v8355
        %v8379 = vpack.c.b16 %v8358, %v8357
        %v8380 = vpack.c.b16 %v8360, %v8359
        %v8381 = vpack.c.b16 %v8362, %v8361
        %v8382 = vpack.c.b16 %v8364, %v8363
        %v8383 = vpack.c.b16 %v8366, %v8365
        %v8384 = vpack.c.b16 %v8368, %v8367
        %v8417 = vunpack.c.l.b16 %v8321
        %v8418 = vunpack.c.l.b16 %v8322
        %v8419 = vunpack.c.l.b16 %v8323
        %v8420 = vunpack.c.l.b16 %v8324
        %v8421 = vunpack.c.l.b16 %v8325
        %v8422 = vunpack.c.l.b16 %v8326
        %v8423 = vunpack.c.l.b16 %v8327
        %v8424 = vunpack.c.l.b16 %v8328
        %v8425 = vunpack.c.l.b16 %v8329
        %v8426 = vunpack.c.l.b16 %v8330
        %v8427 = vunpack.c.l.b16 %v8331
        %v8428 = vunpack.c.l.b16 %v8332
        %v8429 = vunpack.c.l.b16 %v8333
        %v8430 = vunpack.c.l.b16 %v8334
        %v8431 = vunpack.c.l.b16 %v8335
        %v8432 = vunpack.c.l.b16 %v8336
        %v8433 = vpack.c.b16 %v8418, %v8417
        %v8434 = vpack.c.b16 %v8420, %v8419
        %v8435 = vpack.c.b16 %v8422, %v8421
        %v8436 = vpack.c.b16 %v8424, %v8423
        %v8437 = vpack.c.b16 %v8426, %v8425
        %v8438 = vpack.c.b16 %v8428, %v8427
        %v8439 = vpack.c.b16 %v8430, %v8429
        %v8440 = vpack.c.b16 %v8432, %v8431
        %8449 = vmatpush.bf16.msra.mxu0 %v8440
        %8450 = vmatpush.bf16.msra.mxu0 %v8439
        %8451 = vmatpush.bf16.msra.mxu0 %v8438
        %8452 = vmatpush.bf16.msra.mxu0 %v8437
        %8453 = vmatpush.bf16.msra.mxu0 %v8436
        %8454 = vmatpush.bf16.msra.mxu0 %v8435
        %8455 = vmatpush.bf16.msra.mxu0 %v8434
        %8456 = vmatpush.bf16.msra.mxu0 %v8433
        %8457 = vmatmul.bf16.gmra.mxu0 %v8369
        %v8458 = vpop.f32.mrf.mxu0
        %v8459 = vadd.f32 0.0, %v8458
        %v8460 = vpop.f32.mrf.mxu0
        %v8461 = vadd.f32 0.0, %v8460
        %8462 = vmatmul.bf16.gmra.mxu0 %v8370
        %v8463 = vpop.f32.mrf.mxu0
        %v8464 = vadd.f32 0.0, %v8463
        %v8465 = vpop.f32.mrf.mxu0
        %v8466 = vadd.f32 0.0, %v8465
        %8467 = vmatmul.bf16.gmra.mxu0 %v8371
        %v8468 = vpop.f32.mrf.mxu0
        %v8469 = vadd.f32 0.0, %v8468
        %v8470 = vpop.f32.mrf.mxu0
        %v8471 = vadd.f32 0.0, %v8470
        %8472 = vmatmul.bf16.gmra.mxu0 %v8372
        %v8473 = vpop.f32.mrf.mxu0
        %v8474 = vadd.f32 0.0, %v8473
        %v8475 = vpop.f32.mrf.mxu0
        %v8476 = vadd.f32 0.0, %v8475
        %8477 = vmatmul.bf16.gmra.mxu0 %v8373
        %v8478 = vpop.f32.mrf.mxu0
        %v8479 = vadd.f32 0.0, %v8478
        %v8480 = vpop.f32.mrf.mxu0
        %v8481 = vadd.f32 0.0, %v8480
        %8482 = vmatmul.bf16.gmra.mxu0 %v8374
        %v8483 = vpop.f32.mrf.mxu0
        %v8484 = vadd.f32 0.0, %v8483
        %v8485 = vpop.f32.mrf.mxu0
        %v8486 = vadd.f32 0.0, %v8485
        %8487 = vmatmul.bf16.gmra.mxu0 %v8375
        %v8488 = vpop.f32.mrf.mxu0
        %v8489 = vadd.f32 0.0, %v8488
        %v8490 = vpop.f32.mrf.mxu0
        %v8491 = vadd.f32 0.0, %v8490
        %8492 = vmatmul.bf16.gmra.mxu0 %v8376
        %v8493 = vpop.f32.mrf.mxu0
        %v8494 = vadd.f32 0.0, %v8493
        %v8495 = vpop.f32.mrf.mxu0
        %v8496 = vadd.f32 0.0, %v8495
        %8497 = vmatmul.bf16.gmra.mxu0 %v8377
        %v8498 = vpop.f32.mrf.mxu0
        %v8499 = vadd.f32 0.0, %v8498
        %v8500 = vpop.f32.mrf.mxu0
        %v8501 = vadd.f32 0.0, %v8500
        %8502 = vmatmul.bf16.gmra.mxu0 %v8378
        %v8503 = vpop.f32.mrf.mxu0
        %v8504 = vadd.f32 0.0, %v8503
        %v8505 = vpop.f32.mrf.mxu0
        %v8506 = vadd.f32 0.0, %v8505
        %8507 = vmatmul.bf16.gmra.mxu0 %v8379
        %v8508 = vpop.f32.mrf.mxu0
        %v8509 = vadd.f32 0.0, %v8508
        %v8510 = vpop.f32.mrf.mxu0
        %v8511 = vadd.f32 0.0, %v8510
        %8512 = vmatmul.bf16.gmra.mxu0 %v8380
        %v8513 = vpop.f32.mrf.mxu0
        %v8514 = vadd.f32 0.0, %v8513
        %v8515 = vpop.f32.mrf.mxu0
        %v8516 = vadd.f32 0.0, %v8515
        %8517 = vmatmul.bf16.gmra.mxu0 %v8381
        %v8518 = vpop.f32.mrf.mxu0
        %v8519 = vadd.f32 0.0, %v8518
        %v8520 = vpop.f32.mrf.mxu0
        %v8521 = vadd.f32 0.0, %v8520
        %8522 = vmatmul.bf16.gmra.mxu0 %v8382
        %v8523 = vpop.f32.mrf.mxu0
        %v8524 = vadd.f32 0.0, %v8523
        %v8525 = vpop.f32.mrf.mxu0
        %v8526 = vadd.f32 0.0, %v8525
        %8527 = vmatmul.bf16.gmra.mxu0 %v8383
        %v8528 = vpop.f32.mrf.mxu0
        %v8529 = vadd.f32 0.0, %v8528
        %v8530 = vpop.f32.mrf.mxu0
        %v8531 = vadd.f32 0.0, %v8530
        %8532 = vmatmul.bf16.gmra.mxu0 %v8384
        %v8533 = vpop.f32.mrf.mxu0
        %v8534 = vadd.f32 0.0, %v8533
        %v8535 = vpop.f32.mrf.mxu0
        %v8536 = vadd.f32 0.0, %v8535
        %8537 = vdwg.mxu0
        %v8538 = vadd.f32 %v7857, %v8459
        %v8539 = vadd.f32 %v7858, %v8461
        %v8540 = vadd.f32 %v7859, %v8464
        %v8541 = vadd.f32 %v7860, %v8466
        %v8542 = vadd.f32 %v7861, %v8469
        %v8543 = vadd.f32 %v7862, %v8471
        %v8544 = vadd.f32 %v7863, %v8474
        %v8545 = vadd.f32 %v7864, %v8476
        %v8546 = vadd.f32 %v7865, %v8479
        %v8547 = vadd.f32 %v7866, %v8481
        %v8548 = vadd.f32 %v7867, %v8484
        %v8549 = vadd.f32 %v7868, %v8486
        %v8550 = vadd.f32 %v7869, %v8489
        %v8551 = vadd.f32 %v7870, %v8491
        %v8552 = vadd.f32 %v7871, %v8494
        %v8553 = vadd.f32 %v7872, %v8496
        %v8554 = vadd.f32 %v7873, %v8499
        %v8555 = vadd.f32 %v7874, %v8501
        %v8556 = vadd.f32 %v7875, %v8504
        %v8557 = vadd.f32 %v7876, %v8506
        %v8558 = vadd.f32 %v7877, %v8509
        %v8559 = vadd.f32 %v7878, %v8511
        %v8560 = vadd.f32 %v7879, %v8514
        %v8561 = vadd.f32 %v7880, %v8516
        %v8562 = vadd.f32 %v7881, %v8519
        %v8563 = vadd.f32 %v7882, %v8521
        %v8564 = vadd.f32 %v7883, %v8524
        %v8565 = vadd.f32 %v7884, %v8526
        %v8566 = vadd.f32 %v7885, %v8529
        %v8567 = vadd.f32 %v7886, %v8531
        %v8568 = vadd.f32 %v7887, %v8534
        %v8569 = vadd.f32 %v7888, %v8536
        %v8570 = vld [vmem:[#allocation3] sm:$0xe]
        %v8571 = vld [vmem:[#allocation3 + $0xc] sm:$0xe]
        %v8572 = vld [vmem:[#allocation3 + $0x18] sm:$0xe]
        %v8573 = vld [vmem:[#allocation3 + $0x24] sm:$0xe]
        %v8574 = vld [vmem:[#allocation3 + $0x30] sm:$0xe]
        %v8575 = vld [vmem:[#allocation3 + $0x3c] sm:$0xe]
        %v8576 = vld [vmem:[#allocation3 + $0x48] sm:$0xe]
        %v8577 = vld [vmem:[#allocation3 + $0x54] sm:$0xe]
        %v8578 = vld [vmem:[#allocation3 + $0x60] sm:$0xe]
        %v8579 = vld [vmem:[#allocation3 + $0x6c] sm:$0xe]
        %v8580 = vld [vmem:[#allocation3 + $0x78] sm:$0xe]
        %v8581 = vld [vmem:[#allocation3 + $0x84] sm:$0xe]
        %v8582 = vld [vmem:[#allocation3 + $0x90] sm:$0xe]
        %v8583 = vld [vmem:[#allocation3 + $0x9c] sm:$0xe]
        %v8584 = vld [vmem:[#allocation3 + $0xa8] sm:$0xe]
        %v8585 = vld [vmem:[#allocation3 + $0xb4] sm:$0xe]
        %v8634 = vrot.slane %v8570, 5
        %v8635 = vrot.slane %v8634, 4
        %v8636 = vrot.slane %v7890, 5
        %v8637 = vsel %vm1724, %v8635, %v8636
        %v8638 = vrot.slane %v8636, 4
        %v8639 = vrot.slane %v7891, 5
        %v8640 = vsel %vm1724, %v8638, %v8639
        %v8641 = vrot.slane %v8571, 5
        %v8642 = vrot.slane %v8641, 4
        %v8643 = vrot.slane %v7893, 5
        %v8644 = vsel %vm1724, %v8642, %v8643
        %v8645 = vrot.slane %v8643, 4
        %v8646 = vrot.slane %v7894, 5
        %v8647 = vsel %vm1724, %v8645, %v8646
        %v8648 = vrot.slane %v8572, 5
        %v8649 = vrot.slane %v8648, 4
        %v8650 = vrot.slane %v7896, 5
        %v8651 = vsel %vm1724, %v8649, %v8650
        %v8652 = vrot.slane %v8650, 4
        %v8653 = vrot.slane %v7897, 5
        %v8654 = vsel %vm1724, %v8652, %v8653
        %v8655 = vrot.slane %v8573, 5
        %v8656 = vrot.slane %v8655, 4
        %v8657 = vrot.slane %v7899, 5
        %v8658 = vsel %vm1724, %v8656, %v8657
        %v8659 = vrot.slane %v8657, 4
        %v8660 = vrot.slane %v7900, 5
        %v8661 = vsel %vm1724, %v8659, %v8660
        %v8662 = vrot.slane %v8574, 5
        %v8663 = vrot.slane %v8662, 4
        %v8664 = vrot.slane %v7902, 5
        %v8665 = vsel %vm1724, %v8663, %v8664
        %v8666 = vrot.slane %v8664, 4
        %v8667 = vrot.slane %v7903, 5
        %v8668 = vsel %vm1724, %v8666, %v8667
        %v8669 = vrot.slane %v8575, 5
        %v8670 = vrot.slane %v8669, 4
        %v8671 = vrot.slane %v7905, 5
        %v8672 = vsel %vm1724, %v8670, %v8671
        %v8673 = vrot.slane %v8671, 4
        %v8674 = vrot.slane %v7906, 5
        %v8675 = vsel %vm1724, %v8673, %v8674
        %v8676 = vrot.slane %v8576, 5
        %v8677 = vrot.slane %v8676, 4
        %v8678 = vrot.slane %v7908, 5
        %v8679 = vsel %vm1724, %v8677, %v8678
        %v8680 = vrot.slane %v8678, 4
        %v8681 = vrot.slane %v7909, 5
        %v8682 = vsel %vm1724, %v8680, %v8681
        %v8683 = vrot.slane %v8577, 5
        %v8684 = vrot.slane %v8683, 4
        %v8685 = vrot.slane %v7911, 5
        %v8686 = vsel %vm1724, %v8684, %v8685
        %v8687 = vrot.slane %v8685, 4
        %v8688 = vrot.slane %v7912, 5
        %v8689 = vsel %vm1724, %v8687, %v8688
        %v8690 = vrot.slane %v8578, 5
        %v8691 = vrot.slane %v8690, 4
        %v8692 = vrot.slane %v7914, 5
        %v8693 = vsel %vm1724, %v8691, %v8692
        %v8694 = vrot.slane %v8692, 4
        %v8695 = vrot.slane %v7915, 5
        %v8696 = vsel %vm1724, %v8694, %v8695
        %v8697 = vrot.slane %v8579, 5
        %v8698 = vrot.slane %v8697, 4
        %v8699 = vrot.slane %v7917, 5
        %v8700 = vsel %vm1724, %v8698, %v8699
        %v8701 = vrot.slane %v8699, 4
        %v8702 = vrot.slane %v7918, 5
        %v8703 = vsel %vm1724, %v8701, %v8702
        %v8704 = vrot.slane %v8580, 5
        %v8705 = vrot.slane %v8704, 4
        %v8706 = vrot.slane %v7920, 5
        %v8707 = vsel %vm1724, %v8705, %v8706
        %v8708 = vrot.slane %v8706, 4
        %v8709 = vrot.slane %v7921, 5
        %v8710 = vsel %vm1724, %v8708, %v8709
        %v8711 = vrot.slane %v8581, 5
        %v8712 = vrot.slane %v8711, 4
        %v8713 = vrot.slane %v7923, 5
        %v8714 = vsel %vm1724, %v8712, %v8713
        %v8715 = vrot.slane %v8713, 4
        %v8716 = vrot.slane %v7924, 5
        %v8717 = vsel %vm1724, %v8715, %v8716
        %v8718 = vrot.slane %v8582, 5
        %v8719 = vrot.slane %v8718, 4
        %v8720 = vrot.slane %v7926, 5
        %v8721 = vsel %vm1724, %v8719, %v8720
        %v8722 = vrot.slane %v8720, 4
        %v8723 = vrot.slane %v7927, 5
        %v8724 = vsel %vm1724, %v8722, %v8723
        %v8725 = vrot.slane %v8583, 5
        %v8726 = vrot.slane %v8725, 4
        %v8727 = vrot.slane %v7929, 5
        %v8728 = vsel %vm1724, %v8726, %v8727
        %v8729 = vrot.slane %v8727, 4
        %v8730 = vrot.slane %v7930, 5
        %v8731 = vsel %vm1724, %v8729, %v8730
        %v8732 = vrot.slane %v8584, 5
        %v8733 = vrot.slane %v8732, 4
        %v8734 = vrot.slane %v7932, 5
        %v8735 = vsel %vm1724, %v8733, %v8734
        %v8736 = vrot.slane %v8734, 4
        %v8737 = vrot.slane %v7933, 5
        %v8738 = vsel %vm1724, %v8736, %v8737
        %v8739 = vrot.slane %v8585, 5
        %v8740 = vrot.slane %v8739, 4
        %v8741 = vrot.slane %v7935, 5
        %v8742 = vsel %vm1724, %v8740, %v8741
        %v8743 = vrot.slane %v8741, 4
        %v8744 = vrot.slane %v7936, 5
        %v8745 = vsel %vm1724, %v8743, %v8744
        %v8746 = vld [vmem:[#allocation10 + $0x80] sm:$0xf]
        %v8747 = vld [vmem:[#allocation10 + $0x84] sm:$0xf]
        %v8748 = vld [vmem:[#allocation10 + $0x88] sm:$0xf]
        %v8749 = vld [vmem:[#allocation10 + $0x8c] sm:$0xf]
        %v8750 = vld [vmem:[#allocation10 + $0x90] sm:$0xf]
        %v8751 = vld [vmem:[#allocation10 + $0x94] sm:$0xf]
        %v8752 = vld [vmem:[#allocation10 + $0x98] sm:$0xf]
        %v8753 = vld [vmem:[#allocation10 + $0x9c] sm:$0xf]
        %v8754 = vld [vmem:[#allocation10 + $0xa0] sm:$0xf]
        %v8755 = vld [vmem:[#allocation10 + $0xa4] sm:$0xf]
        %v8756 = vld [vmem:[#allocation10 + $0xa8] sm:$0xf]
        %v8757 = vld [vmem:[#allocation10 + $0xac] sm:$0xf]
        %v8758 = vld [vmem:[#allocation10 + $0xb0] sm:$0xf]
        %v8759 = vld [vmem:[#allocation10 + $0xb4] sm:$0xf]
        %v8760 = vld [vmem:[#allocation10 + $0xb8] sm:$0xf]
        %v8761 = vld [vmem:[#allocation10 + $0xbc] sm:$0xf]
        %v8762 = vunpack.c.l.b16 %v8637
        %v8763 = vunpack.c.l.b16 %v8640
        %v8764 = vunpack.c.l.b16 %v8644
        %v8765 = vunpack.c.l.b16 %v8647
        %v8766 = vunpack.c.l.b16 %v8651
        %v8767 = vunpack.c.l.b16 %v8654
        %v8768 = vunpack.c.l.b16 %v8658
        %v8769 = vunpack.c.l.b16 %v8661
        %v8770 = vunpack.c.l.b16 %v8665
        %v8771 = vunpack.c.l.b16 %v8668
        %v8772 = vunpack.c.l.b16 %v8672
        %v8773 = vunpack.c.l.b16 %v8675
        %v8774 = vunpack.c.l.b16 %v8679
        %v8775 = vunpack.c.l.b16 %v8682
        %v8776 = vunpack.c.l.b16 %v8686
        %v8777 = vunpack.c.l.b16 %v8689
        %v8778 = vunpack.c.l.b16 %v8693
        %v8779 = vunpack.c.l.b16 %v8696
        %v8780 = vunpack.c.l.b16 %v8700
        %v8781 = vunpack.c.l.b16 %v8703
        %v8782 = vunpack.c.l.b16 %v8707
        %v8783 = vunpack.c.l.b16 %v8710
        %v8784 = vunpack.c.l.b16 %v8714
        %v8785 = vunpack.c.l.b16 %v8717
        %v8786 = vunpack.c.l.b16 %v8721
        %v8787 = vunpack.c.l.b16 %v8724
        %v8788 = vunpack.c.l.b16 %v8728
        %v8789 = vunpack.c.l.b16 %v8731
        %v8790 = vunpack.c.l.b16 %v8735
        %v8791 = vunpack.c.l.b16 %v8738
        %v8792 = vunpack.c.l.b16 %v8742
        %v8793 = vunpack.c.l.b16 %v8745
        %v8794 = vpack.c.b16 %v8763, %v8762
        %v8795 = vpack.c.b16 %v8765, %v8764
        %v8796 = vpack.c.b16 %v8767, %v8766
        %v8797 = vpack.c.b16 %v8769, %v8768
        %v8798 = vpack.c.b16 %v8771, %v8770
        %v8799 = vpack.c.b16 %v8773, %v8772
        %v8800 = vpack.c.b16 %v8775, %v8774
        %v8801 = vpack.c.b16 %v8777, %v8776
        %v8802 = vpack.c.b16 %v8779, %v8778
        %v8803 = vpack.c.b16 %v8781, %v8780
        %v8804 = vpack.c.b16 %v8783, %v8782
        %v8805 = vpack.c.b16 %v8785, %v8784
        %v8806 = vpack.c.b16 %v8787, %v8786
        %v8807 = vpack.c.b16 %v8789, %v8788
        %v8808 = vpack.c.b16 %v8791, %v8790
        %v8809 = vpack.c.b16 %v8793, %v8792
        %v8842 = vunpack.c.l.b16 %v8746
        %v8843 = vunpack.c.l.b16 %v8747
        %v8844 = vunpack.c.l.b16 %v8748
        %v8845 = vunpack.c.l.b16 %v8749
        %v8846 = vunpack.c.l.b16 %v8750
        %v8847 = vunpack.c.l.b16 %v8751
        %v8848 = vunpack.c.l.b16 %v8752
        %v8849 = vunpack.c.l.b16 %v8753
        %v8850 = vunpack.c.l.b16 %v8754
        %v8851 = vunpack.c.l.b16 %v8755
        %v8852 = vunpack.c.l.b16 %v8756
        %v8853 = vunpack.c.l.b16 %v8757
        %v8854 = vunpack.c.l.b16 %v8758
        %v8855 = vunpack.c.l.b16 %v8759
        %v8856 = vunpack.c.l.b16 %v8760
        %v8857 = vunpack.c.l.b16 %v8761
        %v8858 = vpack.c.b16 %v8843, %v8842
        %v8859 = vpack.c.b16 %v8845, %v8844
        %v8860 = vpack.c.b16 %v8847, %v8846
        %v8861 = vpack.c.b16 %v8849, %v8848
        %v8862 = vpack.c.b16 %v8851, %v8850
        %v8863 = vpack.c.b16 %v8853, %v8852
        %v8864 = vpack.c.b16 %v8855, %v8854
        %v8865 = vpack.c.b16 %v8857, %v8856
        %8874 = vmatpush.bf16.msra.mxu0 %v8865
        %8875 = vmatpush.bf16.msra.mxu0 %v8864
        %8876 = vmatpush.bf16.msra.mxu0 %v8863
        %8877 = vmatpush.bf16.msra.mxu0 %v8862
        %8878 = vmatpush.bf16.msra.mxu0 %v8861
        %8879 = vmatpush.bf16.msra.mxu0 %v8860
        %8880 = vmatpush.bf16.msra.mxu0 %v8859
        %8881 = vmatpush.bf16.msra.mxu0 %v8858
        %8882 = vmatmul.bf16.gmra.mxu0 %v8794
        %v8883 = vpop.f32.mrf.mxu0
        %v8884 = vadd.f32 0.0, %v8883
        %v8885 = vpop.f32.mrf.mxu0
        %v8886 = vadd.f32 0.0, %v8885
        %8887 = vmatmul.bf16.gmra.mxu0 %v8795
        %v8888 = vpop.f32.mrf.mxu0
        %v8889 = vadd.f32 0.0, %v8888
        %v8890 = vpop.f32.mrf.mxu0
        %v8891 = vadd.f32 0.0, %v8890
        %8892 = vmatmul.bf16.gmra.mxu0 %v8796
        %v8893 = vpop.f32.mrf.mxu0
        %v8894 = vadd.f32 0.0, %v8893
        %v8895 = vpop.f32.mrf.mxu0
        %v8896 = vadd.f32 0.0, %v8895
        %8897 = vmatmul.bf16.gmra.mxu0 %v8797
        %v8898 = vpop.f32.mrf.mxu0
        %v8899 = vadd.f32 0.0, %v8898
        %v8900 = vpop.f32.mrf.mxu0
        %v8901 = vadd.f32 0.0, %v8900
        %8902 = vmatmul.bf16.gmra.mxu0 %v8798
        %v8903 = vpop.f32.mrf.mxu0
        %v8904 = vadd.f32 0.0, %v8903
        %v8905 = vpop.f32.mrf.mxu0
        %v8906 = vadd.f32 0.0, %v8905
        %8907 = vmatmul.bf16.gmra.mxu0 %v8799
        %v8908 = vpop.f32.mrf.mxu0
        %v8909 = vadd.f32 0.0, %v8908
        %v8910 = vpop.f32.mrf.mxu0
        %v8911 = vadd.f32 0.0, %v8910
        %8912 = vmatmul.bf16.gmra.mxu0 %v8800
        %v8913 = vpop.f32.mrf.mxu0
        %v8914 = vadd.f32 0.0, %v8913
        %v8915 = vpop.f32.mrf.mxu0
        %v8916 = vadd.f32 0.0, %v8915
        %8917 = vmatmul.bf16.gmra.mxu0 %v8801
        %v8918 = vpop.f32.mrf.mxu0
        %v8919 = vadd.f32 0.0, %v8918
        %v8920 = vpop.f32.mrf.mxu0
        %v8921 = vadd.f32 0.0, %v8920
        %8922 = vmatmul.bf16.gmra.mxu0 %v8802
        %v8923 = vpop.f32.mrf.mxu0
        %v8924 = vadd.f32 0.0, %v8923
        %v8925 = vpop.f32.mrf.mxu0
        %v8926 = vadd.f32 0.0, %v8925
        %8927 = vmatmul.bf16.gmra.mxu0 %v8803
        %v8928 = vpop.f32.mrf.mxu0
        %v8929 = vadd.f32 0.0, %v8928
        %v8930 = vpop.f32.mrf.mxu0
        %v8931 = vadd.f32 0.0, %v8930
        %8932 = vmatmul.bf16.gmra.mxu0 %v8804
        %v8933 = vpop.f32.mrf.mxu0
        %v8934 = vadd.f32 0.0, %v8933
        %v8935 = vpop.f32.mrf.mxu0
        %v8936 = vadd.f32 0.0, %v8935
        %8937 = vmatmul.bf16.gmra.mxu0 %v8805
        %v8938 = vpop.f32.mrf.mxu0
        %v8939 = vadd.f32 0.0, %v8938
        %v8940 = vpop.f32.mrf.mxu0
        %v8941 = vadd.f32 0.0, %v8940
        %8942 = vmatmul.bf16.gmra.mxu0 %v8806
        %v8943 = vpop.f32.mrf.mxu0
        %v8944 = vadd.f32 0.0, %v8943
        %v8945 = vpop.f32.mrf.mxu0
        %v8946 = vadd.f32 0.0, %v8945
        %8947 = vmatmul.bf16.gmra.mxu0 %v8807
        %v8948 = vpop.f32.mrf.mxu0
        %v8949 = vadd.f32 0.0, %v8948
        %v8950 = vpop.f32.mrf.mxu0
        %v8951 = vadd.f32 0.0, %v8950
        %8952 = vmatmul.bf16.gmra.mxu0 %v8808
        %v8953 = vpop.f32.mrf.mxu0
        %v8954 = vadd.f32 0.0, %v8953
        %v8955 = vpop.f32.mrf.mxu0
        %v8956 = vadd.f32 0.0, %v8955
        %8957 = vmatmul.bf16.gmra.mxu0 %v8809
        %v8958 = vpop.f32.mrf.mxu0
        %v8959 = vadd.f32 0.0, %v8958
        %v8960 = vpop.f32.mrf.mxu0
        %v8961 = vadd.f32 0.0, %v8960
        %8962 = vdwg.mxu0
        %v8963 = vadd.f32 %v8538, %v8884
        %v8964 = vadd.f32 %v8539, %v8886
        %v8965 = vadd.f32 %v8540, %v8889
        %v8966 = vadd.f32 %v8541, %v8891
        %v8967 = vadd.f32 %v8542, %v8894
        %v8968 = vadd.f32 %v8543, %v8896
        %v8969 = vadd.f32 %v8544, %v8899
        %v8970 = vadd.f32 %v8545, %v8901
        %v8971 = vadd.f32 %v8546, %v8904
        %v8972 = vadd.f32 %v8547, %v8906
        %v8973 = vadd.f32 %v8548, %v8909
        %v8974 = vadd.f32 %v8549, %v8911
        %v8975 = vadd.f32 %v8550, %v8914
        %v8976 = vadd.f32 %v8551, %v8916
        %v8977 = vadd.f32 %v8552, %v8919
        %v8978 = vadd.f32 %v8553, %v8921
        %v8979 = vadd.f32 %v8554, %v8924
        %v8980 = vadd.f32 %v8555, %v8926
        %v8981 = vadd.f32 %v8556, %v8929
        %v8982 = vadd.f32 %v8557, %v8931
        %v8983 = vadd.f32 %v8558, %v8934
        %v8984 = vadd.f32 %v8559, %v8936
        %v8985 = vadd.f32 %v8560, %v8939
        %v8986 = vadd.f32 %v8561, %v8941
        %v8987 = vadd.f32 %v8562, %v8944
        %v8988 = vadd.f32 %v8563, %v8946
        %v8989 = vadd.f32 %v8564, %v8949
        %v8990 = vadd.f32 %v8565, %v8951
        %v8991 = vadd.f32 %v8566, %v8954
        %v8992 = vadd.f32 %v8567, %v8956
        %v8993 = vadd.f32 %v8568, %v8959
        %v8994 = vadd.f32 %v8569, %v8961
        %v8995 = vld [vmem:[%s7463] sm:$0xf]
        %v8996 = vld [vmem:[%s7463 + $0x4] sm:$0xf]
        %v8997 = vld [vmem:[%s7463 + $0xc] sm:$0xf]
        %v8998 = vld [vmem:[%s7463 + $0x10] sm:$0xf]
        %v8999 = vld [vmem:[%s7463 + $0x18] sm:$0xf]
        %v9000 = vld [vmem:[%s7463 + $0x1c] sm:$0xf]
        %v9001 = vld [vmem:[%s7463 + $0x24] sm:$0xf]
        %v9002 = vld [vmem:[%s7463 + $0x28] sm:$0xf]
        %v9003 = vld [vmem:[%s7463 + $0x30] sm:$0xf]
        %v9004 = vld [vmem:[%s7463 + $0x34] sm:$0xf]
        %v9005 = vld [vmem:[%s7463 + $0x3c] sm:$0xf]
        %v9006 = vld [vmem:[%s7463 + $0x40] sm:$0xf]
        %v9007 = vld [vmem:[%s7463 + $0x48] sm:$0xf]
        %v9008 = vld [vmem:[%s7463 + $0x4c] sm:$0xf]
        %v9009 = vld [vmem:[%s7463 + $0x54] sm:$0xf]
        %v9010 = vld [vmem:[%s7463 + $0x58] sm:$0xf]
        %v9011 = vld [vmem:[%s7463 + $0x60] sm:$0xf]
        %v9012 = vld [vmem:[%s7463 + $0x64] sm:$0xf]
        %v9013 = vld [vmem:[%s7463 + $0x6c] sm:$0xf]
        %v9014 = vld [vmem:[%s7463 + $0x70] sm:$0xf]
        %v9015 = vld [vmem:[%s7463 + $0x78] sm:$0xf]
        %v9016 = vld [vmem:[%s7463 + $0x7c] sm:$0xf]
        %v9017 = vld [vmem:[%s7463 + $0x84] sm:$0xf]
        %v9018 = vld [vmem:[%s7463 + $0x88] sm:$0xf]
        %v9019 = vld [vmem:[%s7463 + $0x90] sm:$0xf]
        %v9020 = vld [vmem:[%s7463 + $0x94] sm:$0xf]
        %v9021 = vld [vmem:[%s7463 + $0x9c] sm:$0xf]
        %v9022 = vld [vmem:[%s7463 + $0xa0] sm:$0xf]
        %v9023 = vld [vmem:[%s7463 + $0xa8] sm:$0xf]
        %v9024 = vld [vmem:[%s7463 + $0xac] sm:$0xf]
        %v9025 = vld [vmem:[%s7463 + $0xb4] sm:$0xf]
        %v9026 = vld [vmem:[%s7463 + $0xb8] sm:$0xf]
        %v9027 = vld [vmem:[#allocation10 + $0xc0] sm:$0xf]
        %v9028 = vld [vmem:[#allocation10 + $0xc4] sm:$0xf]
        %v9029 = vld [vmem:[#allocation10 + $0xc8] sm:$0xf]
        %v9030 = vld [vmem:[#allocation10 + $0xcc] sm:$0xf]
        %v9031 = vld [vmem:[#allocation10 + $0xd0] sm:$0xf]
        %v9032 = vld [vmem:[#allocation10 + $0xd4] sm:$0xf]
        %v9033 = vld [vmem:[#allocation10 + $0xd8] sm:$0xf]
        %v9034 = vld [vmem:[#allocation10 + $0xdc] sm:$0xf]
        %v9035 = vld [vmem:[#allocation10 + $0xe0] sm:$0xf]
        %v9036 = vld [vmem:[#allocation10 + $0xe4] sm:$0xf]
        %v9037 = vld [vmem:[#allocation10 + $0xe8] sm:$0xf]
        %v9038 = vld [vmem:[#allocation10 + $0xec] sm:$0xf]
        %v9039 = vld [vmem:[#allocation10 + $0xf0] sm:$0xf]
        %v9040 = vld [vmem:[#allocation10 + $0xf4] sm:$0xf]
        %v9041 = vld [vmem:[#allocation10 + $0xf8] sm:$0xf]
        %v9042 = vld [vmem:[#allocation10 + $0xfc] sm:$0xf]
        %v9075 = vunpack.c.l.b16 %v8995
        %v9076 = vunpack.c.l.b16 %v8996
        %v9077 = vunpack.c.l.b16 %v8997
        %v9078 = vunpack.c.l.b16 %v8998
        %v9079 = vunpack.c.l.b16 %v8999
        %v9080 = vunpack.c.l.b16 %v9000
        %v9081 = vunpack.c.l.b16 %v9001
        %v9082 = vunpack.c.l.b16 %v9002
        %v9083 = vunpack.c.l.b16 %v9003
        %v9084 = vunpack.c.l.b16 %v9004
        %v9085 = vunpack.c.l.b16 %v9005
        %v9086 = vunpack.c.l.b16 %v9006
        %v9087 = vunpack.c.l.b16 %v9007
        %v9088 = vunpack.c.l.b16 %v9008
        %v9089 = vunpack.c.l.b16 %v9009
        %v9090 = vunpack.c.l.b16 %v9010
        %v9091 = vunpack.c.l.b16 %v9011
        %v9092 = vunpack.c.l.b16 %v9012
        %v9093 = vunpack.c.l.b16 %v9013
        %v9094 = vunpack.c.l.b16 %v9014
        %v9095 = vunpack.c.l.b16 %v9015
        %v9096 = vunpack.c.l.b16 %v9016
        %v9097 = vunpack.c.l.b16 %v9017
        %v9098 = vunpack.c.l.b16 %v9018
        %v9099 = vunpack.c.l.b16 %v9019
        %v9100 = vunpack.c.l.b16 %v9020
        %v9101 = vunpack.c.l.b16 %v9021
        %v9102 = vunpack.c.l.b16 %v9022
        %v9103 = vunpack.c.l.b16 %v9023
        %v9104 = vunpack.c.l.b16 %v9024
        %v9105 = vunpack.c.l.b16 %v9025
        %v9106 = vunpack.c.l.b16 %v9026
        %v9107 = vpack.c.b16 %v9076, %v9075
        %v9108 = vpack.c.b16 %v9078, %v9077
        %v9109 = vpack.c.b16 %v9080, %v9079
        %v9110 = vpack.c.b16 %v9082, %v9081
        %v9111 = vpack.c.b16 %v9084, %v9083
        %v9112 = vpack.c.b16 %v9086, %v9085
        %v9113 = vpack.c.b16 %v9088, %v9087
        %v9114 = vpack.c.b16 %v9090, %v9089
        %v9115 = vpack.c.b16 %v9092, %v9091
        %v9116 = vpack.c.b16 %v9094, %v9093
        %v9117 = vpack.c.b16 %v9096, %v9095
        %v9118 = vpack.c.b16 %v9098, %v9097
        %v9119 = vpack.c.b16 %v9100, %v9099
        %v9120 = vpack.c.b16 %v9102, %v9101
        %v9121 = vpack.c.b16 %v9104, %v9103
        %v9122 = vpack.c.b16 %v9106, %v9105
        %v9155 = vunpack.c.l.b16 %v9027
        %v9156 = vunpack.c.l.b16 %v9028
        %v9157 = vunpack.c.l.b16 %v9029
        %v9158 = vunpack.c.l.b16 %v9030
        %v9159 = vunpack.c.l.b16 %v9031
        %v9160 = vunpack.c.l.b16 %v9032
        %v9161 = vunpack.c.l.b16 %v9033
        %v9162 = vunpack.c.l.b16 %v9034
        %v9163 = vunpack.c.l.b16 %v9035
        %v9164 = vunpack.c.l.b16 %v9036
        %v9165 = vunpack.c.l.b16 %v9037
        %v9166 = vunpack.c.l.b16 %v9038
        %v9167 = vunpack.c.l.b16 %v9039
        %v9168 = vunpack.c.l.b16 %v9040
        %v9169 = vunpack.c.l.b16 %v9041
        %v9170 = vunpack.c.l.b16 %v9042
        %v9171 = vpack.c.b16 %v9156, %v9155
        %v9172 = vpack.c.b16 %v9158, %v9157
        %v9173 = vpack.c.b16 %v9160, %v9159
        %v9174 = vpack.c.b16 %v9162, %v9161
        %v9175 = vpack.c.b16 %v9164, %v9163
        %v9176 = vpack.c.b16 %v9166, %v9165
        %v9177 = vpack.c.b16 %v9168, %v9167
        %v9178 = vpack.c.b16 %v9170, %v9169
        %9187 = vmatpush.bf16.msra.mxu0 %v9178
        %9188 = vmatpush.bf16.msra.mxu0 %v9177
        %9189 = vmatpush.bf16.msra.mxu0 %v9176
        %9190 = vmatpush.bf16.msra.mxu0 %v9175
        %9191 = vmatpush.bf16.msra.mxu0 %v9174
        %9192 = vmatpush.bf16.msra.mxu0 %v9173
        %9193 = vmatpush.bf16.msra.mxu0 %v9172
        %9194 = vmatpush.bf16.msra.mxu0 %v9171
        %9195 = vmatmul.bf16.gmra.mxu0 %v9107
        %v9196 = vpop.f32.mrf.mxu0
        %v9197 = vadd.f32 0.0, %v9196
        %v9198 = vpop.f32.mrf.mxu0
        %v9199 = vadd.f32 0.0, %v9198
        %9200 = vmatmul.bf16.gmra.mxu0 %v9108
        %v9201 = vpop.f32.mrf.mxu0
        %v9202 = vadd.f32 0.0, %v9201
        %v9203 = vpop.f32.mrf.mxu0
        %v9204 = vadd.f32 0.0, %v9203
        %9205 = vmatmul.bf16.gmra.mxu0 %v9109
        %v9206 = vpop.f32.mrf.mxu0
        %v9207 = vadd.f32 0.0, %v9206
        %v9208 = vpop.f32.mrf.mxu0
        %v9209 = vadd.f32 0.0, %v9208
        %9210 = vmatmul.bf16.gmra.mxu0 %v9110
        %v9211 = vpop.f32.mrf.mxu0
        %v9212 = vadd.f32 0.0, %v9211
        %v9213 = vpop.f32.mrf.mxu0
        %v9214 = vadd.f32 0.0, %v9213
        %9215 = vmatmul.bf16.gmra.mxu0 %v9111
        %v9216 = vpop.f32.mrf.mxu0
        %v9217 = vadd.f32 0.0, %v9216
        %v9218 = vpop.f32.mrf.mxu0
        %v9219 = vadd.f32 0.0, %v9218
        %9220 = vmatmul.bf16.gmra.mxu0 %v9112
        %v9221 = vpop.f32.mrf.mxu0
        %v9222 = vadd.f32 0.0, %v9221
        %v9223 = vpop.f32.mrf.mxu0
        %v9224 = vadd.f32 0.0, %v9223
        %9225 = vmatmul.bf16.gmra.mxu0 %v9113
        %v9226 = vpop.f32.mrf.mxu0
        %v9227 = vadd.f32 0.0, %v9226
        %v9228 = vpop.f32.mrf.mxu0
        %v9229 = vadd.f32 0.0, %v9228
        %9230 = vmatmul.bf16.gmra.mxu0 %v9114
        %v9231 = vpop.f32.mrf.mxu0
        %v9232 = vadd.f32 0.0, %v9231
        %v9233 = vpop.f32.mrf.mxu0
        %v9234 = vadd.f32 0.0, %v9233
        %9235 = vmatmul.bf16.gmra.mxu0 %v9115
        %v9236 = vpop.f32.mrf.mxu0
        %v9237 = vadd.f32 0.0, %v9236
        %v9238 = vpop.f32.mrf.mxu0
        %v9239 = vadd.f32 0.0, %v9238
        %9240 = vmatmul.bf16.gmra.mxu0 %v9116
        %v9241 = vpop.f32.mrf.mxu0
        %v9242 = vadd.f32 0.0, %v9241
        %v9243 = vpop.f32.mrf.mxu0
        %v9244 = vadd.f32 0.0, %v9243
        %9245 = vmatmul.bf16.gmra.mxu0 %v9117
        %v9246 = vpop.f32.mrf.mxu0
        %v9247 = vadd.f32 0.0, %v9246
        %v9248 = vpop.f32.mrf.mxu0
        %v9249 = vadd.f32 0.0, %v9248
        %9250 = vmatmul.bf16.gmra.mxu0 %v9118
        %v9251 = vpop.f32.mrf.mxu0
        %v9252 = vadd.f32 0.0, %v9251
        %v9253 = vpop.f32.mrf.mxu0
        %v9254 = vadd.f32 0.0, %v9253
        %9255 = vmatmul.bf16.gmra.mxu0 %v9119
        %v9256 = vpop.f32.mrf.mxu0
        %v9257 = vadd.f32 0.0, %v9256
        %v9258 = vpop.f32.mrf.mxu0
        %v9259 = vadd.f32 0.0, %v9258
        %9260 = vmatmul.bf16.gmra.mxu0 %v9120
        %v9261 = vpop.f32.mrf.mxu0
        %v9262 = vadd.f32 0.0, %v9261
        %v9263 = vpop.f32.mrf.mxu0
        %v9264 = vadd.f32 0.0, %v9263
        %9265 = vmatmul.bf16.gmra.mxu0 %v9121
        %v9266 = vpop.f32.mrf.mxu0
        %v9267 = vadd.f32 0.0, %v9266
        %v9268 = vpop.f32.mrf.mxu0
        %v9269 = vadd.f32 0.0, %v9268
        %9270 = vmatmul.bf16.gmra.mxu0 %v9122
        %v9271 = vpop.f32.mrf.mxu0
        %v9272 = vadd.f32 0.0, %v9271
        %v9273 = vpop.f32.mrf.mxu0
        %v9274 = vadd.f32 0.0, %v9273
        %9275 = vdwg.mxu0
        %v9276 = vadd.f32 %v8963, %v9197
        %v9277 = vadd.f32 %v8964, %v9199
        %v9278 = vadd.f32 %v8965, %v9202
        %v9279 = vadd.f32 %v8966, %v9204
        %v9280 = vadd.f32 %v8967, %v9207
        %v9281 = vadd.f32 %v8968, %v9209
        %v9282 = vadd.f32 %v8969, %v9212
        %v9283 = vadd.f32 %v8970, %v9214
        %v9284 = vadd.f32 %v8971, %v9217
        %v9285 = vadd.f32 %v8972, %v9219
        %v9286 = vadd.f32 %v8973, %v9222
        %v9287 = vadd.f32 %v8974, %v9224
        %v9288 = vadd.f32 %v8975, %v9227
        %v9289 = vadd.f32 %v8976, %v9229
        %v9290 = vadd.f32 %v8977, %v9232
        %v9291 = vadd.f32 %v8978, %v9234
        %v9292 = vadd.f32 %v8979, %v9237
        %v9293 = vadd.f32 %v8980, %v9239
        %v9294 = vadd.f32 %v8981, %v9242
        %v9295 = vadd.f32 %v8982, %v9244
        %v9296 = vadd.f32 %v8983, %v9247
        %v9297 = vadd.f32 %v8984, %v9249
        %v9298 = vadd.f32 %v8985, %v9252
        %v9299 = vadd.f32 %v8986, %v9254
        %v9300 = vadd.f32 %v8987, %v9257
        %v9301 = vadd.f32 %v8988, %v9259
        %v9302 = vadd.f32 %v8989, %v9262
        %v9303 = vadd.f32 %v8990, %v9264
        %v9304 = vadd.f32 %v8991, %v9267
        %v9305 = vadd.f32 %v8992, %v9269
        %v9306 = vadd.f32 %v8993, %v9272
        %v9307 = vadd.f32 %v8994, %v9274
        %v9308 = vld [vmem:[%s7463] sm:$0xf]
        %v9309 = vld [vmem:[%s7463 + $0x4] sm:$0xf]
        %v9310 = vld [vmem:[%s7463 + $0x8] sm:$0x1]
        %v9311 = vld [vmem:[%s7463 + $0xc] sm:$0xf]
        %v9312 = vld [vmem:[%s7463 + $0x10] sm:$0xf]
        %v9313 = vld [vmem:[%s7463 + $0x14] sm:$0x1]
        %v9314 = vld [vmem:[%s7463 + $0x18] sm:$0xf]
        %v9315 = vld [vmem:[%s7463 + $0x1c] sm:$0xf]
        %v9316 = vld [vmem:[%s7463 + $0x20] sm:$0x1]
        %v9317 = vld [vmem:[%s7463 + $0x24] sm:$0xf]
        %v9318 = vld [vmem:[%s7463 + $0x28] sm:$0xf]
        %v9319 = vld [vmem:[%s7463 + $0x2c] sm:$0x1]
        %v9320 = vld [vmem:[%s7463 + $0x30] sm:$0xf]
        %v9321 = vld [vmem:[%s7463 + $0x34] sm:$0xf]
        %v9322 = vld [vmem:[%s7463 + $0x38] sm:$0x1]
        %v9323 = vld [vmem:[%s7463 + $0x3c] sm:$0xf]
        %v9324 = vld [vmem:[%s7463 + $0x40] sm:$0xf]
        %v9325 = vld [vmem:[%s7463 + $0x44] sm:$0x1]
        %v9326 = vld [vmem:[%s7463 + $0x48] sm:$0xf]
        %v9327 = vld [vmem:[%s7463 + $0x4c] sm:$0xf]
        %v9328 = vld [vmem:[%s7463 + $0x50] sm:$0x1]
        %v9329 = vld [vmem:[%s7463 + $0x54] sm:$0xf]
        %v9330 = vld [vmem:[%s7463 + $0x58] sm:$0xf]
        %v9331 = vld [vmem:[%s7463 + $0x5c] sm:$0x1]
        %v9332 = vld [vmem:[%s7463 + $0x60] sm:$0xf]
        %v9333 = vld [vmem:[%s7463 + $0x64] sm:$0xf]
        %v9334 = vld [vmem:[%s7463 + $0x68] sm:$0x1]
        %v9335 = vld [vmem:[%s7463 + $0x6c] sm:$0xf]
        %v9336 = vld [vmem:[%s7463 + $0x70] sm:$0xf]
        %v9337 = vld [vmem:[%s7463 + $0x74] sm:$0x1]
        %v9338 = vld [vmem:[%s7463 + $0x78] sm:$0xf]
        %v9339 = vld [vmem:[%s7463 + $0x7c] sm:$0xf]
        %v9340 = vld [vmem:[%s7463 + $0x80] sm:$0x1]
        %v9341 = vld [vmem:[%s7463 + $0x84] sm:$0xf]
        %v9342 = vld [vmem:[%s7463 + $0x88] sm:$0xf]
        %v9343 = vld [vmem:[%s7463 + $0x8c] sm:$0x1]
        %v9344 = vld [vmem:[%s7463 + $0x90] sm:$0xf]
        %v9345 = vld [vmem:[%s7463 + $0x94] sm:$0xf]
        %v9346 = vld [vmem:[%s7463 + $0x98] sm:$0x1]
        %v9347 = vld [vmem:[%s7463 + $0x9c] sm:$0xf]
        %v9348 = vld [vmem:[%s7463 + $0xa0] sm:$0xf]
        %v9349 = vld [vmem:[%s7463 + $0xa4] sm:$0x1]
        %v9350 = vld [vmem:[%s7463 + $0xa8] sm:$0xf]
        %v9351 = vld [vmem:[%s7463 + $0xac] sm:$0xf]
        %v9352 = vld [vmem:[%s7463 + $0xb0] sm:$0x1]
        %v9353 = vld [vmem:[%s7463 + $0xb4] sm:$0xf]
        %v9354 = vld [vmem:[%s7463 + $0xb8] sm:$0xf]
        %v9355 = vld [vmem:[%s7463 + $0xbc] sm:$0x1]
        %v9357 = vshrl.u32 %v9308, 16
        %v9359 = vrot.slane %v9357, 4
        %v9360 = vshll.u32 %v9308, 16
        %v9362 = vrot.slane %v9360, 5
        %v9363 = vor.u32 %v9359, %v9362
        %v9364 = vrot.slane %v9363, 4
        %v9366 = vshll.u32 %v9309, 16
        %v9368 = vrot.slane %v9366, 5
        %v9369 = vsel %vm1177, %v9364, %v9368
        %v9370 = vshrl.u32 %v9309, 16
        %v9372 = vrot.slane %v9370, 4
        %v9373 = vor.u32 %v9372, %v9368
        %v9374 = vrot.slane %v9373, 4
        %v9376 = vshll.u32 %v9310, 16
        %v9378 = vrot.slane %v9376, 5
        %v9379 = vsel %vm1177, %v9374, %v9378
        %v9381 = vshrl.u32 %v9311, 16
        %v9383 = vrot.slane %v9381, 4
        %v9384 = vshll.u32 %v9311, 16
        %v9386 = vrot.slane %v9384, 5
        %v9387 = vor.u32 %v9383, %v9386
        %v9388 = vrot.slane %v9387, 4
        %v9390 = vshll.u32 %v9312, 16
        %v9392 = vrot.slane %v9390, 5
        %v9393 = vsel %vm1177, %v9388, %v9392
        %v9394 = vshrl.u32 %v9312, 16
        %v9396 = vrot.slane %v9394, 4
        %v9397 = vor.u32 %v9396, %v9392
        %v9398 = vrot.slane %v9397, 4
        %v9400 = vshll.u32 %v9313, 16
        %v9402 = vrot.slane %v9400, 5
        %v9403 = vsel %vm1177, %v9398, %v9402
        %v9405 = vshrl.u32 %v9314, 16
        %v9407 = vrot.slane %v9405, 4
        %v9408 = vshll.u32 %v9314, 16
        %v9410 = vrot.slane %v9408, 5
        %v9411 = vor.u32 %v9407, %v9410
        %v9412 = vrot.slane %v9411, 4
        %v9414 = vshll.u32 %v9315, 16
        %v9416 = vrot.slane %v9414, 5
        %v9417 = vsel %vm1177, %v9412, %v9416
        %v9418 = vshrl.u32 %v9315, 16
        %v9420 = vrot.slane %v9418, 4
        %v9421 = vor.u32 %v9420, %v9416
        %v9422 = vrot.slane %v9421, 4
        %v9424 = vshll.u32 %v9316, 16
        %v9426 = vrot.slane %v9424, 5
        %v9427 = vsel %vm1177, %v9422, %v9426
        %v9429 = vshrl.u32 %v9317, 16
        %v9431 = vrot.slane %v9429, 4
        %v9432 = vshll.u32 %v9317, 16
        %v9434 = vrot.slane %v9432, 5
        %v9435 = vor.u32 %v9431, %v9434
        %v9436 = vrot.slane %v9435, 4
        %v9438 = vshll.u32 %v9318, 16
        %v9440 = vrot.slane %v9438, 5
        %v9441 = vsel %vm1177, %v9436, %v9440
        %v9442 = vshrl.u32 %v9318, 16
        %v9444 = vrot.slane %v9442, 4
        %v9445 = vor.u32 %v9444, %v9440
        %v9446 = vrot.slane %v9445, 4
        %v9448 = vshll.u32 %v9319, 16
        %v9450 = vrot.slane %v9448, 5
        %v9451 = vsel %vm1177, %v9446, %v9450
        %v9453 = vshrl.u32 %v9320, 16
        %v9455 = vrot.slane %v9453, 4
        %v9456 = vshll.u32 %v9320, 16
        %v9458 = vrot.slane %v9456, 5
        %v9459 = vor.u32 %v9455, %v9458
        %v9460 = vrot.slane %v9459, 4
        %v9462 = vshll.u32 %v9321, 16
        %v9464 = vrot.slane %v9462, 5
        %v9465 = vsel %vm1177, %v9460, %v9464
        %v9466 = vshrl.u32 %v9321, 16
        %v9468 = vrot.slane %v9466, 4
        %v9469 = vor.u32 %v9468, %v9464
        %v9470 = vrot.slane %v9469, 4
        %v9472 = vshll.u32 %v9322, 16
        %v9474 = vrot.slane %v9472, 5
        %v9475 = vsel %vm1177, %v9470, %v9474
        %v9477 = vshrl.u32 %v9323, 16
        %v9479 = vrot.slane %v9477, 4
        %v9480 = vshll.u32 %v9323, 16
        %v9482 = vrot.slane %v9480, 5
        %v9483 = vor.u32 %v9479, %v9482
        %v9484 = vrot.slane %v9483, 4
        %v9486 = vshll.u32 %v9324, 16
        %v9488 = vrot.slane %v9486, 5
        %v9489 = vsel %vm1177, %v9484, %v9488
        %v9490 = vshrl.u32 %v9324, 16
        %v9492 = vrot.slane %v9490, 4
        %v9493 = vor.u32 %v9492, %v9488
        %v9494 = vrot.slane %v9493, 4
        %v9496 = vshll.u32 %v9325, 16
        %v9498 = vrot.slane %v9496, 5
        %v9499 = vsel %vm1177, %v9494, %v9498
        %v9501 = vshrl.u32 %v9326, 16
        %v9503 = vrot.slane %v9501, 4
        %v9504 = vshll.u32 %v9326, 16
        %v9506 = vrot.slane %v9504, 5
        %v9507 = vor.u32 %v9503, %v9506
        %v9508 = vrot.slane %v9507, 4
        %v9510 = vshll.u32 %v9327, 16
        %v9512 = vrot.slane %v9510, 5
        %v9513 = vsel %vm1177, %v9508, %v9512
        %v9514 = vshrl.u32 %v9327, 16
        %v9516 = vrot.slane %v9514, 4
        %v9517 = vor.u32 %v9516, %v9512
        %v9518 = vrot.slane %v9517, 4
        %v9520 = vshll.u32 %v9328, 16
        %v9522 = vrot.slane %v9520, 5
        %v9523 = vsel %vm1177, %v9518, %v9522
        %v9525 = vshrl.u32 %v9329, 16
        %v9527 = vrot.slane %v9525, 4
        %v9528 = vshll.u32 %v9329, 16
        %v9530 = vrot.slane %v9528, 5
        %v9531 = vor.u32 %v9527, %v9530
        %v9532 = vrot.slane %v9531, 4
        %v9534 = vshll.u32 %v9330, 16
        %v9536 = vrot.slane %v9534, 5
        %v9537 = vsel %vm1177, %v9532, %v9536
        %v9538 = vshrl.u32 %v9330, 16
        %v9540 = vrot.slane %v9538, 4
        %v9541 = vor.u32 %v9540, %v9536
        %v9542 = vrot.slane %v9541, 4
        %v9544 = vshll.u32 %v9331, 16
        %v9546 = vrot.slane %v9544, 5
        %v9547 = vsel %vm1177, %v9542, %v9546
        %v9549 = vshrl.u32 %v9332, 16
        %v9551 = vrot.slane %v9549, 4
        %v9552 = vshll.u32 %v9332, 16
        %v9554 = vrot.slane %v9552, 5
        %v9555 = vor.u32 %v9551, %v9554
        %v9556 = vrot.slane %v9555, 4
        %v9558 = vshll.u32 %v9333, 16
        %v9560 = vrot.slane %v9558, 5
        %v9561 = vsel %vm1177, %v9556, %v9560
        %v9562 = vshrl.u32 %v9333, 16
        %v9564 = vrot.slane %v9562, 4
        %v9565 = vor.u32 %v9564, %v9560
        %v9566 = vrot.slane %v9565, 4
        %v9568 = vshll.u32 %v9334, 16
        %v9570 = vrot.slane %v9568, 5
        %v9571 = vsel %vm1177, %v9566, %v9570
        %v9573 = vshrl.u32 %v9335, 16
        %v9575 = vrot.slane %v9573, 4
        %v9576 = vshll.u32 %v9335, 16
        %v9578 = vrot.slane %v9576, 5
        %v9579 = vor.u32 %v9575, %v9578
        %v9580 = vrot.slane %v9579, 4
        %v9582 = vshll.u32 %v9336, 16
        %v9584 = vrot.slane %v9582, 5
        %v9585 = vsel %vm1177, %v9580, %v9584
        %v9586 = vshrl.u32 %v9336, 16
        %v9588 = vrot.slane %v9586, 4
        %v9589 = vor.u32 %v9588, %v9584
        %v9590 = vrot.slane %v9589, 4
        %v9592 = vshll.u32 %v9337, 16
        %v9594 = vrot.slane %v9592, 5
        %v9595 = vsel %vm1177, %v9590, %v9594
        %v9597 = vshrl.u32 %v9338, 16
        %v9599 = vrot.slane %v9597, 4
        %v9600 = vshll.u32 %v9338, 16
        %v9602 = vrot.slane %v9600, 5
        %v9603 = vor.u32 %v9599, %v9602
        %v9604 = vrot.slane %v9603, 4
        %v9606 = vshll.u32 %v9339, 16
        %v9608 = vrot.slane %v9606, 5
        %v9609 = vsel %vm1177, %v9604, %v9608
        %v9610 = vshrl.u32 %v9339, 16
        %v9612 = vrot.slane %v9610, 4
        %v9613 = vor.u32 %v9612, %v9608
        %v9614 = vrot.slane %v9613, 4
        %v9616 = vshll.u32 %v9340, 16
        %v9618 = vrot.slane %v9616, 5
        %v9619 = vsel %vm1177, %v9614, %v9618
        %v9621 = vshrl.u32 %v9341, 16
        %v9623 = vrot.slane %v9621, 4
        %v9624 = vshll.u32 %v9341, 16
        %v9626 = vrot.slane %v9624, 5
        %v9627 = vor.u32 %v9623, %v9626
        %v9628 = vrot.slane %v9627, 4
        %v9630 = vshll.u32 %v9342, 16
        %v9632 = vrot.slane %v9630, 5
        %v9633 = vsel %vm1177, %v9628, %v9632
        %v9634 = vshrl.u32 %v9342, 16
        %v9636 = vrot.slane %v9634, 4
        %v9637 = vor.u32 %v9636, %v9632
        %v9638 = vrot.slane %v9637, 4
        %v9640 = vshll.u32 %v9343, 16
        %v9642 = vrot.slane %v9640, 5
        %v9643 = vsel %vm1177, %v9638, %v9642
        %v9645 = vshrl.u32 %v9344, 16
        %v9647 = vrot.slane %v9645, 4
        %v9648 = vshll.u32 %v9344, 16
        %v9650 = vrot.slane %v9648, 5
        %v9651 = vor.u32 %v9647, %v9650
        %v9652 = vrot.slane %v9651, 4
        %v9654 = vshll.u32 %v9345, 16
        %v9656 = vrot.slane %v9654, 5
        %v9657 = vsel %vm1177, %v9652, %v9656
        %v9658 = vshrl.u32 %v9345, 16
        %v9660 = vrot.slane %v9658, 4
        %v9661 = vor.u32 %v9660, %v9656
        %v9662 = vrot.slane %v9661, 4
        %v9664 = vshll.u32 %v9346, 16
        %v9666 = vrot.slane %v9664, 5
        %v9667 = vsel %vm1177, %v9662, %v9666
        %v9669 = vshrl.u32 %v9347, 16
        %v9671 = vrot.slane %v9669, 4
        %v9672 = vshll.u32 %v9347, 16
        %v9674 = vrot.slane %v9672, 5
        %v9675 = vor.u32 %v9671, %v9674
        %v9676 = vrot.slane %v9675, 4
        %v9678 = vshll.u32 %v9348, 16
        %v9680 = vrot.slane %v9678, 5
        %v9681 = vsel %vm1177, %v9676, %v9680
        %v9682 = vshrl.u32 %v9348, 16
        %v9684 = vrot.slane %v9682, 4
        %v9685 = vor.u32 %v9684, %v9680
        %v9686 = vrot.slane %v9685, 4
        %v9688 = vshll.u32 %v9349, 16
        %v9690 = vrot.slane %v9688, 5
        %v9691 = vsel %vm1177, %v9686, %v9690
        %v9693 = vshrl.u32 %v9350, 16
        %v9695 = vrot.slane %v9693, 4
        %v9696 = vshll.u32 %v9350, 16
        %v9698 = vrot.slane %v9696, 5
        %v9699 = vor.u32 %v9695, %v9698
        %v9700 = vrot.slane %v9699, 4
        %v9702 = vshll.u32 %v9351, 16
        %v9704 = vrot.slane %v9702, 5
        %v9705 = vsel %vm1177, %v9700, %v9704
        %v9706 = vshrl.u32 %v9351, 16
        %v9708 = vrot.slane %v9706, 4
        %v9709 = vor.u32 %v9708, %v9704
        %v9710 = vrot.slane %v9709, 4
        %v9712 = vshll.u32 %v9352, 16
        %v9714 = vrot.slane %v9712, 5
        %v9715 = vsel %vm1177, %v9710, %v9714
        %v9717 = vshrl.u32 %v9353, 16
        %v9719 = vrot.slane %v9717, 4
        %v9720 = vshll.u32 %v9353, 16
        %v9722 = vrot.slane %v9720, 5
        %v9723 = vor.u32 %v9719, %v9722
        %v9724 = vrot.slane %v9723, 4
        %v9726 = vshll.u32 %v9354, 16
        %v9728 = vrot.slane %v9726, 5
        %v9729 = vsel %vm1177, %v9724, %v9728
        %v9730 = vshrl.u32 %v9354, 16
        %v9732 = vrot.slane %v9730, 4
        %v9733 = vor.u32 %v9732, %v9728
        %v9734 = vrot.slane %v9733, 4
        %v9736 = vshll.u32 %v9355, 16
        %v9738 = vrot.slane %v9736, 5
        %v9739 = vsel %vm1177, %v9734, %v9738
        %v9740 = vld [vmem:[#allocation10 + $0x100] sm:$0xf]
        %v9741 = vld [vmem:[#allocation10 + $0x104] sm:$0xf]
        %v9742 = vld [vmem:[#allocation10 + $0x108] sm:$0xf]
        %v9743 = vld [vmem:[#allocation10 + $0x10c] sm:$0xf]
        %v9744 = vld [vmem:[#allocation10 + $0x110] sm:$0xf]
        %v9745 = vld [vmem:[#allocation10 + $0x114] sm:$0xf]
        %v9746 = vld [vmem:[#allocation10 + $0x118] sm:$0xf]
        %v9747 = vld [vmem:[#allocation10 + $0x11c] sm:$0xf]
        %v9748 = vld [vmem:[#allocation10 + $0x120] sm:$0xf]
        %v9749 = vld [vmem:[#allocation10 + $0x124] sm:$0xf]
        %v9750 = vld [vmem:[#allocation10 + $0x128] sm:$0xf]
        %v9751 = vld [vmem:[#allocation10 + $0x12c] sm:$0xf]
        %v9752 = vld [vmem:[#allocation10 + $0x130] sm:$0xf]
        %v9753 = vld [vmem:[#allocation10 + $0x134] sm:$0xf]
        %v9754 = vld [vmem:[#allocation10 + $0x138] sm:$0xf]
        %v9755 = vld [vmem:[#allocation10 + $0x13c] sm:$0xf]
        %v9756 = vunpack.c.l.b16 %v9369
        %v9757 = vunpack.c.l.b16 %v9379
        %v9758 = vunpack.c.l.b16 %v9393
        %v9759 = vunpack.c.l.b16 %v9403
        %v9760 = vunpack.c.l.b16 %v9417
        %v9761 = vunpack.c.l.b16 %v9427
        %v9762 = vunpack.c.l.b16 %v9441
        %v9763 = vunpack.c.l.b16 %v9451
        %v9764 = vunpack.c.l.b16 %v9465
        %v9765 = vunpack.c.l.b16 %v9475
        %v9766 = vunpack.c.l.b16 %v9489
        %v9767 = vunpack.c.l.b16 %v9499
        %v9768 = vunpack.c.l.b16 %v9513
        %v9769 = vunpack.c.l.b16 %v9523
        %v9770 = vunpack.c.l.b16 %v9537
        %v9771 = vunpack.c.l.b16 %v9547
        %v9772 = vunpack.c.l.b16 %v9561
        %v9773 = vunpack.c.l.b16 %v9571
        %v9774 = vunpack.c.l.b16 %v9585
        %v9775 = vunpack.c.l.b16 %v9595
        %v9776 = vunpack.c.l.b16 %v9609
        %v9777 = vunpack.c.l.b16 %v9619
        %v9778 = vunpack.c.l.b16 %v9633
        %v9779 = vunpack.c.l.b16 %v9643
        %v9780 = vunpack.c.l.b16 %v9657
        %v9781 = vunpack.c.l.b16 %v9667
        %v9782 = vunpack.c.l.b16 %v9681
        %v9783 = vunpack.c.l.b16 %v9691
        %v9784 = vunpack.c.l.b16 %v9705
        %v9785 = vunpack.c.l.b16 %v9715
        %v9786 = vunpack.c.l.b16 %v9729
        %v9787 = vunpack.c.l.b16 %v9739
        %v9788 = vpack.c.b16 %v9757, %v9756
        %v9789 = vpack.c.b16 %v9759, %v9758
        %v9790 = vpack.c.b16 %v9761, %v9760
        %v9791 = vpack.c.b16 %v9763, %v9762
        %v9792 = vpack.c.b16 %v9765, %v9764
        %v9793 = vpack.c.b16 %v9767, %v9766
        %v9794 = vpack.c.b16 %v9769, %v9768
        %v9795 = vpack.c.b16 %v9771, %v9770
        %v9796 = vpack.c.b16 %v9773, %v9772
        %v9797 = vpack.c.b16 %v9775, %v9774
        %v9798 = vpack.c.b16 %v9777, %v9776
        %v9799 = vpack.c.b16 %v9779, %v9778
        %v9800 = vpack.c.b16 %v9781, %v9780
        %v9801 = vpack.c.b16 %v9783, %v9782
        %v9802 = vpack.c.b16 %v9785, %v9784
        %v9803 = vpack.c.b16 %v9787, %v9786
        %v9836 = vunpack.c.l.b16 %v9740
        %v9837 = vunpack.c.l.b16 %v9741
        %v9838 = vunpack.c.l.b16 %v9742
        %v9839 = vunpack.c.l.b16 %v9743
        %v9840 = vunpack.c.l.b16 %v9744
        %v9841 = vunpack.c.l.b16 %v9745
        %v9842 = vunpack.c.l.b16 %v9746
        %v9843 = vunpack.c.l.b16 %v9747
        %v9844 = vunpack.c.l.b16 %v9748
        %v9845 = vunpack.c.l.b16 %v9749
        %v9846 = vunpack.c.l.b16 %v9750
        %v9847 = vunpack.c.l.b16 %v9751
        %v9848 = vunpack.c.l.b16 %v9752
        %v9849 = vunpack.c.l.b16 %v9753
        %v9850 = vunpack.c.l.b16 %v9754
        %v9851 = vunpack.c.l.b16 %v9755
        %v9852 = vpack.c.b16 %v9837, %v9836
        %v9853 = vpack.c.b16 %v9839, %v9838
        %v9854 = vpack.c.b16 %v9841, %v9840
        %v9855 = vpack.c.b16 %v9843, %v9842
        %v9856 = vpack.c.b16 %v9845, %v9844
        %v9857 = vpack.c.b16 %v9847, %v9846
        %v9858 = vpack.c.b16 %v9849, %v9848
        %v9859 = vpack.c.b16 %v9851, %v9850
        %9868 = vmatpush.bf16.msra.mxu0 %v9859
        %9869 = vmatpush.bf16.msra.mxu0 %v9858
        %9870 = vmatpush.bf16.msra.mxu0 %v9857
        %9871 = vmatpush.bf16.msra.mxu0 %v9856
        %9872 = vmatpush.bf16.msra.mxu0 %v9855
        %9873 = vmatpush.bf16.msra.mxu0 %v9854
        %9874 = vmatpush.bf16.msra.mxu0 %v9853
        %9875 = vmatpush.bf16.msra.mxu0 %v9852
        %9876 = vmatmul.bf16.gmra.mxu0 %v9788
        %v9877 = vpop.f32.mrf.mxu0
        %v9878 = vadd.f32 0.0, %v9877
        %v9879 = vpop.f32.mrf.mxu0
        %v9880 = vadd.f32 0.0, %v9879
        %9881 = vmatmul.bf16.gmra.mxu0 %v9789
        %v9882 = vpop.f32.mrf.mxu0
        %v9883 = vadd.f32 0.0, %v9882
        %v9884 = vpop.f32.mrf.mxu0
        %v9885 = vadd.f32 0.0, %v9884
        %9886 = vmatmul.bf16.gmra.mxu0 %v9790
        %v9887 = vpop.f32.mrf.mxu0
        %v9888 = vadd.f32 0.0, %v9887
        %v9889 = vpop.f32.mrf.mxu0
        %v9890 = vadd.f32 0.0, %v9889
        %9891 = vmatmul.bf16.gmra.mxu0 %v9791
        %v9892 = vpop.f32.mrf.mxu0
        %v9893 = vadd.f32 0.0, %v9892
        %v9894 = vpop.f32.mrf.mxu0
        %v9895 = vadd.f32 0.0, %v9894
        %9896 = vmatmul.bf16.gmra.mxu0 %v9792
        %v9897 = vpop.f32.mrf.mxu0
        %v9898 = vadd.f32 0.0, %v9897
        %v9899 = vpop.f32.mrf.mxu0
        %v9900 = vadd.f32 0.0, %v9899
        %9901 = vmatmul.bf16.gmra.mxu0 %v9793
        %v9902 = vpop.f32.mrf.mxu0
        %v9903 = vadd.f32 0.0, %v9902
        %v9904 = vpop.f32.mrf.mxu0
        %v9905 = vadd.f32 0.0, %v9904
        %9906 = vmatmul.bf16.gmra.mxu0 %v9794
        %v9907 = vpop.f32.mrf.mxu0
        %v9908 = vadd.f32 0.0, %v9907
        %v9909 = vpop.f32.mrf.mxu0
        %v9910 = vadd.f32 0.0, %v9909
        %9911 = vmatmul.bf16.gmra.mxu0 %v9795
        %v9912 = vpop.f32.mrf.mxu0
        %v9913 = vadd.f32 0.0, %v9912
        %v9914 = vpop.f32.mrf.mxu0
        %v9915 = vadd.f32 0.0, %v9914
        %9916 = vmatmul.bf16.gmra.mxu0 %v9796
        %v9917 = vpop.f32.mrf.mxu0
        %v9918 = vadd.f32 0.0, %v9917
        %v9919 = vpop.f32.mrf.mxu0
        %v9920 = vadd.f32 0.0, %v9919
        %9921 = vmatmul.bf16.gmra.mxu0 %v9797
        %v9922 = vpop.f32.mrf.mxu0
        %v9923 = vadd.f32 0.0, %v9922
        %v9924 = vpop.f32.mrf.mxu0
        %v9925 = vadd.f32 0.0, %v9924
        %9926 = vmatmul.bf16.gmra.mxu0 %v9798
        %v9927 = vpop.f32.mrf.mxu0
        %v9928 = vadd.f32 0.0, %v9927
        %v9929 = vpop.f32.mrf.mxu0
        %v9930 = vadd.f32 0.0, %v9929
        %9931 = vmatmul.bf16.gmra.mxu0 %v9799
        %v9932 = vpop.f32.mrf.mxu0
        %v9933 = vadd.f32 0.0, %v9932
        %v9934 = vpop.f32.mrf.mxu0
        %v9935 = vadd.f32 0.0, %v9934
        %9936 = vmatmul.bf16.gmra.mxu0 %v9800
        %v9937 = vpop.f32.mrf.mxu0
        %v9938 = vadd.f32 0.0, %v9937
        %v9939 = vpop.f32.mrf.mxu0
        %v9940 = vadd.f32 0.0, %v9939
        %9941 = vmatmul.bf16.gmra.mxu0 %v9801
        %v9942 = vpop.f32.mrf.mxu0
        %v9943 = vadd.f32 0.0, %v9942
        %v9944 = vpop.f32.mrf.mxu0
        %v9945 = vadd.f32 0.0, %v9944
        %9946 = vmatmul.bf16.gmra.mxu0 %v9802
        %v9947 = vpop.f32.mrf.mxu0
        %v9948 = vadd.f32 0.0, %v9947
        %v9949 = vpop.f32.mrf.mxu0
        %v9950 = vadd.f32 0.0, %v9949
        %9951 = vmatmul.bf16.gmra.mxu0 %v9803
        %v9952 = vpop.f32.mrf.mxu0
        %v9953 = vadd.f32 0.0, %v9952
        %v9954 = vpop.f32.mrf.mxu0
        %v9955 = vadd.f32 0.0, %v9954
        %9956 = vdwg.mxu0
        %v9957 = vadd.f32 %v9276, %v9878
        %v9958 = vadd.f32 %v9277, %v9880
        %v9959 = vadd.f32 %v9278, %v9883
        %v9960 = vadd.f32 %v9279, %v9885
        %v9961 = vadd.f32 %v9280, %v9888
        %v9962 = vadd.f32 %v9281, %v9890
        %v9963 = vadd.f32 %v9282, %v9893
        %v9964 = vadd.f32 %v9283, %v9895
        %v9965 = vadd.f32 %v9284, %v9898
        %v9966 = vadd.f32 %v9285, %v9900
        %v9967 = vadd.f32 %v9286, %v9903
        %v9968 = vadd.f32 %v9287, %v9905
        %v9969 = vadd.f32 %v9288, %v9908
        %v9970 = vadd.f32 %v9289, %v9910
        %v9971 = vadd.f32 %v9290, %v9913
        %v9972 = vadd.f32 %v9291, %v9915
        %v9973 = vadd.f32 %v9292, %v9918
        %v9974 = vadd.f32 %v9293, %v9920
        %v9975 = vadd.f32 %v9294, %v9923
        %v9976 = vadd.f32 %v9295, %v9925
        %v9977 = vadd.f32 %v9296, %v9928
        %v9978 = vadd.f32 %v9297, %v9930
        %v9979 = vadd.f32 %v9298, %v9933
        %v9980 = vadd.f32 %v9299, %v9935
        %v9981 = vadd.f32 %v9300, %v9938
        %v9982 = vadd.f32 %v9301, %v9940
        %v9983 = vadd.f32 %v9302, %v9943
        %v9984 = vadd.f32 %v9303, %v9945
        %v9985 = vadd.f32 %v9304, %v9948
        %v9986 = vadd.f32 %v9305, %v9950
        %v9987 = vadd.f32 %v9306, %v9953
        %v9988 = vadd.f32 %v9307, %v9955
        %v9989 = vld [vmem:[%s7463] sm:$0xe]
        %v9990 = vld [vmem:[%s7463 + $0xc] sm:$0xe]
        %v9991 = vld [vmem:[%s7463 + $0x18] sm:$0xe]
        %v9992 = vld [vmem:[%s7463 + $0x24] sm:$0xe]
        %v9993 = vld [vmem:[%s7463 + $0x30] sm:$0xe]
        %v9994 = vld [vmem:[%s7463 + $0x3c] sm:$0xe]
        %v9995 = vld [vmem:[%s7463 + $0x48] sm:$0xe]
        %v9996 = vld [vmem:[%s7463 + $0x54] sm:$0xe]
        %v9997 = vld [vmem:[%s7463 + $0x60] sm:$0xe]
        %v9998 = vld [vmem:[%s7463 + $0x6c] sm:$0xe]
        %v9999 = vld [vmem:[%s7463 + $0x78] sm:$0xe]
        %v10000 = vld [vmem:[%s7463 + $0x84] sm:$0xe]
        %v10001 = vld [vmem:[%s7463 + $0x90] sm:$0xe]
        %v10002 = vld [vmem:[%s7463 + $0x9c] sm:$0xe]
        %v10003 = vld [vmem:[%s7463 + $0xa8] sm:$0xe]
        %v10004 = vld [vmem:[%s7463 + $0xb4] sm:$0xe]
        %v10053 = vrot.slane %v9989, 5
        %v10054 = vrot.slane %v10053, 4
        %v10055 = vrot.slane %v9309, 5
        %v10056 = vsel %vm1724, %v10054, %v10055
        %v10057 = vrot.slane %v10055, 4
        %v10058 = vrot.slane %v9310, 5
        %v10059 = vsel %vm1724, %v10057, %v10058
        %v10060 = vrot.slane %v9990, 5
        %v10061 = vrot.slane %v10060, 4
        %v10062 = vrot.slane %v9312, 5
        %v10063 = vsel %vm1724, %v10061, %v10062
        %v10064 = vrot.slane %v10062, 4
        %v10065 = vrot.slane %v9313, 5
        %v10066 = vsel %vm1724, %v10064, %v10065
        %v10067 = vrot.slane %v9991, 5
        %v10068 = vrot.slane %v10067, 4
        %v10069 = vrot.slane %v9315, 5
        %v10070 = vsel %vm1724, %v10068, %v10069
        %v10071 = vrot.slane %v10069, 4
        %v10072 = vrot.slane %v9316, 5
        %v10073 = vsel %vm1724, %v10071, %v10072
        %v10074 = vrot.slane %v9992, 5
        %v10075 = vrot.slane %v10074, 4
        %v10076 = vrot.slane %v9318, 5
        %v10077 = vsel %vm1724, %v10075, %v10076
        %v10078 = vrot.slane %v10076, 4
        %v10079 = vrot.slane %v9319, 5
        %v10080 = vsel %vm1724, %v10078, %v10079
        %v10081 = vrot.slane %v9993, 5
        %v10082 = vrot.slane %v10081, 4
        %v10083 = vrot.slane %v9321, 5
        %v10084 = vsel %vm1724, %v10082, %v10083
        %v10085 = vrot.slane %v10083, 4
        %v10086 = vrot.slane %v9322, 5
        %v10087 = vsel %vm1724, %v10085, %v10086
        %v10088 = vrot.slane %v9994, 5
        %v10089 = vrot.slane %v10088, 4
        %v10090 = vrot.slane %v9324, 5
        %v10091 = vsel %vm1724, %v10089, %v10090
        %v10092 = vrot.slane %v10090, 4
        %v10093 = vrot.slane %v9325, 5
        %v10094 = vsel %vm1724, %v10092, %v10093
        %v10095 = vrot.slane %v9995, 5
        %v10096 = vrot.slane %v10095, 4
        %v10097 = vrot.slane %v9327, 5
        %v10098 = vsel %vm1724, %v10096, %v10097
        %v10099 = vrot.slane %v10097, 4
        %v10100 = vrot.slane %v9328, 5
        %v10101 = vsel %vm1724, %v10099, %v10100
        %v10102 = vrot.slane %v9996, 5
        %v10103 = vrot.slane %v10102, 4
        %v10104 = vrot.slane %v9330, 5
        %v10105 = vsel %vm1724, %v10103, %v10104
        %v10106 = vrot.slane %v10104, 4
        %v10107 = vrot.slane %v9331, 5
        %v10108 = vsel %vm1724, %v10106, %v10107
        %v10109 = vrot.slane %v9997, 5
        %v10110 = vrot.slane %v10109, 4
        %v10111 = vrot.slane %v9333, 5
        %v10112 = vsel %vm1724, %v10110, %v10111
        %v10113 = vrot.slane %v10111, 4
        %v10114 = vrot.slane %v9334, 5
        %v10115 = vsel %vm1724, %v10113, %v10114
        %v10116 = vrot.slane %v9998, 5
        %v10117 = vrot.slane %v10116, 4
        %v10118 = vrot.slane %v9336, 5
        %v10119 = vsel %vm1724, %v10117, %v10118
        %v10120 = vrot.slane %v10118, 4
        %v10121 = vrot.slane %v9337, 5
        %v10122 = vsel %vm1724, %v10120, %v10121
        %v10123 = vrot.slane %v9999, 5
        %v10124 = vrot.slane %v10123, 4
        %v10125 = vrot.slane %v9339, 5
        %v10126 = vsel %vm1724, %v10124, %v10125
        %v10127 = vrot.slane %v10125, 4
        %v10128 = vrot.slane %v9340, 5
        %v10129 = vsel %vm1724, %v10127, %v10128
        %v10130 = vrot.slane %v10000, 5
        %v10131 = vrot.slane %v10130, 4
        %v10132 = vrot.slane %v9342, 5
        %v10133 = vsel %vm1724, %v10131, %v10132
        %v10134 = vrot.slane %v10132, 4
        %v10135 = vrot.slane %v9343, 5
        %v10136 = vsel %vm1724, %v10134, %v10135
        %v10137 = vrot.slane %v10001, 5
        %v10138 = vrot.slane %v10137, 4
        %v10139 = vrot.slane %v9345, 5
        %v10140 = vsel %vm1724, %v10138, %v10139
        %v10141 = vrot.slane %v10139, 4
        %v10142 = vrot.slane %v9346, 5
        %v10143 = vsel %vm1724, %v10141, %v10142
        %v10144 = vrot.slane %v10002, 5
        %v10145 = vrot.slane %v10144, 4
        %v10146 = vrot.slane %v9348, 5
        %v10147 = vsel %vm1724, %v10145, %v10146
        %v10148 = vrot.slane %v10146, 4
        %v10149 = vrot.slane %v9349, 5
        %v10150 = vsel %vm1724, %v10148, %v10149
        %v10151 = vrot.slane %v10003, 5
        %v10152 = vrot.slane %v10151, 4
        %v10153 = vrot.slane %v9351, 5
        %v10154 = vsel %vm1724, %v10152, %v10153
        %v10155 = vrot.slane %v10153, 4
        %v10156 = vrot.slane %v9352, 5
        %v10157 = vsel %vm1724, %v10155, %v10156
        %v10158 = vrot.slane %v10004, 5
        %v10159 = vrot.slane %v10158, 4
        %v10160 = vrot.slane %v9354, 5
        %v10161 = vsel %vm1724, %v10159, %v10160
        %v10162 = vrot.slane %v10160, 4
        %v10163 = vrot.slane %v9355, 5
        %v10164 = vsel %vm1724, %v10162, %v10163
        %v10165 = vld [vmem:[#allocation10 + $0x140] sm:$0xf]
        %v10166 = vld [vmem:[#allocation10 + $0x144] sm:$0xf]
        %v10167 = vld [vmem:[#allocation10 + $0x148] sm:$0xf]
        %v10168 = vld [vmem:[#allocation10 + $0x14c] sm:$0xf]
        %v10169 = vld [vmem:[#allocation10 + $0x150] sm:$0xf]
        %v10170 = vld [vmem:[#allocation10 + $0x154] sm:$0xf]
        %v10171 = vld [vmem:[#allocation10 + $0x158] sm:$0xf]
        %v10172 = vld [vmem:[#allocation10 + $0x15c] sm:$0xf]
        %v10173 = vld [vmem:[#allocation10 + $0x160] sm:$0xf]
        %v10174 = vld [vmem:[#allocation10 + $0x164] sm:$0xf]
        %v10175 = vld [vmem:[#allocation10 + $0x168] sm:$0xf]
        %v10176 = vld [vmem:[#allocation10 + $0x16c] sm:$0xf]
        %v10177 = vld [vmem:[#allocation10 + $0x170] sm:$0xf]
        %v10178 = vld [vmem:[#allocation10 + $0x174] sm:$0xf]
        %v10179 = vld [vmem:[#allocation10 + $0x178] sm:$0xf]
        %v10180 = vld [vmem:[#allocation10 + $0x17c] sm:$0xf]
        %v10181 = vunpack.c.l.b16 %v10056
        %v10182 = vunpack.c.l.b16 %v10059
        %v10183 = vunpack.c.l.b16 %v10063
        %v10184 = vunpack.c.l.b16 %v10066
        %v10185 = vunpack.c.l.b16 %v10070
        %v10186 = vunpack.c.l.b16 %v10073
        %v10187 = vunpack.c.l.b16 %v10077
        %v10188 = vunpack.c.l.b16 %v10080
        %v10189 = vunpack.c.l.b16 %v10084
        %v10190 = vunpack.c.l.b16 %v10087
        %v10191 = vunpack.c.l.b16 %v10091
        %v10192 = vunpack.c.l.b16 %v10094
        %v10193 = vunpack.c.l.b16 %v10098
        %v10194 = vunpack.c.l.b16 %v10101
        %v10195 = vunpack.c.l.b16 %v10105
        %v10196 = vunpack.c.l.b16 %v10108
        %v10197 = vunpack.c.l.b16 %v10112
        %v10198 = vunpack.c.l.b16 %v10115
        %v10199 = vunpack.c.l.b16 %v10119
        %v10200 = vunpack.c.l.b16 %v10122
        %v10201 = vunpack.c.l.b16 %v10126
        %v10202 = vunpack.c.l.b16 %v10129
        %v10203 = vunpack.c.l.b16 %v10133
        %v10204 = vunpack.c.l.b16 %v10136
        %v10205 = vunpack.c.l.b16 %v10140
        %v10206 = vunpack.c.l.b16 %v10143
        %v10207 = vunpack.c.l.b16 %v10147
        %v10208 = vunpack.c.l.b16 %v10150
        %v10209 = vunpack.c.l.b16 %v10154
        %v10210 = vunpack.c.l.b16 %v10157
        %v10211 = vunpack.c.l.b16 %v10161
        %v10212 = vunpack.c.l.b16 %v10164
        %v10213 = vpack.c.b16 %v10182, %v10181
        %v10214 = vpack.c.b16 %v10184, %v10183
        %v10215 = vpack.c.b16 %v10186, %v10185
        %v10216 = vpack.c.b16 %v10188, %v10187
        %v10217 = vpack.c.b16 %v10190, %v10189
        %v10218 = vpack.c.b16 %v10192, %v10191
        %v10219 = vpack.c.b16 %v10194, %v10193
        %v10220 = vpack.c.b16 %v10196, %v10195
        %v10221 = vpack.c.b16 %v10198, %v10197
        %v10222 = vpack.c.b16 %v10200, %v10199
        %v10223 = vpack.c.b16 %v10202, %v10201
        %v10224 = vpack.c.b16 %v10204, %v10203
        %v10225 = vpack.c.b16 %v10206, %v10205
        %v10226 = vpack.c.b16 %v10208, %v10207
        %v10227 = vpack.c.b16 %v10210, %v10209
        %v10228 = vpack.c.b16 %v10212, %v10211
        %v10261 = vunpack.c.l.b16 %v10165
        %v10262 = vunpack.c.l.b16 %v10166
        %v10263 = vunpack.c.l.b16 %v10167
        %v10264 = vunpack.c.l.b16 %v10168
        %v10265 = vunpack.c.l.b16 %v10169
        %v10266 = vunpack.c.l.b16 %v10170
        %v10267 = vunpack.c.l.b16 %v10171
        %v10268 = vunpack.c.l.b16 %v10172
        %v10269 = vunpack.c.l.b16 %v10173
        %v10270 = vunpack.c.l.b16 %v10174
        %v10271 = vunpack.c.l.b16 %v10175
        %v10272 = vunpack.c.l.b16 %v10176
        %v10273 = vunpack.c.l.b16 %v10177
        %v10274 = vunpack.c.l.b16 %v10178
        %v10275 = vunpack.c.l.b16 %v10179
        %v10276 = vunpack.c.l.b16 %v10180
        %v10277 = vpack.c.b16 %v10262, %v10261
        %v10278 = vpack.c.b16 %v10264, %v10263
        %v10279 = vpack.c.b16 %v10266, %v10265
        %v10280 = vpack.c.b16 %v10268, %v10267
        %v10281 = vpack.c.b16 %v10270, %v10269
        %v10282 = vpack.c.b16 %v10272, %v10271
        %v10283 = vpack.c.b16 %v10274, %v10273
        %v10284 = vpack.c.b16 %v10276, %v10275
        %10293 = vmatpush.bf16.msra.mxu0 %v10284
        %10294 = vmatpush.bf16.msra.mxu0 %v10283
        %10295 = vmatpush.bf16.msra.mxu0 %v10282
        %10296 = vmatpush.bf16.msra.mxu0 %v10281
        %10297 = vmatpush.bf16.msra.mxu0 %v10280
        %10298 = vmatpush.bf16.msra.mxu0 %v10279
        %10299 = vmatpush.bf16.msra.mxu0 %v10278
        %10300 = vmatpush.bf16.msra.mxu0 %v10277
        %10301 = vmatmul.bf16.gmra.mxu0 %v10213
        %v10302 = vpop.f32.mrf.mxu0
        %v10303 = vadd.f32 0.0, %v10302
        %v10304 = vpop.f32.mrf.mxu0
        %v10305 = vadd.f32 0.0, %v10304
        %10306 = vmatmul.bf16.gmra.mxu0 %v10214
        %v10307 = vpop.f32.mrf.mxu0
        %v10308 = vadd.f32 0.0, %v10307
        %v10309 = vpop.f32.mrf.mxu0
        %v10310 = vadd.f32 0.0, %v10309
        %10311 = vmatmul.bf16.gmra.mxu0 %v10215
        %v10312 = vpop.f32.mrf.mxu0
        %v10313 = vadd.f32 0.0, %v10312
        %v10314 = vpop.f32.mrf.mxu0
        %v10315 = vadd.f32 0.0, %v10314
        %10316 = vmatmul.bf16.gmra.mxu0 %v10216
        %v10317 = vpop.f32.mrf.mxu0
        %v10318 = vadd.f32 0.0, %v10317
        %v10319 = vpop.f32.mrf.mxu0
        %v10320 = vadd.f32 0.0, %v10319
        %10321 = vmatmul.bf16.gmra.mxu0 %v10217
        %v10322 = vpop.f32.mrf.mxu0
        %v10323 = vadd.f32 0.0, %v10322
        %v10324 = vpop.f32.mrf.mxu0
        %v10325 = vadd.f32 0.0, %v10324
        %10326 = vmatmul.bf16.gmra.mxu0 %v10218
        %v10327 = vpop.f32.mrf.mxu0
        %v10328 = vadd.f32 0.0, %v10327
        %v10329 = vpop.f32.mrf.mxu0
        %v10330 = vadd.f32 0.0, %v10329
        %10331 = vmatmul.bf16.gmra.mxu0 %v10219
        %v10332 = vpop.f32.mrf.mxu0
        %v10333 = vadd.f32 0.0, %v10332
        %v10334 = vpop.f32.mrf.mxu0
        %v10335 = vadd.f32 0.0, %v10334
        %10336 = vmatmul.bf16.gmra.mxu0 %v10220
        %v10337 = vpop.f32.mrf.mxu0
        %v10338 = vadd.f32 0.0, %v10337
        %v10339 = vpop.f32.mrf.mxu0
        %v10340 = vadd.f32 0.0, %v10339
        %10341 = vmatmul.bf16.gmra.mxu0 %v10221
        %v10342 = vpop.f32.mrf.mxu0
        %v10343 = vadd.f32 0.0, %v10342
        %v10344 = vpop.f32.mrf.mxu0
        %v10345 = vadd.f32 0.0, %v10344
        %10346 = vmatmul.bf16.gmra.mxu0 %v10222
        %v10347 = vpop.f32.mrf.mxu0
        %v10348 = vadd.f32 0.0, %v10347
        %v10349 = vpop.f32.mrf.mxu0
        %v10350 = vadd.f32 0.0, %v10349
        %10351 = vmatmul.bf16.gmra.mxu0 %v10223
        %v10352 = vpop.f32.mrf.mxu0
        %v10353 = vadd.f32 0.0, %v10352
        %v10354 = vpop.f32.mrf.mxu0
        %v10355 = vadd.f32 0.0, %v10354
        %10356 = vmatmul.bf16.gmra.mxu0 %v10224
        %v10357 = vpop.f32.mrf.mxu0
        %v10358 = vadd.f32 0.0, %v10357
        %v10359 = vpop.f32.mrf.mxu0
        %v10360 = vadd.f32 0.0, %v10359
        %10361 = vmatmul.bf16.gmra.mxu0 %v10225
        %v10362 = vpop.f32.mrf.mxu0
        %v10363 = vadd.f32 0.0, %v10362
        %v10364 = vpop.f32.mrf.mxu0
        %v10365 = vadd.f32 0.0, %v10364
        %10366 = vmatmul.bf16.gmra.mxu0 %v10226
        %v10367 = vpop.f32.mrf.mxu0
        %v10368 = vadd.f32 0.0, %v10367
        %v10369 = vpop.f32.mrf.mxu0
        %v10370 = vadd.f32 0.0, %v10369
        %10371 = vmatmul.bf16.gmra.mxu0 %v10227
        %v10372 = vpop.f32.mrf.mxu0
        %v10373 = vadd.f32 0.0, %v10372
        %v10374 = vpop.f32.mrf.mxu0
        %v10375 = vadd.f32 0.0, %v10374
        %10376 = vmatmul.bf16.gmra.mxu0 %v10228
        %v10377 = vpop.f32.mrf.mxu0
        %v10378 = vadd.f32 0.0, %v10377
        %v10379 = vpop.f32.mrf.mxu0
        %v10380 = vadd.f32 0.0, %v10379
        %10381 = vdwg.mxu0
        %v10382 = vadd.f32 %v9957, %v10303
        %v10383 = vadd.f32 %v9958, %v10305
        %v10384 = vadd.f32 %v9959, %v10308
        %v10385 = vadd.f32 %v9960, %v10310
        %v10386 = vadd.f32 %v9961, %v10313
        %v10387 = vadd.f32 %v9962, %v10315
        %v10388 = vadd.f32 %v9963, %v10318
        %v10389 = vadd.f32 %v9964, %v10320
        %v10390 = vadd.f32 %v9965, %v10323
        %v10391 = vadd.f32 %v9966, %v10325
        %v10392 = vadd.f32 %v9967, %v10328
        %v10393 = vadd.f32 %v9968, %v10330
        %v10394 = vadd.f32 %v9969, %v10333
        %v10395 = vadd.f32 %v9970, %v10335
        %v10396 = vadd.f32 %v9971, %v10338
        %v10397 = vadd.f32 %v9972, %v10340
        %v10398 = vadd.f32 %v9973, %v10343
        %v10399 = vadd.f32 %v9974, %v10345
        %v10400 = vadd.f32 %v9975, %v10348
        %v10401 = vadd.f32 %v9976, %v10350
        %v10402 = vadd.f32 %v9977, %v10353
        %v10403 = vadd.f32 %v9978, %v10355
        %v10404 = vadd.f32 %v9979, %v10358
        %v10405 = vadd.f32 %v9980, %v10360
        %v10406 = vadd.f32 %v9981, %v10363
        %v10407 = vadd.f32 %v9982, %v10365
        %v10408 = vadd.f32 %v9983, %v10368
        %v10409 = vadd.f32 %v9984, %v10370
        %v10410 = vadd.f32 %v9985, %v10373
        %v10411 = vadd.f32 %v9986, %v10375
        %v10412 = vadd.f32 %v9987, %v10378
        %v10413 = vadd.f32 %v9988, %v10380
        %s10414 = scalar_lea.vmem [#allocation3], 24
        %v10415 = vld [vmem:[%s10414] sm:$0xf]
        %v10416 = vld [vmem:[%s10414 + $0x4] sm:$0xf]
        %v10417 = vld [vmem:[%s10414 + $0xc] sm:$0xf]
        %v10418 = vld [vmem:[%s10414 + $0x10] sm:$0xf]
        %v10419 = vld [vmem:[%s10414 + $0x18] sm:$0xf]
        %v10420 = vld [vmem:[%s10414 + $0x1c] sm:$0xf]
        %v10421 = vld [vmem:[%s10414 + $0x24] sm:$0xf]
        %v10422 = vld [vmem:[%s10414 + $0x28] sm:$0xf]
        %v10423 = vld [vmem:[%s10414 + $0x30] sm:$0xf]
        %v10424 = vld [vmem:[%s10414 + $0x34] sm:$0xf]
        %v10425 = vld [vmem:[%s10414 + $0x3c] sm:$0xf]
        %v10426 = vld [vmem:[%s10414 + $0x40] sm:$0xf]
        %v10427 = vld [vmem:[%s10414 + $0x48] sm:$0xf]
        %v10428 = vld [vmem:[%s10414 + $0x4c] sm:$0xf]
        %v10429 = vld [vmem:[%s10414 + $0x54] sm:$0xf]
        %v10430 = vld [vmem:[%s10414 + $0x58] sm:$0xf]
        %v10431 = vld [vmem:[%s10414 + $0x60] sm:$0xf]
        %v10432 = vld [vmem:[%s10414 + $0x64] sm:$0xf]
        %v10433 = vld [vmem:[%s10414 + $0x6c] sm:$0xf]
        %v10434 = vld [vmem:[%s10414 + $0x70] sm:$0xf]
        %v10435 = vld [vmem:[%s10414 + $0x78] sm:$0xf]
        %v10436 = vld [vmem:[%s10414 + $0x7c] sm:$0xf]
        %v10437 = vld [vmem:[%s10414 + $0x84] sm:$0xf]
        %v10438 = vld [vmem:[%s10414 + $0x88] sm:$0xf]
        %v10439 = vld [vmem:[%s10414 + $0x90] sm:$0xf]
        %v10440 = vld [vmem:[%s10414 + $0x94] sm:$0xf]
        %v10441 = vld [vmem:[%s10414 + $0x9c] sm:$0xf]
        %v10442 = vld [vmem:[%s10414 + $0xa0] sm:$0xf]
        %v10443 = vld [vmem:[%s10414 + $0xa8] sm:$0xf]
        %v10444 = vld [vmem:[%s10414 + $0xac] sm:$0xf]
        %v10445 = vld [vmem:[%s10414 + $0xb4] sm:$0xf]
        %v10446 = vld [vmem:[%s10414 + $0xb8] sm:$0xf]
        %v10447 = vld [vmem:[#allocation10 + $0x180] sm:$0xf]
        %v10448 = vld [vmem:[#allocation10 + $0x184] sm:$0xf]
        %v10449 = vld [vmem:[#allocation10 + $0x188] sm:$0xf]
        %v10450 = vld [vmem:[#allocation10 + $0x18c] sm:$0xf]
        %v10451 = vld [vmem:[#allocation10 + $0x190] sm:$0xf]
        %v10452 = vld [vmem:[#allocation10 + $0x194] sm:$0xf]
        %v10453 = vld [vmem:[#allocation10 + $0x198] sm:$0xf]
        %v10454 = vld [vmem:[#allocation10 + $0x19c] sm:$0xf]
        %v10455 = vld [vmem:[#allocation10 + $0x1a0] sm:$0xf]
        %v10456 = vld [vmem:[#allocation10 + $0x1a4] sm:$0xf]
        %v10457 = vld [vmem:[#allocation10 + $0x1a8] sm:$0xf]
        %v10458 = vld [vmem:[#allocation10 + $0x1ac] sm:$0xf]
        %v10459 = vld [vmem:[#allocation10 + $0x1b0] sm:$0xf]
        %v10460 = vld [vmem:[#allocation10 + $0x1b4] sm:$0xf]
        %v10461 = vld [vmem:[#allocation10 + $0x1b8] sm:$0xf]
        %v10462 = vld [vmem:[#allocation10 + $0x1bc] sm:$0xf]
        %v10495 = vunpack.c.l.b16 %v10415
        %v10496 = vunpack.c.l.b16 %v10416
        %v10497 = vunpack.c.l.b16 %v10417
        %v10498 = vunpack.c.l.b16 %v10418
        %v10499 = vunpack.c.l.b16 %v10419
        %v10500 = vunpack.c.l.b16 %v10420
        %v10501 = vunpack.c.l.b16 %v10421
        %v10502 = vunpack.c.l.b16 %v10422
        %v10503 = vunpack.c.l.b16 %v10423
        %v10504 = vunpack.c.l.b16 %v10424
        %v10505 = vunpack.c.l.b16 %v10425
        %v10506 = vunpack.c.l.b16 %v10426
        %v10507 = vunpack.c.l.b16 %v10427
        %v10508 = vunpack.c.l.b16 %v10428
        %v10509 = vunpack.c.l.b16 %v10429
        %v10510 = vunpack.c.l.b16 %v10430
        %v10511 = vunpack.c.l.b16 %v10431
        %v10512 = vunpack.c.l.b16 %v10432
        %v10513 = vunpack.c.l.b16 %v10433
        %v10514 = vunpack.c.l.b16 %v10434
        %v10515 = vunpack.c.l.b16 %v10435
        %v10516 = vunpack.c.l.b16 %v10436
        %v10517 = vunpack.c.l.b16 %v10437
        %v10518 = vunpack.c.l.b16 %v10438
        %v10519 = vunpack.c.l.b16 %v10439
        %v10520 = vunpack.c.l.b16 %v10440
        %v10521 = vunpack.c.l.b16 %v10441
        %v10522 = vunpack.c.l.b16 %v10442
        %v10523 = vunpack.c.l.b16 %v10443
        %v10524 = vunpack.c.l.b16 %v10444
        %v10525 = vunpack.c.l.b16 %v10445
        %v10526 = vunpack.c.l.b16 %v10446
        %v10527 = vpack.c.b16 %v10496, %v10495
        %v10528 = vpack.c.b16 %v10498, %v10497
        %v10529 = vpack.c.b16 %v10500, %v10499
        %v10530 = vpack.c.b16 %v10502, %v10501
        %v10531 = vpack.c.b16 %v10504, %v10503
        %v10532 = vpack.c.b16 %v10506, %v10505
        %v10533 = vpack.c.b16 %v10508, %v10507
        %v10534 = vpack.c.b16 %v10510, %v10509
        %v10535 = vpack.c.b16 %v10512, %v10511
        %v10536 = vpack.c.b16 %v10514, %v10513
        %v10537 = vpack.c.b16 %v10516, %v10515
        %v10538 = vpack.c.b16 %v10518, %v10517
        %v10539 = vpack.c.b16 %v10520, %v10519
        %v10540 = vpack.c.b16 %v10522, %v10521
        %v10541 = vpack.c.b16 %v10524, %v10523
        %v10542 = vpack.c.b16 %v10526, %v10525
        %v10575 = vunpack.c.l.b16 %v10447
        %v10576 = vunpack.c.l.b16 %v10448
        %v10577 = vunpack.c.l.b16 %v10449
        %v10578 = vunpack.c.l.b16 %v10450
        %v10579 = vunpack.c.l.b16 %v10451
        %v10580 = vunpack.c.l.b16 %v10452
        %v10581 = vunpack.c.l.b16 %v10453
        %v10582 = vunpack.c.l.b16 %v10454
        %v10583 = vunpack.c.l.b16 %v10455
        %v10584 = vunpack.c.l.b16 %v10456
        %v10585 = vunpack.c.l.b16 %v10457
        %v10586 = vunpack.c.l.b16 %v10458
        %v10587 = vunpack.c.l.b16 %v10459
        %v10588 = vunpack.c.l.b16 %v10460
        %v10589 = vunpack.c.l.b16 %v10461
        %v10590 = vunpack.c.l.b16 %v10462
        %v10591 = vpack.c.b16 %v10576, %v10575
        %v10592 = vpack.c.b16 %v10578, %v10577
        %v10593 = vpack.c.b16 %v10580, %v10579
        %v10594 = vpack.c.b16 %v10582, %v10581
        %v10595 = vpack.c.b16 %v10584, %v10583
        %v10596 = vpack.c.b16 %v10586, %v10585
        %v10597 = vpack.c.b16 %v10588, %v10587
        %v10598 = vpack.c.b16 %v10590, %v10589
        %10607 = vmatpush.bf16.msra.mxu0 %v10598
        %10608 = vmatpush.bf16.msra.mxu0 %v10597
        %10609 = vmatpush.bf16.msra.mxu0 %v10596
        %10610 = vmatpush.bf16.msra.mxu0 %v10595
        %10611 = vmatpush.bf16.msra.mxu0 %v10594
        %10612 = vmatpush.bf16.msra.mxu0 %v10593
        %10613 = vmatpush.bf16.msra.mxu0 %v10592
        %10614 = vmatpush.bf16.msra.mxu0 %v10591
        %10615 = vmatmul.bf16.gmra.mxu0 %v10527
        %v10616 = vpop.f32.mrf.mxu0
        %v10617 = vadd.f32 0.0, %v10616
        %v10618 = vpop.f32.mrf.mxu0
        %v10619 = vadd.f32 0.0, %v10618
        %10620 = vmatmul.bf16.gmra.mxu0 %v10528
        %v10621 = vpop.f32.mrf.mxu0
        %v10622 = vadd.f32 0.0, %v10621
        %v10623 = vpop.f32.mrf.mxu0
        %v10624 = vadd.f32 0.0, %v10623
        %10625 = vmatmul.bf16.gmra.mxu0 %v10529
        %v10626 = vpop.f32.mrf.mxu0
        %v10627 = vadd.f32 0.0, %v10626
        %v10628 = vpop.f32.mrf.mxu0
        %v10629 = vadd.f32 0.0, %v10628
        %10630 = vmatmul.bf16.gmra.mxu0 %v10530
        %v10631 = vpop.f32.mrf.mxu0
        %v10632 = vadd.f32 0.0, %v10631
        %v10633 = vpop.f32.mrf.mxu0
        %v10634 = vadd.f32 0.0, %v10633
        %10635 = vmatmul.bf16.gmra.mxu0 %v10531
        %v10636 = vpop.f32.mrf.mxu0
        %v10637 = vadd.f32 0.0, %v10636
        %v10638 = vpop.f32.mrf.mxu0
        %v10639 = vadd.f32 0.0, %v10638
        %10640 = vmatmul.bf16.gmra.mxu0 %v10532
        %v10641 = vpop.f32.mrf.mxu0
        %v10642 = vadd.f32 0.0, %v10641
        %v10643 = vpop.f32.mrf.mxu0
        %v10644 = vadd.f32 0.0, %v10643
        %10645 = vmatmul.bf16.gmra.mxu0 %v10533
        %v10646 = vpop.f32.mrf.mxu0
        %v10647 = vadd.f32 0.0, %v10646
        %v10648 = vpop.f32.mrf.mxu0
        %v10649 = vadd.f32 0.0, %v10648
        %10650 = vmatmul.bf16.gmra.mxu0 %v10534
        %v10651 = vpop.f32.mrf.mxu0
        %v10652 = vadd.f32 0.0, %v10651
        %v10653 = vpop.f32.mrf.mxu0
        %v10654 = vadd.f32 0.0, %v10653
        %10655 = vmatmul.bf16.gmra.mxu0 %v10535
        %v10656 = vpop.f32.mrf.mxu0
        %v10657 = vadd.f32 0.0, %v10656
        %v10658 = vpop.f32.mrf.mxu0
        %v10659 = vadd.f32 0.0, %v10658
        %10660 = vmatmul.bf16.gmra.mxu0 %v10536
        %v10661 = vpop.f32.mrf.mxu0
        %v10662 = vadd.f32 0.0, %v10661
        %v10663 = vpop.f32.mrf.mxu0
        %v10664 = vadd.f32 0.0, %v10663
        %10665 = vmatmul.bf16.gmra.mxu0 %v10537
        %v10666 = vpop.f32.mrf.mxu0
        %v10667 = vadd.f32 0.0, %v10666
        %v10668 = vpop.f32.mrf.mxu0
        %v10669 = vadd.f32 0.0, %v10668
        %10670 = vmatmul.bf16.gmra.mxu0 %v10538
        %v10671 = vpop.f32.mrf.mxu0
        %v10672 = vadd.f32 0.0, %v10671
        %v10673 = vpop.f32.mrf.mxu0
        %v10674 = vadd.f32 0.0, %v10673
        %10675 = vmatmul.bf16.gmra.mxu0 %v10539
        %v10676 = vpop.f32.mrf.mxu0
        %v10677 = vadd.f32 0.0, %v10676
        %v10678 = vpop.f32.mrf.mxu0
        %v10679 = vadd.f32 0.0, %v10678
        %10680 = vmatmul.bf16.gmra.mxu0 %v10540
        %v10681 = vpop.f32.mrf.mxu0
        %v10682 = vadd.f32 0.0, %v10681
        %v10683 = vpop.f32.mrf.mxu0
        %v10684 = vadd.f32 0.0, %v10683
        %10685 = vmatmul.bf16.gmra.mxu0 %v10541
        %v10686 = vpop.f32.mrf.mxu0
        %v10687 = vadd.f32 0.0, %v10686
        %v10688 = vpop.f32.mrf.mxu0
        %v10689 = vadd.f32 0.0, %v10688
        %10690 = vmatmul.bf16.gmra.mxu0 %v10542
        %v10691 = vpop.f32.mrf.mxu0
        %v10692 = vadd.f32 0.0, %v10691
        %v10693 = vpop.f32.mrf.mxu0
        %v10694 = vadd.f32 0.0, %v10693
        %10695 = vdwg.mxu0
        %v10696 = vadd.f32 %v10382, %v10617
        %v10697 = vadd.f32 %v10383, %v10619
        %v10698 = vadd.f32 %v10384, %v10622
        %v10699 = vadd.f32 %v10385, %v10624
        %v10700 = vadd.f32 %v10386, %v10627
        %v10701 = vadd.f32 %v10387, %v10629
        %v10702 = vadd.f32 %v10388, %v10632
        %v10703 = vadd.f32 %v10389, %v10634
        %v10704 = vadd.f32 %v10390, %v10637
        %v10705 = vadd.f32 %v10391, %v10639
        %v10706 = vadd.f32 %v10392, %v10642
        %v10707 = vadd.f32 %v10393, %v10644
        %v10708 = vadd.f32 %v10394, %v10647
        %v10709 = vadd.f32 %v10395, %v10649
        %v10710 = vadd.f32 %v10396, %v10652
        %v10711 = vadd.f32 %v10397, %v10654
        %v10712 = vadd.f32 %v10398, %v10657
        %v10713 = vadd.f32 %v10399, %v10659
        %v10714 = vadd.f32 %v10400, %v10662
        %v10715 = vadd.f32 %v10401, %v10664
        %v10716 = vadd.f32 %v10402, %v10667
        %v10717 = vadd.f32 %v10403, %v10669
        %v10718 = vadd.f32 %v10404, %v10672
        %v10719 = vadd.f32 %v10405, %v10674
        %v10720 = vadd.f32 %v10406, %v10677
        %v10721 = vadd.f32 %v10407, %v10679
        %v10722 = vadd.f32 %v10408, %v10682
        %v10723 = vadd.f32 %v10409, %v10684
        %v10724 = vadd.f32 %v10410, %v10687
        %v10725 = vadd.f32 %v10411, %v10689
        %v10726 = vadd.f32 %v10412, %v10692
        %v10727 = vadd.f32 %v10413, %v10694
        %v10728 = vld [vmem:[%s10414] sm:$0xf]
        %v10729 = vld [vmem:[%s10414 + $0x4] sm:$0xf]
        %v10730 = vld [vmem:[%s10414 + $0x8] sm:$0x1]
        %v10731 = vld [vmem:[%s10414 + $0xc] sm:$0xf]
        %v10732 = vld [vmem:[%s10414 + $0x10] sm:$0xf]
        %v10733 = vld [vmem:[%s10414 + $0x14] sm:$0x1]
        %v10734 = vld [vmem:[%s10414 + $0x18] sm:$0xf]
        %v10735 = vld [vmem:[%s10414 + $0x1c] sm:$0xf]
        %v10736 = vld [vmem:[%s10414 + $0x20] sm:$0x1]
        %v10737 = vld [vmem:[%s10414 + $0x24] sm:$0xf]
        %v10738 = vld [vmem:[%s10414 + $0x28] sm:$0xf]
        %v10739 = vld [vmem:[%s10414 + $0x2c] sm:$0x1]
        %v10740 = vld [vmem:[%s10414 + $0x30] sm:$0xf]
        %v10741 = vld [vmem:[%s10414 + $0x34] sm:$0xf]
        %v10742 = vld [vmem:[%s10414 + $0x38] sm:$0x1]
        %v10743 = vld [vmem:[%s10414 + $0x3c] sm:$0xf]
        %v10744 = vld [vmem:[%s10414 + $0x40] sm:$0xf]
        %v10745 = vld [vmem:[%s10414 + $0x44] sm:$0x1]
        %v10746 = vld [vmem:[%s10414 + $0x48] sm:$0xf]
        %v10747 = vld [vmem:[%s10414 + $0x4c] sm:$0xf]
        %v10748 = vld [vmem:[%s10414 + $0x50] sm:$0x1]
        %v10749 = vld [vmem:[%s10414 + $0x54] sm:$0xf]
        %v10750 = vld [vmem:[%s10414 + $0x58] sm:$0xf]
        %v10751 = vld [vmem:[%s10414 + $0x5c] sm:$0x1]
        %v10752 = vld [vmem:[%s10414 + $0x60] sm:$0xf]
        %v10753 = vld [vmem:[%s10414 + $0x64] sm:$0xf]
        %v10754 = vld [vmem:[%s10414 + $0x68] sm:$0x1]
        %v10755 = vld [vmem:[%s10414 + $0x6c] sm:$0xf]
        %v10756 = vld [vmem:[%s10414 + $0x70] sm:$0xf]
        %v10757 = vld [vmem:[%s10414 + $0x74] sm:$0x1]
        %v10758 = vld [vmem:[%s10414 + $0x78] sm:$0xf]
        %v10759 = vld [vmem:[%s10414 + $0x7c] sm:$0xf]
        %v10760 = vld [vmem:[%s10414 + $0x80] sm:$0x1]
        %v10761 = vld [vmem:[%s10414 + $0x84] sm:$0xf]
        %v10762 = vld [vmem:[%s10414 + $0x88] sm:$0xf]
        %v10763 = vld [vmem:[%s10414 + $0x8c] sm:$0x1]
        %v10764 = vld [vmem:[%s10414 + $0x90] sm:$0xf]
        %v10765 = vld [vmem:[%s10414 + $0x94] sm:$0xf]
        %v10766 = vld [vmem:[%s10414 + $0x98] sm:$0x1]
        %v10767 = vld [vmem:[%s10414 + $0x9c] sm:$0xf]
        %v10768 = vld [vmem:[%s10414 + $0xa0] sm:$0xf]
        %v10769 = vld [vmem:[%s10414 + $0xa4] sm:$0x1]
        %v10770 = vld [vmem:[%s10414 + $0xa8] sm:$0xf]
        %v10771 = vld [vmem:[%s10414 + $0xac] sm:$0xf]
        %v10772 = vld [vmem:[%s10414 + $0xb0] sm:$0x1]
        %v10773 = vld [vmem:[%s10414 + $0xb4] sm:$0xf]
        %v10774 = vld [vmem:[%s10414 + $0xb8] sm:$0xf]
        %v10775 = vld [vmem:[%s10414 + $0xbc] sm:$0x1]
        %v10777 = vshrl.u32 %v10728, 16
        %v10779 = vrot.slane %v10777, 4
        %v10780 = vshll.u32 %v10728, 16
        %v10782 = vrot.slane %v10780, 5
        %v10783 = vor.u32 %v10779, %v10782
        %v10784 = vrot.slane %v10783, 4
        %v10786 = vshll.u32 %v10729, 16
        %v10788 = vrot.slane %v10786, 5
        %v10789 = vsel %vm1177, %v10784, %v10788
        %v10790 = vshrl.u32 %v10729, 16
        %v10792 = vrot.slane %v10790, 4
        %v10793 = vor.u32 %v10792, %v10788
        %v10794 = vrot.slane %v10793, 4
        %v10796 = vshll.u32 %v10730, 16
        %v10798 = vrot.slane %v10796, 5
        %v10799 = vsel %vm1177, %v10794, %v10798
        %v10801 = vshrl.u32 %v10731, 16
        %v10803 = vrot.slane %v10801, 4
        %v10804 = vshll.u32 %v10731, 16
        %v10806 = vrot.slane %v10804, 5
        %v10807 = vor.u32 %v10803, %v10806
        %v10808 = vrot.slane %v10807, 4
        %v10810 = vshll.u32 %v10732, 16
        %v10812 = vrot.slane %v10810, 5
        %v10813 = vsel %vm1177, %v10808, %v10812
        %v10814 = vshrl.u32 %v10732, 16
        %v10816 = vrot.slane %v10814, 4
        %v10817 = vor.u32 %v10816, %v10812
        %v10818 = vrot.slane %v10817, 4
        %v10820 = vshll.u32 %v10733, 16
        %v10822 = vrot.slane %v10820, 5
        %v10823 = vsel %vm1177, %v10818, %v10822
        %v10825 = vshrl.u32 %v10734, 16
        %v10827 = vrot.slane %v10825, 4
        %v10828 = vshll.u32 %v10734, 16
        %v10830 = vrot.slane %v10828, 5
        %v10831 = vor.u32 %v10827, %v10830
        %v10832 = vrot.slane %v10831, 4
        %v10834 = vshll.u32 %v10735, 16
        %v10836 = vrot.slane %v10834, 5
        %v10837 = vsel %vm1177, %v10832, %v10836
        %v10838 = vshrl.u32 %v10735, 16
        %v10840 = vrot.slane %v10838, 4
        %v10841 = vor.u32 %v10840, %v10836
        %v10842 = vrot.slane %v10841, 4
        %v10844 = vshll.u32 %v10736, 16
        %v10846 = vrot.slane %v10844, 5
        %v10847 = vsel %vm1177, %v10842, %v10846
        %v10849 = vshrl.u32 %v10737, 16
        %v10851 = vrot.slane %v10849, 4
        %v10852 = vshll.u32 %v10737, 16
        %v10854 = vrot.slane %v10852, 5
        %v10855 = vor.u32 %v10851, %v10854
        %v10856 = vrot.slane %v10855, 4
        %v10858 = vshll.u32 %v10738, 16
        %v10860 = vrot.slane %v10858, 5
        %v10861 = vsel %vm1177, %v10856, %v10860
        %v10862 = vshrl.u32 %v10738, 16
        %v10864 = vrot.slane %v10862, 4
        %v10865 = vor.u32 %v10864, %v10860
        %v10866 = vrot.slane %v10865, 4
        %v10868 = vshll.u32 %v10739, 16
        %v10870 = vrot.slane %v10868, 5
        %v10871 = vsel %vm1177, %v10866, %v10870
        %v10873 = vshrl.u32 %v10740, 16
        %v10875 = vrot.slane %v10873, 4
        %v10876 = vshll.u32 %v10740, 16
        %v10878 = vrot.slane %v10876, 5
        %v10879 = vor.u32 %v10875, %v10878
        %v10880 = vrot.slane %v10879, 4
        %v10882 = vshll.u32 %v10741, 16
        %v10884 = vrot.slane %v10882, 5
        %v10885 = vsel %vm1177, %v10880, %v10884
        %v10886 = vshrl.u32 %v10741, 16
        %v10888 = vrot.slane %v10886, 4
        %v10889 = vor.u32 %v10888, %v10884
        %v10890 = vrot.slane %v10889, 4
        %v10892 = vshll.u32 %v10742, 16
        %v10894 = vrot.slane %v10892, 5
        %v10895 = vsel %vm1177, %v10890, %v10894
        %v10897 = vshrl.u32 %v10743, 16
        %v10899 = vrot.slane %v10897, 4
        %v10900 = vshll.u32 %v10743, 16
        %v10902 = vrot.slane %v10900, 5
        %v10903 = vor.u32 %v10899, %v10902
        %v10904 = vrot.slane %v10903, 4
        %v10906 = vshll.u32 %v10744, 16
        %v10908 = vrot.slane %v10906, 5
        %v10909 = vsel %vm1177, %v10904, %v10908
        %v10910 = vshrl.u32 %v10744, 16
        %v10912 = vrot.slane %v10910, 4
        %v10913 = vor.u32 %v10912, %v10908
        %v10914 = vrot.slane %v10913, 4
        %v10916 = vshll.u32 %v10745, 16
        %v10918 = vrot.slane %v10916, 5
        %v10919 = vsel %vm1177, %v10914, %v10918
        %v10921 = vshrl.u32 %v10746, 16
        %v10923 = vrot.slane %v10921, 4
        %v10924 = vshll.u32 %v10746, 16
        %v10926 = vrot.slane %v10924, 5
        %v10927 = vor.u32 %v10923, %v10926
        %v10928 = vrot.slane %v10927, 4
        %v10930 = vshll.u32 %v10747, 16
        %v10932 = vrot.slane %v10930, 5
        %v10933 = vsel %vm1177, %v10928, %v10932
        %v10934 = vshrl.u32 %v10747, 16
        %v10936 = vrot.slane %v10934, 4
        %v10937 = vor.u32 %v10936, %v10932
        %v10938 = vrot.slane %v10937, 4
        %v10940 = vshll.u32 %v10748, 16
        %v10942 = vrot.slane %v10940, 5
        %v10943 = vsel %vm1177, %v10938, %v10942
        %v10945 = vshrl.u32 %v10749, 16
        %v10947 = vrot.slane %v10945, 4
        %v10948 = vshll.u32 %v10749, 16
        %v10950 = vrot.slane %v10948, 5
        %v10951 = vor.u32 %v10947, %v10950
        %v10952 = vrot.slane %v10951, 4
        %v10954 = vshll.u32 %v10750, 16
        %v10956 = vrot.slane %v10954, 5
        %v10957 = vsel %vm1177, %v10952, %v10956
        %v10958 = vshrl.u32 %v10750, 16
        %v10960 = vrot.slane %v10958, 4
        %v10961 = vor.u32 %v10960, %v10956
        %v10962 = vrot.slane %v10961, 4
        %v10964 = vshll.u32 %v10751, 16
        %v10966 = vrot.slane %v10964, 5
        %v10967 = vsel %vm1177, %v10962, %v10966
        %v10969 = vshrl.u32 %v10752, 16
        %v10971 = vrot.slane %v10969, 4
        %v10972 = vshll.u32 %v10752, 16
        %v10974 = vrot.slane %v10972, 5
        %v10975 = vor.u32 %v10971, %v10974
        %v10976 = vrot.slane %v10975, 4
        %v10978 = vshll.u32 %v10753, 16
        %v10980 = vrot.slane %v10978, 5
        %v10981 = vsel %vm1177, %v10976, %v10980
        %v10982 = vshrl.u32 %v10753, 16
        %v10984 = vrot.slane %v10982, 4
        %v10985 = vor.u32 %v10984, %v10980
        %v10986 = vrot.slane %v10985, 4
        %v10988 = vshll.u32 %v10754, 16
        %v10990 = vrot.slane %v10988, 5
        %v10991 = vsel %vm1177, %v10986, %v10990
        %v10993 = vshrl.u32 %v10755, 16
        %v10995 = vrot.slane %v10993, 4
        %v10996 = vshll.u32 %v10755, 16
        %v10998 = vrot.slane %v10996, 5
        %v10999 = vor.u32 %v10995, %v10998
        %v11000 = vrot.slane %v10999, 4
        %v11002 = vshll.u32 %v10756, 16
        %v11004 = vrot.slane %v11002, 5
        %v11005 = vsel %vm1177, %v11000, %v11004
        %v11006 = vshrl.u32 %v10756, 16
        %v11008 = vrot.slane %v11006, 4
        %v11009 = vor.u32 %v11008, %v11004
        %v11010 = vrot.slane %v11009, 4
        %v11012 = vshll.u32 %v10757, 16
        %v11014 = vrot.slane %v11012, 5
        %v11015 = vsel %vm1177, %v11010, %v11014
        %v11017 = vshrl.u32 %v10758, 16
        %v11019 = vrot.slane %v11017, 4
        %v11020 = vshll.u32 %v10758, 16
        %v11022 = vrot.slane %v11020, 5
        %v11023 = vor.u32 %v11019, %v11022
        %v11024 = vrot.slane %v11023, 4
        %v11026 = vshll.u32 %v10759, 16
        %v11028 = vrot.slane %v11026, 5
        %v11029 = vsel %vm1177, %v11024, %v11028
        %v11030 = vshrl.u32 %v10759, 16
        %v11032 = vrot.slane %v11030, 4
        %v11033 = vor.u32 %v11032, %v11028
        %v11034 = vrot.slane %v11033, 4
        %v11036 = vshll.u32 %v10760, 16
        %v11038 = vrot.slane %v11036, 5
        %v11039 = vsel %vm1177, %v11034, %v11038
        %v11041 = vshrl.u32 %v10761, 16
        %v11043 = vrot.slane %v11041, 4
        %v11044 = vshll.u32 %v10761, 16
        %v11046 = vrot.slane %v11044, 5
        %v11047 = vor.u32 %v11043, %v11046
        %v11048 = vrot.slane %v11047, 4
        %v11050 = vshll.u32 %v10762, 16
        %v11052 = vrot.slane %v11050, 5
        %v11053 = vsel %vm1177, %v11048, %v11052
        %v11054 = vshrl.u32 %v10762, 16
        %v11056 = vrot.slane %v11054, 4
        %v11057 = vor.u32 %v11056, %v11052
        %v11058 = vrot.slane %v11057, 4
        %v11060 = vshll.u32 %v10763, 16
        %v11062 = vrot.slane %v11060, 5
        %v11063 = vsel %vm1177, %v11058, %v11062
        %v11065 = vshrl.u32 %v10764, 16
        %v11067 = vrot.slane %v11065, 4
        %v11068 = vshll.u32 %v10764, 16
        %v11070 = vrot.slane %v11068, 5
        %v11071 = vor.u32 %v11067, %v11070
        %v11072 = vrot.slane %v11071, 4
        %v11074 = vshll.u32 %v10765, 16
        %v11076 = vrot.slane %v11074, 5
        %v11077 = vsel %vm1177, %v11072, %v11076
        %v11078 = vshrl.u32 %v10765, 16
        %v11080 = vrot.slane %v11078, 4
        %v11081 = vor.u32 %v11080, %v11076
        %v11082 = vrot.slane %v11081, 4
        %v11084 = vshll.u32 %v10766, 16
        %v11086 = vrot.slane %v11084, 5
        %v11087 = vsel %vm1177, %v11082, %v11086
        %v11089 = vshrl.u32 %v10767, 16
        %v11091 = vrot.slane %v11089, 4
        %v11092 = vshll.u32 %v10767, 16
        %v11094 = vrot.slane %v11092, 5
        %v11095 = vor.u32 %v11091, %v11094
        %v11096 = vrot.slane %v11095, 4
        %v11098 = vshll.u32 %v10768, 16
        %v11100 = vrot.slane %v11098, 5
        %v11101 = vsel %vm1177, %v11096, %v11100
        %v11102 = vshrl.u32 %v10768, 16
        %v11104 = vrot.slane %v11102, 4
        %v11105 = vor.u32 %v11104, %v11100
        %v11106 = vrot.slane %v11105, 4
        %v11108 = vshll.u32 %v10769, 16
        %v11110 = vrot.slane %v11108, 5
        %v11111 = vsel %vm1177, %v11106, %v11110
        %v11113 = vshrl.u32 %v10770, 16
        %v11115 = vrot.slane %v11113, 4
        %v11116 = vshll.u32 %v10770, 16
        %v11118 = vrot.slane %v11116, 5
        %v11119 = vor.u32 %v11115, %v11118
        %v11120 = vrot.slane %v11119, 4
        %v11122 = vshll.u32 %v10771, 16
        %v11124 = vrot.slane %v11122, 5
        %v11125 = vsel %vm1177, %v11120, %v11124
        %v11126 = vshrl.u32 %v10771, 16
        %v11128 = vrot.slane %v11126, 4
        %v11129 = vor.u32 %v11128, %v11124
        %v11130 = vrot.slane %v11129, 4
        %v11132 = vshll.u32 %v10772, 16
        %v11134 = vrot.slane %v11132, 5
        %v11135 = vsel %vm1177, %v11130, %v11134
        %v11137 = vshrl.u32 %v10773, 16
        %v11139 = vrot.slane %v11137, 4
        %v11140 = vshll.u32 %v10773, 16
        %v11142 = vrot.slane %v11140, 5
        %v11143 = vor.u32 %v11139, %v11142
        %v11144 = vrot.slane %v11143, 4
        %v11146 = vshll.u32 %v10774, 16
        %v11148 = vrot.slane %v11146, 5
        %v11149 = vsel %vm1177, %v11144, %v11148
        %v11150 = vshrl.u32 %v10774, 16
        %v11152 = vrot.slane %v11150, 4
        %v11153 = vor.u32 %v11152, %v11148
        %v11154 = vrot.slane %v11153, 4
        %v11156 = vshll.u32 %v10775, 16
        %v11158 = vrot.slane %v11156, 5
        %v11159 = vsel %vm1177, %v11154, %v11158
        %v11160 = vld [vmem:[#allocation10 + $0x1c0] sm:$0xf]
        %v11161 = vld [vmem:[#allocation10 + $0x1c4] sm:$0xf]
        %v11162 = vld [vmem:[#allocation10 + $0x1c8] sm:$0xf]
        %v11163 = vld [vmem:[#allocation10 + $0x1cc] sm:$0xf]
        %v11164 = vld [vmem:[#allocation10 + $0x1d0] sm:$0xf]
        %v11165 = vld [vmem:[#allocation10 + $0x1d4] sm:$0xf]
        %v11166 = vld [vmem:[#allocation10 + $0x1d8] sm:$0xf]
        %v11167 = vld [vmem:[#allocation10 + $0x1dc] sm:$0xf]
        %v11168 = vld [vmem:[#allocation10 + $0x1e0] sm:$0xf]
        %v11169 = vld [vmem:[#allocation10 + $0x1e4] sm:$0xf]
        %v11170 = vld [vmem:[#allocation10 + $0x1e8] sm:$0xf]
        %v11171 = vld [vmem:[#allocation10 + $0x1ec] sm:$0xf]
        %v11172 = vld [vmem:[#allocation10 + $0x1f0] sm:$0xf]
        %v11173 = vld [vmem:[#allocation10 + $0x1f4] sm:$0xf]
        %v11174 = vld [vmem:[#allocation10 + $0x1f8] sm:$0xf]
        %v11175 = vld [vmem:[#allocation10 + $0x1fc] sm:$0xf]
        %v11176 = vunpack.c.l.b16 %v10789
        %v11177 = vunpack.c.l.b16 %v10799
        %v11178 = vunpack.c.l.b16 %v10813
        %v11179 = vunpack.c.l.b16 %v10823
        %v11180 = vunpack.c.l.b16 %v10837
        %v11181 = vunpack.c.l.b16 %v10847
        %v11182 = vunpack.c.l.b16 %v10861
        %v11183 = vunpack.c.l.b16 %v10871
        %v11184 = vunpack.c.l.b16 %v10885
        %v11185 = vunpack.c.l.b16 %v10895
        %v11186 = vunpack.c.l.b16 %v10909
        %v11187 = vunpack.c.l.b16 %v10919
        %v11188 = vunpack.c.l.b16 %v10933
        %v11189 = vunpack.c.l.b16 %v10943
        %v11190 = vunpack.c.l.b16 %v10957
        %v11191 = vunpack.c.l.b16 %v10967
        %v11192 = vunpack.c.l.b16 %v10981
        %v11193 = vunpack.c.l.b16 %v10991
        %v11194 = vunpack.c.l.b16 %v11005
        %v11195 = vunpack.c.l.b16 %v11015
        %v11196 = vunpack.c.l.b16 %v11029
        %v11197 = vunpack.c.l.b16 %v11039
        %v11198 = vunpack.c.l.b16 %v11053
        %v11199 = vunpack.c.l.b16 %v11063
        %v11200 = vunpack.c.l.b16 %v11077
        %v11201 = vunpack.c.l.b16 %v11087
        %v11202 = vunpack.c.l.b16 %v11101
        %v11203 = vunpack.c.l.b16 %v11111
        %v11204 = vunpack.c.l.b16 %v11125
        %v11205 = vunpack.c.l.b16 %v11135
        %v11206 = vunpack.c.l.b16 %v11149
        %v11207 = vunpack.c.l.b16 %v11159
        %v11208 = vpack.c.b16 %v11177, %v11176
        %v11209 = vpack.c.b16 %v11179, %v11178
        %v11210 = vpack.c.b16 %v11181, %v11180
        %v11211 = vpack.c.b16 %v11183, %v11182
        %v11212 = vpack.c.b16 %v11185, %v11184
        %v11213 = vpack.c.b16 %v11187, %v11186
        %v11214 = vpack.c.b16 %v11189, %v11188
        %v11215 = vpack.c.b16 %v11191, %v11190
        %v11216 = vpack.c.b16 %v11193, %v11192
        %v11217 = vpack.c.b16 %v11195, %v11194
        %v11218 = vpack.c.b16 %v11197, %v11196
        %v11219 = vpack.c.b16 %v11199, %v11198
        %v11220 = vpack.c.b16 %v11201, %v11200
        %v11221 = vpack.c.b16 %v11203, %v11202
        %v11222 = vpack.c.b16 %v11205, %v11204
        %v11223 = vpack.c.b16 %v11207, %v11206
        %v11256 = vunpack.c.l.b16 %v11160
        %v11257 = vunpack.c.l.b16 %v11161
        %v11258 = vunpack.c.l.b16 %v11162
        %v11259 = vunpack.c.l.b16 %v11163
        %v11260 = vunpack.c.l.b16 %v11164
        %v11261 = vunpack.c.l.b16 %v11165
        %v11262 = vunpack.c.l.b16 %v11166
        %v11263 = vunpack.c.l.b16 %v11167
        %v11264 = vunpack.c.l.b16 %v11168
        %v11265 = vunpack.c.l.b16 %v11169
        %v11266 = vunpack.c.l.b16 %v11170
        %v11267 = vunpack.c.l.b16 %v11171
        %v11268 = vunpack.c.l.b16 %v11172
        %v11269 = vunpack.c.l.b16 %v11173
        %v11270 = vunpack.c.l.b16 %v11174
        %v11271 = vunpack.c.l.b16 %v11175
        %v11272 = vpack.c.b16 %v11257, %v11256
        %v11273 = vpack.c.b16 %v11259, %v11258
        %v11274 = vpack.c.b16 %v11261, %v11260
        %v11275 = vpack.c.b16 %v11263, %v11262
        %v11276 = vpack.c.b16 %v11265, %v11264
        %v11277 = vpack.c.b16 %v11267, %v11266
        %v11278 = vpack.c.b16 %v11269, %v11268
        %v11279 = vpack.c.b16 %v11271, %v11270
        %11288 = vmatpush.bf16.msra.mxu0 %v11279
        %11289 = vmatpush.bf16.msra.mxu0 %v11278
        %11290 = vmatpush.bf16.msra.mxu0 %v11277
        %11291 = vmatpush.bf16.msra.mxu0 %v11276
        %11292 = vmatpush.bf16.msra.mxu0 %v11275
        %11293 = vmatpush.bf16.msra.mxu0 %v11274
        %11294 = vmatpush.bf16.msra.mxu0 %v11273
        %11295 = vmatpush.bf16.msra.mxu0 %v11272
        %11296 = vmatmul.bf16.gmra.mxu0 %v11208
        %v11297 = vpop.f32.mrf.mxu0
        %v11298 = vadd.f32 0.0, %v11297
        %v11299 = vpop.f32.mrf.mxu0
        %v11300 = vadd.f32 0.0, %v11299
        %11301 = vmatmul.bf16.gmra.mxu0 %v11209
        %v11302 = vpop.f32.mrf.mxu0
        %v11303 = vadd.f32 0.0, %v11302
        %v11304 = vpop.f32.mrf.mxu0
        %v11305 = vadd.f32 0.0, %v11304
        %11306 = vmatmul.bf16.gmra.mxu0 %v11210
        %v11307 = vpop.f32.mrf.mxu0
        %v11308 = vadd.f32 0.0, %v11307
        %v11309 = vpop.f32.mrf.mxu0
        %v11310 = vadd.f32 0.0, %v11309
        %11311 = vmatmul.bf16.gmra.mxu0 %v11211
        %v11312 = vpop.f32.mrf.mxu0
        %v11313 = vadd.f32 0.0, %v11312
        %v11314 = vpop.f32.mrf.mxu0
        %v11315 = vadd.f32 0.0, %v11314
        %11316 = vmatmul.bf16.gmra.mxu0 %v11212
        %v11317 = vpop.f32.mrf.mxu0
        %v11318 = vadd.f32 0.0, %v11317
        %v11319 = vpop.f32.mrf.mxu0
        %v11320 = vadd.f32 0.0, %v11319
        %11321 = vmatmul.bf16.gmra.mxu0 %v11213
        %v11322 = vpop.f32.mrf.mxu0
        %v11323 = vadd.f32 0.0, %v11322
        %v11324 = vpop.f32.mrf.mxu0
        %v11325 = vadd.f32 0.0, %v11324
        %11326 = vmatmul.bf16.gmra.mxu0 %v11214
        %v11327 = vpop.f32.mrf.mxu0
        %v11328 = vadd.f32 0.0, %v11327
        %v11329 = vpop.f32.mrf.mxu0
        %v11330 = vadd.f32 0.0, %v11329
        %11331 = vmatmul.bf16.gmra.mxu0 %v11215
        %v11332 = vpop.f32.mrf.mxu0
        %v11333 = vadd.f32 0.0, %v11332
        %v11334 = vpop.f32.mrf.mxu0
        %v11335 = vadd.f32 0.0, %v11334
        %11336 = vmatmul.bf16.gmra.mxu0 %v11216
        %v11337 = vpop.f32.mrf.mxu0
        %v11338 = vadd.f32 0.0, %v11337
        %v11339 = vpop.f32.mrf.mxu0
        %v11340 = vadd.f32 0.0, %v11339
        %11341 = vmatmul.bf16.gmra.mxu0 %v11217
        %v11342 = vpop.f32.mrf.mxu0
        %v11343 = vadd.f32 0.0, %v11342
        %v11344 = vpop.f32.mrf.mxu0
        %v11345 = vadd.f32 0.0, %v11344
        %11346 = vmatmul.bf16.gmra.mxu0 %v11218
        %v11347 = vpop.f32.mrf.mxu0
        %v11348 = vadd.f32 0.0, %v11347
        %v11349 = vpop.f32.mrf.mxu0
        %v11350 = vadd.f32 0.0, %v11349
        %11351 = vmatmul.bf16.gmra.mxu0 %v11219
        %v11352 = vpop.f32.mrf.mxu0
        %v11353 = vadd.f32 0.0, %v11352
        %v11354 = vpop.f32.mrf.mxu0
        %v11355 = vadd.f32 0.0, %v11354
        %11356 = vmatmul.bf16.gmra.mxu0 %v11220
        %v11357 = vpop.f32.mrf.mxu0
        %v11358 = vadd.f32 0.0, %v11357
        %v11359 = vpop.f32.mrf.mxu0
        %v11360 = vadd.f32 0.0, %v11359
        %11361 = vmatmul.bf16.gmra.mxu0 %v11221
        %v11362 = vpop.f32.mrf.mxu0
        %v11363 = vadd.f32 0.0, %v11362
        %v11364 = vpop.f32.mrf.mxu0
        %v11365 = vadd.f32 0.0, %v11364
        %11366 = vmatmul.bf16.gmra.mxu0 %v11222
        %v11367 = vpop.f32.mrf.mxu0
        %v11368 = vadd.f32 0.0, %v11367
        %v11369 = vpop.f32.mrf.mxu0
        %v11370 = vadd.f32 0.0, %v11369
        %11371 = vmatmul.bf16.gmra.mxu0 %v11223
        %v11372 = vpop.f32.mrf.mxu0
        %v11373 = vadd.f32 0.0, %v11372
        %v11374 = vpop.f32.mrf.mxu0
        %v11375 = vadd.f32 0.0, %v11374
        %11376 = vdwg.mxu0
        %v11377 = vadd.f32 %v10696, %v11298
        %v11378 = vadd.f32 %v10697, %v11300
        %v11379 = vadd.f32 %v10698, %v11303
        %v11380 = vadd.f32 %v10699, %v11305
        %v11381 = vadd.f32 %v10700, %v11308
        %v11382 = vadd.f32 %v10701, %v11310
        %v11383 = vadd.f32 %v10702, %v11313
        %v11384 = vadd.f32 %v10703, %v11315
        %v11385 = vadd.f32 %v10704, %v11318
        %v11386 = vadd.f32 %v10705, %v11320
        %v11387 = vadd.f32 %v10706, %v11323
        %v11388 = vadd.f32 %v10707, %v11325
        %v11389 = vadd.f32 %v10708, %v11328
        %v11390 = vadd.f32 %v10709, %v11330
        %v11391 = vadd.f32 %v10710, %v11333
        %v11392 = vadd.f32 %v10711, %v11335
        %v11393 = vadd.f32 %v10712, %v11338
        %v11394 = vadd.f32 %v10713, %v11340
        %v11395 = vadd.f32 %v10714, %v11343
        %v11396 = vadd.f32 %v10715, %v11345
        %v11397 = vadd.f32 %v10716, %v11348
        %v11398 = vadd.f32 %v10717, %v11350
        %v11399 = vadd.f32 %v10718, %v11353
        %v11400 = vadd.f32 %v10719, %v11355
        %v11401 = vadd.f32 %v10720, %v11358
        %v11402 = vadd.f32 %v10721, %v11360
        %v11403 = vadd.f32 %v10722, %v11363
        %v11404 = vadd.f32 %v10723, %v11365
        %v11405 = vadd.f32 %v10724, %v11368
        %v11406 = vadd.f32 %v10725, %v11370
        %v11407 = vadd.f32 %v10726, %v11373
        %v11408 = vadd.f32 %v10727, %v11375
        %v11409 = vld [vmem:[%s10414] sm:$0xe]
        %v11410 = vld [vmem:[%s10414 + $0xc] sm:$0xe]
        %v11411 = vld [vmem:[%s10414 + $0x18] sm:$0xe]
        %v11412 = vld [vmem:[%s10414 + $0x24] sm:$0xe]
        %v11413 = vld [vmem:[%s10414 + $0x30] sm:$0xe]
        %v11414 = vld [vmem:[%s10414 + $0x3c] sm:$0xe]
        %v11415 = vld [vmem:[%s10414 + $0x48] sm:$0xe]
        %v11416 = vld [vmem:[%s10414 + $0x54] sm:$0xe]
        %v11417 = vld [vmem:[%s10414 + $0x60] sm:$0xe]
        %v11418 = vld [vmem:[%s10414 + $0x6c] sm:$0xe]
        %v11419 = vld [vmem:[%s10414 + $0x78] sm:$0xe]
        %v11420 = vld [vmem:[%s10414 + $0x84] sm:$0xe]
        %v11421 = vld [vmem:[%s10414 + $0x90] sm:$0xe]
        %v11422 = vld [vmem:[%s10414 + $0x9c] sm:$0xe]
        %v11423 = vld [vmem:[%s10414 + $0xa8] sm:$0xe]
        %v11424 = vld [vmem:[%s10414 + $0xb4] sm:$0xe]
        %v11473 = vrot.slane %v11409, 5
        %v11474 = vrot.slane %v11473, 4
        %v11475 = vrot.slane %v10729, 5
        %v11476 = vsel %vm1724, %v11474, %v11475
        %v11477 = vrot.slane %v11475, 4
        %v11478 = vrot.slane %v10730, 5
        %v11479 = vsel %vm1724, %v11477, %v11478
        %v11480 = vrot.slane %v11410, 5
        %v11481 = vrot.slane %v11480, 4
        %v11482 = vrot.slane %v10732, 5
        %v11483 = vsel %vm1724, %v11481, %v11482
        %v11484 = vrot.slane %v11482, 4
        %v11485 = vrot.slane %v10733, 5
        %v11486 = vsel %vm1724, %v11484, %v11485
        %v11487 = vrot.slane %v11411, 5
        %v11488 = vrot.slane %v11487, 4
        %v11489 = vrot.slane %v10735, 5
        %v11490 = vsel %vm1724, %v11488, %v11489
        %v11491 = vrot.slane %v11489, 4
        %v11492 = vrot.slane %v10736, 5
        %v11493 = vsel %vm1724, %v11491, %v11492
        %v11494 = vrot.slane %v11412, 5
        %v11495 = vrot.slane %v11494, 4
        %v11496 = vrot.slane %v10738, 5
        %v11497 = vsel %vm1724, %v11495, %v11496
        %v11498 = vrot.slane %v11496, 4
        %v11499 = vrot.slane %v10739, 5
        %v11500 = vsel %vm1724, %v11498, %v11499
        %v11501 = vrot.slane %v11413, 5
        %v11502 = vrot.slane %v11501, 4
        %v11503 = vrot.slane %v10741, 5
        %v11504 = vsel %vm1724, %v11502, %v11503
        %v11505 = vrot.slane %v11503, 4
        %v11506 = vrot.slane %v10742, 5
        %v11507 = vsel %vm1724, %v11505, %v11506
        %v11508 = vrot.slane %v11414, 5
        %v11509 = vrot.slane %v11508, 4
        %v11510 = vrot.slane %v10744, 5
        %v11511 = vsel %vm1724, %v11509, %v11510
        %v11512 = vrot.slane %v11510, 4
        %v11513 = vrot.slane %v10745, 5
        %v11514 = vsel %vm1724, %v11512, %v11513
        %v11515 = vrot.slane %v11415, 5
        %v11516 = vrot.slane %v11515, 4
        %v11517 = vrot.slane %v10747, 5
        %v11518 = vsel %vm1724, %v11516, %v11517
        %v11519 = vrot.slane %v11517, 4
        %v11520 = vrot.slane %v10748, 5
        %v11521 = vsel %vm1724, %v11519, %v11520
        %v11522 = vrot.slane %v11416, 5
        %v11523 = vrot.slane %v11522, 4
        %v11524 = vrot.slane %v10750, 5
        %v11525 = vsel %vm1724, %v11523, %v11524
        %v11526 = vrot.slane %v11524, 4
        %v11527 = vrot.slane %v10751, 5
        %v11528 = vsel %vm1724, %v11526, %v11527
        %v11529 = vrot.slane %v11417, 5
        %v11530 = vrot.slane %v11529, 4
        %v11531 = vrot.slane %v10753, 5
        %v11532 = vsel %vm1724, %v11530, %v11531
        %v11533 = vrot.slane %v11531, 4
        %v11534 = vrot.slane %v10754, 5
        %v11535 = vsel %vm1724, %v11533, %v11534
        %v11536 = vrot.slane %v11418, 5
        %v11537 = vrot.slane %v11536, 4
        %v11538 = vrot.slane %v10756, 5
        %v11539 = vsel %vm1724, %v11537, %v11538
        %v11540 = vrot.slane %v11538, 4
        %v11541 = vrot.slane %v10757, 5
        %v11542 = vsel %vm1724, %v11540, %v11541
        %v11543 = vrot.slane %v11419, 5
        %v11544 = vrot.slane %v11543, 4
        %v11545 = vrot.slane %v10759, 5
        %v11546 = vsel %vm1724, %v11544, %v11545
        %v11547 = vrot.slane %v11545, 4
        %v11548 = vrot.slane %v10760, 5
        %v11549 = vsel %vm1724, %v11547, %v11548
        %v11550 = vrot.slane %v11420, 5
        %v11551 = vrot.slane %v11550, 4
        %v11552 = vrot.slane %v10762, 5
        %v11553 = vsel %vm1724, %v11551, %v11552
        %v11554 = vrot.slane %v11552, 4
        %v11555 = vrot.slane %v10763, 5
        %v11556 = vsel %vm1724, %v11554, %v11555
        %v11557 = vrot.slane %v11421, 5
        %v11558 = vrot.slane %v11557, 4
        %v11559 = vrot.slane %v10765, 5
        %v11560 = vsel %vm1724, %v11558, %v11559
        %v11561 = vrot.slane %v11559, 4
        %v11562 = vrot.slane %v10766, 5
        %v11563 = vsel %vm1724, %v11561, %v11562
        %v11564 = vrot.slane %v11422, 5
        %v11565 = vrot.slane %v11564, 4
        %v11566 = vrot.slane %v10768, 5
        %v11567 = vsel %vm1724, %v11565, %v11566
        %v11568 = vrot.slane %v11566, 4
        %v11569 = vrot.slane %v10769, 5
        %v11570 = vsel %vm1724, %v11568, %v11569
        %v11571 = vrot.slane %v11423, 5
        %v11572 = vrot.slane %v11571, 4
        %v11573 = vrot.slane %v10771, 5
        %v11574 = vsel %vm1724, %v11572, %v11573
        %v11575 = vrot.slane %v11573, 4
        %v11576 = vrot.slane %v10772, 5
        %v11577 = vsel %vm1724, %v11575, %v11576
        %v11578 = vrot.slane %v11424, 5
        %v11579 = vrot.slane %v11578, 4
        %v11580 = vrot.slane %v10774, 5
        %v11581 = vsel %vm1724, %v11579, %v11580
        %v11582 = vrot.slane %v11580, 4
        %v11583 = vrot.slane %v10775, 5
        %v11584 = vsel %vm1724, %v11582, %v11583
        %v11585 = vld [vmem:[#allocation10 + $0x200] sm:$0xf]
        %v11586 = vld [vmem:[#allocation10 + $0x204] sm:$0xf]
        %v11587 = vld [vmem:[#allocation10 + $0x208] sm:$0xf]
        %v11588 = vld [vmem:[#allocation10 + $0x20c] sm:$0xf]
        %v11589 = vld [vmem:[#allocation10 + $0x210] sm:$0xf]
        %v11590 = vld [vmem:[#allocation10 + $0x214] sm:$0xf]
        %v11591 = vld [vmem:[#allocation10 + $0x218] sm:$0xf]
        %v11592 = vld [vmem:[#allocation10 + $0x21c] sm:$0xf]
        %v11593 = vld [vmem:[#allocation10 + $0x220] sm:$0xf]
        %v11594 = vld [vmem:[#allocation10 + $0x224] sm:$0xf]
        %v11595 = vld [vmem:[#allocation10 + $0x228] sm:$0xf]
        %v11596 = vld [vmem:[#allocation10 + $0x22c] sm:$0xf]
        %v11597 = vld [vmem:[#allocation10 + $0x230] sm:$0xf]
        %v11598 = vld [vmem:[#allocation10 + $0x234] sm:$0xf]
        %v11599 = vld [vmem:[#allocation10 + $0x238] sm:$0xf]
        %v11600 = vld [vmem:[#allocation10 + $0x23c] sm:$0xf]
        %v11601 = vunpack.c.l.b16 %v11476
        %v11602 = vunpack.c.l.b16 %v11479
        %v11603 = vunpack.c.l.b16 %v11483
        %v11604 = vunpack.c.l.b16 %v11486
        %v11605 = vunpack.c.l.b16 %v11490
        %v11606 = vunpack.c.l.b16 %v11493
        %v11607 = vunpack.c.l.b16 %v11497
        %v11608 = vunpack.c.l.b16 %v11500
        %v11609 = vunpack.c.l.b16 %v11504
        %v11610 = vunpack.c.l.b16 %v11507
        %v11611 = vunpack.c.l.b16 %v11511
        %v11612 = vunpack.c.l.b16 %v11514
        %v11613 = vunpack.c.l.b16 %v11518
        %v11614 = vunpack.c.l.b16 %v11521
        %v11615 = vunpack.c.l.b16 %v11525
        %v11616 = vunpack.c.l.b16 %v11528
        %v11617 = vunpack.c.l.b16 %v11532
        %v11618 = vunpack.c.l.b16 %v11535
        %v11619 = vunpack.c.l.b16 %v11539
        %v11620 = vunpack.c.l.b16 %v11542
        %v11621 = vunpack.c.l.b16 %v11546
        %v11622 = vunpack.c.l.b16 %v11549
        %v11623 = vunpack.c.l.b16 %v11553
        %v11624 = vunpack.c.l.b16 %v11556
        %v11625 = vunpack.c.l.b16 %v11560
        %v11626 = vunpack.c.l.b16 %v11563
        %v11627 = vunpack.c.l.b16 %v11567
        %v11628 = vunpack.c.l.b16 %v11570
        %v11629 = vunpack.c.l.b16 %v11574
        %v11630 = vunpack.c.l.b16 %v11577
        %v11631 = vunpack.c.l.b16 %v11581
        %v11632 = vunpack.c.l.b16 %v11584
        %v11633 = vpack.c.b16 %v11602, %v11601
        %v11634 = vpack.c.b16 %v11604, %v11603
        %v11635 = vpack.c.b16 %v11606, %v11605
        %v11636 = vpack.c.b16 %v11608, %v11607
        %v11637 = vpack.c.b16 %v11610, %v11609
        %v11638 = vpack.c.b16 %v11612, %v11611
        %v11639 = vpack.c.b16 %v11614, %v11613
        %v11640 = vpack.c.b16 %v11616, %v11615
        %v11641 = vpack.c.b16 %v11618, %v11617
        %v11642 = vpack.c.b16 %v11620, %v11619
        %v11643 = vpack.c.b16 %v11622, %v11621
        %v11644 = vpack.c.b16 %v11624, %v11623
        %v11645 = vpack.c.b16 %v11626, %v11625
        %v11646 = vpack.c.b16 %v11628, %v11627
        %v11647 = vpack.c.b16 %v11630, %v11629
        %v11648 = vpack.c.b16 %v11632, %v11631
        %v11681 = vunpack.c.l.b16 %v11585
        %v11682 = vunpack.c.l.b16 %v11586
        %v11683 = vunpack.c.l.b16 %v11587
        %v11684 = vunpack.c.l.b16 %v11588
        %v11685 = vunpack.c.l.b16 %v11589
        %v11686 = vunpack.c.l.b16 %v11590
        %v11687 = vunpack.c.l.b16 %v11591
        %v11688 = vunpack.c.l.b16 %v11592
        %v11689 = vunpack.c.l.b16 %v11593
        %v11690 = vunpack.c.l.b16 %v11594
        %v11691 = vunpack.c.l.b16 %v11595
        %v11692 = vunpack.c.l.b16 %v11596
        %v11693 = vunpack.c.l.b16 %v11597
        %v11694 = vunpack.c.l.b16 %v11598
        %v11695 = vunpack.c.l.b16 %v11599
        %v11696 = vunpack.c.l.b16 %v11600
        %v11697 = vpack.c.b16 %v11682, %v11681
        %v11698 = vpack.c.b16 %v11684, %v11683
        %v11699 = vpack.c.b16 %v11686, %v11685
        %v11700 = vpack.c.b16 %v11688, %v11687
        %v11701 = vpack.c.b16 %v11690, %v11689
        %v11702 = vpack.c.b16 %v11692, %v11691
        %v11703 = vpack.c.b16 %v11694, %v11693
        %v11704 = vpack.c.b16 %v11696, %v11695
        %11713 = vmatpush.bf16.msra.mxu0 %v11704
        %11714 = vmatpush.bf16.msra.mxu0 %v11703
        %11715 = vmatpush.bf16.msra.mxu0 %v11702
        %11716 = vmatpush.bf16.msra.mxu0 %v11701
        %11717 = vmatpush.bf16.msra.mxu0 %v11700
        %11718 = vmatpush.bf16.msra.mxu0 %v11699
        %11719 = vmatpush.bf16.msra.mxu0 %v11698
        %11720 = vmatpush.bf16.msra.mxu0 %v11697
        %11721 = vmatmul.bf16.gmra.mxu0 %v11633
        %v11722 = vpop.f32.mrf.mxu0
        %v11723 = vadd.f32 0.0, %v11722
        %v11724 = vpop.f32.mrf.mxu0
        %v11725 = vadd.f32 0.0, %v11724
        %11726 = vmatmul.bf16.gmra.mxu0 %v11634
        %v11727 = vpop.f32.mrf.mxu0
        %v11728 = vadd.f32 0.0, %v11727
        %v11729 = vpop.f32.mrf.mxu0
        %v11730 = vadd.f32 0.0, %v11729
        %11731 = vmatmul.bf16.gmra.mxu0 %v11635
        %v11732 = vpop.f32.mrf.mxu0
        %v11733 = vadd.f32 0.0, %v11732
        %v11734 = vpop.f32.mrf.mxu0
        %v11735 = vadd.f32 0.0, %v11734
        %11736 = vmatmul.bf16.gmra.mxu0 %v11636
        %v11737 = vpop.f32.mrf.mxu0
        %v11738 = vadd.f32 0.0, %v11737
        %v11739 = vpop.f32.mrf.mxu0
        %v11740 = vadd.f32 0.0, %v11739
        %11741 = vmatmul.bf16.gmra.mxu0 %v11637
        %v11742 = vpop.f32.mrf.mxu0
        %v11743 = vadd.f32 0.0, %v11742
        %v11744 = vpop.f32.mrf.mxu0
        %v11745 = vadd.f32 0.0, %v11744
        %11746 = vmatmul.bf16.gmra.mxu0 %v11638
        %v11747 = vpop.f32.mrf.mxu0
        %v11748 = vadd.f32 0.0, %v11747
        %v11749 = vpop.f32.mrf.mxu0
        %v11750 = vadd.f32 0.0, %v11749
        %11751 = vmatmul.bf16.gmra.mxu0 %v11639
        %v11752 = vpop.f32.mrf.mxu0
        %v11753 = vadd.f32 0.0, %v11752
        %v11754 = vpop.f32.mrf.mxu0
        %v11755 = vadd.f32 0.0, %v11754
        %11756 = vmatmul.bf16.gmra.mxu0 %v11640
        %v11757 = vpop.f32.mrf.mxu0
        %v11758 = vadd.f32 0.0, %v11757
        %v11759 = vpop.f32.mrf.mxu0
        %v11760 = vadd.f32 0.0, %v11759
        %11761 = vmatmul.bf16.gmra.mxu0 %v11641
        %v11762 = vpop.f32.mrf.mxu0
        %v11763 = vadd.f32 0.0, %v11762
        %v11764 = vpop.f32.mrf.mxu0
        %v11765 = vadd.f32 0.0, %v11764
        %11766 = vmatmul.bf16.gmra.mxu0 %v11642
        %v11767 = vpop.f32.mrf.mxu0
        %v11768 = vadd.f32 0.0, %v11767
        %v11769 = vpop.f32.mrf.mxu0
        %v11770 = vadd.f32 0.0, %v11769
        %11771 = vmatmul.bf16.gmra.mxu0 %v11643
        %v11772 = vpop.f32.mrf.mxu0
        %v11773 = vadd.f32 0.0, %v11772
        %v11774 = vpop.f32.mrf.mxu0
        %v11775 = vadd.f32 0.0, %v11774
        %11776 = vmatmul.bf16.gmra.mxu0 %v11644
        %v11777 = vpop.f32.mrf.mxu0
        %v11778 = vadd.f32 0.0, %v11777
        %v11779 = vpop.f32.mrf.mxu0
        %v11780 = vadd.f32 0.0, %v11779
        %11781 = vmatmul.bf16.gmra.mxu0 %v11645
        %v11782 = vpop.f32.mrf.mxu0
        %v11783 = vadd.f32 0.0, %v11782
        %v11784 = vpop.f32.mrf.mxu0
        %v11785 = vadd.f32 0.0, %v11784
        %11786 = vmatmul.bf16.gmra.mxu0 %v11646
        %v11787 = vpop.f32.mrf.mxu0
        %v11788 = vadd.f32 0.0, %v11787
        %v11789 = vpop.f32.mrf.mxu0
        %v11790 = vadd.f32 0.0, %v11789
        %11791 = vmatmul.bf16.gmra.mxu0 %v11647
        %v11792 = vpop.f32.mrf.mxu0
        %v11793 = vadd.f32 0.0, %v11792
        %v11794 = vpop.f32.mrf.mxu0
        %v11795 = vadd.f32 0.0, %v11794
        %11796 = vmatmul.bf16.gmra.mxu0 %v11648
        %v11797 = vpop.f32.mrf.mxu0
        %v11798 = vadd.f32 0.0, %v11797
        %v11799 = vpop.f32.mrf.mxu0
        %v11800 = vadd.f32 0.0, %v11799
        %11801 = vdwg.mxu0
        %v11802 = vadd.f32 %v11377, %v11723
        %v11803 = vadd.f32 %v11378, %v11725
        %v11804 = vadd.f32 %v11379, %v11728
        %v11805 = vadd.f32 %v11380, %v11730
        %v11806 = vadd.f32 %v11381, %v11733
        %v11807 = vadd.f32 %v11382, %v11735
        %v11808 = vadd.f32 %v11383, %v11738
        %v11809 = vadd.f32 %v11384, %v11740
        %v11810 = vadd.f32 %v11385, %v11743
        %v11811 = vadd.f32 %v11386, %v11745
        %v11812 = vadd.f32 %v11387, %v11748
        %v11813 = vadd.f32 %v11388, %v11750
        %v11814 = vadd.f32 %v11389, %v11753
        %v11815 = vadd.f32 %v11390, %v11755
        %v11816 = vadd.f32 %v11391, %v11758
        %v11817 = vadd.f32 %v11392, %v11760
        %v11818 = vadd.f32 %v11393, %v11763
        %v11819 = vadd.f32 %v11394, %v11765
        %v11820 = vadd.f32 %v11395, %v11768
        %v11821 = vadd.f32 %v11396, %v11770
        %v11822 = vadd.f32 %v11397, %v11773
        %v11823 = vadd.f32 %v11398, %v11775
        %v11824 = vadd.f32 %v11399, %v11778
        %v11825 = vadd.f32 %v11400, %v11780
        %v11826 = vadd.f32 %v11401, %v11783
        %v11827 = vadd.f32 %v11402, %v11785
        %v11828 = vadd.f32 %v11403, %v11788
        %v11829 = vadd.f32 %v11404, %v11790
        %v11830 = vadd.f32 %v11405, %v11793
        %v11831 = vadd.f32 %v11406, %v11795
        %v11832 = vadd.f32 %v11407, %v11798
        %v11833 = vadd.f32 %v11408, %v11800
        %v11834 = vpack.c.bf16 %v11802, %v11802
        %v11835 = vpack.c.bf16 %v11803, %v11803
        %v11836 = vpack.c.bf16 %v11804, %v11804
        %v11837 = vpack.c.bf16 %v11805, %v11805
        %v11838 = vpack.c.bf16 %v11806, %v11806
        %v11839 = vpack.c.bf16 %v11807, %v11807
        %v11840 = vpack.c.bf16 %v11808, %v11808
        %v11841 = vpack.c.bf16 %v11809, %v11809
        %v11842 = vpack.c.bf16 %v11810, %v11810
        %v11843 = vpack.c.bf16 %v11811, %v11811
        %v11844 = vpack.c.bf16 %v11812, %v11812
        %v11845 = vpack.c.bf16 %v11813, %v11813
        %v11846 = vpack.c.bf16 %v11814, %v11814
        %v11847 = vpack.c.bf16 %v11815, %v11815
        %v11848 = vpack.c.bf16 %v11816, %v11816
        %v11849 = vpack.c.bf16 %v11817, %v11817
        %v11850 = vpack.c.bf16 %v11818, %v11818
        %v11851 = vpack.c.bf16 %v11819, %v11819
        %v11852 = vpack.c.bf16 %v11820, %v11820
        %v11853 = vpack.c.bf16 %v11821, %v11821
        %v11854 = vpack.c.bf16 %v11822, %v11822
        %v11855 = vpack.c.bf16 %v11823, %v11823
        %v11856 = vpack.c.bf16 %v11824, %v11824
        %v11857 = vpack.c.bf16 %v11825, %v11825
        %v11858 = vpack.c.bf16 %v11826, %v11826
        %v11859 = vpack.c.bf16 %v11827, %v11827
        %v11860 = vpack.c.bf16 %v11828, %v11828
        %v11861 = vpack.c.bf16 %v11829, %v11829
        %v11862 = vpack.c.bf16 %v11830, %v11830
        %v11863 = vpack.c.bf16 %v11831, %v11831
        %v11864 = vpack.c.bf16 %v11832, %v11832
        %v11865 = vpack.c.bf16 %v11833, %v11833
        %11866 = vst [vmem:[%s304] sm:$0xf] %v11834
        %11867 = vst [vmem:[%s304 + $0x4] sm:$0xf] %v11835
        %11868 = vst [vmem:[%s304 + $0x8] sm:$0xf] %v11836
        %11869 = vst [vmem:[%s304 + $0xc] sm:$0xf] %v11837
        %11870 = vst [vmem:[%s304 + $0x10] sm:$0xf] %v11838
        %11871 = vst [vmem:[%s304 + $0x14] sm:$0xf] %v11839
        %11872 = vst [vmem:[%s304 + $0x18] sm:$0xf] %v11840
        %11873 = vst [vmem:[%s304 + $0x1c] sm:$0xf] %v11841
        %11874 = vst [vmem:[%s304 + $0x20] sm:$0xf] %v11842
        %11875 = vst [vmem:[%s304 + $0x24] sm:$0xf] %v11843
        %11876 = vst [vmem:[%s304 + $0x28] sm:$0xf] %v11844
        %11877 = vst [vmem:[%s304 + $0x2c] sm:$0xf] %v11845
        %11878 = vst [vmem:[%s304 + $0x30] sm:$0xf] %v11846
        %11879 = vst [vmem:[%s304 + $0x34] sm:$0xf] %v11847
        %11880 = vst [vmem:[%s304 + $0x38] sm:$0xf] %v11848
        %11881 = vst [vmem:[%s304 + $0x3c] sm:$0xf] %v11849
        %11882 = vst [vmem:[%s304 + $0x40] sm:$0xf] %v11850
        %11883 = vst [vmem:[%s304 + $0x44] sm:$0xf] %v11851
        %11884 = vst [vmem:[%s304 + $0x48] sm:$0xf] %v11852
        %11885 = vst [vmem:[%s304 + $0x4c] sm:$0xf] %v11853
        %11886 = vst [vmem:[%s304 + $0x50] sm:$0xf] %v11854
        %11887 = vst [vmem:[%s304 + $0x54] sm:$0xf] %v11855
        %11888 = vst [vmem:[%s304 + $0x58] sm:$0xf] %v11856
        %11889 = vst [vmem:[%s304 + $0x5c] sm:$0xf] %v11857
        %11890 = vst [vmem:[%s304 + $0x60] sm:$0xf] %v11858
        %11891 = vst [vmem:[%s304 + $0x64] sm:$0xf] %v11859
        %11892 = vst [vmem:[%s304 + $0x68] sm:$0xf] %v11860
        %11893 = vst [vmem:[%s304 + $0x6c] sm:$0xf] %v11861
        %11894 = vst [vmem:[%s304 + $0x70] sm:$0xf] %v11862
        %11895 = vst [vmem:[%s304 + $0x74] sm:$0xf] %v11863
        %11896 = vst [vmem:[%s304 + $0x78] sm:$0xf] %v11864
        %11897 = vst [vmem:[%s304 + $0x7c] sm:$0xf] %v11865
        %s11898 = sand.u32 %s163, 1
        %s11899 = scalar_lea.sflag [#allocation7], %s11898
        %s11900 = sand.u32 %s163, 1
        %s11901 = smul.addr %s11900, 128
        %s11902 = scalar_lea.vmem [#allocation11], %s11901
        // Predicated region
        $region57: #{tpu_custom_call.1} parent=43 // pred_check
          %p11903 = pneg %p173
        $region58: #{tpu_custom_call.1} parent=43 // pred_check_branch
          %11905 = sbr.rel (%p11903) target = $region60
        $region59: #{tpu_custom_call.1} parent=43 // pred_region
          %11907 = vsyncadd %s11899, 0
          %s11908 = smul.addr %s24, 32
          %s11909 = smul.addr %s11908, 4
          %s11910 = scalar_lea.hbm %s6, %s11909
          %s11911 = sshll.u32 %s11902, 4
          %s11912 = int_to_ptr.vmem [resolvable:$true] %s11911
          %s11913 = sshll.u32 %s11910, 4
          %s11914 = int_to_ptr.hbm [resolvable:$true] %s11913
          %11919 = dma.vmem_to_hbm [thread:$0]  %s11912, 2048, %s11914, %s11899, 64, 64, 4
        $region60: #{tpu_custom_call.1} parent=43 // pred_fallthru
          _
      $region44: #{tpu_custom_call.1} parent=5 // pred_fallthru
        _
      %p11920 = scmp.le.s32.totalorder 2, %s19
      // Predicated region
      $region61: #{tpu_custom_call.1} parent=5 // pred_check
        %p11921 = pneg %p11920
      $region62: #{tpu_custom_call.1} parent=5 // pred_check_branch
        %11923 = sbr.rel (%p11921) target = $region64
      $region63: #{tpu_custom_call.1} parent=5 // pred_region
        %s11924 = ssub.s32 %s19, 2
        // Predicated region
        $region65: #{tpu_custom_call.1} parent=63 // pred_check
          %p11925 = pneg %p179
        $region66: #{tpu_custom_call.1} parent=63 // pred_check_branch
          %11927 = sbr.rel (%p11925) target = $region68
        $region67: #{tpu_custom_call.1} parent=63 // pred_region
          %s11928 = sand.u32 %s164, 1
          %s11929 = scalar_lea.sflag [#allocation7], %s11928
          %s11930 = sand.u32 %s164, 1
          %s11931 = smul.addr %s11930, 128
          %s11932 = scalar_lea.vmem [#allocation11], %s11931
          %11934 = dma.done %s11929, 2048
        $region68: #{tpu_custom_call.1} parent=63 // pred_fallthru
          _
      $region64: #{tpu_custom_call.1} parent=5 // pred_fallthru
        _
    $region6: #{tpu_custom_call.1} parent=1 // loop_footer
      %s23 = sadd.s32 1, %s19
    $region7: #{tpu_custom_call.1} parent=1 // loop_footer_branch
      %18 = sbr.rel target = $region3
    $region8: #{tpu_custom_call.1} parent=1 // loop_exit
      _
    %11935 = vsyncpa [#allocation6], 1
    %s11936 = scalar_lea.sflag [#allocation6], 1
    %11937 = vsyncpa %s11936, 1
    %11938 = vsyncpa [#allocation9], 1
    %11939 = vsyncpa [#allocation7], 1
    %s11940 = scalar_lea.sflag [#allocation7], 1
    %11941 = vsyncpa %s11940, 1

</llo_original>
